<compile_context>
chip_gen: v5e
topology: v5e:2x2
jax: 0.10.0
libtpu: 0.0.40
codegen_flags: <defaults>
</compile_context>

<pallas_src>
import jax
import jax.numpy as jnp
from jax.experimental import pallas as pl
from jax.experimental.pallas import tpu as pltpu


def _gelu_kernel(x_ref, o_ref):
    x = x_ref[...]
    inv_sqrt2 = jnp.asarray(0.7071067811865476, dtype=x.dtype)
    half = jnp.asarray(0.5, dtype=x.dtype)
    one = jnp.asarray(1.0, dtype=x.dtype)
    # exact GELU: 0.5 * x * (1 + erf(x / sqrt(2)))
    o_ref[...] = half * x * (one + jax.lax.erf(x * inv_sqrt2))


def _choose_row_tile(
    rows,
    cols,
    itemsize,
    vmem_budget_bytes=12 * 1024 * 1024,
    min_steps=4,
    max_steps=16,
):
    """Pick a row tile (multiple of 8) giving a grid depth of ~min_steps..max_steps.

    A deeper grid hides pipeline fill/drain (v5e/v6e) and gives each v7x
    TensorCore >=2 steps so DMA and compute overlap.  Double-buffered in+out
    blocks are kept under `vmem_budget_bytes` (safe on all three generations).
    """

    def fits(t):
        # 2 (in + out) x 2 (double-buffered) blocks resident in VMEM.
        return 4 * t * cols * itemsize <= vmem_budget_bytes

    # Pass 1: exact divisors of `rows` (no padding needed), largest tile whose
    # grid depth lands in the target range.
    exact = [t for t in range(8, rows + 1, 8) if rows % t == 0 and fits(t)]
    for t in sorted(exact, reverse=True):
        steps = rows // t
        if min_steps <= steps <= max_steps:
            return t

    # Pass 2: allow padding; try shallowest grid first (largest tile) within
    # the target depth range.
    for steps in range(min_steps, max_steps + 1):
        t = -(-rows // steps)          # ceil(rows / steps)
        t = -(-t // 8) * 8             # round up to multiple of 8
        if t >= 8 and fits(t):
            return t

    # Pass 3: very large inputs -- largest multiple-of-8 tile that fits the
    # budget (grid just gets deeper than max_steps, which is still correct and
    # pipelined).
    best = 8
    t = 8
    while fits(t) and t <= rows:
        best = t
        t += 8
    return best


def gelu_pallas(x):
    """Exact GELU over an NHWC tensor using a Pallas elementwise kernel."""
    orig_shape = x.shape
    c = orig_shape[-1]
    rows = 1
    for d in orig_shape[:-1]:
        rows *= d
    x2d = x.reshape(rows, c)

    # Channel axis must be lane-aligned for unmasked full-width stores.
    assert c % 128 == 0, "channel axis must be a multiple of 128"

    itemsize = jnp.dtype(x.dtype).itemsize
    row_tile = _choose_row_tile(rows, c, itemsize)

    # Pad rows up to a multiple of the tile if needed (GELU(0) == 0, benign).
    padded_rows = -(-rows // row_tile) * row_tile
    if padded_rows != rows:
        x2d = jnp.pad(x2d, ((0, padded_rows - rows), (0, 0)))

    grid = (padded_rows // row_tile,)

    # Advisory cost hint for XLA's scheduler (erf lowers to a ~20-op rational
    # polynomial on the VPU).
    n_elems = padded_rows * c
    cost = pl.CostEstimate(
        flops=20 * n_elems,
        transcendentals=n_elems,
        bytes_accessed=2 * n_elems * itemsize,
    )

    out = pl.pallas_call(
        _gelu_kernel,
        out_shape=jax.ShapeDtypeStruct((padded_rows, c), x.dtype),
        grid=grid,
        in_specs=[pl.BlockSpec((row_tile, c), lambda i: (i, 0))],
        out_specs=pl.BlockSpec((row_tile, c), lambda i: (i, 0)),
        compiler_params=pltpu.CompilerParams(
            dimension_semantics=("parallel",)
        ),
        cost_estimate=cost,
    )(x2d)

    if padded_rows != rows:
        out = out[:rows]
    return out.reshape(orig_shape)


if __name__ == "__main__":
    key = jax.random.PRNGKey(0)
    # input shape matches the PyTorch module's x72: [1, 28, 28, 1536]
    x = jax.random.normal(key, (1, 28, 28, 1536), dtype=jnp.float32)

    y = gelu_pallas(x)
    y = jax.block_until_ready(y)

    # sanity check against plain JAX exact GELU (== torch GELU approximate='none')
    y_ref = jax.nn.gelu(x, approximate=False)
    assert y.shape == x.shape
    assert jnp.allclose(y, y_ref, atol=1e-5, rtol=1e-5)

    print("KERNEL_OK")
</pallas_src>

<mosaic_0001>
module attributes {stable_mosaic.version = 11 : i64} {
  func.func @_gelu_kernel(%arg0: i32, %arg1: memref<112x1536xf32, #tpu.memory_space<vmem>>, %arg2: memref<112x1536xf32, #tpu.memory_space<vmem>>) attributes {dimension_semantics = [#tpu.dimension_semantics<parallel>], iteration_bounds = array<i64: 7>, scalar_prefetch = 0 : i64, scratch_operands = 0 : i64, tpu.core_type = #tpu.core_type<tc>, window_params = [{transform_indices = @transform_0, window_bounds = array<i64: 112, 1536>}, {transform_indices = @transform_1, window_bounds = array<i64: 112, 1536>}]} {
    %c0 = arith.constant 0 : index
    %c0_0 = arith.constant 0 : index
    %0 = vector.load %arg1[%c0, %c0_0] : memref<112x1536xf32, #tpu.memory_space<vmem>>, vector<112x1536xf32>
    %cst = arith.constant 5.000000e-01 : f32
    %1 = vector.broadcast %cst : f32 to vector<112x1536xf32>
    %2 = arith.mulf %1, %0 : vector<112x1536xf32>
    %cst_1 = arith.constant 0.707106769 : f32
    %3 = vector.broadcast %cst_1 : f32 to vector<112x1536xf32>
    %4 = arith.mulf %0, %3 : vector<112x1536xf32>
    %5 = math.erf %4 : vector<112x1536xf32>
    %cst_2 = arith.constant 1.000000e+00 : f32
    %6 = vector.broadcast %cst_2 : f32 to vector<112x1536xf32>
    %7 = arith.addf %6, %5 : vector<112x1536xf32>
    %8 = arith.mulf %2, %7 : vector<112x1536xf32>
    %c0_3 = arith.constant 0 : index
    %c0_4 = arith.constant 0 : index
    %9 = vector.load %arg2[%c0_3, %c0_4] : memref<112x1536xf32, #tpu.memory_space<vmem>>, vector<112x1536xf32>
    tpu.vector_store %arg2[%c0_3, %c0_4], %8 {strides = array<i32>} : memref<112x1536xf32, #tpu.memory_space<vmem>>, vector<112x1536xf32>,
    return
  }
  func.func @transform_0(%arg0: i32) -> (i32, i32) {
    %c0_i32 = arith.constant 0 : i32
    %c0_i32_0 = arith.constant 0 : i32
    return %arg0, %c0_i32 : i32, i32
  }
  func.func @transform_1(%arg0: i32) -> (i32, i32) {
    %c0_i32 = arith.constant 0 : i32
    %c0_i32_0 = arith.constant 0 : i32
    return %arg0, %c0_i32 : i32, i32
  }
}

</mosaic_0001>

<llo_original>
// kernel: tpu_custom_call.1
$region0: #{tpu_custom_call.1}
  #allocation0 [shape = 'u32[]', space=smem, size = 0x4, offset = 0x4, fixed_abs, tag = 'smem constant byte address 0x4 - core index']
  #allocation1 [shape = 'u32[72,128]{1,0:T(1,128)}', space=vmem, size = 0x9000, scoped, tag = 'internal scratch']
  %s0 = inlined_call_operand.hbm [shape: f32[784,1536], index: 0, kind: input, shape index: {}]
  %s1 = inlined_call_operand.hbm [shape: f32[784,1536], index: 1, kind: output, shape index: {}]
  %s2 = sld [smem:[#allocation0]]
  $region41: #{tpu_custom_call.1} parent=0
    _
  %s4 = ssub.s32 1, %s2
  %s5 = scalar_select 0, %s4, %s2
  $region1: #{tpu_custom_call.1} parent=0
    #allocation2 [shape = 'u8[1376256]{0}', space=vmem, size = 0x150000, scoped, tag = 'input window, operand 0']
    #allocation3 [shape = 's32[2]{0}', space=sflag, size = 0x8, scoped, tag = 'scoped memory for tpu_custom_call.1']
    #allocation4 [shape = 's32[2]{0}', space=sflag, size = 0x8, scoped, tag = 'scoped memory for tpu_custom_call.1']
    #allocation5 [shape = 'u8[1376256]{0}', space=vmem, size = 0x150000, scoped, tag = 'output window, operand 0']
    %6 = vsyncpa [#allocation3], 0
    %s7 = scalar_lea.sflag [#allocation3], 1
    %8 = vsyncpa %s7, 0
    %9 = vsyncpa [#allocation4], 0
    %s10 = scalar_lea.sflag [#allocation4], 1
    %11 = vsyncpa %s10, 0
    loop: start=0, step=1, limit=9
    $region2: #{tpu_custom_call.1} parent=1 // loop_pre_header
      _
    $region3: #{tpu_custom_call.1} parent=1 // loop_header
      %s13 = sphi 0, %s17
      %p14 = scmp.ge.s32.totalorder %s13, 9
      %s23 = sphi 0, %s25
      %s26 = sphi 0, %s23
      %s27 = sphi 0, %s26
      %s43 = sphi 0, %s27
      %s49 = sphi 0, %s51
      %s52 = sphi 0, %s49
      %s53 = sphi 0, %s52
      %s69 = sphi 0, %s53
    $region4: #{tpu_custom_call.1} parent=1 // loop_header_branch
      %16 = sbr.rel (%p14) target = $region8
    $region5: #{tpu_custom_call.1} parent=1 // loop_body
      %s18 = ssub.s32 %s13, 1
      %s19 = ssub.s32 %s13, 2
      %s20 = sadd.s32 %s13, 1
      %s21 = ssub.s32 %s13, %s20
      %p22 = scmp.eq.s32.totalorder %s21, 0
      %s24 = sadd.s32 %s23, 1
      %s25 = scalar_select %p22, %s23, %s24
      %p28 = pneg %p22
      %p29 = scmp.eq.s32.totalorder %s13, 6
      %p30 = por %p28, %p29
      %p31 = scmp.ne.s32.totalorder %s23, %s26
      %p32 = scmp.eq.s32.totalorder %s13, 0
      %p33 = por %p31, %p32
      %p34 = scmp.ne.s32.totalorder %s23, %s26
      %p35 = scmp.eq.s32.totalorder %s18, 6
      %p36 = por %p34, %p35
      %p37 = scmp.ne.s32.totalorder %s26, %s27
      %p38 = scmp.eq.s32.totalorder %s18, 0
      %p39 = por %p37, %p38
      %p40 = scmp.ne.s32.totalorder %s26, %s27
      %p41 = scmp.eq.s32.totalorder %s19, 6
      %p42 = por %p40, %p41
      %p44 = scmp.ne.s32.totalorder %s27, %s43
      %p45 = scmp.eq.s32.totalorder %s19, 0
      %p46 = por %p44, %p45
      %s47 = ssub.s32 %s13, %s20
      %p48 = scmp.eq.s32.totalorder %s47, 0
      %s50 = sadd.s32 %s49, 1
      %s51 = scalar_select %p48, %s49, %s50
      %p54 = pneg %p48
      %p55 = scmp.eq.s32.totalorder %s13, 6
      %p56 = por %p54, %p55
      %p57 = scmp.ne.s32.totalorder %s49, %s52
      %p58 = scmp.eq.s32.totalorder %s13, 0
      %p59 = por %p57, %p58
      %p60 = scmp.ne.s32.totalorder %s49, %s52
      %p61 = scmp.eq.s32.totalorder %s18, 6
      %p62 = por %p60, %p61
      %p63 = scmp.ne.s32.totalorder %s52, %s53
      %p64 = scmp.eq.s32.totalorder %s18, 0
      %p65 = por %p63, %p64
      %p66 = scmp.ne.s32.totalorder %s52, %s53
      %p67 = scmp.eq.s32.totalorder %s19, 6
      %p68 = por %p66, %p67
      %p70 = scmp.ne.s32.totalorder %s53, %s69
      %p71 = scmp.eq.s32.totalorder %s19, 0
      %p72 = por %p70, %p71
      %p73 = scmp.le.s32.totalorder 1, %s13
      %p74 = scmp.lt.s32.totalorder %s13, 8
      %p75 = pnand %p73, %p74
      %p76 = pneg %p75
      // Predicated region
      $region9: #{tpu_custom_call.1} parent=5 // pred_check
        _
      $region10: #{tpu_custom_call.1} parent=5 // pred_check_branch
        %78 = sbr.rel (%p75) target = $region12
      $region11: #{tpu_custom_call.1} parent=5 // pred_region
        %s79 = ssub.s32 %s13, 1
      $region12: #{tpu_custom_call.1} parent=5 // pred_fallthru
        _
      %p80 = scmp.lt.s32.totalorder %s13, 7
      // Predicated region
      $region13: #{tpu_custom_call.1} parent=5 // pred_check
        %p81 = pneg %p80
      $region14: #{tpu_custom_call.1} parent=5 // pred_check_branch
        %83 = sbr.rel (%p81) target = $region16
      $region15: #{tpu_custom_call.1} parent=5 // pred_region
        // Predicated region
        $region17: #{tpu_custom_call.1} parent=15 // pred_check
          %p84 = pneg %p33
        $region18: #{tpu_custom_call.1} parent=15 // pred_check_branch
          %86 = sbr.rel (%p84) target = $region20
        $region19: #{tpu_custom_call.1} parent=15 // pred_region
          %s87 = sand.u32 %s23, 1
          %s88 = scalar_lea.sflag [#allocation3], %s87
          %s89 = sand.u32 %s23, 1
          %s90 = smul.addr %s89, 1344
          %s91 = scalar_lea.vmem [#allocation2], %s90
          %s92 = smul.u32 14, %s13
          %94 = vsyncadd %s88, 0
          %s95 = smul.addr %s92, 12
          %s96 = smul.addr %s95, 8
          %s97 = scalar_lea.hbm %s0, %s96
          %s98 = sshll.u32 %s97, 4
          %s99 = int_to_ptr.hbm [resolvable:$true] %s98
          %s100 = sshll.u32 %s91, 4
          %s101 = int_to_ptr.vmem [resolvable:$true] %s100
          %106 = dma.hbm_to_vmem [thread:$0]  %s99, 21504, %s101, %s88, 1536, 1536, 96
        $region20: #{tpu_custom_call.1} parent=15 // pred_fallthru
          _
      $region16: #{tpu_custom_call.1} parent=5 // pred_fallthru
        _
      %p107 = scmp.le.s32.totalorder 1, %s13
      %p108 = scmp.lt.s32.totalorder %s13, 8
      %p109 = pnand %p107, %p108
      %p110 = pneg %p109
      // Predicated region
      $region21: #{tpu_custom_call.1} parent=5 // pred_check
        _
      $region22: #{tpu_custom_call.1} parent=5 // pred_check_branch
        %112 = sbr.rel (%p109) target = $region24
      $region23: #{tpu_custom_call.1} parent=5 // pred_region
        %s113 = ssub.s32 %s13, 1
        %s114 = sand.u32 %s26, 1
        %s115 = scalar_lea.sflag [#allocation3], %s114
        %s116 = sand.u32 %s26, 1
        %s117 = smul.addr %s116, 1344
        %s118 = scalar_lea.vmem [#allocation2], %s117
        // Predicated region
        $region25: #{tpu_custom_call.1} parent=23 // pred_check
          %p119 = pneg %p39
        $region26: #{tpu_custom_call.1} parent=23 // pred_check_branch
          %121 = sbr.rel (%p119) target = $region28
        $region27: #{tpu_custom_call.1} parent=23 // pred_region
          %123 = dma.done %s115, 21504
        $region28: #{tpu_custom_call.1} parent=23 // pred_fallthru
          _
        %s124 = sand.u32 %s26, 1
        %s125 = scalar_lea.sflag [#allocation3], %s124
        %s126 = sand.u32 %s26, 1
        %s127 = smul.addr %s126, 1344
        %s128 = scalar_lea.vmem [#allocation2], %s127
        %p129 = pneg %p39
        %p130 = pneg %p36
        %p131 = pneg %p65
        %p132 = pneg %p62
        %s133 = sand.u32 %s52, 1
        %s134 = scalar_lea.sflag [#allocation4], %s133
        %s135 = sand.u32 %s52, 1
        %s136 = smul.addr %s135, 1344
        %s137 = scalar_lea.vmem [#allocation5], %s136
        %s138 = smul.u32 14, %s18
        %s139 = smul.u32 14, %s18
        %v140 = vld [vmem:[%s118] sm:$0xff]
        %v141 = vld [vmem:[%s118 + $0x8] sm:$0xff]
        %v142 = vld [vmem:[%s118 + $0x10] sm:$0xff]
        %v143 = vld [vmem:[%s118 + $0x18] sm:$0xff]
        %v144 = vld [vmem:[%s118 + $0x20] sm:$0xff]
        %v145 = vld [vmem:[%s118 + $0x28] sm:$0xff]
        %v146 = vld [vmem:[%s118 + $0x30] sm:$0xff]
        %v147 = vld [vmem:[%s118 + $0x38] sm:$0xff]
        %v148 = vld [vmem:[%s118 + $0x40] sm:$0xff]
        %v149 = vld [vmem:[%s118 + $0x48] sm:$0xff]
        %v150 = vld [vmem:[%s118 + $0x50] sm:$0xff]
        %v151 = vld [vmem:[%s118 + $0x58] sm:$0xff]
        %v152 = vld [vmem:[%s118 + $0x60] sm:$0xff]
        %v153 = vld [vmem:[%s118 + $0x68] sm:$0xff]
        %v154 = vld [vmem:[%s118 + $0x70] sm:$0xff]
        %v155 = vld [vmem:[%s118 + $0x78] sm:$0xff]
        %v156 = vld [vmem:[%s118 + $0x80] sm:$0xff]
        %v157 = vld [vmem:[%s118 + $0x88] sm:$0xff]
        %v158 = vld [vmem:[%s118 + $0x90] sm:$0xff]
        %v159 = vld [vmem:[%s118 + $0x98] sm:$0xff]
        %v160 = vld [vmem:[%s118 + $0xa0] sm:$0xff]
        %v161 = vld [vmem:[%s118 + $0xa8] sm:$0xff]
        %v162 = vld [vmem:[%s118 + $0xb0] sm:$0xff]
        %v163 = vld [vmem:[%s118 + $0xb8] sm:$0xff]
        %v164 = vld [vmem:[%s118 + $0xc0] sm:$0xff]
        %v165 = vld [vmem:[%s118 + $0xc8] sm:$0xff]
        %v166 = vld [vmem:[%s118 + $0xd0] sm:$0xff]
        %v167 = vld [vmem:[%s118 + $0xd8] sm:$0xff]
        %v168 = vld [vmem:[%s118 + $0xe0] sm:$0xff]
        %v169 = vld [vmem:[%s118 + $0xe8] sm:$0xff]
        %v170 = vld [vmem:[%s118 + $0xf0] sm:$0xff]
        %v171 = vld [vmem:[%s118 + $0xf8] sm:$0xff]
        %v172 = vld [vmem:[%s118 + $0x100] sm:$0xff]
        %v173 = vld [vmem:[%s118 + $0x108] sm:$0xff]
        %v174 = vld [vmem:[%s118 + $0x110] sm:$0xff]
        %v175 = vld [vmem:[%s118 + $0x118] sm:$0xff]
        %v176 = vld [vmem:[%s118 + $0x120] sm:$0xff]
        %v177 = vld [vmem:[%s118 + $0x128] sm:$0xff]
        %v178 = vld [vmem:[%s118 + $0x130] sm:$0xff]
        %v179 = vld [vmem:[%s118 + $0x138] sm:$0xff]
        %v180 = vld [vmem:[%s118 + $0x140] sm:$0xff]
        %v181 = vld [vmem:[%s118 + $0x148] sm:$0xff]
        %v182 = vld [vmem:[%s118 + $0x150] sm:$0xff]
        %v183 = vld [vmem:[%s118 + $0x158] sm:$0xff]
        %v184 = vld [vmem:[%s118 + $0x160] sm:$0xff]
        %v185 = vld [vmem:[%s118 + $0x168] sm:$0xff]
        %v186 = vld [vmem:[%s118 + $0x170] sm:$0xff]
        %v187 = vld [vmem:[%s118 + $0x178] sm:$0xff]
        %v188 = vld [vmem:[%s118 + $0x180] sm:$0xff]
        %v189 = vld [vmem:[%s118 + $0x188] sm:$0xff]
        %v190 = vld [vmem:[%s118 + $0x190] sm:$0xff]
        %v191 = vld [vmem:[%s118 + $0x198] sm:$0xff]
        %v192 = vld [vmem:[%s118 + $0x1a0] sm:$0xff]
        %v193 = vld [vmem:[%s118 + $0x1a8] sm:$0xff]
        %v194 = vld [vmem:[%s118 + $0x1b0] sm:$0xff]
        %v195 = vld [vmem:[%s118 + $0x1b8] sm:$0xff]
        %v196 = vld [vmem:[%s118 + $0x1c0] sm:$0xff]
        %v197 = vld [vmem:[%s118 + $0x1c8] sm:$0xff]
        %v198 = vld [vmem:[%s118 + $0x1d0] sm:$0xff]
        %v199 = vld [vmem:[%s118 + $0x1d8] sm:$0xff]
        %v200 = vld [vmem:[%s118 + $0x1e0] sm:$0xff]
        %v201 = vld [vmem:[%s118 + $0x1e8] sm:$0xff]
        %v202 = vld [vmem:[%s118 + $0x1f0] sm:$0xff]
        %v203 = vld [vmem:[%s118 + $0x1f8] sm:$0xff]
        %v204 = vld [vmem:[%s118 + $0x200] sm:$0xff]
        %v205 = vld [vmem:[%s118 + $0x208] sm:$0xff]
        %v206 = vld [vmem:[%s118 + $0x210] sm:$0xff]
        %v207 = vld [vmem:[%s118 + $0x218] sm:$0xff]
        %v208 = vld [vmem:[%s118 + $0x220] sm:$0xff]
        %v209 = vld [vmem:[%s118 + $0x228] sm:$0xff]
        %v210 = vld [vmem:[%s118 + $0x230] sm:$0xff]
        %v211 = vld [vmem:[%s118 + $0x238] sm:$0xff]
        %v212 = vld [vmem:[%s118 + $0x240] sm:$0xff]
        %v213 = vld [vmem:[%s118 + $0x248] sm:$0xff]
        %v214 = vld [vmem:[%s118 + $0x250] sm:$0xff]
        %v215 = vld [vmem:[%s118 + $0x258] sm:$0xff]
        %v216 = vld [vmem:[%s118 + $0x260] sm:$0xff]
        %v217 = vld [vmem:[%s118 + $0x268] sm:$0xff]
        %v218 = vld [vmem:[%s118 + $0x270] sm:$0xff]
        %v219 = vld [vmem:[%s118 + $0x278] sm:$0xff]
        %v220 = vld [vmem:[%s118 + $0x280] sm:$0xff]
        %v221 = vld [vmem:[%s118 + $0x288] sm:$0xff]
        %v222 = vld [vmem:[%s118 + $0x290] sm:$0xff]
        %v223 = vld [vmem:[%s118 + $0x298] sm:$0xff]
        %v224 = vld [vmem:[%s118 + $0x2a0] sm:$0xff]
        %v225 = vld [vmem:[%s118 + $0x2a8] sm:$0xff]
        %v226 = vld [vmem:[%s118 + $0x2b0] sm:$0xff]
        %v227 = vld [vmem:[%s118 + $0x2b8] sm:$0xff]
        %v228 = vld [vmem:[%s118 + $0x2c0] sm:$0xff]
        %v229 = vld [vmem:[%s118 + $0x2c8] sm:$0xff]
        %v230 = vld [vmem:[%s118 + $0x2d0] sm:$0xff]
        %v231 = vld [vmem:[%s118 + $0x2d8] sm:$0xff]
        %v232 = vld [vmem:[%s118 + $0x2e0] sm:$0xff]
        %v233 = vld [vmem:[%s118 + $0x2e8] sm:$0xff]
        %v234 = vld [vmem:[%s118 + $0x2f0] sm:$0xff]
        %v235 = vld [vmem:[%s118 + $0x2f8] sm:$0xff]
        %v236 = vld [vmem:[%s118 + $0x300] sm:$0xff]
        %v237 = vld [vmem:[%s118 + $0x308] sm:$0xff]
        %v238 = vld [vmem:[%s118 + $0x310] sm:$0xff]
        %v239 = vld [vmem:[%s118 + $0x318] sm:$0xff]
        %v240 = vld [vmem:[%s118 + $0x320] sm:$0xff]
        %v241 = vld [vmem:[%s118 + $0x328] sm:$0xff]
        %v242 = vld [vmem:[%s118 + $0x330] sm:$0xff]
        %v243 = vld [vmem:[%s118 + $0x338] sm:$0xff]
        %v244 = vld [vmem:[%s118 + $0x340] sm:$0xff]
        %v245 = vld [vmem:[%s118 + $0x348] sm:$0xff]
        %v246 = vld [vmem:[%s118 + $0x350] sm:$0xff]
        %v247 = vld [vmem:[%s118 + $0x358] sm:$0xff]
        %v248 = vld [vmem:[%s118 + $0x360] sm:$0xff]
        %v249 = vld [vmem:[%s118 + $0x368] sm:$0xff]
        %v250 = vld [vmem:[%s118 + $0x370] sm:$0xff]
        %v251 = vld [vmem:[%s118 + $0x378] sm:$0xff]
        %v252 = vld [vmem:[%s118 + $0x380] sm:$0xff]
        %v253 = vld [vmem:[%s118 + $0x388] sm:$0xff]
        %v254 = vld [vmem:[%s118 + $0x390] sm:$0xff]
        %v255 = vld [vmem:[%s118 + $0x398] sm:$0xff]
        %v256 = vld [vmem:[%s118 + $0x3a0] sm:$0xff]
        %v257 = vld [vmem:[%s118 + $0x3a8] sm:$0xff]
        %v258 = vld [vmem:[%s118 + $0x3b0] sm:$0xff]
        %v259 = vld [vmem:[%s118 + $0x3b8] sm:$0xff]
        %v260 = vld [vmem:[%s118 + $0x3c0] sm:$0xff]
        %v261 = vld [vmem:[%s118 + $0x3c8] sm:$0xff]
        %v262 = vld [vmem:[%s118 + $0x3d0] sm:$0xff]
        %v263 = vld [vmem:[%s118 + $0x3d8] sm:$0xff]
        %v264 = vld [vmem:[%s118 + $0x3e0] sm:$0xff]
        %v265 = vld [vmem:[%s118 + $0x3e8] sm:$0xff]
        %v266 = vld [vmem:[%s118 + $0x3f0] sm:$0xff]
        %v267 = vld [vmem:[%s118 + $0x3f8] sm:$0xff]
        %v268 = vld [vmem:[%s118 + $0x400] sm:$0xff]
        %v269 = vld [vmem:[%s118 + $0x408] sm:$0xff]
        %v270 = vld [vmem:[%s118 + $0x410] sm:$0xff]
        %v271 = vld [vmem:[%s118 + $0x418] sm:$0xff]
        %v272 = vld [vmem:[%s118 + $0x420] sm:$0xff]
        %v273 = vld [vmem:[%s118 + $0x428] sm:$0xff]
        %v274 = vld [vmem:[%s118 + $0x430] sm:$0xff]
        %v275 = vld [vmem:[%s118 + $0x438] sm:$0xff]
        %v276 = vld [vmem:[%s118 + $0x440] sm:$0xff]
        %v277 = vld [vmem:[%s118 + $0x448] sm:$0xff]
        %v278 = vld [vmem:[%s118 + $0x450] sm:$0xff]
        %v279 = vld [vmem:[%s118 + $0x458] sm:$0xff]
        %v280 = vld [vmem:[%s118 + $0x460] sm:$0xff]
        %v281 = vld [vmem:[%s118 + $0x468] sm:$0xff]
        %v282 = vld [vmem:[%s118 + $0x470] sm:$0xff]
        %v283 = vld [vmem:[%s118 + $0x478] sm:$0xff]
        %v284 = vld [vmem:[%s118 + $0x480] sm:$0xff]
        %v285 = vld [vmem:[%s118 + $0x488] sm:$0xff]
        %v286 = vld [vmem:[%s118 + $0x490] sm:$0xff]
        %v287 = vld [vmem:[%s118 + $0x498] sm:$0xff]
        %v288 = vld [vmem:[%s118 + $0x4a0] sm:$0xff]
        %v289 = vld [vmem:[%s118 + $0x4a8] sm:$0xff]
        %v290 = vld [vmem:[%s118 + $0x4b0] sm:$0xff]
        %v291 = vld [vmem:[%s118 + $0x4b8] sm:$0xff]
        %v292 = vld [vmem:[%s118 + $0x4c0] sm:$0xff]
        %v293 = vld [vmem:[%s118 + $0x4c8] sm:$0xff]
        %v294 = vld [vmem:[%s118 + $0x4d0] sm:$0xff]
        %v295 = vld [vmem:[%s118 + $0x4d8] sm:$0xff]
        %v296 = vld [vmem:[%s118 + $0x4e0] sm:$0xff]
        %v297 = vld [vmem:[%s118 + $0x4e8] sm:$0xff]
        %v298 = vld [vmem:[%s118 + $0x4f0] sm:$0xff]
        %v299 = vld [vmem:[%s118 + $0x4f8] sm:$0xff]
        %v300 = vld [vmem:[%s118 + $0x500] sm:$0xff]
        %v301 = vld [vmem:[%s118 + $0x508] sm:$0xff]
        %v302 = vld [vmem:[%s118 + $0x510] sm:$0xff]
        %v303 = vld [vmem:[%s118 + $0x518] sm:$0xff]
        %v304 = vld [vmem:[%s118 + $0x520] sm:$0xff]
        %v305 = vld [vmem:[%s118 + $0x528] sm:$0xff]
        %v306 = vld [vmem:[%s118 + $0x530] sm:$0xff]
        %v307 = vld [vmem:[%s118 + $0x538] sm:$0xff]
        %v308 = vmul.f32 %v140, 0.5
        %v309 = vmul.f32 %v141, 0.5
        %v310 = vmul.f32 %v142, 0.5
        %v311 = vmul.f32 %v143, 0.5
        %v312 = vmul.f32 %v144, 0.5
        %v313 = vmul.f32 %v145, 0.5
        %v314 = vmul.f32 %v146, 0.5
        %v315 = vmul.f32 %v147, 0.5
        %v316 = vmul.f32 %v148, 0.5
        %v317 = vmul.f32 %v149, 0.5
        %v318 = vmul.f32 %v150, 0.5
        %v319 = vmul.f32 %v151, 0.5
        %v320 = vmul.f32 %v152, 0.5
        %v321 = vmul.f32 %v153, 0.5
        %v322 = vmul.f32 %v154, 0.5
        %v323 = vmul.f32 %v155, 0.5
        %v324 = vmul.f32 %v156, 0.5
        %v325 = vmul.f32 %v157, 0.5
        %v326 = vmul.f32 %v158, 0.5
        %v327 = vmul.f32 %v159, 0.5
        %v328 = vmul.f32 %v160, 0.5
        %v329 = vmul.f32 %v161, 0.5
        %v330 = vmul.f32 %v162, 0.5
        %v331 = vmul.f32 %v163, 0.5
        %v332 = vmul.f32 %v164, 0.5
        %v333 = vmul.f32 %v165, 0.5
        %v334 = vmul.f32 %v166, 0.5
        %v335 = vmul.f32 %v167, 0.5
        %v336 = vmul.f32 %v168, 0.5
        %v337 = vmul.f32 %v169, 0.5
        %v338 = vmul.f32 %v170, 0.5
        %v339 = vmul.f32 %v171, 0.5
        %v340 = vmul.f32 %v172, 0.5
        %v341 = vmul.f32 %v173, 0.5
        %v342 = vmul.f32 %v174, 0.5
        %v343 = vmul.f32 %v175, 0.5
        %v344 = vmul.f32 %v176, 0.5
        %v345 = vmul.f32 %v177, 0.5
        %v346 = vmul.f32 %v178, 0.5
        %v347 = vmul.f32 %v179, 0.5
        %v348 = vmul.f32 %v180, 0.5
        %v349 = vmul.f32 %v181, 0.5
        %v350 = vmul.f32 %v182, 0.5
        %v351 = vmul.f32 %v183, 0.5
        %v352 = vmul.f32 %v184, 0.5
        %v353 = vmul.f32 %v185, 0.5
        %v354 = vmul.f32 %v186, 0.5
        %v355 = vmul.f32 %v187, 0.5
        %v356 = vmul.f32 %v188, 0.5
        %v357 = vmul.f32 %v189, 0.5
        %v358 = vmul.f32 %v190, 0.5
        %v359 = vmul.f32 %v191, 0.5
        %v360 = vmul.f32 %v192, 0.5
        %v361 = vmul.f32 %v193, 0.5
        %v362 = vmul.f32 %v194, 0.5
        %v363 = vmul.f32 %v195, 0.5
        %v364 = vmul.f32 %v196, 0.5
        %v365 = vmul.f32 %v197, 0.5
        %v366 = vmul.f32 %v198, 0.5
        %v367 = vmul.f32 %v199, 0.5
        %v368 = vmul.f32 %v200, 0.5
        %v369 = vmul.f32 %v201, 0.5
        %v370 = vmul.f32 %v202, 0.5
        %v371 = vmul.f32 %v203, 0.5
        %v372 = vmul.f32 %v204, 0.5
        %v373 = vmul.f32 %v205, 0.5
        %v374 = vmul.f32 %v206, 0.5
        %v375 = vmul.f32 %v207, 0.5
        %v376 = vmul.f32 %v208, 0.5
        %v377 = vmul.f32 %v209, 0.5
        %v378 = vmul.f32 %v210, 0.5
        %v379 = vmul.f32 %v211, 0.5
        %v380 = vmul.f32 %v212, 0.5
        %v381 = vmul.f32 %v213, 0.5
        %v382 = vmul.f32 %v214, 0.5
        %v383 = vmul.f32 %v215, 0.5
        %v384 = vmul.f32 %v216, 0.5
        %v385 = vmul.f32 %v217, 0.5
        %v386 = vmul.f32 %v218, 0.5
        %v387 = vmul.f32 %v219, 0.5
        %v388 = vmul.f32 %v220, 0.5
        %v389 = vmul.f32 %v221, 0.5
        %v390 = vmul.f32 %v222, 0.5
        %v391 = vmul.f32 %v223, 0.5
        %v392 = vmul.f32 %v224, 0.5
        %v393 = vmul.f32 %v225, 0.5
        %v394 = vmul.f32 %v226, 0.5
        %v395 = vmul.f32 %v227, 0.5
        %v396 = vmul.f32 %v228, 0.5
        %v397 = vmul.f32 %v229, 0.5
        %v398 = vmul.f32 %v230, 0.5
        %v399 = vmul.f32 %v231, 0.5
        %v400 = vmul.f32 %v232, 0.5
        %v401 = vmul.f32 %v233, 0.5
        %v402 = vmul.f32 %v234, 0.5
        %v403 = vmul.f32 %v235, 0.5
        %v404 = vmul.f32 %v236, 0.5
        %v405 = vmul.f32 %v237, 0.5
        %v406 = vmul.f32 %v238, 0.5
        %v407 = vmul.f32 %v239, 0.5
        %v408 = vmul.f32 %v240, 0.5
        %v409 = vmul.f32 %v241, 0.5
        %v410 = vmul.f32 %v242, 0.5
        %v411 = vmul.f32 %v243, 0.5
        %v412 = vmul.f32 %v244, 0.5
        %v413 = vmul.f32 %v245, 0.5
        %v414 = vmul.f32 %v246, 0.5
        %v415 = vmul.f32 %v247, 0.5
        %v416 = vmul.f32 %v248, 0.5
        %v417 = vmul.f32 %v249, 0.5
        %v418 = vmul.f32 %v250, 0.5
        %v419 = vmul.f32 %v251, 0.5
        %v420 = vmul.f32 %v252, 0.5
        %v421 = vmul.f32 %v253, 0.5
        %v422 = vmul.f32 %v254, 0.5
        %v423 = vmul.f32 %v255, 0.5
        %v424 = vmul.f32 %v256, 0.5
        %v425 = vmul.f32 %v257, 0.5
        %v426 = vmul.f32 %v258, 0.5
        %v427 = vmul.f32 %v259, 0.5
        %v428 = vmul.f32 %v260, 0.5
        %v429 = vmul.f32 %v261, 0.5
        %v430 = vmul.f32 %v262, 0.5
        %v431 = vmul.f32 %v263, 0.5
        %v432 = vmul.f32 %v264, 0.5
        %v433 = vmul.f32 %v265, 0.5
        %v434 = vmul.f32 %v266, 0.5
        %v435 = vmul.f32 %v267, 0.5
        %v436 = vmul.f32 %v268, 0.5
        %v437 = vmul.f32 %v269, 0.5
        %v438 = vmul.f32 %v270, 0.5
        %v439 = vmul.f32 %v271, 0.5
        %v440 = vmul.f32 %v272, 0.5
        %v441 = vmul.f32 %v273, 0.5
        %v442 = vmul.f32 %v274, 0.5
        %v443 = vmul.f32 %v275, 0.5
        %v444 = vmul.f32 %v276, 0.5
        %v445 = vmul.f32 %v277, 0.5
        %v446 = vmul.f32 %v278, 0.5
        %v447 = vmul.f32 %v279, 0.5
        %v448 = vmul.f32 %v280, 0.5
        %v449 = vmul.f32 %v281, 0.5
        %v450 = vmul.f32 %v282, 0.5
        %v451 = vmul.f32 %v283, 0.5
        %v452 = vmul.f32 %v284, 0.5
        %v453 = vmul.f32 %v285, 0.5
        %v454 = vmul.f32 %v286, 0.5
        %v455 = vmul.f32 %v287, 0.5
        %v456 = vmul.f32 %v288, 0.5
        %v457 = vmul.f32 %v289, 0.5
        %v458 = vmul.f32 %v290, 0.5
        %v459 = vmul.f32 %v291, 0.5
        %v460 = vmul.f32 %v292, 0.5
        %v461 = vmul.f32 %v293, 0.5
        %v462 = vmul.f32 %v294, 0.5
        %v463 = vmul.f32 %v295, 0.5
        %v464 = vmul.f32 %v296, 0.5
        %v465 = vmul.f32 %v297, 0.5
        %v466 = vmul.f32 %v298, 0.5
        %v467 = vmul.f32 %v299, 0.5
        %v468 = vmul.f32 %v300, 0.5
        %v469 = vmul.f32 %v301, 0.5
        %v470 = vmul.f32 %v302, 0.5
        %v471 = vmul.f32 %v303, 0.5
        %v472 = vmul.f32 %v304, 0.5
        %v473 = vmul.f32 %v305, 0.5
        %v474 = vmul.f32 %v306, 0.5
        %v475 = vmul.f32 %v307, 0.5
        %v476 = vmul.f32 %v140, 0.70710677
        %v477 = vmul.f32 %v141, 0.70710677
        %v478 = vmul.f32 %v142, 0.70710677
        %v479 = vmul.f32 %v143, 0.70710677
        %v480 = vmul.f32 %v144, 0.70710677
        %v481 = vmul.f32 %v145, 0.70710677
        %v482 = vmul.f32 %v146, 0.70710677
        %v483 = vmul.f32 %v147, 0.70710677
        %v484 = vmul.f32 %v148, 0.70710677
        %v485 = vmul.f32 %v149, 0.70710677
        %v486 = vmul.f32 %v150, 0.70710677
        %v487 = vmul.f32 %v151, 0.70710677
        %v488 = vmul.f32 %v152, 0.70710677
        %v489 = vmul.f32 %v153, 0.70710677
        %v490 = vmul.f32 %v154, 0.70710677
        %v491 = vmul.f32 %v155, 0.70710677
        %v492 = vmul.f32 %v156, 0.70710677
        %v493 = vmul.f32 %v157, 0.70710677
        %v494 = vmul.f32 %v158, 0.70710677
        %v495 = vmul.f32 %v159, 0.70710677
        %v496 = vmul.f32 %v160, 0.70710677
        %v497 = vmul.f32 %v161, 0.70710677
        %v498 = vmul.f32 %v162, 0.70710677
        %v499 = vmul.f32 %v163, 0.70710677
        %v500 = vmul.f32 %v164, 0.70710677
        %v501 = vmul.f32 %v165, 0.70710677
        %v502 = vmul.f32 %v166, 0.70710677
        %v503 = vmul.f32 %v167, 0.70710677
        %v504 = vmul.f32 %v168, 0.70710677
        %v505 = vmul.f32 %v169, 0.70710677
        %v506 = vmul.f32 %v170, 0.70710677
        %v507 = vmul.f32 %v171, 0.70710677
        %v508 = vmul.f32 %v172, 0.70710677
        %v509 = vmul.f32 %v173, 0.70710677
        %v510 = vmul.f32 %v174, 0.70710677
        %v511 = vmul.f32 %v175, 0.70710677
        %v512 = vmul.f32 %v176, 0.70710677
        %v513 = vmul.f32 %v177, 0.70710677
        %v514 = vmul.f32 %v178, 0.70710677
        %v515 = vmul.f32 %v179, 0.70710677
        %v516 = vmul.f32 %v180, 0.70710677
        %v517 = vmul.f32 %v181, 0.70710677
        %v518 = vmul.f32 %v182, 0.70710677
        %v519 = vmul.f32 %v183, 0.70710677
        %v520 = vmul.f32 %v184, 0.70710677
        %v521 = vmul.f32 %v185, 0.70710677
        %v522 = vmul.f32 %v186, 0.70710677
        %v523 = vmul.f32 %v187, 0.70710677
        %v524 = vmul.f32 %v188, 0.70710677
        %v525 = vmul.f32 %v189, 0.70710677
        %v526 = vmul.f32 %v190, 0.70710677
        %v527 = vmul.f32 %v191, 0.70710677
        %v528 = vmul.f32 %v192, 0.70710677
        %v529 = vmul.f32 %v193, 0.70710677
        %v530 = vmul.f32 %v194, 0.70710677
        %v531 = vmul.f32 %v195, 0.70710677
        %v532 = vmul.f32 %v196, 0.70710677
        %v533 = vmul.f32 %v197, 0.70710677
        %v534 = vmul.f32 %v198, 0.70710677
        %v535 = vmul.f32 %v199, 0.70710677
        %v536 = vmul.f32 %v200, 0.70710677
        %v537 = vmul.f32 %v201, 0.70710677
        %v538 = vmul.f32 %v202, 0.70710677
        %v539 = vmul.f32 %v203, 0.70710677
        %v540 = vmul.f32 %v204, 0.70710677
        %v541 = vmul.f32 %v205, 0.70710677
        %v542 = vmul.f32 %v206, 0.70710677
        %v543 = vmul.f32 %v207, 0.70710677
        %v544 = vmul.f32 %v208, 0.70710677
        %v545 = vmul.f32 %v209, 0.70710677
        %v546 = vmul.f32 %v210, 0.70710677
        %v547 = vmul.f32 %v211, 0.70710677
        %v548 = vmul.f32 %v212, 0.70710677
        %v549 = vmul.f32 %v213, 0.70710677
        %v550 = vmul.f32 %v214, 0.70710677
        %v551 = vmul.f32 %v215, 0.70710677
        %v552 = vmul.f32 %v216, 0.70710677
        %v553 = vmul.f32 %v217, 0.70710677
        %v554 = vmul.f32 %v218, 0.70710677
        %v555 = vmul.f32 %v219, 0.70710677
        %v556 = vmul.f32 %v220, 0.70710677
        %v557 = vmul.f32 %v221, 0.70710677
        %v558 = vmul.f32 %v222, 0.70710677
        %v559 = vmul.f32 %v223, 0.70710677
        %v560 = vmul.f32 %v224, 0.70710677
        %v561 = vmul.f32 %v225, 0.70710677
        %v562 = vmul.f32 %v226, 0.70710677
        %v563 = vmul.f32 %v227, 0.70710677
        %v564 = vmul.f32 %v228, 0.70710677
        %v565 = vmul.f32 %v229, 0.70710677
        %v566 = vmul.f32 %v230, 0.70710677
        %v567 = vmul.f32 %v231, 0.70710677
        %v568 = vmul.f32 %v232, 0.70710677
        %v569 = vmul.f32 %v233, 0.70710677
        %v570 = vmul.f32 %v234, 0.70710677
        %v571 = vmul.f32 %v235, 0.70710677
        %v572 = vmul.f32 %v236, 0.70710677
        %v573 = vmul.f32 %v237, 0.70710677
        %v574 = vmul.f32 %v238, 0.70710677
        %v575 = vmul.f32 %v239, 0.70710677
        %v576 = vmul.f32 %v240, 0.70710677
        %v577 = vmul.f32 %v241, 0.70710677
        %v578 = vmul.f32 %v242, 0.70710677
        %v579 = vmul.f32 %v243, 0.70710677
        %v580 = vmul.f32 %v244, 0.70710677
        %v581 = vmul.f32 %v245, 0.70710677
        %v582 = vmul.f32 %v246, 0.70710677
        %v583 = vmul.f32 %v247, 0.70710677
        %v584 = vmul.f32 %v248, 0.70710677
        %v585 = vmul.f32 %v249, 0.70710677
        %v586 = vmul.f32 %v250, 0.70710677
        %v587 = vmul.f32 %v251, 0.70710677
        %v588 = vmul.f32 %v252, 0.70710677
        %v589 = vmul.f32 %v253, 0.70710677
        %v590 = vmul.f32 %v254, 0.70710677
        %v591 = vmul.f32 %v255, 0.70710677
        %v592 = vmul.f32 %v256, 0.70710677
        %v593 = vmul.f32 %v257, 0.70710677
        %v594 = vmul.f32 %v258, 0.70710677
        %v595 = vmul.f32 %v259, 0.70710677
        %v596 = vmul.f32 %v260, 0.70710677
        %v597 = vmul.f32 %v261, 0.70710677
        %v598 = vmul.f32 %v262, 0.70710677
        %v599 = vmul.f32 %v263, 0.70710677
        %v600 = vmul.f32 %v264, 0.70710677
        %v601 = vmul.f32 %v265, 0.70710677
        %v602 = vmul.f32 %v266, 0.70710677
        %v603 = vmul.f32 %v267, 0.70710677
        %v604 = vmul.f32 %v268, 0.70710677
        %v605 = vmul.f32 %v269, 0.70710677
        %v606 = vmul.f32 %v270, 0.70710677
        %v607 = vmul.f32 %v271, 0.70710677
        %v608 = vmul.f32 %v272, 0.70710677
        %v609 = vmul.f32 %v273, 0.70710677
        %v610 = vmul.f32 %v274, 0.70710677
        %v611 = vmul.f32 %v275, 0.70710677
        %v612 = vmul.f32 %v276, 0.70710677
        %v613 = vmul.f32 %v277, 0.70710677
        %v614 = vmul.f32 %v278, 0.70710677
        %v615 = vmul.f32 %v279, 0.70710677
        %v616 = vmul.f32 %v280, 0.70710677
        %v617 = vmul.f32 %v281, 0.70710677
        %v618 = vmul.f32 %v282, 0.70710677
        %v619 = vmul.f32 %v283, 0.70710677
        %v620 = vmul.f32 %v284, 0.70710677
        %v621 = vmul.f32 %v285, 0.70710677
        %v622 = vmul.f32 %v286, 0.70710677
        %v623 = vmul.f32 %v287, 0.70710677
        %v624 = vmul.f32 %v288, 0.70710677
        %v625 = vmul.f32 %v289, 0.70710677
        %v626 = vmul.f32 %v290, 0.70710677
        %v627 = vmul.f32 %v291, 0.70710677
        %v628 = vmul.f32 %v292, 0.70710677
        %v629 = vmul.f32 %v293, 0.70710677
        %v630 = vmul.f32 %v294, 0.70710677
        %v631 = vmul.f32 %v295, 0.70710677
        %v632 = vmul.f32 %v296, 0.70710677
        %v633 = vmul.f32 %v297, 0.70710677
        %v634 = vmul.f32 %v298, 0.70710677
        %v635 = vmul.f32 %v299, 0.70710677
        %v636 = vmul.f32 %v300, 0.70710677
        %v637 = vmul.f32 %v301, 0.70710677
        %v638 = vmul.f32 %v302, 0.70710677
        %v639 = vmul.f32 %v303, 0.70710677
        %v640 = vmul.f32 %v304, 0.70710677
        %v641 = vmul.f32 %v305, 0.70710677
        %v642 = vmul.f32 %v306, 0.70710677
        %v643 = vmul.f32 %v307, 0.70710677
        %v644 = vmul.f32 %v476, %v476
        %v645 = vmin.f32 16.0, %v644
        %v646 = vmul.f32 %v645, 2.1237322e-06
        %v647 = vadd.f32 %v646, 0.00028619796
        %v648 = vmul.f32 %v645, %v647
        %v649 = vadd.f32 %v648, 0.0036580483
        %v650 = vmul.f32 %v645, %v649
        %v651 = vadd.f32 %v650, 0.05243302
        %v652 = vmul.f32 %v645, %v651
        %v653 = vadd.f32 %v652, 0.18741608
        %v654 = vmul.f32 %v645, %v653
        %v655 = vadd.f32 %v654, 1.1283791
        %v656 = vmul.f32 %v476, %v655
        %v657 = vmul.f32 %v645, 3.8918573e-05
        %v658 = vadd.f32 %v657, 0.001143296
        %v659 = vmul.f32 %v645, %v658
        %v660 = vadd.f32 %v659, 0.014752088
        %v661 = vmul.f32 %v645, %v660
        %v662 = vadd.f32 %v661, 0.112945676
        %v663 = vmul.f32 %v645, %v662
        %v664 = vadd.f32 %v663, 0.4994258
        %v665 = vmul.f32 %v645, %v664
        %v666 = vadd.f32 %v665, 1.0
        %v667 = vrcp.pop %v666
        %v668 = vmul.f32 %v666, %v667
        %v669 = vsub.f32 1.0, %v668
        %v670 = vmul.f32 %v667, %v669
        %v671 = vadd.f32 %v667, %v670
        %vm672 = vweird.f32 %v666
        %vm673 = vweird.f32 %v667
        %vm674 = vmor %vm672, %vm673
        %v675 = vsel %vm674, %v667, %v671
        %v676 = vand.u32 2147483647, %v666
        %vm677 = vcmp.eq.f32.partialorder %v676, 8.507059e+37
        %v678 = vand.u32 %v666, 2147483648
        %v679 = vor.u32 1.1754944e-38, %v678
        %v680 = vsel %vm677, %v679, %v675
        %v681 = vmul.f32 %v656, %v680
        %v682 = vmin.f32 %v681, 1.0
        %v683 = vmax.f32 %v682, -1.0
        %v684 = vmul.f32 %v477, %v477
        %v685 = vmin.f32 16.0, %v684
        %v686 = vmul.f32 %v685, 2.1237322e-06
        %v687 = vadd.f32 %v686, 0.00028619796
        %v688 = vmul.f32 %v685, %v687
        %v689 = vadd.f32 %v688, 0.0036580483
        %v690 = vmul.f32 %v685, %v689
        %v691 = vadd.f32 %v690, 0.05243302
        %v692 = vmul.f32 %v685, %v691
        %v693 = vadd.f32 %v692, 0.18741608
        %v694 = vmul.f32 %v685, %v693
        %v695 = vadd.f32 %v694, 1.1283791
        %v696 = vmul.f32 %v477, %v695
        %v697 = vmul.f32 %v685, 3.8918573e-05
        %v698 = vadd.f32 %v697, 0.001143296
        %v699 = vmul.f32 %v685, %v698
        %v700 = vadd.f32 %v699, 0.014752088
        %v701 = vmul.f32 %v685, %v700
        %v702 = vadd.f32 %v701, 0.112945676
        %v703 = vmul.f32 %v685, %v702
        %v704 = vadd.f32 %v703, 0.4994258
        %v705 = vmul.f32 %v685, %v704
        %v706 = vadd.f32 %v705, 1.0
        %v707 = vrcp.pop %v706
        %v708 = vmul.f32 %v706, %v707
        %v709 = vsub.f32 1.0, %v708
        %v710 = vmul.f32 %v707, %v709
        %v711 = vadd.f32 %v707, %v710
        %vm712 = vweird.f32 %v706
        %vm713 = vweird.f32 %v707
        %vm714 = vmor %vm712, %vm713
        %v715 = vsel %vm714, %v707, %v711
        %v716 = vand.u32 2147483647, %v706
        %vm717 = vcmp.eq.f32.partialorder %v716, 8.507059e+37
        %v718 = vand.u32 %v706, 2147483648
        %v719 = vor.u32 1.1754944e-38, %v718
        %v720 = vsel %vm717, %v719, %v715
        %v721 = vmul.f32 %v696, %v720
        %v722 = vmin.f32 %v721, 1.0
        %v723 = vmax.f32 %v722, -1.0
        %v724 = vmul.f32 %v478, %v478
        %v725 = vmin.f32 16.0, %v724
        %v726 = vmul.f32 %v725, 2.1237322e-06
        %v727 = vadd.f32 %v726, 0.00028619796
        %v728 = vmul.f32 %v725, %v727
        %v729 = vadd.f32 %v728, 0.0036580483
        %v730 = vmul.f32 %v725, %v729
        %v731 = vadd.f32 %v730, 0.05243302
        %v732 = vmul.f32 %v725, %v731
        %v733 = vadd.f32 %v732, 0.18741608
        %v734 = vmul.f32 %v725, %v733
        %v735 = vadd.f32 %v734, 1.1283791
        %v736 = vmul.f32 %v478, %v735
        %v737 = vmul.f32 %v725, 3.8918573e-05
        %v738 = vadd.f32 %v737, 0.001143296
        %v739 = vmul.f32 %v725, %v738
        %v740 = vadd.f32 %v739, 0.014752088
        %v741 = vmul.f32 %v725, %v740
        %v742 = vadd.f32 %v741, 0.112945676
        %v743 = vmul.f32 %v725, %v742
        %v744 = vadd.f32 %v743, 0.4994258
        %v745 = vmul.f32 %v725, %v744
        %v746 = vadd.f32 %v745, 1.0
        %v747 = vrcp.pop %v746
        %v748 = vmul.f32 %v746, %v747
        %v749 = vsub.f32 1.0, %v748
        %v750 = vmul.f32 %v747, %v749
        %v751 = vadd.f32 %v747, %v750
        %vm752 = vweird.f32 %v746
        %vm753 = vweird.f32 %v747
        %vm754 = vmor %vm752, %vm753
        %v755 = vsel %vm754, %v747, %v751
        %v756 = vand.u32 2147483647, %v746
        %vm757 = vcmp.eq.f32.partialorder %v756, 8.507059e+37
        %v758 = vand.u32 %v746, 2147483648
        %v759 = vor.u32 1.1754944e-38, %v758
        %v760 = vsel %vm757, %v759, %v755
        %v761 = vmul.f32 %v736, %v760
        %v762 = vmin.f32 %v761, 1.0
        %v763 = vmax.f32 %v762, -1.0
        %v764 = vmul.f32 %v479, %v479
        %v765 = vmin.f32 16.0, %v764
        %v766 = vmul.f32 %v765, 2.1237322e-06
        %v767 = vadd.f32 %v766, 0.00028619796
        %v768 = vmul.f32 %v765, %v767
        %v769 = vadd.f32 %v768, 0.0036580483
        %v770 = vmul.f32 %v765, %v769
        %v771 = vadd.f32 %v770, 0.05243302
        %v772 = vmul.f32 %v765, %v771
        %v773 = vadd.f32 %v772, 0.18741608
        %v774 = vmul.f32 %v765, %v773
        %v775 = vadd.f32 %v774, 1.1283791
        %v776 = vmul.f32 %v479, %v775
        %v777 = vmul.f32 %v765, 3.8918573e-05
        %v778 = vadd.f32 %v777, 0.001143296
        %v779 = vmul.f32 %v765, %v778
        %v780 = vadd.f32 %v779, 0.014752088
        %v781 = vmul.f32 %v765, %v780
        %v782 = vadd.f32 %v781, 0.112945676
        %v783 = vmul.f32 %v765, %v782
        %v784 = vadd.f32 %v783, 0.4994258
        %v785 = vmul.f32 %v765, %v784
        %v786 = vadd.f32 %v785, 1.0
        %v787 = vrcp.pop %v786
        %v788 = vmul.f32 %v786, %v787
        %v789 = vsub.f32 1.0, %v788
        %v790 = vmul.f32 %v787, %v789
        %v791 = vadd.f32 %v787, %v790
        %vm792 = vweird.f32 %v786
        %vm793 = vweird.f32 %v787
        %vm794 = vmor %vm792, %vm793
        %v795 = vsel %vm794, %v787, %v791
        %v796 = vand.u32 2147483647, %v786
        %vm797 = vcmp.eq.f32.partialorder %v796, 8.507059e+37
        %v798 = vand.u32 %v786, 2147483648
        %v799 = vor.u32 1.1754944e-38, %v798
        %v800 = vsel %vm797, %v799, %v795
        %v801 = vmul.f32 %v776, %v800
        %v802 = vmin.f32 %v801, 1.0
        %v803 = vmax.f32 %v802, -1.0
        %v804 = vmul.f32 %v480, %v480
        %v805 = vmin.f32 16.0, %v804
        %v806 = vmul.f32 %v805, 2.1237322e-06
        %v807 = vadd.f32 %v806, 0.00028619796
        %v808 = vmul.f32 %v805, %v807
        %v809 = vadd.f32 %v808, 0.0036580483
        %v810 = vmul.f32 %v805, %v809
        %v811 = vadd.f32 %v810, 0.05243302
        %v812 = vmul.f32 %v805, %v811
        %v813 = vadd.f32 %v812, 0.18741608
        %v814 = vmul.f32 %v805, %v813
        %v815 = vadd.f32 %v814, 1.1283791
        %v816 = vmul.f32 %v480, %v815
        %v817 = vmul.f32 %v805, 3.8918573e-05
        %v818 = vadd.f32 %v817, 0.001143296
        %v819 = vmul.f32 %v805, %v818
        %v820 = vadd.f32 %v819, 0.014752088
        %v821 = vmul.f32 %v805, %v820
        %v822 = vadd.f32 %v821, 0.112945676
        %v823 = vmul.f32 %v805, %v822
        %v824 = vadd.f32 %v823, 0.4994258
        %v825 = vmul.f32 %v805, %v824
        %v826 = vadd.f32 %v825, 1.0
        %v827 = vrcp.pop %v826
        %v828 = vmul.f32 %v826, %v827
        %v829 = vsub.f32 1.0, %v828
        %v830 = vmul.f32 %v827, %v829
        %v831 = vadd.f32 %v827, %v830
        %vm832 = vweird.f32 %v826
        %vm833 = vweird.f32 %v827
        %vm834 = vmor %vm832, %vm833
        %v835 = vsel %vm834, %v827, %v831
        %v836 = vand.u32 2147483647, %v826
        %vm837 = vcmp.eq.f32.partialorder %v836, 8.507059e+37
        %v838 = vand.u32 %v826, 2147483648
        %v839 = vor.u32 1.1754944e-38, %v838
        %v840 = vsel %vm837, %v839, %v835
        %v841 = vmul.f32 %v816, %v840
        %v842 = vmin.f32 %v841, 1.0
        %v843 = vmax.f32 %v842, -1.0
        %v844 = vmul.f32 %v481, %v481
        %v845 = vmin.f32 16.0, %v844
        %v846 = vmul.f32 %v845, 2.1237322e-06
        %v847 = vadd.f32 %v846, 0.00028619796
        %v848 = vmul.f32 %v845, %v847
        %v849 = vadd.f32 %v848, 0.0036580483
        %v850 = vmul.f32 %v845, %v849
        %v851 = vadd.f32 %v850, 0.05243302
        %v852 = vmul.f32 %v845, %v851
        %v853 = vadd.f32 %v852, 0.18741608
        %v854 = vmul.f32 %v845, %v853
        %v855 = vadd.f32 %v854, 1.1283791
        %v856 = vmul.f32 %v481, %v855
        %v857 = vmul.f32 %v845, 3.8918573e-05
        %v858 = vadd.f32 %v857, 0.001143296
        %v859 = vmul.f32 %v845, %v858
        %v860 = vadd.f32 %v859, 0.014752088
        %v861 = vmul.f32 %v845, %v860
        %v862 = vadd.f32 %v861, 0.112945676
        %v863 = vmul.f32 %v845, %v862
        %v864 = vadd.f32 %v863, 0.4994258
        %v865 = vmul.f32 %v845, %v864
        %v866 = vadd.f32 %v865, 1.0
        %v867 = vrcp.pop %v866
        %v868 = vmul.f32 %v866, %v867
        %v869 = vsub.f32 1.0, %v868
        %v870 = vmul.f32 %v867, %v869
        %v871 = vadd.f32 %v867, %v870
        %vm872 = vweird.f32 %v866
        %vm873 = vweird.f32 %v867
        %vm874 = vmor %vm872, %vm873
        %v875 = vsel %vm874, %v867, %v871
        %v876 = vand.u32 2147483647, %v866
        %vm877 = vcmp.eq.f32.partialorder %v876, 8.507059e+37
        %v878 = vand.u32 %v866, 2147483648
        %v879 = vor.u32 1.1754944e-38, %v878
        %v880 = vsel %vm877, %v879, %v875
        %v881 = vmul.f32 %v856, %v880
        %v882 = vmin.f32 %v881, 1.0
        %v883 = vmax.f32 %v882, -1.0
        %v884 = vmul.f32 %v482, %v482
        %v885 = vmin.f32 16.0, %v884
        %v886 = vmul.f32 %v885, 2.1237322e-06
        %v887 = vadd.f32 %v886, 0.00028619796
        %v888 = vmul.f32 %v885, %v887
        %v889 = vadd.f32 %v888, 0.0036580483
        %v890 = vmul.f32 %v885, %v889
        %v891 = vadd.f32 %v890, 0.05243302
        %v892 = vmul.f32 %v885, %v891
        %v893 = vadd.f32 %v892, 0.18741608
        %v894 = vmul.f32 %v885, %v893
        %v895 = vadd.f32 %v894, 1.1283791
        %v896 = vmul.f32 %v482, %v895
        %v897 = vmul.f32 %v885, 3.8918573e-05
        %v898 = vadd.f32 %v897, 0.001143296
        %v899 = vmul.f32 %v885, %v898
        %v900 = vadd.f32 %v899, 0.014752088
        %v901 = vmul.f32 %v885, %v900
        %v902 = vadd.f32 %v901, 0.112945676
        %v903 = vmul.f32 %v885, %v902
        %v904 = vadd.f32 %v903, 0.4994258
        %v905 = vmul.f32 %v885, %v904
        %v906 = vadd.f32 %v905, 1.0
        %v907 = vrcp.pop %v906
        %v908 = vmul.f32 %v906, %v907
        %v909 = vsub.f32 1.0, %v908
        %v910 = vmul.f32 %v907, %v909
        %v911 = vadd.f32 %v907, %v910
        %vm912 = vweird.f32 %v906
        %vm913 = vweird.f32 %v907
        %vm914 = vmor %vm912, %vm913
        %v915 = vsel %vm914, %v907, %v911
        %v916 = vand.u32 2147483647, %v906
        %vm917 = vcmp.eq.f32.partialorder %v916, 8.507059e+37
        %v918 = vand.u32 %v906, 2147483648
        %v919 = vor.u32 1.1754944e-38, %v918
        %v920 = vsel %vm917, %v919, %v915
        %v921 = vmul.f32 %v896, %v920
        %v922 = vmin.f32 %v921, 1.0
        %v923 = vmax.f32 %v922, -1.0
        %v924 = vmul.f32 %v483, %v483
        %v925 = vmin.f32 16.0, %v924
        %v926 = vmul.f32 %v925, 2.1237322e-06
        %v927 = vadd.f32 %v926, 0.00028619796
        %v928 = vmul.f32 %v925, %v927
        %v929 = vadd.f32 %v928, 0.0036580483
        %v930 = vmul.f32 %v925, %v929
        %v931 = vadd.f32 %v930, 0.05243302
        %v932 = vmul.f32 %v925, %v931
        %v933 = vadd.f32 %v932, 0.18741608
        %v934 = vmul.f32 %v925, %v933
        %v935 = vadd.f32 %v934, 1.1283791
        %v936 = vmul.f32 %v483, %v935
        %v937 = vmul.f32 %v925, 3.8918573e-05
        %v938 = vadd.f32 %v937, 0.001143296
        %v939 = vmul.f32 %v925, %v938
        %v940 = vadd.f32 %v939, 0.014752088
        %v941 = vmul.f32 %v925, %v940
        %v942 = vadd.f32 %v941, 0.112945676
        %v943 = vmul.f32 %v925, %v942
        %v944 = vadd.f32 %v943, 0.4994258
        %v945 = vmul.f32 %v925, %v944
        %v946 = vadd.f32 %v945, 1.0
        %v947 = vrcp.pop %v946
        %v948 = vmul.f32 %v946, %v947
        %v949 = vsub.f32 1.0, %v948
        %v950 = vmul.f32 %v947, %v949
        %v951 = vadd.f32 %v947, %v950
        %vm952 = vweird.f32 %v946
        %vm953 = vweird.f32 %v947
        %vm954 = vmor %vm952, %vm953
        %v955 = vsel %vm954, %v947, %v951
        %v956 = vand.u32 2147483647, %v946
        %vm957 = vcmp.eq.f32.partialorder %v956, 8.507059e+37
        %v958 = vand.u32 %v946, 2147483648
        %v959 = vor.u32 1.1754944e-38, %v958
        %v960 = vsel %vm957, %v959, %v955
        %v961 = vmul.f32 %v936, %v960
        %v962 = vmin.f32 %v961, 1.0
        %v963 = vmax.f32 %v962, -1.0
        %v964 = vmul.f32 %v484, %v484
        %v965 = vmin.f32 16.0, %v964
        %v966 = vmul.f32 %v965, 2.1237322e-06
        %v967 = vadd.f32 %v966, 0.00028619796
        %v968 = vmul.f32 %v965, %v967
        %v969 = vadd.f32 %v968, 0.0036580483
        %v970 = vmul.f32 %v965, %v969
        %v971 = vadd.f32 %v970, 0.05243302
        %v972 = vmul.f32 %v965, %v971
        %v973 = vadd.f32 %v972, 0.18741608
        %v974 = vmul.f32 %v965, %v973
        %v975 = vadd.f32 %v974, 1.1283791
        %v976 = vmul.f32 %v484, %v975
        %v977 = vmul.f32 %v965, 3.8918573e-05
        %v978 = vadd.f32 %v977, 0.001143296
        %v979 = vmul.f32 %v965, %v978
        %v980 = vadd.f32 %v979, 0.014752088
        %v981 = vmul.f32 %v965, %v980
        %v982 = vadd.f32 %v981, 0.112945676
        %v983 = vmul.f32 %v965, %v982
        %v984 = vadd.f32 %v983, 0.4994258
        %v985 = vmul.f32 %v965, %v984
        %v986 = vadd.f32 %v985, 1.0
        %v987 = vrcp.pop %v986
        %v988 = vmul.f32 %v986, %v987
        %v989 = vsub.f32 1.0, %v988
        %v990 = vmul.f32 %v987, %v989
        %v991 = vadd.f32 %v987, %v990
        %vm992 = vweird.f32 %v986
        %vm993 = vweird.f32 %v987
        %vm994 = vmor %vm992, %vm993
        %v995 = vsel %vm994, %v987, %v991
        %v996 = vand.u32 2147483647, %v986
        %vm997 = vcmp.eq.f32.partialorder %v996, 8.507059e+37
        %v998 = vand.u32 %v986, 2147483648
        %v999 = vor.u32 1.1754944e-38, %v998
        %v1000 = vsel %vm997, %v999, %v995
        %v1001 = vmul.f32 %v976, %v1000
        %v1002 = vmin.f32 %v1001, 1.0
        %v1003 = vmax.f32 %v1002, -1.0
        %v1004 = vmul.f32 %v485, %v485
        %v1005 = vmin.f32 16.0, %v1004
        %v1006 = vmul.f32 %v1005, 2.1237322e-06
        %v1007 = vadd.f32 %v1006, 0.00028619796
        %v1008 = vmul.f32 %v1005, %v1007
        %v1009 = vadd.f32 %v1008, 0.0036580483
        %v1010 = vmul.f32 %v1005, %v1009
        %v1011 = vadd.f32 %v1010, 0.05243302
        %v1012 = vmul.f32 %v1005, %v1011
        %v1013 = vadd.f32 %v1012, 0.18741608
        %v1014 = vmul.f32 %v1005, %v1013
        %v1015 = vadd.f32 %v1014, 1.1283791
        %v1016 = vmul.f32 %v485, %v1015
        %v1017 = vmul.f32 %v1005, 3.8918573e-05
        %v1018 = vadd.f32 %v1017, 0.001143296
        %v1019 = vmul.f32 %v1005, %v1018
        %v1020 = vadd.f32 %v1019, 0.014752088
        %v1021 = vmul.f32 %v1005, %v1020
        %v1022 = vadd.f32 %v1021, 0.112945676
        %v1023 = vmul.f32 %v1005, %v1022
        %v1024 = vadd.f32 %v1023, 0.4994258
        %v1025 = vmul.f32 %v1005, %v1024
        %v1026 = vadd.f32 %v1025, 1.0
        %v1027 = vrcp.pop %v1026
        %v1028 = vmul.f32 %v1026, %v1027
        %v1029 = vsub.f32 1.0, %v1028
        %v1030 = vmul.f32 %v1027, %v1029
        %v1031 = vadd.f32 %v1027, %v1030
        %vm1032 = vweird.f32 %v1026
        %vm1033 = vweird.f32 %v1027
        %vm1034 = vmor %vm1032, %vm1033
        %v1035 = vsel %vm1034, %v1027, %v1031
        %v1036 = vand.u32 2147483647, %v1026
        %vm1037 = vcmp.eq.f32.partialorder %v1036, 8.507059e+37
        %v1038 = vand.u32 %v1026, 2147483648
        %v1039 = vor.u32 1.1754944e-38, %v1038
        %v1040 = vsel %vm1037, %v1039, %v1035
        %v1041 = vmul.f32 %v1016, %v1040
        %v1042 = vmin.f32 %v1041, 1.0
        %v1043 = vmax.f32 %v1042, -1.0
        %v1044 = vmul.f32 %v486, %v486
        %v1045 = vmin.f32 16.0, %v1044
        %v1046 = vmul.f32 %v1045, 2.1237322e-06
        %v1047 = vadd.f32 %v1046, 0.00028619796
        %v1048 = vmul.f32 %v1045, %v1047
        %v1049 = vadd.f32 %v1048, 0.0036580483
        %v1050 = vmul.f32 %v1045, %v1049
        %v1051 = vadd.f32 %v1050, 0.05243302
        %v1052 = vmul.f32 %v1045, %v1051
        %v1053 = vadd.f32 %v1052, 0.18741608
        %v1054 = vmul.f32 %v1045, %v1053
        %v1055 = vadd.f32 %v1054, 1.1283791
        %v1056 = vmul.f32 %v486, %v1055
        %v1057 = vmul.f32 %v1045, 3.8918573e-05
        %v1058 = vadd.f32 %v1057, 0.001143296
        %v1059 = vmul.f32 %v1045, %v1058
        %v1060 = vadd.f32 %v1059, 0.014752088
        %v1061 = vmul.f32 %v1045, %v1060
        %v1062 = vadd.f32 %v1061, 0.112945676
        %v1063 = vmul.f32 %v1045, %v1062
        %v1064 = vadd.f32 %v1063, 0.4994258
        %v1065 = vmul.f32 %v1045, %v1064
        %v1066 = vadd.f32 %v1065, 1.0
        %v1067 = vrcp.pop %v1066
        %v1068 = vmul.f32 %v1066, %v1067
        %v1069 = vsub.f32 1.0, %v1068
        %v1070 = vmul.f32 %v1067, %v1069
        %v1071 = vadd.f32 %v1067, %v1070
        %vm1072 = vweird.f32 %v1066
        %vm1073 = vweird.f32 %v1067
        %vm1074 = vmor %vm1072, %vm1073
        %v1075 = vsel %vm1074, %v1067, %v1071
        %v1076 = vand.u32 2147483647, %v1066
        %vm1077 = vcmp.eq.f32.partialorder %v1076, 8.507059e+37
        %v1078 = vand.u32 %v1066, 2147483648
        %v1079 = vor.u32 1.1754944e-38, %v1078
        %v1080 = vsel %vm1077, %v1079, %v1075
        %v1081 = vmul.f32 %v1056, %v1080
        %v1082 = vmin.f32 %v1081, 1.0
        %v1083 = vmax.f32 %v1082, -1.0
        %v1084 = vmul.f32 %v487, %v487
        %v1085 = vmin.f32 16.0, %v1084
        %v1086 = vmul.f32 %v1085, 2.1237322e-06
        %v1087 = vadd.f32 %v1086, 0.00028619796
        %v1088 = vmul.f32 %v1085, %v1087
        %v1089 = vadd.f32 %v1088, 0.0036580483
        %v1090 = vmul.f32 %v1085, %v1089
        %v1091 = vadd.f32 %v1090, 0.05243302
        %v1092 = vmul.f32 %v1085, %v1091
        %v1093 = vadd.f32 %v1092, 0.18741608
        %v1094 = vmul.f32 %v1085, %v1093
        %v1095 = vadd.f32 %v1094, 1.1283791
        %v1096 = vmul.f32 %v487, %v1095
        %v1097 = vmul.f32 %v1085, 3.8918573e-05
        %v1098 = vadd.f32 %v1097, 0.001143296
        %v1099 = vmul.f32 %v1085, %v1098
        %v1100 = vadd.f32 %v1099, 0.014752088
        %v1101 = vmul.f32 %v1085, %v1100
        %v1102 = vadd.f32 %v1101, 0.112945676
        %v1103 = vmul.f32 %v1085, %v1102
        %v1104 = vadd.f32 %v1103, 0.4994258
        %v1105 = vmul.f32 %v1085, %v1104
        %v1106 = vadd.f32 %v1105, 1.0
        %v1107 = vrcp.pop %v1106
        %v1108 = vmul.f32 %v1106, %v1107
        %v1109 = vsub.f32 1.0, %v1108
        %v1110 = vmul.f32 %v1107, %v1109
        %v1111 = vadd.f32 %v1107, %v1110
        %vm1112 = vweird.f32 %v1106
        %vm1113 = vweird.f32 %v1107
        %vm1114 = vmor %vm1112, %vm1113
        %v1115 = vsel %vm1114, %v1107, %v1111
        %v1116 = vand.u32 2147483647, %v1106
        %vm1117 = vcmp.eq.f32.partialorder %v1116, 8.507059e+37
        %v1118 = vand.u32 %v1106, 2147483648
        %v1119 = vor.u32 1.1754944e-38, %v1118
        %v1120 = vsel %vm1117, %v1119, %v1115
        %v1121 = vmul.f32 %v1096, %v1120
        %v1122 = vmin.f32 %v1121, 1.0
        %v1123 = vmax.f32 %v1122, -1.0
        %v1124 = vmul.f32 %v488, %v488
        %v1125 = vmin.f32 16.0, %v1124
        %v1126 = vmul.f32 %v1125, 2.1237322e-06
        %v1127 = vadd.f32 %v1126, 0.00028619796
        %v1128 = vmul.f32 %v1125, %v1127
        %v1129 = vadd.f32 %v1128, 0.0036580483
        %v1130 = vmul.f32 %v1125, %v1129
        %v1131 = vadd.f32 %v1130, 0.05243302
        %v1132 = vmul.f32 %v1125, %v1131
        %v1133 = vadd.f32 %v1132, 0.18741608
        %v1134 = vmul.f32 %v1125, %v1133
        %v1135 = vadd.f32 %v1134, 1.1283791
        %v1136 = vmul.f32 %v488, %v1135
        %v1137 = vmul.f32 %v1125, 3.8918573e-05
        %v1138 = vadd.f32 %v1137, 0.001143296
        %v1139 = vmul.f32 %v1125, %v1138
        %v1140 = vadd.f32 %v1139, 0.014752088
        %v1141 = vmul.f32 %v1125, %v1140
        %v1142 = vadd.f32 %v1141, 0.112945676
        %v1143 = vmul.f32 %v1125, %v1142
        %v1144 = vadd.f32 %v1143, 0.4994258
        %v1145 = vmul.f32 %v1125, %v1144
        %v1146 = vadd.f32 %v1145, 1.0
        %v1147 = vrcp.pop %v1146
        %v1148 = vmul.f32 %v1146, %v1147
        %v1149 = vsub.f32 1.0, %v1148
        %v1150 = vmul.f32 %v1147, %v1149
        %v1151 = vadd.f32 %v1147, %v1150
        %vm1152 = vweird.f32 %v1146
        %vm1153 = vweird.f32 %v1147
        %vm1154 = vmor %vm1152, %vm1153
        %v1155 = vsel %vm1154, %v1147, %v1151
        %v1156 = vand.u32 2147483647, %v1146
        %vm1157 = vcmp.eq.f32.partialorder %v1156, 8.507059e+37
        %v1158 = vand.u32 %v1146, 2147483648
        %v1159 = vor.u32 1.1754944e-38, %v1158
        %v1160 = vsel %vm1157, %v1159, %v1155
        %v1161 = vmul.f32 %v1136, %v1160
        %v1162 = vmin.f32 %v1161, 1.0
        %v1163 = vmax.f32 %v1162, -1.0
        %v1164 = vmul.f32 %v489, %v489
        %v1165 = vmin.f32 16.0, %v1164
        %v1166 = vmul.f32 %v1165, 2.1237322e-06
        %v1167 = vadd.f32 %v1166, 0.00028619796
        %v1168 = vmul.f32 %v1165, %v1167
        %v1169 = vadd.f32 %v1168, 0.0036580483
        %v1170 = vmul.f32 %v1165, %v1169
        %v1171 = vadd.f32 %v1170, 0.05243302
        %v1172 = vmul.f32 %v1165, %v1171
        %v1173 = vadd.f32 %v1172, 0.18741608
        %v1174 = vmul.f32 %v1165, %v1173
        %v1175 = vadd.f32 %v1174, 1.1283791
        %v1176 = vmul.f32 %v489, %v1175
        %v1177 = vmul.f32 %v1165, 3.8918573e-05
        %v1178 = vadd.f32 %v1177, 0.001143296
        %v1179 = vmul.f32 %v1165, %v1178
        %v1180 = vadd.f32 %v1179, 0.014752088
        %v1181 = vmul.f32 %v1165, %v1180
        %v1182 = vadd.f32 %v1181, 0.112945676
        %v1183 = vmul.f32 %v1165, %v1182
        %v1184 = vadd.f32 %v1183, 0.4994258
        %v1185 = vmul.f32 %v1165, %v1184
        %v1186 = vadd.f32 %v1185, 1.0
        %v1187 = vrcp.pop %v1186
        %v1188 = vmul.f32 %v1186, %v1187
        %v1189 = vsub.f32 1.0, %v1188
        %v1190 = vmul.f32 %v1187, %v1189
        %v1191 = vadd.f32 %v1187, %v1190
        %vm1192 = vweird.f32 %v1186
        %vm1193 = vweird.f32 %v1187
        %vm1194 = vmor %vm1192, %vm1193
        %v1195 = vsel %vm1194, %v1187, %v1191
        %v1196 = vand.u32 2147483647, %v1186
        %vm1197 = vcmp.eq.f32.partialorder %v1196, 8.507059e+37
        %v1198 = vand.u32 %v1186, 2147483648
        %v1199 = vor.u32 1.1754944e-38, %v1198
        %v1200 = vsel %vm1197, %v1199, %v1195
        %v1201 = vmul.f32 %v1176, %v1200
        %v1202 = vmin.f32 %v1201, 1.0
        %v1203 = vmax.f32 %v1202, -1.0
        %v1204 = vmul.f32 %v490, %v490
        %v1205 = vmin.f32 16.0, %v1204
        %v1206 = vmul.f32 %v1205, 2.1237322e-06
        %v1207 = vadd.f32 %v1206, 0.00028619796
        %v1208 = vmul.f32 %v1205, %v1207
        %v1209 = vadd.f32 %v1208, 0.0036580483
        %v1210 = vmul.f32 %v1205, %v1209
        %v1211 = vadd.f32 %v1210, 0.05243302
        %v1212 = vmul.f32 %v1205, %v1211
        %v1213 = vadd.f32 %v1212, 0.18741608
        %v1214 = vmul.f32 %v1205, %v1213
        %v1215 = vadd.f32 %v1214, 1.1283791
        %v1216 = vmul.f32 %v490, %v1215
        %v1217 = vmul.f32 %v1205, 3.8918573e-05
        %v1218 = vadd.f32 %v1217, 0.001143296
        %v1219 = vmul.f32 %v1205, %v1218
        %v1220 = vadd.f32 %v1219, 0.014752088
        %v1221 = vmul.f32 %v1205, %v1220
        %v1222 = vadd.f32 %v1221, 0.112945676
        %v1223 = vmul.f32 %v1205, %v1222
        %v1224 = vadd.f32 %v1223, 0.4994258
        %v1225 = vmul.f32 %v1205, %v1224
        %v1226 = vadd.f32 %v1225, 1.0
        %v1227 = vrcp.pop %v1226
        %v1228 = vmul.f32 %v1226, %v1227
        %v1229 = vsub.f32 1.0, %v1228
        %v1230 = vmul.f32 %v1227, %v1229
        %v1231 = vadd.f32 %v1227, %v1230
        %vm1232 = vweird.f32 %v1226
        %vm1233 = vweird.f32 %v1227
        %vm1234 = vmor %vm1232, %vm1233
        %v1235 = vsel %vm1234, %v1227, %v1231
        %v1236 = vand.u32 2147483647, %v1226
        %vm1237 = vcmp.eq.f32.partialorder %v1236, 8.507059e+37
        %v1238 = vand.u32 %v1226, 2147483648
        %v1239 = vor.u32 1.1754944e-38, %v1238
        %v1240 = vsel %vm1237, %v1239, %v1235
        %v1241 = vmul.f32 %v1216, %v1240
        %v1242 = vmin.f32 %v1241, 1.0
        %v1243 = vmax.f32 %v1242, -1.0
        %v1244 = vmul.f32 %v491, %v491
        %v1245 = vmin.f32 16.0, %v1244
        %v1246 = vmul.f32 %v1245, 2.1237322e-06
        %v1247 = vadd.f32 %v1246, 0.00028619796
        %v1248 = vmul.f32 %v1245, %v1247
        %v1249 = vadd.f32 %v1248, 0.0036580483
        %v1250 = vmul.f32 %v1245, %v1249
        %v1251 = vadd.f32 %v1250, 0.05243302
        %v1252 = vmul.f32 %v1245, %v1251
        %v1253 = vadd.f32 %v1252, 0.18741608
        %v1254 = vmul.f32 %v1245, %v1253
        %v1255 = vadd.f32 %v1254, 1.1283791
        %v1256 = vmul.f32 %v491, %v1255
        %v1257 = vmul.f32 %v1245, 3.8918573e-05
        %v1258 = vadd.f32 %v1257, 0.001143296
        %v1259 = vmul.f32 %v1245, %v1258
        %v1260 = vadd.f32 %v1259, 0.014752088
        %v1261 = vmul.f32 %v1245, %v1260
        %v1262 = vadd.f32 %v1261, 0.112945676
        %v1263 = vmul.f32 %v1245, %v1262
        %v1264 = vadd.f32 %v1263, 0.4994258
        %v1265 = vmul.f32 %v1245, %v1264
        %v1266 = vadd.f32 %v1265, 1.0
        %v1267 = vrcp.pop %v1266
        %v1268 = vmul.f32 %v1266, %v1267
        %v1269 = vsub.f32 1.0, %v1268
        %v1270 = vmul.f32 %v1267, %v1269
        %v1271 = vadd.f32 %v1267, %v1270
        %vm1272 = vweird.f32 %v1266
        %vm1273 = vweird.f32 %v1267
        %vm1274 = vmor %vm1272, %vm1273
        %v1275 = vsel %vm1274, %v1267, %v1271
        %v1276 = vand.u32 2147483647, %v1266
        %vm1277 = vcmp.eq.f32.partialorder %v1276, 8.507059e+37
        %v1278 = vand.u32 %v1266, 2147483648
        %v1279 = vor.u32 1.1754944e-38, %v1278
        %v1280 = vsel %vm1277, %v1279, %v1275
        %v1281 = vmul.f32 %v1256, %v1280
        %v1282 = vmin.f32 %v1281, 1.0
        %v1283 = vmax.f32 %v1282, -1.0
        %v1284 = vmul.f32 %v492, %v492
        %v1285 = vmin.f32 16.0, %v1284
        %v1286 = vmul.f32 %v1285, 2.1237322e-06
        %v1287 = vadd.f32 %v1286, 0.00028619796
        %v1288 = vmul.f32 %v1285, %v1287
        %v1289 = vadd.f32 %v1288, 0.0036580483
        %v1290 = vmul.f32 %v1285, %v1289
        %v1291 = vadd.f32 %v1290, 0.05243302
        %v1292 = vmul.f32 %v1285, %v1291
        %v1293 = vadd.f32 %v1292, 0.18741608
        %v1294 = vmul.f32 %v1285, %v1293
        %v1295 = vadd.f32 %v1294, 1.1283791
        %v1296 = vmul.f32 %v492, %v1295
        %v1297 = vmul.f32 %v1285, 3.8918573e-05
        %v1298 = vadd.f32 %v1297, 0.001143296
        %v1299 = vmul.f32 %v1285, %v1298
        %v1300 = vadd.f32 %v1299, 0.014752088
        %v1301 = vmul.f32 %v1285, %v1300
        %v1302 = vadd.f32 %v1301, 0.112945676
        %v1303 = vmul.f32 %v1285, %v1302
        %v1304 = vadd.f32 %v1303, 0.4994258
        %v1305 = vmul.f32 %v1285, %v1304
        %v1306 = vadd.f32 %v1305, 1.0
        %v1307 = vrcp.pop %v1306
        %v1308 = vmul.f32 %v1306, %v1307
        %v1309 = vsub.f32 1.0, %v1308
        %v1310 = vmul.f32 %v1307, %v1309
        %v1311 = vadd.f32 %v1307, %v1310
        %vm1312 = vweird.f32 %v1306
        %vm1313 = vweird.f32 %v1307
        %vm1314 = vmor %vm1312, %vm1313
        %v1315 = vsel %vm1314, %v1307, %v1311
        %v1316 = vand.u32 2147483647, %v1306
        %vm1317 = vcmp.eq.f32.partialorder %v1316, 8.507059e+37
        %v1318 = vand.u32 %v1306, 2147483648
        %v1319 = vor.u32 1.1754944e-38, %v1318
        %v1320 = vsel %vm1317, %v1319, %v1315
        %v1321 = vmul.f32 %v1296, %v1320
        %v1322 = vmin.f32 %v1321, 1.0
        %v1323 = vmax.f32 %v1322, -1.0
        %v1324 = vmul.f32 %v493, %v493
        %v1325 = vmin.f32 16.0, %v1324
        %v1326 = vmul.f32 %v1325, 2.1237322e-06
        %v1327 = vadd.f32 %v1326, 0.00028619796
        %v1328 = vmul.f32 %v1325, %v1327
        %v1329 = vadd.f32 %v1328, 0.0036580483
        %v1330 = vmul.f32 %v1325, %v1329
        %v1331 = vadd.f32 %v1330, 0.05243302
        %v1332 = vmul.f32 %v1325, %v1331
        %v1333 = vadd.f32 %v1332, 0.18741608
        %v1334 = vmul.f32 %v1325, %v1333
        %v1335 = vadd.f32 %v1334, 1.1283791
        %v1336 = vmul.f32 %v493, %v1335
        %v1337 = vmul.f32 %v1325, 3.8918573e-05
        %v1338 = vadd.f32 %v1337, 0.001143296
        %v1339 = vmul.f32 %v1325, %v1338
        %v1340 = vadd.f32 %v1339, 0.014752088
        %v1341 = vmul.f32 %v1325, %v1340
        %v1342 = vadd.f32 %v1341, 0.112945676
        %v1343 = vmul.f32 %v1325, %v1342
        %v1344 = vadd.f32 %v1343, 0.4994258
        %v1345 = vmul.f32 %v1325, %v1344
        %v1346 = vadd.f32 %v1345, 1.0
        %v1347 = vrcp.pop %v1346
        %v1348 = vmul.f32 %v1346, %v1347
        %v1349 = vsub.f32 1.0, %v1348
        %v1350 = vmul.f32 %v1347, %v1349
        %v1351 = vadd.f32 %v1347, %v1350
        %vm1352 = vweird.f32 %v1346
        %vm1353 = vweird.f32 %v1347
        %vm1354 = vmor %vm1352, %vm1353
        %v1355 = vsel %vm1354, %v1347, %v1351
        %v1356 = vand.u32 2147483647, %v1346
        %vm1357 = vcmp.eq.f32.partialorder %v1356, 8.507059e+37
        %v1358 = vand.u32 %v1346, 2147483648
        %v1359 = vor.u32 1.1754944e-38, %v1358
        %v1360 = vsel %vm1357, %v1359, %v1355
        %v1361 = vmul.f32 %v1336, %v1360
        %v1362 = vmin.f32 %v1361, 1.0
        %v1363 = vmax.f32 %v1362, -1.0
        %v1364 = vmul.f32 %v494, %v494
        %v1365 = vmin.f32 16.0, %v1364
        %v1366 = vmul.f32 %v1365, 2.1237322e-06
        %v1367 = vadd.f32 %v1366, 0.00028619796
        %v1368 = vmul.f32 %v1365, %v1367
        %v1369 = vadd.f32 %v1368, 0.0036580483
        %v1370 = vmul.f32 %v1365, %v1369
        %v1371 = vadd.f32 %v1370, 0.05243302
        %v1372 = vmul.f32 %v1365, %v1371
        %v1373 = vadd.f32 %v1372, 0.18741608
        %v1374 = vmul.f32 %v1365, %v1373
        %v1375 = vadd.f32 %v1374, 1.1283791
        %v1376 = vmul.f32 %v494, %v1375
        %v1377 = vmul.f32 %v1365, 3.8918573e-05
        %v1378 = vadd.f32 %v1377, 0.001143296
        %v1379 = vmul.f32 %v1365, %v1378
        %v1380 = vadd.f32 %v1379, 0.014752088
        %v1381 = vmul.f32 %v1365, %v1380
        %v1382 = vadd.f32 %v1381, 0.112945676
        %v1383 = vmul.f32 %v1365, %v1382
        %v1384 = vadd.f32 %v1383, 0.4994258
        %v1385 = vmul.f32 %v1365, %v1384
        %v1386 = vadd.f32 %v1385, 1.0
        %v1387 = vrcp.pop %v1386
        %v1388 = vmul.f32 %v1386, %v1387
        %v1389 = vsub.f32 1.0, %v1388
        %v1390 = vmul.f32 %v1387, %v1389
        %v1391 = vadd.f32 %v1387, %v1390
        %vm1392 = vweird.f32 %v1386
        %vm1393 = vweird.f32 %v1387
        %vm1394 = vmor %vm1392, %vm1393
        %v1395 = vsel %vm1394, %v1387, %v1391
        %v1396 = vand.u32 2147483647, %v1386
        %vm1397 = vcmp.eq.f32.partialorder %v1396, 8.507059e+37
        %v1398 = vand.u32 %v1386, 2147483648
        %v1399 = vor.u32 1.1754944e-38, %v1398
        %v1400 = vsel %vm1397, %v1399, %v1395
        %v1401 = vmul.f32 %v1376, %v1400
        %v1402 = vmin.f32 %v1401, 1.0
        %v1403 = vmax.f32 %v1402, -1.0
        %v1404 = vmul.f32 %v495, %v495
        %v1405 = vmin.f32 16.0, %v1404
        %v1406 = vmul.f32 %v1405, 2.1237322e-06
        %v1407 = vadd.f32 %v1406, 0.00028619796
        %v1408 = vmul.f32 %v1405, %v1407
        %v1409 = vadd.f32 %v1408, 0.0036580483
        %v1410 = vmul.f32 %v1405, %v1409
        %v1411 = vadd.f32 %v1410, 0.05243302
        %v1412 = vmul.f32 %v1405, %v1411
        %v1413 = vadd.f32 %v1412, 0.18741608
        %v1414 = vmul.f32 %v1405, %v1413
        %v1415 = vadd.f32 %v1414, 1.1283791
        %v1416 = vmul.f32 %v495, %v1415
        %v1417 = vmul.f32 %v1405, 3.8918573e-05
        %v1418 = vadd.f32 %v1417, 0.001143296
        %v1419 = vmul.f32 %v1405, %v1418
        %v1420 = vadd.f32 %v1419, 0.014752088
        %v1421 = vmul.f32 %v1405, %v1420
        %v1422 = vadd.f32 %v1421, 0.112945676
        %v1423 = vmul.f32 %v1405, %v1422
        %v1424 = vadd.f32 %v1423, 0.4994258
        %v1425 = vmul.f32 %v1405, %v1424
        %v1426 = vadd.f32 %v1425, 1.0
        %v1427 = vrcp.pop %v1426
        %v1428 = vmul.f32 %v1426, %v1427
        %v1429 = vsub.f32 1.0, %v1428
        %v1430 = vmul.f32 %v1427, %v1429
        %v1431 = vadd.f32 %v1427, %v1430
        %vm1432 = vweird.f32 %v1426
        %vm1433 = vweird.f32 %v1427
        %vm1434 = vmor %vm1432, %vm1433
        %v1435 = vsel %vm1434, %v1427, %v1431
        %v1436 = vand.u32 2147483647, %v1426
        %vm1437 = vcmp.eq.f32.partialorder %v1436, 8.507059e+37
        %v1438 = vand.u32 %v1426, 2147483648
        %v1439 = vor.u32 1.1754944e-38, %v1438
        %v1440 = vsel %vm1437, %v1439, %v1435
        %v1441 = vmul.f32 %v1416, %v1440
        %v1442 = vmin.f32 %v1441, 1.0
        %v1443 = vmax.f32 %v1442, -1.0
        %v1444 = vmul.f32 %v496, %v496
        %v1445 = vmin.f32 16.0, %v1444
        %v1446 = vmul.f32 %v1445, 2.1237322e-06
        %v1447 = vadd.f32 %v1446, 0.00028619796
        %v1448 = vmul.f32 %v1445, %v1447
        %v1449 = vadd.f32 %v1448, 0.0036580483
        %v1450 = vmul.f32 %v1445, %v1449
        %v1451 = vadd.f32 %v1450, 0.05243302
        %v1452 = vmul.f32 %v1445, %v1451
        %v1453 = vadd.f32 %v1452, 0.18741608
        %v1454 = vmul.f32 %v1445, %v1453
        %v1455 = vadd.f32 %v1454, 1.1283791
        %v1456 = vmul.f32 %v496, %v1455
        %v1457 = vmul.f32 %v1445, 3.8918573e-05
        %v1458 = vadd.f32 %v1457, 0.001143296
        %v1459 = vmul.f32 %v1445, %v1458
        %v1460 = vadd.f32 %v1459, 0.014752088
        %v1461 = vmul.f32 %v1445, %v1460
        %v1462 = vadd.f32 %v1461, 0.112945676
        %v1463 = vmul.f32 %v1445, %v1462
        %v1464 = vadd.f32 %v1463, 0.4994258
        %v1465 = vmul.f32 %v1445, %v1464
        %v1466 = vadd.f32 %v1465, 1.0
        %v1467 = vrcp.pop %v1466
        %v1468 = vmul.f32 %v1466, %v1467
        %v1469 = vsub.f32 1.0, %v1468
        %v1470 = vmul.f32 %v1467, %v1469
        %v1471 = vadd.f32 %v1467, %v1470
        %vm1472 = vweird.f32 %v1466
        %vm1473 = vweird.f32 %v1467
        %vm1474 = vmor %vm1472, %vm1473
        %v1475 = vsel %vm1474, %v1467, %v1471
        %v1476 = vand.u32 2147483647, %v1466
        %vm1477 = vcmp.eq.f32.partialorder %v1476, 8.507059e+37
        %v1478 = vand.u32 %v1466, 2147483648
        %v1479 = vor.u32 1.1754944e-38, %v1478
        %v1480 = vsel %vm1477, %v1479, %v1475
        %v1481 = vmul.f32 %v1456, %v1480
        %v1482 = vmin.f32 %v1481, 1.0
        %v1483 = vmax.f32 %v1482, -1.0
        %v1484 = vmul.f32 %v497, %v497
        %v1485 = vmin.f32 16.0, %v1484
        %v1486 = vmul.f32 %v1485, 2.1237322e-06
        %v1487 = vadd.f32 %v1486, 0.00028619796
        %v1488 = vmul.f32 %v1485, %v1487
        %v1489 = vadd.f32 %v1488, 0.0036580483
        %v1490 = vmul.f32 %v1485, %v1489
        %v1491 = vadd.f32 %v1490, 0.05243302
        %v1492 = vmul.f32 %v1485, %v1491
        %v1493 = vadd.f32 %v1492, 0.18741608
        %v1494 = vmul.f32 %v1485, %v1493
        %v1495 = vadd.f32 %v1494, 1.1283791
        %v1496 = vmul.f32 %v497, %v1495
        %v1497 = vmul.f32 %v1485, 3.8918573e-05
        %v1498 = vadd.f32 %v1497, 0.001143296
        %v1499 = vmul.f32 %v1485, %v1498
        %v1500 = vadd.f32 %v1499, 0.014752088
        %v1501 = vmul.f32 %v1485, %v1500
        %v1502 = vadd.f32 %v1501, 0.112945676
        %v1503 = vmul.f32 %v1485, %v1502
        %v1504 = vadd.f32 %v1503, 0.4994258
        %v1505 = vmul.f32 %v1485, %v1504
        %v1506 = vadd.f32 %v1505, 1.0
        %v1507 = vrcp.pop %v1506
        %v1508 = vmul.f32 %v1506, %v1507
        %v1509 = vsub.f32 1.0, %v1508
        %v1510 = vmul.f32 %v1507, %v1509
        %v1511 = vadd.f32 %v1507, %v1510
        %vm1512 = vweird.f32 %v1506
        %vm1513 = vweird.f32 %v1507
        %vm1514 = vmor %vm1512, %vm1513
        %v1515 = vsel %vm1514, %v1507, %v1511
        %v1516 = vand.u32 2147483647, %v1506
        %vm1517 = vcmp.eq.f32.partialorder %v1516, 8.507059e+37
        %v1518 = vand.u32 %v1506, 2147483648
        %v1519 = vor.u32 1.1754944e-38, %v1518
        %v1520 = vsel %vm1517, %v1519, %v1515
        %v1521 = vmul.f32 %v1496, %v1520
        %v1522 = vmin.f32 %v1521, 1.0
        %v1523 = vmax.f32 %v1522, -1.0
        %v1524 = vmul.f32 %v498, %v498
        %v1525 = vmin.f32 16.0, %v1524
        %v1526 = vmul.f32 %v1525, 2.1237322e-06
        %v1527 = vadd.f32 %v1526, 0.00028619796
        %v1528 = vmul.f32 %v1525, %v1527
        %v1529 = vadd.f32 %v1528, 0.0036580483
        %v1530 = vmul.f32 %v1525, %v1529
        %v1531 = vadd.f32 %v1530, 0.05243302
        %v1532 = vmul.f32 %v1525, %v1531
        %v1533 = vadd.f32 %v1532, 0.18741608
        %v1534 = vmul.f32 %v1525, %v1533
        %v1535 = vadd.f32 %v1534, 1.1283791
        %v1536 = vmul.f32 %v498, %v1535
        %v1537 = vmul.f32 %v1525, 3.8918573e-05
        %v1538 = vadd.f32 %v1537, 0.001143296
        %v1539 = vmul.f32 %v1525, %v1538
        %v1540 = vadd.f32 %v1539, 0.014752088
        %v1541 = vmul.f32 %v1525, %v1540
        %v1542 = vadd.f32 %v1541, 0.112945676
        %v1543 = vmul.f32 %v1525, %v1542
        %v1544 = vadd.f32 %v1543, 0.4994258
        %v1545 = vmul.f32 %v1525, %v1544
        %v1546 = vadd.f32 %v1545, 1.0
        %v1547 = vrcp.pop %v1546
        %v1548 = vmul.f32 %v1546, %v1547
        %v1549 = vsub.f32 1.0, %v1548
        %v1550 = vmul.f32 %v1547, %v1549
        %v1551 = vadd.f32 %v1547, %v1550
        %vm1552 = vweird.f32 %v1546
        %vm1553 = vweird.f32 %v1547
        %vm1554 = vmor %vm1552, %vm1553
        %v1555 = vsel %vm1554, %v1547, %v1551
        %v1556 = vand.u32 2147483647, %v1546
        %vm1557 = vcmp.eq.f32.partialorder %v1556, 8.507059e+37
        %v1558 = vand.u32 %v1546, 2147483648
        %v1559 = vor.u32 1.1754944e-38, %v1558
        %v1560 = vsel %vm1557, %v1559, %v1555
        %v1561 = vmul.f32 %v1536, %v1560
        %v1562 = vmin.f32 %v1561, 1.0
        %v1563 = vmax.f32 %v1562, -1.0
        %v1564 = vmul.f32 %v499, %v499
        %v1565 = vmin.f32 16.0, %v1564
        %v1566 = vmul.f32 %v1565, 2.1237322e-06
        %v1567 = vadd.f32 %v1566, 0.00028619796
        %v1568 = vmul.f32 %v1565, %v1567
        %v1569 = vadd.f32 %v1568, 0.0036580483
        %v1570 = vmul.f32 %v1565, %v1569
        %v1571 = vadd.f32 %v1570, 0.05243302
        %v1572 = vmul.f32 %v1565, %v1571
        %v1573 = vadd.f32 %v1572, 0.18741608
        %v1574 = vmul.f32 %v1565, %v1573
        %v1575 = vadd.f32 %v1574, 1.1283791
        %v1576 = vmul.f32 %v499, %v1575
        %v1577 = vmul.f32 %v1565, 3.8918573e-05
        %v1578 = vadd.f32 %v1577, 0.001143296
        %v1579 = vmul.f32 %v1565, %v1578
        %v1580 = vadd.f32 %v1579, 0.014752088
        %v1581 = vmul.f32 %v1565, %v1580
        %v1582 = vadd.f32 %v1581, 0.112945676
        %v1583 = vmul.f32 %v1565, %v1582
        %v1584 = vadd.f32 %v1583, 0.4994258
        %v1585 = vmul.f32 %v1565, %v1584
        %v1586 = vadd.f32 %v1585, 1.0
        %v1587 = vrcp.pop %v1586
        %v1588 = vmul.f32 %v1586, %v1587
        %v1589 = vsub.f32 1.0, %v1588
        %v1590 = vmul.f32 %v1587, %v1589
        %v1591 = vadd.f32 %v1587, %v1590
        %vm1592 = vweird.f32 %v1586
        %vm1593 = vweird.f32 %v1587
        %vm1594 = vmor %vm1592, %vm1593
        %v1595 = vsel %vm1594, %v1587, %v1591
        %v1596 = vand.u32 2147483647, %v1586
        %vm1597 = vcmp.eq.f32.partialorder %v1596, 8.507059e+37
        %v1598 = vand.u32 %v1586, 2147483648
        %v1599 = vor.u32 1.1754944e-38, %v1598
        %v1600 = vsel %vm1597, %v1599, %v1595
        %v1601 = vmul.f32 %v1576, %v1600
        %v1602 = vmin.f32 %v1601, 1.0
        %v1603 = vmax.f32 %v1602, -1.0
        %v1604 = vmul.f32 %v500, %v500
        %v1605 = vmin.f32 16.0, %v1604
        %v1606 = vmul.f32 %v1605, 2.1237322e-06
        %v1607 = vadd.f32 %v1606, 0.00028619796
        %v1608 = vmul.f32 %v1605, %v1607
        %v1609 = vadd.f32 %v1608, 0.0036580483
        %v1610 = vmul.f32 %v1605, %v1609
        %v1611 = vadd.f32 %v1610, 0.05243302
        %v1612 = vmul.f32 %v1605, %v1611
        %v1613 = vadd.f32 %v1612, 0.18741608
        %v1614 = vmul.f32 %v1605, %v1613
        %v1615 = vadd.f32 %v1614, 1.1283791
        %v1616 = vmul.f32 %v500, %v1615
        %v1617 = vmul.f32 %v1605, 3.8918573e-05
        %v1618 = vadd.f32 %v1617, 0.001143296
        %v1619 = vmul.f32 %v1605, %v1618
        %v1620 = vadd.f32 %v1619, 0.014752088
        %v1621 = vmul.f32 %v1605, %v1620
        %v1622 = vadd.f32 %v1621, 0.112945676
        %v1623 = vmul.f32 %v1605, %v1622
        %v1624 = vadd.f32 %v1623, 0.4994258
        %v1625 = vmul.f32 %v1605, %v1624
        %v1626 = vadd.f32 %v1625, 1.0
        %v1627 = vrcp.pop %v1626
        %v1628 = vmul.f32 %v1626, %v1627
        %v1629 = vsub.f32 1.0, %v1628
        %v1630 = vmul.f32 %v1627, %v1629
        %v1631 = vadd.f32 %v1627, %v1630
        %vm1632 = vweird.f32 %v1626
        %vm1633 = vweird.f32 %v1627
        %vm1634 = vmor %vm1632, %vm1633
        %v1635 = vsel %vm1634, %v1627, %v1631
        %v1636 = vand.u32 2147483647, %v1626
        %vm1637 = vcmp.eq.f32.partialorder %v1636, 8.507059e+37
        %v1638 = vand.u32 %v1626, 2147483648
        %v1639 = vor.u32 1.1754944e-38, %v1638
        %v1640 = vsel %vm1637, %v1639, %v1635
        %v1641 = vmul.f32 %v1616, %v1640
        %v1642 = vmin.f32 %v1641, 1.0
        %v1643 = vmax.f32 %v1642, -1.0
        %v1644 = vmul.f32 %v501, %v501
        %v1645 = vmin.f32 16.0, %v1644
        %v1646 = vmul.f32 %v1645, 2.1237322e-06
        %v1647 = vadd.f32 %v1646, 0.00028619796
        %v1648 = vmul.f32 %v1645, %v1647
        %v1649 = vadd.f32 %v1648, 0.0036580483
        %v1650 = vmul.f32 %v1645, %v1649
        %v1651 = vadd.f32 %v1650, 0.05243302
        %v1652 = vmul.f32 %v1645, %v1651
        %v1653 = vadd.f32 %v1652, 0.18741608
        %v1654 = vmul.f32 %v1645, %v1653
        %v1655 = vadd.f32 %v1654, 1.1283791
        %v1656 = vmul.f32 %v501, %v1655
        %v1657 = vmul.f32 %v1645, 3.8918573e-05
        %v1658 = vadd.f32 %v1657, 0.001143296
        %v1659 = vmul.f32 %v1645, %v1658
        %v1660 = vadd.f32 %v1659, 0.014752088
        %v1661 = vmul.f32 %v1645, %v1660
        %v1662 = vadd.f32 %v1661, 0.112945676
        %v1663 = vmul.f32 %v1645, %v1662
        %v1664 = vadd.f32 %v1663, 0.4994258
        %v1665 = vmul.f32 %v1645, %v1664
        %v1666 = vadd.f32 %v1665, 1.0
        %v1667 = vrcp.pop %v1666
        %v1668 = vmul.f32 %v1666, %v1667
        %v1669 = vsub.f32 1.0, %v1668
        %v1670 = vmul.f32 %v1667, %v1669
        %v1671 = vadd.f32 %v1667, %v1670
        %vm1672 = vweird.f32 %v1666
        %vm1673 = vweird.f32 %v1667
        %vm1674 = vmor %vm1672, %vm1673
        %v1675 = vsel %vm1674, %v1667, %v1671
        %v1676 = vand.u32 2147483647, %v1666
        %vm1677 = vcmp.eq.f32.partialorder %v1676, 8.507059e+37
        %v1678 = vand.u32 %v1666, 2147483648
        %v1679 = vor.u32 1.1754944e-38, %v1678
        %v1680 = vsel %vm1677, %v1679, %v1675
        %v1681 = vmul.f32 %v1656, %v1680
        %v1682 = vmin.f32 %v1681, 1.0
        %v1683 = vmax.f32 %v1682, -1.0
        %v1684 = vmul.f32 %v502, %v502
        %v1685 = vmin.f32 16.0, %v1684
        %v1686 = vmul.f32 %v1685, 2.1237322e-06
        %v1687 = vadd.f32 %v1686, 0.00028619796
        %v1688 = vmul.f32 %v1685, %v1687
        %v1689 = vadd.f32 %v1688, 0.0036580483
        %v1690 = vmul.f32 %v1685, %v1689
        %v1691 = vadd.f32 %v1690, 0.05243302
        %v1692 = vmul.f32 %v1685, %v1691
        %v1693 = vadd.f32 %v1692, 0.18741608
        %v1694 = vmul.f32 %v1685, %v1693
        %v1695 = vadd.f32 %v1694, 1.1283791
        %v1696 = vmul.f32 %v502, %v1695
        %v1697 = vmul.f32 %v1685, 3.8918573e-05
        %v1698 = vadd.f32 %v1697, 0.001143296
        %v1699 = vmul.f32 %v1685, %v1698
        %v1700 = vadd.f32 %v1699, 0.014752088
        %v1701 = vmul.f32 %v1685, %v1700
        %v1702 = vadd.f32 %v1701, 0.112945676
        %v1703 = vmul.f32 %v1685, %v1702
        %v1704 = vadd.f32 %v1703, 0.4994258
        %v1705 = vmul.f32 %v1685, %v1704
        %v1706 = vadd.f32 %v1705, 1.0
        %v1707 = vrcp.pop %v1706
        %v1708 = vmul.f32 %v1706, %v1707
        %v1709 = vsub.f32 1.0, %v1708
        %v1710 = vmul.f32 %v1707, %v1709
        %v1711 = vadd.f32 %v1707, %v1710
        %vm1712 = vweird.f32 %v1706
        %vm1713 = vweird.f32 %v1707
        %vm1714 = vmor %vm1712, %vm1713
        %v1715 = vsel %vm1714, %v1707, %v1711
        %v1716 = vand.u32 2147483647, %v1706
        %vm1717 = vcmp.eq.f32.partialorder %v1716, 8.507059e+37
        %v1718 = vand.u32 %v1706, 2147483648
        %v1719 = vor.u32 1.1754944e-38, %v1718
        %v1720 = vsel %vm1717, %v1719, %v1715
        %v1721 = vmul.f32 %v1696, %v1720
        %v1722 = vmin.f32 %v1721, 1.0
        %v1723 = vmax.f32 %v1722, -1.0
        %v1724 = vmul.f32 %v503, %v503
        %v1725 = vmin.f32 16.0, %v1724
        %v1726 = vmul.f32 %v1725, 2.1237322e-06
        %v1727 = vadd.f32 %v1726, 0.00028619796
        %v1728 = vmul.f32 %v1725, %v1727
        %v1729 = vadd.f32 %v1728, 0.0036580483
        %v1730 = vmul.f32 %v1725, %v1729
        %v1731 = vadd.f32 %v1730, 0.05243302
        %v1732 = vmul.f32 %v1725, %v1731
        %v1733 = vadd.f32 %v1732, 0.18741608
        %v1734 = vmul.f32 %v1725, %v1733
        %v1735 = vadd.f32 %v1734, 1.1283791
        %v1736 = vmul.f32 %v503, %v1735
        %v1737 = vmul.f32 %v1725, 3.8918573e-05
        %v1738 = vadd.f32 %v1737, 0.001143296
        %v1739 = vmul.f32 %v1725, %v1738
        %v1740 = vadd.f32 %v1739, 0.014752088
        %v1741 = vmul.f32 %v1725, %v1740
        %v1742 = vadd.f32 %v1741, 0.112945676
        %v1743 = vmul.f32 %v1725, %v1742
        %v1744 = vadd.f32 %v1743, 0.4994258
        %v1745 = vmul.f32 %v1725, %v1744
        %v1746 = vadd.f32 %v1745, 1.0
        %v1747 = vrcp.pop %v1746
        %v1748 = vmul.f32 %v1746, %v1747
        %v1749 = vsub.f32 1.0, %v1748
        %v1750 = vmul.f32 %v1747, %v1749
        %v1751 = vadd.f32 %v1747, %v1750
        %vm1752 = vweird.f32 %v1746
        %vm1753 = vweird.f32 %v1747
        %vm1754 = vmor %vm1752, %vm1753
        %v1755 = vsel %vm1754, %v1747, %v1751
        %v1756 = vand.u32 2147483647, %v1746
        %vm1757 = vcmp.eq.f32.partialorder %v1756, 8.507059e+37
        %v1758 = vand.u32 %v1746, 2147483648
        %v1759 = vor.u32 1.1754944e-38, %v1758
        %v1760 = vsel %vm1757, %v1759, %v1755
        %v1761 = vmul.f32 %v1736, %v1760
        %v1762 = vmin.f32 %v1761, 1.0
        %v1763 = vmax.f32 %v1762, -1.0
        %v1764 = vmul.f32 %v504, %v504
        %v1765 = vmin.f32 16.0, %v1764
        %v1766 = vmul.f32 %v1765, 2.1237322e-06
        %v1767 = vadd.f32 %v1766, 0.00028619796
        %v1768 = vmul.f32 %v1765, %v1767
        %v1769 = vadd.f32 %v1768, 0.0036580483
        %v1770 = vmul.f32 %v1765, %v1769
        %v1771 = vadd.f32 %v1770, 0.05243302
        %v1772 = vmul.f32 %v1765, %v1771
        %v1773 = vadd.f32 %v1772, 0.18741608
        %v1774 = vmul.f32 %v1765, %v1773
        %v1775 = vadd.f32 %v1774, 1.1283791
        %v1776 = vmul.f32 %v504, %v1775
        %v1777 = vmul.f32 %v1765, 3.8918573e-05
        %v1778 = vadd.f32 %v1777, 0.001143296
        %v1779 = vmul.f32 %v1765, %v1778
        %v1780 = vadd.f32 %v1779, 0.014752088
        %v1781 = vmul.f32 %v1765, %v1780
        %v1782 = vadd.f32 %v1781, 0.112945676
        %v1783 = vmul.f32 %v1765, %v1782
        %v1784 = vadd.f32 %v1783, 0.4994258
        %v1785 = vmul.f32 %v1765, %v1784
        %v1786 = vadd.f32 %v1785, 1.0
        %v1787 = vrcp.pop %v1786
        %v1788 = vmul.f32 %v1786, %v1787
        %v1789 = vsub.f32 1.0, %v1788
        %v1790 = vmul.f32 %v1787, %v1789
        %v1791 = vadd.f32 %v1787, %v1790
        %vm1792 = vweird.f32 %v1786
        %vm1793 = vweird.f32 %v1787
        %vm1794 = vmor %vm1792, %vm1793
        %v1795 = vsel %vm1794, %v1787, %v1791
        %v1796 = vand.u32 2147483647, %v1786
        %vm1797 = vcmp.eq.f32.partialorder %v1796, 8.507059e+37
        %v1798 = vand.u32 %v1786, 2147483648
        %v1799 = vor.u32 1.1754944e-38, %v1798
        %v1800 = vsel %vm1797, %v1799, %v1795
        %v1801 = vmul.f32 %v1776, %v1800
        %v1802 = vmin.f32 %v1801, 1.0
        %v1803 = vmax.f32 %v1802, -1.0
        %v1804 = vmul.f32 %v505, %v505
        %v1805 = vmin.f32 16.0, %v1804
        %v1806 = vmul.f32 %v1805, 2.1237322e-06
        %v1807 = vadd.f32 %v1806, 0.00028619796
        %v1808 = vmul.f32 %v1805, %v1807
        %v1809 = vadd.f32 %v1808, 0.0036580483
        %v1810 = vmul.f32 %v1805, %v1809
        %v1811 = vadd.f32 %v1810, 0.05243302
        %v1812 = vmul.f32 %v1805, %v1811
        %v1813 = vadd.f32 %v1812, 0.18741608
        %v1814 = vmul.f32 %v1805, %v1813
        %v1815 = vadd.f32 %v1814, 1.1283791
        %v1816 = vmul.f32 %v505, %v1815
        %v1817 = vmul.f32 %v1805, 3.8918573e-05
        %v1818 = vadd.f32 %v1817, 0.001143296
        %v1819 = vmul.f32 %v1805, %v1818
        %v1820 = vadd.f32 %v1819, 0.014752088
        %v1821 = vmul.f32 %v1805, %v1820
        %v1822 = vadd.f32 %v1821, 0.112945676
        %v1823 = vmul.f32 %v1805, %v1822
        %v1824 = vadd.f32 %v1823, 0.4994258
        %v1825 = vmul.f32 %v1805, %v1824
        %v1826 = vadd.f32 %v1825, 1.0
        %v1827 = vrcp.pop %v1826
        %v1828 = vmul.f32 %v1826, %v1827
        %v1829 = vsub.f32 1.0, %v1828
        %v1830 = vmul.f32 %v1827, %v1829
        %v1831 = vadd.f32 %v1827, %v1830
        %vm1832 = vweird.f32 %v1826
        %vm1833 = vweird.f32 %v1827
        %vm1834 = vmor %vm1832, %vm1833
        %v1835 = vsel %vm1834, %v1827, %v1831
        %v1836 = vand.u32 2147483647, %v1826
        %vm1837 = vcmp.eq.f32.partialorder %v1836, 8.507059e+37
        %v1838 = vand.u32 %v1826, 2147483648
        %v1839 = vor.u32 1.1754944e-38, %v1838
        %v1840 = vsel %vm1837, %v1839, %v1835
        %v1841 = vmul.f32 %v1816, %v1840
        %v1842 = vmin.f32 %v1841, 1.0
        %v1843 = vmax.f32 %v1842, -1.0
        %v1844 = vmul.f32 %v506, %v506
        %v1845 = vmin.f32 16.0, %v1844
        %v1846 = vmul.f32 %v1845, 2.1237322e-06
        %v1847 = vadd.f32 %v1846, 0.00028619796
        %v1848 = vmul.f32 %v1845, %v1847
        %v1849 = vadd.f32 %v1848, 0.0036580483
        %v1850 = vmul.f32 %v1845, %v1849
        %v1851 = vadd.f32 %v1850, 0.05243302
        %v1852 = vmul.f32 %v1845, %v1851
        %v1853 = vadd.f32 %v1852, 0.18741608
        %v1854 = vmul.f32 %v1845, %v1853
        %v1855 = vadd.f32 %v1854, 1.1283791
        %v1856 = vmul.f32 %v506, %v1855
        %v1857 = vmul.f32 %v1845, 3.8918573e-05
        %v1858 = vadd.f32 %v1857, 0.001143296
        %v1859 = vmul.f32 %v1845, %v1858
        %v1860 = vadd.f32 %v1859, 0.014752088
        %v1861 = vmul.f32 %v1845, %v1860
        %v1862 = vadd.f32 %v1861, 0.112945676
        %v1863 = vmul.f32 %v1845, %v1862
        %v1864 = vadd.f32 %v1863, 0.4994258
        %v1865 = vmul.f32 %v1845, %v1864
        %v1866 = vadd.f32 %v1865, 1.0
        %v1867 = vrcp.pop %v1866
        %v1868 = vmul.f32 %v1866, %v1867
        %v1869 = vsub.f32 1.0, %v1868
        %v1870 = vmul.f32 %v1867, %v1869
        %v1871 = vadd.f32 %v1867, %v1870
        %vm1872 = vweird.f32 %v1866
        %vm1873 = vweird.f32 %v1867
        %vm1874 = vmor %vm1872, %vm1873
        %v1875 = vsel %vm1874, %v1867, %v1871
        %v1876 = vand.u32 2147483647, %v1866
        %vm1877 = vcmp.eq.f32.partialorder %v1876, 8.507059e+37
        %v1878 = vand.u32 %v1866, 2147483648
        %v1879 = vor.u32 1.1754944e-38, %v1878
        %v1880 = vsel %vm1877, %v1879, %v1875
        %v1881 = vmul.f32 %v1856, %v1880
        %v1882 = vmin.f32 %v1881, 1.0
        %v1883 = vmax.f32 %v1882, -1.0
        %v1884 = vmul.f32 %v507, %v507
        %v1885 = vmin.f32 16.0, %v1884
        %v1886 = vmul.f32 %v1885, 2.1237322e-06
        %v1887 = vadd.f32 %v1886, 0.00028619796
        %v1888 = vmul.f32 %v1885, %v1887
        %v1889 = vadd.f32 %v1888, 0.0036580483
        %v1890 = vmul.f32 %v1885, %v1889
        %v1891 = vadd.f32 %v1890, 0.05243302
        %v1892 = vmul.f32 %v1885, %v1891
        %v1893 = vadd.f32 %v1892, 0.18741608
        %v1894 = vmul.f32 %v1885, %v1893
        %v1895 = vadd.f32 %v1894, 1.1283791
        %v1896 = vmul.f32 %v507, %v1895
        %v1897 = vmul.f32 %v1885, 3.8918573e-05
        %v1898 = vadd.f32 %v1897, 0.001143296
        %v1899 = vmul.f32 %v1885, %v1898
        %v1900 = vadd.f32 %v1899, 0.014752088
        %v1901 = vmul.f32 %v1885, %v1900
        %v1902 = vadd.f32 %v1901, 0.112945676
        %v1903 = vmul.f32 %v1885, %v1902
        %v1904 = vadd.f32 %v1903, 0.4994258
        %v1905 = vmul.f32 %v1885, %v1904
        %v1906 = vadd.f32 %v1905, 1.0
        %v1907 = vrcp.pop %v1906
        %v1908 = vmul.f32 %v1906, %v1907
        %v1909 = vsub.f32 1.0, %v1908
        %v1910 = vmul.f32 %v1907, %v1909
        %v1911 = vadd.f32 %v1907, %v1910
        %vm1912 = vweird.f32 %v1906
        %vm1913 = vweird.f32 %v1907
        %vm1914 = vmor %vm1912, %vm1913
        %v1915 = vsel %vm1914, %v1907, %v1911
        %v1916 = vand.u32 2147483647, %v1906
        %vm1917 = vcmp.eq.f32.partialorder %v1916, 8.507059e+37
        %v1918 = vand.u32 %v1906, 2147483648
        %v1919 = vor.u32 1.1754944e-38, %v1918
        %v1920 = vsel %vm1917, %v1919, %v1915
        %v1921 = vmul.f32 %v1896, %v1920
        %v1922 = vmin.f32 %v1921, 1.0
        %v1923 = vmax.f32 %v1922, -1.0
        %v1924 = vmul.f32 %v508, %v508
        %v1925 = vmin.f32 16.0, %v1924
        %v1926 = vmul.f32 %v1925, 2.1237322e-06
        %v1927 = vadd.f32 %v1926, 0.00028619796
        %v1928 = vmul.f32 %v1925, %v1927
        %v1929 = vadd.f32 %v1928, 0.0036580483
        %v1930 = vmul.f32 %v1925, %v1929
        %v1931 = vadd.f32 %v1930, 0.05243302
        %v1932 = vmul.f32 %v1925, %v1931
        %v1933 = vadd.f32 %v1932, 0.18741608
        %v1934 = vmul.f32 %v1925, %v1933
        %v1935 = vadd.f32 %v1934, 1.1283791
        %v1936 = vmul.f32 %v508, %v1935
        %v1937 = vmul.f32 %v1925, 3.8918573e-05
        %v1938 = vadd.f32 %v1937, 0.001143296
        %v1939 = vmul.f32 %v1925, %v1938
        %v1940 = vadd.f32 %v1939, 0.014752088
        %v1941 = vmul.f32 %v1925, %v1940
        %v1942 = vadd.f32 %v1941, 0.112945676
        %v1943 = vmul.f32 %v1925, %v1942
        %v1944 = vadd.f32 %v1943, 0.4994258
        %v1945 = vmul.f32 %v1925, %v1944
        %v1946 = vadd.f32 %v1945, 1.0
        %v1947 = vrcp.pop %v1946
        %v1948 = vmul.f32 %v1946, %v1947
        %v1949 = vsub.f32 1.0, %v1948
        %v1950 = vmul.f32 %v1947, %v1949
        %v1951 = vadd.f32 %v1947, %v1950
        %vm1952 = vweird.f32 %v1946
        %vm1953 = vweird.f32 %v1947
        %vm1954 = vmor %vm1952, %vm1953
        %v1955 = vsel %vm1954, %v1947, %v1951
        %v1956 = vand.u32 2147483647, %v1946
        %vm1957 = vcmp.eq.f32.partialorder %v1956, 8.507059e+37
        %v1958 = vand.u32 %v1946, 2147483648
        %v1959 = vor.u32 1.1754944e-38, %v1958
        %v1960 = vsel %vm1957, %v1959, %v1955
        %v1961 = vmul.f32 %v1936, %v1960
        %v1962 = vmin.f32 %v1961, 1.0
        %v1963 = vmax.f32 %v1962, -1.0
        %v1964 = vmul.f32 %v509, %v509
        %v1965 = vmin.f32 16.0, %v1964
        %v1966 = vmul.f32 %v1965, 2.1237322e-06
        %v1967 = vadd.f32 %v1966, 0.00028619796
        %v1968 = vmul.f32 %v1965, %v1967
        %v1969 = vadd.f32 %v1968, 0.0036580483
        %v1970 = vmul.f32 %v1965, %v1969
        %v1971 = vadd.f32 %v1970, 0.05243302
        %v1972 = vmul.f32 %v1965, %v1971
        %v1973 = vadd.f32 %v1972, 0.18741608
        %v1974 = vmul.f32 %v1965, %v1973
        %v1975 = vadd.f32 %v1974, 1.1283791
        %v1976 = vmul.f32 %v509, %v1975
        %v1977 = vmul.f32 %v1965, 3.8918573e-05
        %v1978 = vadd.f32 %v1977, 0.001143296
        %v1979 = vmul.f32 %v1965, %v1978
        %v1980 = vadd.f32 %v1979, 0.014752088
        %v1981 = vmul.f32 %v1965, %v1980
        %v1982 = vadd.f32 %v1981, 0.112945676
        %v1983 = vmul.f32 %v1965, %v1982
        %v1984 = vadd.f32 %v1983, 0.4994258
        %v1985 = vmul.f32 %v1965, %v1984
        %v1986 = vadd.f32 %v1985, 1.0
        %v1987 = vrcp.pop %v1986
        %v1988 = vmul.f32 %v1986, %v1987
        %v1989 = vsub.f32 1.0, %v1988
        %v1990 = vmul.f32 %v1987, %v1989
        %v1991 = vadd.f32 %v1987, %v1990
        %vm1992 = vweird.f32 %v1986
        %vm1993 = vweird.f32 %v1987
        %vm1994 = vmor %vm1992, %vm1993
        %v1995 = vsel %vm1994, %v1987, %v1991
        %v1996 = vand.u32 2147483647, %v1986
        %vm1997 = vcmp.eq.f32.partialorder %v1996, 8.507059e+37
        %v1998 = vand.u32 %v1986, 2147483648
        %v1999 = vor.u32 1.1754944e-38, %v1998
        %v2000 = vsel %vm1997, %v1999, %v1995
        %v2001 = vmul.f32 %v1976, %v2000
        %v2002 = vmin.f32 %v2001, 1.0
        %v2003 = vmax.f32 %v2002, -1.0
        %v2004 = vmul.f32 %v510, %v510
        %v2005 = vmin.f32 16.0, %v2004
        %v2006 = vmul.f32 %v2005, 2.1237322e-06
        %v2007 = vadd.f32 %v2006, 0.00028619796
        %v2008 = vmul.f32 %v2005, %v2007
        %v2009 = vadd.f32 %v2008, 0.0036580483
        %v2010 = vmul.f32 %v2005, %v2009
        %v2011 = vadd.f32 %v2010, 0.05243302
        %v2012 = vmul.f32 %v2005, %v2011
        %v2013 = vadd.f32 %v2012, 0.18741608
        %v2014 = vmul.f32 %v2005, %v2013
        %v2015 = vadd.f32 %v2014, 1.1283791
        %v2016 = vmul.f32 %v510, %v2015
        %v2017 = vmul.f32 %v2005, 3.8918573e-05
        %v2018 = vadd.f32 %v2017, 0.001143296
        %v2019 = vmul.f32 %v2005, %v2018
        %v2020 = vadd.f32 %v2019, 0.014752088
        %v2021 = vmul.f32 %v2005, %v2020
        %v2022 = vadd.f32 %v2021, 0.112945676
        %v2023 = vmul.f32 %v2005, %v2022
        %v2024 = vadd.f32 %v2023, 0.4994258
        %v2025 = vmul.f32 %v2005, %v2024
        %v2026 = vadd.f32 %v2025, 1.0
        %v2027 = vrcp.pop %v2026
        %v2028 = vmul.f32 %v2026, %v2027
        %v2029 = vsub.f32 1.0, %v2028
        %v2030 = vmul.f32 %v2027, %v2029
        %v2031 = vadd.f32 %v2027, %v2030
        %vm2032 = vweird.f32 %v2026
        %vm2033 = vweird.f32 %v2027
        %vm2034 = vmor %vm2032, %vm2033
        %v2035 = vsel %vm2034, %v2027, %v2031
        %v2036 = vand.u32 2147483647, %v2026
        %vm2037 = vcmp.eq.f32.partialorder %v2036, 8.507059e+37
        %v2038 = vand.u32 %v2026, 2147483648
        %v2039 = vor.u32 1.1754944e-38, %v2038
        %v2040 = vsel %vm2037, %v2039, %v2035
        %v2041 = vmul.f32 %v2016, %v2040
        %v2042 = vmin.f32 %v2041, 1.0
        %v2043 = vmax.f32 %v2042, -1.0
        %v2044 = vmul.f32 %v511, %v511
        %v2045 = vmin.f32 16.0, %v2044
        %v2046 = vmul.f32 %v2045, 2.1237322e-06
        %v2047 = vadd.f32 %v2046, 0.00028619796
        %v2048 = vmul.f32 %v2045, %v2047
        %v2049 = vadd.f32 %v2048, 0.0036580483
        %v2050 = vmul.f32 %v2045, %v2049
        %v2051 = vadd.f32 %v2050, 0.05243302
        %v2052 = vmul.f32 %v2045, %v2051
        %v2053 = vadd.f32 %v2052, 0.18741608
        %v2054 = vmul.f32 %v2045, %v2053
        %v2055 = vadd.f32 %v2054, 1.1283791
        %v2056 = vmul.f32 %v511, %v2055
        %v2057 = vmul.f32 %v2045, 3.8918573e-05
        %v2058 = vadd.f32 %v2057, 0.001143296
        %v2059 = vmul.f32 %v2045, %v2058
        %v2060 = vadd.f32 %v2059, 0.014752088
        %v2061 = vmul.f32 %v2045, %v2060
        %v2062 = vadd.f32 %v2061, 0.112945676
        %v2063 = vmul.f32 %v2045, %v2062
        %v2064 = vadd.f32 %v2063, 0.4994258
        %v2065 = vmul.f32 %v2045, %v2064
        %v2066 = vadd.f32 %v2065, 1.0
        %v2067 = vrcp.pop %v2066
        %v2068 = vmul.f32 %v2066, %v2067
        %v2069 = vsub.f32 1.0, %v2068
        %v2070 = vmul.f32 %v2067, %v2069
        %v2071 = vadd.f32 %v2067, %v2070
        %vm2072 = vweird.f32 %v2066
        %vm2073 = vweird.f32 %v2067
        %vm2074 = vmor %vm2072, %vm2073
        %v2075 = vsel %vm2074, %v2067, %v2071
        %v2076 = vand.u32 2147483647, %v2066
        %vm2077 = vcmp.eq.f32.partialorder %v2076, 8.507059e+37
        %v2078 = vand.u32 %v2066, 2147483648
        %v2079 = vor.u32 1.1754944e-38, %v2078
        %v2080 = vsel %vm2077, %v2079, %v2075
        %v2081 = vmul.f32 %v2056, %v2080
        %v2082 = vmin.f32 %v2081, 1.0
        %v2083 = vmax.f32 %v2082, -1.0
        %v2084 = vmul.f32 %v512, %v512
        %v2085 = vmin.f32 16.0, %v2084
        %v2086 = vmul.f32 %v2085, 2.1237322e-06
        %v2087 = vadd.f32 %v2086, 0.00028619796
        %v2088 = vmul.f32 %v2085, %v2087
        %v2089 = vadd.f32 %v2088, 0.0036580483
        %v2090 = vmul.f32 %v2085, %v2089
        %v2091 = vadd.f32 %v2090, 0.05243302
        %v2092 = vmul.f32 %v2085, %v2091
        %v2093 = vadd.f32 %v2092, 0.18741608
        %v2094 = vmul.f32 %v2085, %v2093
        %v2095 = vadd.f32 %v2094, 1.1283791
        %v2096 = vmul.f32 %v512, %v2095
        %v2097 = vmul.f32 %v2085, 3.8918573e-05
        %v2098 = vadd.f32 %v2097, 0.001143296
        %v2099 = vmul.f32 %v2085, %v2098
        %v2100 = vadd.f32 %v2099, 0.014752088
        %v2101 = vmul.f32 %v2085, %v2100
        %v2102 = vadd.f32 %v2101, 0.112945676
        %v2103 = vmul.f32 %v2085, %v2102
        %v2104 = vadd.f32 %v2103, 0.4994258
        %v2105 = vmul.f32 %v2085, %v2104
        %v2106 = vadd.f32 %v2105, 1.0
        %v2107 = vrcp.pop %v2106
        %v2108 = vmul.f32 %v2106, %v2107
        %v2109 = vsub.f32 1.0, %v2108
        %v2110 = vmul.f32 %v2107, %v2109
        %v2111 = vadd.f32 %v2107, %v2110
        %vm2112 = vweird.f32 %v2106
        %vm2113 = vweird.f32 %v2107
        %vm2114 = vmor %vm2112, %vm2113
        %v2115 = vsel %vm2114, %v2107, %v2111
        %v2116 = vand.u32 2147483647, %v2106
        %vm2117 = vcmp.eq.f32.partialorder %v2116, 8.507059e+37
        %v2118 = vand.u32 %v2106, 2147483648
        %v2119 = vor.u32 1.1754944e-38, %v2118
        %v2120 = vsel %vm2117, %v2119, %v2115
        %v2121 = vmul.f32 %v2096, %v2120
        %v2122 = vmin.f32 %v2121, 1.0
        %v2123 = vmax.f32 %v2122, -1.0
        %v2124 = vmul.f32 %v513, %v513
        %v2125 = vmin.f32 16.0, %v2124
        %v2126 = vmul.f32 %v2125, 2.1237322e-06
        %v2127 = vadd.f32 %v2126, 0.00028619796
        %v2128 = vmul.f32 %v2125, %v2127
        %v2129 = vadd.f32 %v2128, 0.0036580483
        %v2130 = vmul.f32 %v2125, %v2129
        %v2131 = vadd.f32 %v2130, 0.05243302
        %v2132 = vmul.f32 %v2125, %v2131
        %v2133 = vadd.f32 %v2132, 0.18741608
        %v2134 = vmul.f32 %v2125, %v2133
        %v2135 = vadd.f32 %v2134, 1.1283791
        %v2136 = vmul.f32 %v513, %v2135
        %v2137 = vmul.f32 %v2125, 3.8918573e-05
        %v2138 = vadd.f32 %v2137, 0.001143296
        %v2139 = vmul.f32 %v2125, %v2138
        %v2140 = vadd.f32 %v2139, 0.014752088
        %v2141 = vmul.f32 %v2125, %v2140
        %v2142 = vadd.f32 %v2141, 0.112945676
        %v2143 = vmul.f32 %v2125, %v2142
        %v2144 = vadd.f32 %v2143, 0.4994258
        %v2145 = vmul.f32 %v2125, %v2144
        %v2146 = vadd.f32 %v2145, 1.0
        %v2147 = vrcp.pop %v2146
        %v2148 = vmul.f32 %v2146, %v2147
        %v2149 = vsub.f32 1.0, %v2148
        %v2150 = vmul.f32 %v2147, %v2149
        %v2151 = vadd.f32 %v2147, %v2150
        %vm2152 = vweird.f32 %v2146
        %vm2153 = vweird.f32 %v2147
        %vm2154 = vmor %vm2152, %vm2153
        %v2155 = vsel %vm2154, %v2147, %v2151
        %v2156 = vand.u32 2147483647, %v2146
        %vm2157 = vcmp.eq.f32.partialorder %v2156, 8.507059e+37
        %v2158 = vand.u32 %v2146, 2147483648
        %v2159 = vor.u32 1.1754944e-38, %v2158
        %v2160 = vsel %vm2157, %v2159, %v2155
        %v2161 = vmul.f32 %v2136, %v2160
        %v2162 = vmin.f32 %v2161, 1.0
        %v2163 = vmax.f32 %v2162, -1.0
        %v2164 = vmul.f32 %v514, %v514
        %v2165 = vmin.f32 16.0, %v2164
        %v2166 = vmul.f32 %v2165, 2.1237322e-06
        %v2167 = vadd.f32 %v2166, 0.00028619796
        %v2168 = vmul.f32 %v2165, %v2167
        %v2169 = vadd.f32 %v2168, 0.0036580483
        %v2170 = vmul.f32 %v2165, %v2169
        %v2171 = vadd.f32 %v2170, 0.05243302
        %v2172 = vmul.f32 %v2165, %v2171
        %v2173 = vadd.f32 %v2172, 0.18741608
        %v2174 = vmul.f32 %v2165, %v2173
        %v2175 = vadd.f32 %v2174, 1.1283791
        %v2176 = vmul.f32 %v514, %v2175
        %v2177 = vmul.f32 %v2165, 3.8918573e-05
        %v2178 = vadd.f32 %v2177, 0.001143296
        %v2179 = vmul.f32 %v2165, %v2178
        %v2180 = vadd.f32 %v2179, 0.014752088
        %v2181 = vmul.f32 %v2165, %v2180
        %v2182 = vadd.f32 %v2181, 0.112945676
        %v2183 = vmul.f32 %v2165, %v2182
        %v2184 = vadd.f32 %v2183, 0.4994258
        %v2185 = vmul.f32 %v2165, %v2184
        %v2186 = vadd.f32 %v2185, 1.0
        %v2187 = vrcp.pop %v2186
        %v2188 = vmul.f32 %v2186, %v2187
        %v2189 = vsub.f32 1.0, %v2188
        %v2190 = vmul.f32 %v2187, %v2189
        %v2191 = vadd.f32 %v2187, %v2190
        %vm2192 = vweird.f32 %v2186
        %vm2193 = vweird.f32 %v2187
        %vm2194 = vmor %vm2192, %vm2193
        %v2195 = vsel %vm2194, %v2187, %v2191
        %v2196 = vand.u32 2147483647, %v2186
        %vm2197 = vcmp.eq.f32.partialorder %v2196, 8.507059e+37
        %v2198 = vand.u32 %v2186, 2147483648
        %v2199 = vor.u32 1.1754944e-38, %v2198
        %v2200 = vsel %vm2197, %v2199, %v2195
        %v2201 = vmul.f32 %v2176, %v2200
        %v2202 = vmin.f32 %v2201, 1.0
        %v2203 = vmax.f32 %v2202, -1.0
        %v2204 = vmul.f32 %v515, %v515
        %v2205 = vmin.f32 16.0, %v2204
        %v2206 = vmul.f32 %v2205, 2.1237322e-06
        %v2207 = vadd.f32 %v2206, 0.00028619796
        %v2208 = vmul.f32 %v2205, %v2207
        %v2209 = vadd.f32 %v2208, 0.0036580483
        %v2210 = vmul.f32 %v2205, %v2209
        %v2211 = vadd.f32 %v2210, 0.05243302
        %v2212 = vmul.f32 %v2205, %v2211
        %v2213 = vadd.f32 %v2212, 0.18741608
        %v2214 = vmul.f32 %v2205, %v2213
        %v2215 = vadd.f32 %v2214, 1.1283791
        %v2216 = vmul.f32 %v515, %v2215
        %v2217 = vmul.f32 %v2205, 3.8918573e-05
        %v2218 = vadd.f32 %v2217, 0.001143296
        %v2219 = vmul.f32 %v2205, %v2218
        %v2220 = vadd.f32 %v2219, 0.014752088
        %v2221 = vmul.f32 %v2205, %v2220
        %v2222 = vadd.f32 %v2221, 0.112945676
        %v2223 = vmul.f32 %v2205, %v2222
        %v2224 = vadd.f32 %v2223, 0.4994258
        %v2225 = vmul.f32 %v2205, %v2224
        %v2226 = vadd.f32 %v2225, 1.0
        %v2227 = vrcp.pop %v2226
        %v2228 = vmul.f32 %v2226, %v2227
        %v2229 = vsub.f32 1.0, %v2228
        %v2230 = vmul.f32 %v2227, %v2229
        %v2231 = vadd.f32 %v2227, %v2230
        %vm2232 = vweird.f32 %v2226
        %vm2233 = vweird.f32 %v2227
        %vm2234 = vmor %vm2232, %vm2233
        %v2235 = vsel %vm2234, %v2227, %v2231
        %v2236 = vand.u32 2147483647, %v2226
        %vm2237 = vcmp.eq.f32.partialorder %v2236, 8.507059e+37
        %v2238 = vand.u32 %v2226, 2147483648
        %v2239 = vor.u32 1.1754944e-38, %v2238
        %v2240 = vsel %vm2237, %v2239, %v2235
        %v2241 = vmul.f32 %v2216, %v2240
        %v2242 = vmin.f32 %v2241, 1.0
        %v2243 = vmax.f32 %v2242, -1.0
        %v2244 = vmul.f32 %v516, %v516
        %v2245 = vmin.f32 16.0, %v2244
        %v2246 = vmul.f32 %v2245, 2.1237322e-06
        %v2247 = vadd.f32 %v2246, 0.00028619796
        %v2248 = vmul.f32 %v2245, %v2247
        %v2249 = vadd.f32 %v2248, 0.0036580483
        %v2250 = vmul.f32 %v2245, %v2249
        %v2251 = vadd.f32 %v2250, 0.05243302
        %v2252 = vmul.f32 %v2245, %v2251
        %v2253 = vadd.f32 %v2252, 0.18741608
        %v2254 = vmul.f32 %v2245, %v2253
        %v2255 = vadd.f32 %v2254, 1.1283791
        %v2256 = vmul.f32 %v516, %v2255
        %v2257 = vmul.f32 %v2245, 3.8918573e-05
        %v2258 = vadd.f32 %v2257, 0.001143296
        %v2259 = vmul.f32 %v2245, %v2258
        %v2260 = vadd.f32 %v2259, 0.014752088
        %v2261 = vmul.f32 %v2245, %v2260
        %v2262 = vadd.f32 %v2261, 0.112945676
        %v2263 = vmul.f32 %v2245, %v2262
        %v2264 = vadd.f32 %v2263, 0.4994258
        %v2265 = vmul.f32 %v2245, %v2264
        %v2266 = vadd.f32 %v2265, 1.0
        %v2267 = vrcp.pop %v2266
        %v2268 = vmul.f32 %v2266, %v2267
        %v2269 = vsub.f32 1.0, %v2268
        %v2270 = vmul.f32 %v2267, %v2269
        %v2271 = vadd.f32 %v2267, %v2270
        %vm2272 = vweird.f32 %v2266
        %vm2273 = vweird.f32 %v2267
        %vm2274 = vmor %vm2272, %vm2273
        %v2275 = vsel %vm2274, %v2267, %v2271
        %v2276 = vand.u32 2147483647, %v2266
        %vm2277 = vcmp.eq.f32.partialorder %v2276, 8.507059e+37
        %v2278 = vand.u32 %v2266, 2147483648
        %v2279 = vor.u32 1.1754944e-38, %v2278
        %v2280 = vsel %vm2277, %v2279, %v2275
        %v2281 = vmul.f32 %v2256, %v2280
        %v2282 = vmin.f32 %v2281, 1.0
        %v2283 = vmax.f32 %v2282, -1.0
        %v2284 = vmul.f32 %v517, %v517
        %v2285 = vmin.f32 16.0, %v2284
        %v2286 = vmul.f32 %v2285, 2.1237322e-06
        %v2287 = vadd.f32 %v2286, 0.00028619796
        %v2288 = vmul.f32 %v2285, %v2287
        %v2289 = vadd.f32 %v2288, 0.0036580483
        %v2290 = vmul.f32 %v2285, %v2289
        %v2291 = vadd.f32 %v2290, 0.05243302
        %v2292 = vmul.f32 %v2285, %v2291
        %v2293 = vadd.f32 %v2292, 0.18741608
        %v2294 = vmul.f32 %v2285, %v2293
        %v2295 = vadd.f32 %v2294, 1.1283791
        %v2296 = vmul.f32 %v517, %v2295
        %v2297 = vmul.f32 %v2285, 3.8918573e-05
        %v2298 = vadd.f32 %v2297, 0.001143296
        %v2299 = vmul.f32 %v2285, %v2298
        %v2300 = vadd.f32 %v2299, 0.014752088
        %v2301 = vmul.f32 %v2285, %v2300
        %v2302 = vadd.f32 %v2301, 0.112945676
        %v2303 = vmul.f32 %v2285, %v2302
        %v2304 = vadd.f32 %v2303, 0.4994258
        %v2305 = vmul.f32 %v2285, %v2304
        %v2306 = vadd.f32 %v2305, 1.0
        %v2307 = vrcp.pop %v2306
        %v2308 = vmul.f32 %v2306, %v2307
        %v2309 = vsub.f32 1.0, %v2308
        %v2310 = vmul.f32 %v2307, %v2309
        %v2311 = vadd.f32 %v2307, %v2310
        %vm2312 = vweird.f32 %v2306
        %vm2313 = vweird.f32 %v2307
        %vm2314 = vmor %vm2312, %vm2313
        %v2315 = vsel %vm2314, %v2307, %v2311
        %v2316 = vand.u32 2147483647, %v2306
        %vm2317 = vcmp.eq.f32.partialorder %v2316, 8.507059e+37
        %v2318 = vand.u32 %v2306, 2147483648
        %v2319 = vor.u32 1.1754944e-38, %v2318
        %v2320 = vsel %vm2317, %v2319, %v2315
        %v2321 = vmul.f32 %v2296, %v2320
        %v2322 = vmin.f32 %v2321, 1.0
        %v2323 = vmax.f32 %v2322, -1.0
        %v2324 = vmul.f32 %v518, %v518
        %v2325 = vmin.f32 16.0, %v2324
        %v2326 = vmul.f32 %v2325, 2.1237322e-06
        %v2327 = vadd.f32 %v2326, 0.00028619796
        %v2328 = vmul.f32 %v2325, %v2327
        %v2329 = vadd.f32 %v2328, 0.0036580483
        %v2330 = vmul.f32 %v2325, %v2329
        %v2331 = vadd.f32 %v2330, 0.05243302
        %v2332 = vmul.f32 %v2325, %v2331
        %v2333 = vadd.f32 %v2332, 0.18741608
        %v2334 = vmul.f32 %v2325, %v2333
        %v2335 = vadd.f32 %v2334, 1.1283791
        %v2336 = vmul.f32 %v518, %v2335
        %v2337 = vmul.f32 %v2325, 3.8918573e-05
        %v2338 = vadd.f32 %v2337, 0.001143296
        %v2339 = vmul.f32 %v2325, %v2338
        %v2340 = vadd.f32 %v2339, 0.014752088
        %v2341 = vmul.f32 %v2325, %v2340
        %v2342 = vadd.f32 %v2341, 0.112945676
        %v2343 = vmul.f32 %v2325, %v2342
        %v2344 = vadd.f32 %v2343, 0.4994258
        %v2345 = vmul.f32 %v2325, %v2344
        %v2346 = vadd.f32 %v2345, 1.0
        %v2347 = vrcp.pop %v2346
        %v2348 = vmul.f32 %v2346, %v2347
        %v2349 = vsub.f32 1.0, %v2348
        %v2350 = vmul.f32 %v2347, %v2349
        %v2351 = vadd.f32 %v2347, %v2350
        %vm2352 = vweird.f32 %v2346
        %vm2353 = vweird.f32 %v2347
        %vm2354 = vmor %vm2352, %vm2353
        %v2355 = vsel %vm2354, %v2347, %v2351
        %v2356 = vand.u32 2147483647, %v2346
        %vm2357 = vcmp.eq.f32.partialorder %v2356, 8.507059e+37
        %v2358 = vand.u32 %v2346, 2147483648
        %v2359 = vor.u32 1.1754944e-38, %v2358
        %v2360 = vsel %vm2357, %v2359, %v2355
        %v2361 = vmul.f32 %v2336, %v2360
        %v2362 = vmin.f32 %v2361, 1.0
        %v2363 = vmax.f32 %v2362, -1.0
        %v2364 = vmul.f32 %v519, %v519
        %v2365 = vmin.f32 16.0, %v2364
        %v2366 = vmul.f32 %v2365, 2.1237322e-06
        %v2367 = vadd.f32 %v2366, 0.00028619796
        %v2368 = vmul.f32 %v2365, %v2367
        %v2369 = vadd.f32 %v2368, 0.0036580483
        %v2370 = vmul.f32 %v2365, %v2369
        %v2371 = vadd.f32 %v2370, 0.05243302
        %v2372 = vmul.f32 %v2365, %v2371
        %v2373 = vadd.f32 %v2372, 0.18741608
        %v2374 = vmul.f32 %v2365, %v2373
        %v2375 = vadd.f32 %v2374, 1.1283791
        %v2376 = vmul.f32 %v519, %v2375
        %v2377 = vmul.f32 %v2365, 3.8918573e-05
        %v2378 = vadd.f32 %v2377, 0.001143296
        %v2379 = vmul.f32 %v2365, %v2378
        %v2380 = vadd.f32 %v2379, 0.014752088
        %v2381 = vmul.f32 %v2365, %v2380
        %v2382 = vadd.f32 %v2381, 0.112945676
        %v2383 = vmul.f32 %v2365, %v2382
        %v2384 = vadd.f32 %v2383, 0.4994258
        %v2385 = vmul.f32 %v2365, %v2384
        %v2386 = vadd.f32 %v2385, 1.0
        %v2387 = vrcp.pop %v2386
        %v2388 = vmul.f32 %v2386, %v2387
        %v2389 = vsub.f32 1.0, %v2388
        %v2390 = vmul.f32 %v2387, %v2389
        %v2391 = vadd.f32 %v2387, %v2390
        %vm2392 = vweird.f32 %v2386
        %vm2393 = vweird.f32 %v2387
        %vm2394 = vmor %vm2392, %vm2393
        %v2395 = vsel %vm2394, %v2387, %v2391
        %v2396 = vand.u32 2147483647, %v2386
        %vm2397 = vcmp.eq.f32.partialorder %v2396, 8.507059e+37
        %v2398 = vand.u32 %v2386, 2147483648
        %v2399 = vor.u32 1.1754944e-38, %v2398
        %v2400 = vsel %vm2397, %v2399, %v2395
        %v2401 = vmul.f32 %v2376, %v2400
        %v2402 = vmin.f32 %v2401, 1.0
        %v2403 = vmax.f32 %v2402, -1.0
        %v2404 = vmul.f32 %v520, %v520
        %v2405 = vmin.f32 16.0, %v2404
        %v2406 = vmul.f32 %v2405, 2.1237322e-06
        %v2407 = vadd.f32 %v2406, 0.00028619796
        %v2408 = vmul.f32 %v2405, %v2407
        %v2409 = vadd.f32 %v2408, 0.0036580483
        %v2410 = vmul.f32 %v2405, %v2409
        %v2411 = vadd.f32 %v2410, 0.05243302
        %v2412 = vmul.f32 %v2405, %v2411
        %v2413 = vadd.f32 %v2412, 0.18741608
        %v2414 = vmul.f32 %v2405, %v2413
        %v2415 = vadd.f32 %v2414, 1.1283791
        %v2416 = vmul.f32 %v520, %v2415
        %v2417 = vmul.f32 %v2405, 3.8918573e-05
        %v2418 = vadd.f32 %v2417, 0.001143296
        %v2419 = vmul.f32 %v2405, %v2418
        %v2420 = vadd.f32 %v2419, 0.014752088
        %v2421 = vmul.f32 %v2405, %v2420
        %v2422 = vadd.f32 %v2421, 0.112945676
        %v2423 = vmul.f32 %v2405, %v2422
        %v2424 = vadd.f32 %v2423, 0.4994258
        %v2425 = vmul.f32 %v2405, %v2424
        %v2426 = vadd.f32 %v2425, 1.0
        %v2427 = vrcp.pop %v2426
        %v2428 = vmul.f32 %v2426, %v2427
        %v2429 = vsub.f32 1.0, %v2428
        %v2430 = vmul.f32 %v2427, %v2429
        %v2431 = vadd.f32 %v2427, %v2430
        %vm2432 = vweird.f32 %v2426
        %vm2433 = vweird.f32 %v2427
        %vm2434 = vmor %vm2432, %vm2433
        %v2435 = vsel %vm2434, %v2427, %v2431
        %v2436 = vand.u32 2147483647, %v2426
        %vm2437 = vcmp.eq.f32.partialorder %v2436, 8.507059e+37
        %v2438 = vand.u32 %v2426, 2147483648
        %v2439 = vor.u32 1.1754944e-38, %v2438
        %v2440 = vsel %vm2437, %v2439, %v2435
        %v2441 = vmul.f32 %v2416, %v2440
        %v2442 = vmin.f32 %v2441, 1.0
        %v2443 = vmax.f32 %v2442, -1.0
        %v2444 = vmul.f32 %v521, %v521
        %v2445 = vmin.f32 16.0, %v2444
        %v2446 = vmul.f32 %v2445, 2.1237322e-06
        %v2447 = vadd.f32 %v2446, 0.00028619796
        %v2448 = vmul.f32 %v2445, %v2447
        %v2449 = vadd.f32 %v2448, 0.0036580483
        %v2450 = vmul.f32 %v2445, %v2449
        %v2451 = vadd.f32 %v2450, 0.05243302
        %v2452 = vmul.f32 %v2445, %v2451
        %v2453 = vadd.f32 %v2452, 0.18741608
        %v2454 = vmul.f32 %v2445, %v2453
        %v2455 = vadd.f32 %v2454, 1.1283791
        %v2456 = vmul.f32 %v521, %v2455
        %v2457 = vmul.f32 %v2445, 3.8918573e-05
        %v2458 = vadd.f32 %v2457, 0.001143296
        %v2459 = vmul.f32 %v2445, %v2458
        %v2460 = vadd.f32 %v2459, 0.014752088
        %v2461 = vmul.f32 %v2445, %v2460
        %v2462 = vadd.f32 %v2461, 0.112945676
        %v2463 = vmul.f32 %v2445, %v2462
        %v2464 = vadd.f32 %v2463, 0.4994258
        %v2465 = vmul.f32 %v2445, %v2464
        %v2466 = vadd.f32 %v2465, 1.0
        %v2467 = vrcp.pop %v2466
        %v2468 = vmul.f32 %v2466, %v2467
        %v2469 = vsub.f32 1.0, %v2468
        %v2470 = vmul.f32 %v2467, %v2469
        %v2471 = vadd.f32 %v2467, %v2470
        %vm2472 = vweird.f32 %v2466
        %vm2473 = vweird.f32 %v2467
        %vm2474 = vmor %vm2472, %vm2473
        %v2475 = vsel %vm2474, %v2467, %v2471
        %v2476 = vand.u32 2147483647, %v2466
        %vm2477 = vcmp.eq.f32.partialorder %v2476, 8.507059e+37
        %v2478 = vand.u32 %v2466, 2147483648
        %v2479 = vor.u32 1.1754944e-38, %v2478
        %v2480 = vsel %vm2477, %v2479, %v2475
        %v2481 = vmul.f32 %v2456, %v2480
        %v2482 = vmin.f32 %v2481, 1.0
        %v2483 = vmax.f32 %v2482, -1.0
        %v2484 = vmul.f32 %v522, %v522
        %v2485 = vmin.f32 16.0, %v2484
        %v2486 = vmul.f32 %v2485, 2.1237322e-06
        %v2487 = vadd.f32 %v2486, 0.00028619796
        %v2488 = vmul.f32 %v2485, %v2487
        %v2489 = vadd.f32 %v2488, 0.0036580483
        %v2490 = vmul.f32 %v2485, %v2489
        %v2491 = vadd.f32 %v2490, 0.05243302
        %v2492 = vmul.f32 %v2485, %v2491
        %v2493 = vadd.f32 %v2492, 0.18741608
        %v2494 = vmul.f32 %v2485, %v2493
        %v2495 = vadd.f32 %v2494, 1.1283791
        %v2496 = vmul.f32 %v522, %v2495
        %v2497 = vmul.f32 %v2485, 3.8918573e-05
        %v2498 = vadd.f32 %v2497, 0.001143296
        %v2499 = vmul.f32 %v2485, %v2498
        %v2500 = vadd.f32 %v2499, 0.014752088
        %v2501 = vmul.f32 %v2485, %v2500
        %v2502 = vadd.f32 %v2501, 0.112945676
        %v2503 = vmul.f32 %v2485, %v2502
        %v2504 = vadd.f32 %v2503, 0.4994258
        %v2505 = vmul.f32 %v2485, %v2504
        %v2506 = vadd.f32 %v2505, 1.0
        %v2507 = vrcp.pop %v2506
        %v2508 = vmul.f32 %v2506, %v2507
        %v2509 = vsub.f32 1.0, %v2508
        %v2510 = vmul.f32 %v2507, %v2509
        %v2511 = vadd.f32 %v2507, %v2510
        %vm2512 = vweird.f32 %v2506
        %vm2513 = vweird.f32 %v2507
        %vm2514 = vmor %vm2512, %vm2513
        %v2515 = vsel %vm2514, %v2507, %v2511
        %v2516 = vand.u32 2147483647, %v2506
        %vm2517 = vcmp.eq.f32.partialorder %v2516, 8.507059e+37
        %v2518 = vand.u32 %v2506, 2147483648
        %v2519 = vor.u32 1.1754944e-38, %v2518
        %v2520 = vsel %vm2517, %v2519, %v2515
        %v2521 = vmul.f32 %v2496, %v2520
        %v2522 = vmin.f32 %v2521, 1.0
        %v2523 = vmax.f32 %v2522, -1.0
        %v2524 = vmul.f32 %v523, %v523
        %v2525 = vmin.f32 16.0, %v2524
        %v2526 = vmul.f32 %v2525, 2.1237322e-06
        %v2527 = vadd.f32 %v2526, 0.00028619796
        %v2528 = vmul.f32 %v2525, %v2527
        %v2529 = vadd.f32 %v2528, 0.0036580483
        %v2530 = vmul.f32 %v2525, %v2529
        %v2531 = vadd.f32 %v2530, 0.05243302
        %v2532 = vmul.f32 %v2525, %v2531
        %v2533 = vadd.f32 %v2532, 0.18741608
        %v2534 = vmul.f32 %v2525, %v2533
        %v2535 = vadd.f32 %v2534, 1.1283791
        %v2536 = vmul.f32 %v523, %v2535
        %v2537 = vmul.f32 %v2525, 3.8918573e-05
        %v2538 = vadd.f32 %v2537, 0.001143296
        %v2539 = vmul.f32 %v2525, %v2538
        %v2540 = vadd.f32 %v2539, 0.014752088
        %v2541 = vmul.f32 %v2525, %v2540
        %v2542 = vadd.f32 %v2541, 0.112945676
        %v2543 = vmul.f32 %v2525, %v2542
        %v2544 = vadd.f32 %v2543, 0.4994258
        %v2545 = vmul.f32 %v2525, %v2544
        %v2546 = vadd.f32 %v2545, 1.0
        %v2547 = vrcp.pop %v2546
        %v2548 = vmul.f32 %v2546, %v2547
        %v2549 = vsub.f32 1.0, %v2548
        %v2550 = vmul.f32 %v2547, %v2549
        %v2551 = vadd.f32 %v2547, %v2550
        %vm2552 = vweird.f32 %v2546
        %vm2553 = vweird.f32 %v2547
        %vm2554 = vmor %vm2552, %vm2553
        %v2555 = vsel %vm2554, %v2547, %v2551
        %v2556 = vand.u32 2147483647, %v2546
        %vm2557 = vcmp.eq.f32.partialorder %v2556, 8.507059e+37
        %v2558 = vand.u32 %v2546, 2147483648
        %v2559 = vor.u32 1.1754944e-38, %v2558
        %v2560 = vsel %vm2557, %v2559, %v2555
        %v2561 = vmul.f32 %v2536, %v2560
        %v2562 = vmin.f32 %v2561, 1.0
        %v2563 = vmax.f32 %v2562, -1.0
        %v2564 = vmul.f32 %v524, %v524
        %v2565 = vmin.f32 16.0, %v2564
        %v2566 = vmul.f32 %v2565, 2.1237322e-06
        %v2567 = vadd.f32 %v2566, 0.00028619796
        %v2568 = vmul.f32 %v2565, %v2567
        %v2569 = vadd.f32 %v2568, 0.0036580483
        %v2570 = vmul.f32 %v2565, %v2569
        %v2571 = vadd.f32 %v2570, 0.05243302
        %v2572 = vmul.f32 %v2565, %v2571
        %v2573 = vadd.f32 %v2572, 0.18741608
        %v2574 = vmul.f32 %v2565, %v2573
        %v2575 = vadd.f32 %v2574, 1.1283791
        %v2576 = vmul.f32 %v524, %v2575
        %v2577 = vmul.f32 %v2565, 3.8918573e-05
        %v2578 = vadd.f32 %v2577, 0.001143296
        %v2579 = vmul.f32 %v2565, %v2578
        %v2580 = vadd.f32 %v2579, 0.014752088
        %v2581 = vmul.f32 %v2565, %v2580
        %v2582 = vadd.f32 %v2581, 0.112945676
        %v2583 = vmul.f32 %v2565, %v2582
        %v2584 = vadd.f32 %v2583, 0.4994258
        %v2585 = vmul.f32 %v2565, %v2584
        %v2586 = vadd.f32 %v2585, 1.0
        %v2587 = vrcp.pop %v2586
        %v2588 = vmul.f32 %v2586, %v2587
        %v2589 = vsub.f32 1.0, %v2588
        %v2590 = vmul.f32 %v2587, %v2589
        %v2591 = vadd.f32 %v2587, %v2590
        %vm2592 = vweird.f32 %v2586
        %vm2593 = vweird.f32 %v2587
        %vm2594 = vmor %vm2592, %vm2593
        %v2595 = vsel %vm2594, %v2587, %v2591
        %v2596 = vand.u32 2147483647, %v2586
        %vm2597 = vcmp.eq.f32.partialorder %v2596, 8.507059e+37
        %v2598 = vand.u32 %v2586, 2147483648
        %v2599 = vor.u32 1.1754944e-38, %v2598
        %v2600 = vsel %vm2597, %v2599, %v2595
        %v2601 = vmul.f32 %v2576, %v2600
        %v2602 = vmin.f32 %v2601, 1.0
        %v2603 = vmax.f32 %v2602, -1.0
        %v2604 = vmul.f32 %v525, %v525
        %v2605 = vmin.f32 16.0, %v2604
        %v2606 = vmul.f32 %v2605, 2.1237322e-06
        %v2607 = vadd.f32 %v2606, 0.00028619796
        %v2608 = vmul.f32 %v2605, %v2607
        %v2609 = vadd.f32 %v2608, 0.0036580483
        %v2610 = vmul.f32 %v2605, %v2609
        %v2611 = vadd.f32 %v2610, 0.05243302
        %v2612 = vmul.f32 %v2605, %v2611
        %v2613 = vadd.f32 %v2612, 0.18741608
        %v2614 = vmul.f32 %v2605, %v2613
        %v2615 = vadd.f32 %v2614, 1.1283791
        %v2616 = vmul.f32 %v525, %v2615
        %v2617 = vmul.f32 %v2605, 3.8918573e-05
        %v2618 = vadd.f32 %v2617, 0.001143296
        %v2619 = vmul.f32 %v2605, %v2618
        %v2620 = vadd.f32 %v2619, 0.014752088
        %v2621 = vmul.f32 %v2605, %v2620
        %v2622 = vadd.f32 %v2621, 0.112945676
        %v2623 = vmul.f32 %v2605, %v2622
        %v2624 = vadd.f32 %v2623, 0.4994258
        %v2625 = vmul.f32 %v2605, %v2624
        %v2626 = vadd.f32 %v2625, 1.0
        %v2627 = vrcp.pop %v2626
        %v2628 = vmul.f32 %v2626, %v2627
        %v2629 = vsub.f32 1.0, %v2628
        %v2630 = vmul.f32 %v2627, %v2629
        %v2631 = vadd.f32 %v2627, %v2630
        %vm2632 = vweird.f32 %v2626
        %vm2633 = vweird.f32 %v2627
        %vm2634 = vmor %vm2632, %vm2633
        %v2635 = vsel %vm2634, %v2627, %v2631
        %v2636 = vand.u32 2147483647, %v2626
        %vm2637 = vcmp.eq.f32.partialorder %v2636, 8.507059e+37
        %v2638 = vand.u32 %v2626, 2147483648
        %v2639 = vor.u32 1.1754944e-38, %v2638
        %v2640 = vsel %vm2637, %v2639, %v2635
        %v2641 = vmul.f32 %v2616, %v2640
        %v2642 = vmin.f32 %v2641, 1.0
        %v2643 = vmax.f32 %v2642, -1.0
        %v2644 = vmul.f32 %v526, %v526
        %v2645 = vmin.f32 16.0, %v2644
        %v2646 = vmul.f32 %v2645, 2.1237322e-06
        %v2647 = vadd.f32 %v2646, 0.00028619796
        %v2648 = vmul.f32 %v2645, %v2647
        %v2649 = vadd.f32 %v2648, 0.0036580483
        %v2650 = vmul.f32 %v2645, %v2649
        %v2651 = vadd.f32 %v2650, 0.05243302
        %v2652 = vmul.f32 %v2645, %v2651
        %v2653 = vadd.f32 %v2652, 0.18741608
        %v2654 = vmul.f32 %v2645, %v2653
        %v2655 = vadd.f32 %v2654, 1.1283791
        %v2656 = vmul.f32 %v526, %v2655
        %v2657 = vmul.f32 %v2645, 3.8918573e-05
        %v2658 = vadd.f32 %v2657, 0.001143296
        %v2659 = vmul.f32 %v2645, %v2658
        %v2660 = vadd.f32 %v2659, 0.014752088
        %v2661 = vmul.f32 %v2645, %v2660
        %v2662 = vadd.f32 %v2661, 0.112945676
        %v2663 = vmul.f32 %v2645, %v2662
        %v2664 = vadd.f32 %v2663, 0.4994258
        %v2665 = vmul.f32 %v2645, %v2664
        %v2666 = vadd.f32 %v2665, 1.0
        %v2667 = vrcp.pop %v2666
        %v2668 = vmul.f32 %v2666, %v2667
        %v2669 = vsub.f32 1.0, %v2668
        %v2670 = vmul.f32 %v2667, %v2669
        %v2671 = vadd.f32 %v2667, %v2670
        %vm2672 = vweird.f32 %v2666
        %vm2673 = vweird.f32 %v2667
        %vm2674 = vmor %vm2672, %vm2673
        %v2675 = vsel %vm2674, %v2667, %v2671
        %v2676 = vand.u32 2147483647, %v2666
        %vm2677 = vcmp.eq.f32.partialorder %v2676, 8.507059e+37
        %v2678 = vand.u32 %v2666, 2147483648
        %v2679 = vor.u32 1.1754944e-38, %v2678
        %v2680 = vsel %vm2677, %v2679, %v2675
        %v2681 = vmul.f32 %v2656, %v2680
        %v2682 = vmin.f32 %v2681, 1.0
        %v2683 = vmax.f32 %v2682, -1.0
        %v2684 = vmul.f32 %v527, %v527
        %v2685 = vmin.f32 16.0, %v2684
        %v2686 = vmul.f32 %v2685, 2.1237322e-06
        %v2687 = vadd.f32 %v2686, 0.00028619796
        %v2688 = vmul.f32 %v2685, %v2687
        %v2689 = vadd.f32 %v2688, 0.0036580483
        %v2690 = vmul.f32 %v2685, %v2689
        %v2691 = vadd.f32 %v2690, 0.05243302
        %v2692 = vmul.f32 %v2685, %v2691
        %v2693 = vadd.f32 %v2692, 0.18741608
        %v2694 = vmul.f32 %v2685, %v2693
        %v2695 = vadd.f32 %v2694, 1.1283791
        %v2696 = vmul.f32 %v527, %v2695
        %v2697 = vmul.f32 %v2685, 3.8918573e-05
        %v2698 = vadd.f32 %v2697, 0.001143296
        %v2699 = vmul.f32 %v2685, %v2698
        %v2700 = vadd.f32 %v2699, 0.014752088
        %v2701 = vmul.f32 %v2685, %v2700
        %v2702 = vadd.f32 %v2701, 0.112945676
        %v2703 = vmul.f32 %v2685, %v2702
        %v2704 = vadd.f32 %v2703, 0.4994258
        %v2705 = vmul.f32 %v2685, %v2704
        %v2706 = vadd.f32 %v2705, 1.0
        %v2707 = vrcp.pop %v2706
        %v2708 = vmul.f32 %v2706, %v2707
        %v2709 = vsub.f32 1.0, %v2708
        %v2710 = vmul.f32 %v2707, %v2709
        %v2711 = vadd.f32 %v2707, %v2710
        %vm2712 = vweird.f32 %v2706
        %vm2713 = vweird.f32 %v2707
        %vm2714 = vmor %vm2712, %vm2713
        %v2715 = vsel %vm2714, %v2707, %v2711
        %v2716 = vand.u32 2147483647, %v2706
        %vm2717 = vcmp.eq.f32.partialorder %v2716, 8.507059e+37
        %v2718 = vand.u32 %v2706, 2147483648
        %v2719 = vor.u32 1.1754944e-38, %v2718
        %v2720 = vsel %vm2717, %v2719, %v2715
        %v2721 = vmul.f32 %v2696, %v2720
        %v2722 = vmin.f32 %v2721, 1.0
        %v2723 = vmax.f32 %v2722, -1.0
        %v2724 = vmul.f32 %v528, %v528
        %v2725 = vmin.f32 16.0, %v2724
        %v2726 = vmul.f32 %v2725, 2.1237322e-06
        %v2727 = vadd.f32 %v2726, 0.00028619796
        %v2728 = vmul.f32 %v2725, %v2727
        %v2729 = vadd.f32 %v2728, 0.0036580483
        %v2730 = vmul.f32 %v2725, %v2729
        %v2731 = vadd.f32 %v2730, 0.05243302
        %v2732 = vmul.f32 %v2725, %v2731
        %v2733 = vadd.f32 %v2732, 0.18741608
        %v2734 = vmul.f32 %v2725, %v2733
        %v2735 = vadd.f32 %v2734, 1.1283791
        %v2736 = vmul.f32 %v528, %v2735
        %v2737 = vmul.f32 %v2725, 3.8918573e-05
        %v2738 = vadd.f32 %v2737, 0.001143296
        %v2739 = vmul.f32 %v2725, %v2738
        %v2740 = vadd.f32 %v2739, 0.014752088
        %v2741 = vmul.f32 %v2725, %v2740
        %v2742 = vadd.f32 %v2741, 0.112945676
        %v2743 = vmul.f32 %v2725, %v2742
        %v2744 = vadd.f32 %v2743, 0.4994258
        %v2745 = vmul.f32 %v2725, %v2744
        %v2746 = vadd.f32 %v2745, 1.0
        %v2747 = vrcp.pop %v2746
        %v2748 = vmul.f32 %v2746, %v2747
        %v2749 = vsub.f32 1.0, %v2748
        %v2750 = vmul.f32 %v2747, %v2749
        %v2751 = vadd.f32 %v2747, %v2750
        %vm2752 = vweird.f32 %v2746
        %vm2753 = vweird.f32 %v2747
        %vm2754 = vmor %vm2752, %vm2753
        %v2755 = vsel %vm2754, %v2747, %v2751
        %v2756 = vand.u32 2147483647, %v2746
        %vm2757 = vcmp.eq.f32.partialorder %v2756, 8.507059e+37
        %v2758 = vand.u32 %v2746, 2147483648
        %v2759 = vor.u32 1.1754944e-38, %v2758
        %v2760 = vsel %vm2757, %v2759, %v2755
        %v2761 = vmul.f32 %v2736, %v2760
        %v2762 = vmin.f32 %v2761, 1.0
        %v2763 = vmax.f32 %v2762, -1.0
        %v2764 = vmul.f32 %v529, %v529
        %v2765 = vmin.f32 16.0, %v2764
        %v2766 = vmul.f32 %v2765, 2.1237322e-06
        %v2767 = vadd.f32 %v2766, 0.00028619796
        %v2768 = vmul.f32 %v2765, %v2767
        %v2769 = vadd.f32 %v2768, 0.0036580483
        %v2770 = vmul.f32 %v2765, %v2769
        %v2771 = vadd.f32 %v2770, 0.05243302
        %v2772 = vmul.f32 %v2765, %v2771
        %v2773 = vadd.f32 %v2772, 0.18741608
        %v2774 = vmul.f32 %v2765, %v2773
        %v2775 = vadd.f32 %v2774, 1.1283791
        %v2776 = vmul.f32 %v529, %v2775
        %v2777 = vmul.f32 %v2765, 3.8918573e-05
        %v2778 = vadd.f32 %v2777, 0.001143296
        %v2779 = vmul.f32 %v2765, %v2778
        %v2780 = vadd.f32 %v2779, 0.014752088
        %v2781 = vmul.f32 %v2765, %v2780
        %v2782 = vadd.f32 %v2781, 0.112945676
        %v2783 = vmul.f32 %v2765, %v2782
        %v2784 = vadd.f32 %v2783, 0.4994258
        %v2785 = vmul.f32 %v2765, %v2784
        %v2786 = vadd.f32 %v2785, 1.0
        %v2787 = vrcp.pop %v2786
        %v2788 = vmul.f32 %v2786, %v2787
        %v2789 = vsub.f32 1.0, %v2788
        %v2790 = vmul.f32 %v2787, %v2789
        %v2791 = vadd.f32 %v2787, %v2790
        %vm2792 = vweird.f32 %v2786
        %vm2793 = vweird.f32 %v2787
        %vm2794 = vmor %vm2792, %vm2793
        %v2795 = vsel %vm2794, %v2787, %v2791
        %v2796 = vand.u32 2147483647, %v2786
        %vm2797 = vcmp.eq.f32.partialorder %v2796, 8.507059e+37
        %v2798 = vand.u32 %v2786, 2147483648
        %v2799 = vor.u32 1.1754944e-38, %v2798
        %v2800 = vsel %vm2797, %v2799, %v2795
        %v2801 = vmul.f32 %v2776, %v2800
        %v2802 = vmin.f32 %v2801, 1.0
        %v2803 = vmax.f32 %v2802, -1.0
        %v2804 = vmul.f32 %v530, %v530
        %v2805 = vmin.f32 16.0, %v2804
        %v2806 = vmul.f32 %v2805, 2.1237322e-06
        %v2807 = vadd.f32 %v2806, 0.00028619796
        %v2808 = vmul.f32 %v2805, %v2807
        %v2809 = vadd.f32 %v2808, 0.0036580483
        %v2810 = vmul.f32 %v2805, %v2809
        %v2811 = vadd.f32 %v2810, 0.05243302
        %v2812 = vmul.f32 %v2805, %v2811
        %v2813 = vadd.f32 %v2812, 0.18741608
        %v2814 = vmul.f32 %v2805, %v2813
        %v2815 = vadd.f32 %v2814, 1.1283791
        %v2816 = vmul.f32 %v530, %v2815
        %v2817 = vmul.f32 %v2805, 3.8918573e-05
        %v2818 = vadd.f32 %v2817, 0.001143296
        %v2819 = vmul.f32 %v2805, %v2818
        %v2820 = vadd.f32 %v2819, 0.014752088
        %v2821 = vmul.f32 %v2805, %v2820
        %v2822 = vadd.f32 %v2821, 0.112945676
        %v2823 = vmul.f32 %v2805, %v2822
        %v2824 = vadd.f32 %v2823, 0.4994258
        %v2825 = vmul.f32 %v2805, %v2824
        %v2826 = vadd.f32 %v2825, 1.0
        %v2827 = vrcp.pop %v2826
        %v2828 = vmul.f32 %v2826, %v2827
        %v2829 = vsub.f32 1.0, %v2828
        %v2830 = vmul.f32 %v2827, %v2829
        %v2831 = vadd.f32 %v2827, %v2830
        %vm2832 = vweird.f32 %v2826
        %vm2833 = vweird.f32 %v2827
        %vm2834 = vmor %vm2832, %vm2833
        %v2835 = vsel %vm2834, %v2827, %v2831
        %v2836 = vand.u32 2147483647, %v2826
        %vm2837 = vcmp.eq.f32.partialorder %v2836, 8.507059e+37
        %v2838 = vand.u32 %v2826, 2147483648
        %v2839 = vor.u32 1.1754944e-38, %v2838
        %v2840 = vsel %vm2837, %v2839, %v2835
        %v2841 = vmul.f32 %v2816, %v2840
        %v2842 = vmin.f32 %v2841, 1.0
        %v2843 = vmax.f32 %v2842, -1.0
        %v2844 = vmul.f32 %v531, %v531
        %v2845 = vmin.f32 16.0, %v2844
        %v2846 = vmul.f32 %v2845, 2.1237322e-06
        %v2847 = vadd.f32 %v2846, 0.00028619796
        %v2848 = vmul.f32 %v2845, %v2847
        %v2849 = vadd.f32 %v2848, 0.0036580483
        %v2850 = vmul.f32 %v2845, %v2849
        %v2851 = vadd.f32 %v2850, 0.05243302
        %v2852 = vmul.f32 %v2845, %v2851
        %v2853 = vadd.f32 %v2852, 0.18741608
        %v2854 = vmul.f32 %v2845, %v2853
        %v2855 = vadd.f32 %v2854, 1.1283791
        %v2856 = vmul.f32 %v531, %v2855
        %v2857 = vmul.f32 %v2845, 3.8918573e-05
        %v2858 = vadd.f32 %v2857, 0.001143296
        %v2859 = vmul.f32 %v2845, %v2858
        %v2860 = vadd.f32 %v2859, 0.014752088
        %v2861 = vmul.f32 %v2845, %v2860
        %v2862 = vadd.f32 %v2861, 0.112945676
        %v2863 = vmul.f32 %v2845, %v2862
        %v2864 = vadd.f32 %v2863, 0.4994258
        %v2865 = vmul.f32 %v2845, %v2864
        %v2866 = vadd.f32 %v2865, 1.0
        %v2867 = vrcp.pop %v2866
        %v2868 = vmul.f32 %v2866, %v2867
        %v2869 = vsub.f32 1.0, %v2868
        %v2870 = vmul.f32 %v2867, %v2869
        %v2871 = vadd.f32 %v2867, %v2870
        %vm2872 = vweird.f32 %v2866
        %vm2873 = vweird.f32 %v2867
        %vm2874 = vmor %vm2872, %vm2873
        %v2875 = vsel %vm2874, %v2867, %v2871
        %v2876 = vand.u32 2147483647, %v2866
        %vm2877 = vcmp.eq.f32.partialorder %v2876, 8.507059e+37
        %v2878 = vand.u32 %v2866, 2147483648
        %v2879 = vor.u32 1.1754944e-38, %v2878
        %v2880 = vsel %vm2877, %v2879, %v2875
        %v2881 = vmul.f32 %v2856, %v2880
        %v2882 = vmin.f32 %v2881, 1.0
        %v2883 = vmax.f32 %v2882, -1.0
        %v2884 = vmul.f32 %v532, %v532
        %v2885 = vmin.f32 16.0, %v2884
        %v2886 = vmul.f32 %v2885, 2.1237322e-06
        %v2887 = vadd.f32 %v2886, 0.00028619796
        %v2888 = vmul.f32 %v2885, %v2887
        %v2889 = vadd.f32 %v2888, 0.0036580483
        %v2890 = vmul.f32 %v2885, %v2889
        %v2891 = vadd.f32 %v2890, 0.05243302
        %v2892 = vmul.f32 %v2885, %v2891
        %v2893 = vadd.f32 %v2892, 0.18741608
        %v2894 = vmul.f32 %v2885, %v2893
        %v2895 = vadd.f32 %v2894, 1.1283791
        %v2896 = vmul.f32 %v532, %v2895
        %v2897 = vmul.f32 %v2885, 3.8918573e-05
        %v2898 = vadd.f32 %v2897, 0.001143296
        %v2899 = vmul.f32 %v2885, %v2898
        %v2900 = vadd.f32 %v2899, 0.014752088
        %v2901 = vmul.f32 %v2885, %v2900
        %v2902 = vadd.f32 %v2901, 0.112945676
        %v2903 = vmul.f32 %v2885, %v2902
        %v2904 = vadd.f32 %v2903, 0.4994258
        %v2905 = vmul.f32 %v2885, %v2904
        %v2906 = vadd.f32 %v2905, 1.0
        %v2907 = vrcp.pop %v2906
        %v2908 = vmul.f32 %v2906, %v2907
        %v2909 = vsub.f32 1.0, %v2908
        %v2910 = vmul.f32 %v2907, %v2909
        %v2911 = vadd.f32 %v2907, %v2910
        %vm2912 = vweird.f32 %v2906
        %vm2913 = vweird.f32 %v2907
        %vm2914 = vmor %vm2912, %vm2913
        %v2915 = vsel %vm2914, %v2907, %v2911
        %v2916 = vand.u32 2147483647, %v2906
        %vm2917 = vcmp.eq.f32.partialorder %v2916, 8.507059e+37
        %v2918 = vand.u32 %v2906, 2147483648
        %v2919 = vor.u32 1.1754944e-38, %v2918
        %v2920 = vsel %vm2917, %v2919, %v2915
        %v2921 = vmul.f32 %v2896, %v2920
        %v2922 = vmin.f32 %v2921, 1.0
        %v2923 = vmax.f32 %v2922, -1.0
        %v2924 = vmul.f32 %v533, %v533
        %v2925 = vmin.f32 16.0, %v2924
        %v2926 = vmul.f32 %v2925, 2.1237322e-06
        %v2927 = vadd.f32 %v2926, 0.00028619796
        %v2928 = vmul.f32 %v2925, %v2927
        %v2929 = vadd.f32 %v2928, 0.0036580483
        %v2930 = vmul.f32 %v2925, %v2929
        %v2931 = vadd.f32 %v2930, 0.05243302
        %v2932 = vmul.f32 %v2925, %v2931
        %v2933 = vadd.f32 %v2932, 0.18741608
        %v2934 = vmul.f32 %v2925, %v2933
        %v2935 = vadd.f32 %v2934, 1.1283791
        %v2936 = vmul.f32 %v533, %v2935
        %v2937 = vmul.f32 %v2925, 3.8918573e-05
        %v2938 = vadd.f32 %v2937, 0.001143296
        %v2939 = vmul.f32 %v2925, %v2938
        %v2940 = vadd.f32 %v2939, 0.014752088
        %v2941 = vmul.f32 %v2925, %v2940
        %v2942 = vadd.f32 %v2941, 0.112945676
        %v2943 = vmul.f32 %v2925, %v2942
        %v2944 = vadd.f32 %v2943, 0.4994258
        %v2945 = vmul.f32 %v2925, %v2944
        %v2946 = vadd.f32 %v2945, 1.0
        %v2947 = vrcp.pop %v2946
        %v2948 = vmul.f32 %v2946, %v2947
        %v2949 = vsub.f32 1.0, %v2948
        %v2950 = vmul.f32 %v2947, %v2949
        %v2951 = vadd.f32 %v2947, %v2950
        %vm2952 = vweird.f32 %v2946
        %vm2953 = vweird.f32 %v2947
        %vm2954 = vmor %vm2952, %vm2953
        %v2955 = vsel %vm2954, %v2947, %v2951
        %v2956 = vand.u32 2147483647, %v2946
        %vm2957 = vcmp.eq.f32.partialorder %v2956, 8.507059e+37
        %v2958 = vand.u32 %v2946, 2147483648
        %v2959 = vor.u32 1.1754944e-38, %v2958
        %v2960 = vsel %vm2957, %v2959, %v2955
        %v2961 = vmul.f32 %v2936, %v2960
        %v2962 = vmin.f32 %v2961, 1.0
        %v2963 = vmax.f32 %v2962, -1.0
        %v2964 = vmul.f32 %v534, %v534
        %v2965 = vmin.f32 16.0, %v2964
        %v2966 = vmul.f32 %v2965, 2.1237322e-06
        %v2967 = vadd.f32 %v2966, 0.00028619796
        %v2968 = vmul.f32 %v2965, %v2967
        %v2969 = vadd.f32 %v2968, 0.0036580483
        %v2970 = vmul.f32 %v2965, %v2969
        %v2971 = vadd.f32 %v2970, 0.05243302
        %v2972 = vmul.f32 %v2965, %v2971
        %v2973 = vadd.f32 %v2972, 0.18741608
        %v2974 = vmul.f32 %v2965, %v2973
        %v2975 = vadd.f32 %v2974, 1.1283791
        %v2976 = vmul.f32 %v534, %v2975
        %v2977 = vmul.f32 %v2965, 3.8918573e-05
        %v2978 = vadd.f32 %v2977, 0.001143296
        %v2979 = vmul.f32 %v2965, %v2978
        %v2980 = vadd.f32 %v2979, 0.014752088
        %v2981 = vmul.f32 %v2965, %v2980
        %v2982 = vadd.f32 %v2981, 0.112945676
        %v2983 = vmul.f32 %v2965, %v2982
        %v2984 = vadd.f32 %v2983, 0.4994258
        %v2985 = vmul.f32 %v2965, %v2984
        %v2986 = vadd.f32 %v2985, 1.0
        %v2987 = vrcp.pop %v2986
        %v2988 = vmul.f32 %v2986, %v2987
        %v2989 = vsub.f32 1.0, %v2988
        %v2990 = vmul.f32 %v2987, %v2989
        %v2991 = vadd.f32 %v2987, %v2990
        %vm2992 = vweird.f32 %v2986
        %vm2993 = vweird.f32 %v2987
        %vm2994 = vmor %vm2992, %vm2993
        %v2995 = vsel %vm2994, %v2987, %v2991
        %v2996 = vand.u32 2147483647, %v2986
        %vm2997 = vcmp.eq.f32.partialorder %v2996, 8.507059e+37
        %v2998 = vand.u32 %v2986, 2147483648
        %v2999 = vor.u32 1.1754944e-38, %v2998
        %v3000 = vsel %vm2997, %v2999, %v2995
        %v3001 = vmul.f32 %v2976, %v3000
        %v3002 = vmin.f32 %v3001, 1.0
        %v3003 = vmax.f32 %v3002, -1.0
        %v3004 = vmul.f32 %v535, %v535
        %v3005 = vmin.f32 16.0, %v3004
        %v3006 = vmul.f32 %v3005, 2.1237322e-06
        %v3007 = vadd.f32 %v3006, 0.00028619796
        %v3008 = vmul.f32 %v3005, %v3007
        %v3009 = vadd.f32 %v3008, 0.0036580483
        %v3010 = vmul.f32 %v3005, %v3009
        %v3011 = vadd.f32 %v3010, 0.05243302
        %v3012 = vmul.f32 %v3005, %v3011
        %v3013 = vadd.f32 %v3012, 0.18741608
        %v3014 = vmul.f32 %v3005, %v3013
        %v3015 = vadd.f32 %v3014, 1.1283791
        %v3016 = vmul.f32 %v535, %v3015
        %v3017 = vmul.f32 %v3005, 3.8918573e-05
        %v3018 = vadd.f32 %v3017, 0.001143296
        %v3019 = vmul.f32 %v3005, %v3018
        %v3020 = vadd.f32 %v3019, 0.014752088
        %v3021 = vmul.f32 %v3005, %v3020
        %v3022 = vadd.f32 %v3021, 0.112945676
        %v3023 = vmul.f32 %v3005, %v3022
        %v3024 = vadd.f32 %v3023, 0.4994258
        %v3025 = vmul.f32 %v3005, %v3024
        %v3026 = vadd.f32 %v3025, 1.0
        %v3027 = vrcp.pop %v3026
        %v3028 = vmul.f32 %v3026, %v3027
        %v3029 = vsub.f32 1.0, %v3028
        %v3030 = vmul.f32 %v3027, %v3029
        %v3031 = vadd.f32 %v3027, %v3030
        %vm3032 = vweird.f32 %v3026
        %vm3033 = vweird.f32 %v3027
        %vm3034 = vmor %vm3032, %vm3033
        %v3035 = vsel %vm3034, %v3027, %v3031
        %v3036 = vand.u32 2147483647, %v3026
        %vm3037 = vcmp.eq.f32.partialorder %v3036, 8.507059e+37
        %v3038 = vand.u32 %v3026, 2147483648
        %v3039 = vor.u32 1.1754944e-38, %v3038
        %v3040 = vsel %vm3037, %v3039, %v3035
        %v3041 = vmul.f32 %v3016, %v3040
        %v3042 = vmin.f32 %v3041, 1.0
        %v3043 = vmax.f32 %v3042, -1.0
        %v3044 = vmul.f32 %v536, %v536
        %v3045 = vmin.f32 16.0, %v3044
        %v3046 = vmul.f32 %v3045, 2.1237322e-06
        %v3047 = vadd.f32 %v3046, 0.00028619796
        %v3048 = vmul.f32 %v3045, %v3047
        %v3049 = vadd.f32 %v3048, 0.0036580483
        %v3050 = vmul.f32 %v3045, %v3049
        %v3051 = vadd.f32 %v3050, 0.05243302
        %v3052 = vmul.f32 %v3045, %v3051
        %v3053 = vadd.f32 %v3052, 0.18741608
        %v3054 = vmul.f32 %v3045, %v3053
        %v3055 = vadd.f32 %v3054, 1.1283791
        %v3056 = vmul.f32 %v536, %v3055
        %v3057 = vmul.f32 %v3045, 3.8918573e-05
        %v3058 = vadd.f32 %v3057, 0.001143296
        %v3059 = vmul.f32 %v3045, %v3058
        %v3060 = vadd.f32 %v3059, 0.014752088
        %v3061 = vmul.f32 %v3045, %v3060
        %v3062 = vadd.f32 %v3061, 0.112945676
        %v3063 = vmul.f32 %v3045, %v3062
        %v3064 = vadd.f32 %v3063, 0.4994258
        %v3065 = vmul.f32 %v3045, %v3064
        %v3066 = vadd.f32 %v3065, 1.0
        %v3067 = vrcp.pop %v3066
        %v3068 = vmul.f32 %v3066, %v3067
        %v3069 = vsub.f32 1.0, %v3068
        %v3070 = vmul.f32 %v3067, %v3069
        %v3071 = vadd.f32 %v3067, %v3070
        %vm3072 = vweird.f32 %v3066
        %vm3073 = vweird.f32 %v3067
        %vm3074 = vmor %vm3072, %vm3073
        %v3075 = vsel %vm3074, %v3067, %v3071
        %v3076 = vand.u32 2147483647, %v3066
        %vm3077 = vcmp.eq.f32.partialorder %v3076, 8.507059e+37
        %v3078 = vand.u32 %v3066, 2147483648
        %v3079 = vor.u32 1.1754944e-38, %v3078
        %v3080 = vsel %vm3077, %v3079, %v3075
        %v3081 = vmul.f32 %v3056, %v3080
        %v3082 = vmin.f32 %v3081, 1.0
        %v3083 = vmax.f32 %v3082, -1.0
        %v3084 = vmul.f32 %v537, %v537
        %v3085 = vmin.f32 16.0, %v3084
        %v3086 = vmul.f32 %v3085, 2.1237322e-06
        %v3087 = vadd.f32 %v3086, 0.00028619796
        %v3088 = vmul.f32 %v3085, %v3087
        %v3089 = vadd.f32 %v3088, 0.0036580483
        %v3090 = vmul.f32 %v3085, %v3089
        %v3091 = vadd.f32 %v3090, 0.05243302
        %v3092 = vmul.f32 %v3085, %v3091
        %v3093 = vadd.f32 %v3092, 0.18741608
        %v3094 = vmul.f32 %v3085, %v3093
        %v3095 = vadd.f32 %v3094, 1.1283791
        %v3096 = vmul.f32 %v537, %v3095
        %v3097 = vmul.f32 %v3085, 3.8918573e-05
        %v3098 = vadd.f32 %v3097, 0.001143296
        %v3099 = vmul.f32 %v3085, %v3098
        %v3100 = vadd.f32 %v3099, 0.014752088
        %v3101 = vmul.f32 %v3085, %v3100
        %v3102 = vadd.f32 %v3101, 0.112945676
        %v3103 = vmul.f32 %v3085, %v3102
        %v3104 = vadd.f32 %v3103, 0.4994258
        %v3105 = vmul.f32 %v3085, %v3104
        %v3106 = vadd.f32 %v3105, 1.0
        %v3107 = vrcp.pop %v3106
        %v3108 = vmul.f32 %v3106, %v3107
        %v3109 = vsub.f32 1.0, %v3108
        %v3110 = vmul.f32 %v3107, %v3109
        %v3111 = vadd.f32 %v3107, %v3110
        %vm3112 = vweird.f32 %v3106
        %vm3113 = vweird.f32 %v3107
        %vm3114 = vmor %vm3112, %vm3113
        %v3115 = vsel %vm3114, %v3107, %v3111
        %v3116 = vand.u32 2147483647, %v3106
        %vm3117 = vcmp.eq.f32.partialorder %v3116, 8.507059e+37
        %v3118 = vand.u32 %v3106, 2147483648
        %v3119 = vor.u32 1.1754944e-38, %v3118
        %v3120 = vsel %vm3117, %v3119, %v3115
        %v3121 = vmul.f32 %v3096, %v3120
        %v3122 = vmin.f32 %v3121, 1.0
        %v3123 = vmax.f32 %v3122, -1.0
        %v3124 = vmul.f32 %v538, %v538
        %v3125 = vmin.f32 16.0, %v3124
        %v3126 = vmul.f32 %v3125, 2.1237322e-06
        %v3127 = vadd.f32 %v3126, 0.00028619796
        %v3128 = vmul.f32 %v3125, %v3127
        %v3129 = vadd.f32 %v3128, 0.0036580483
        %v3130 = vmul.f32 %v3125, %v3129
        %v3131 = vadd.f32 %v3130, 0.05243302
        %v3132 = vmul.f32 %v3125, %v3131
        %v3133 = vadd.f32 %v3132, 0.18741608
        %v3134 = vmul.f32 %v3125, %v3133
        %v3135 = vadd.f32 %v3134, 1.1283791
        %v3136 = vmul.f32 %v538, %v3135
        %v3137 = vmul.f32 %v3125, 3.8918573e-05
        %v3138 = vadd.f32 %v3137, 0.001143296
        %v3139 = vmul.f32 %v3125, %v3138
        %v3140 = vadd.f32 %v3139, 0.014752088
        %v3141 = vmul.f32 %v3125, %v3140
        %v3142 = vadd.f32 %v3141, 0.112945676
        %v3143 = vmul.f32 %v3125, %v3142
        %v3144 = vadd.f32 %v3143, 0.4994258
        %v3145 = vmul.f32 %v3125, %v3144
        %v3146 = vadd.f32 %v3145, 1.0
        %v3147 = vrcp.pop %v3146
        %v3148 = vmul.f32 %v3146, %v3147
        %v3149 = vsub.f32 1.0, %v3148
        %v3150 = vmul.f32 %v3147, %v3149
        %v3151 = vadd.f32 %v3147, %v3150
        %vm3152 = vweird.f32 %v3146
        %vm3153 = vweird.f32 %v3147
        %vm3154 = vmor %vm3152, %vm3153
        %v3155 = vsel %vm3154, %v3147, %v3151
        %v3156 = vand.u32 2147483647, %v3146
        %vm3157 = vcmp.eq.f32.partialorder %v3156, 8.507059e+37
        %v3158 = vand.u32 %v3146, 2147483648
        %v3159 = vor.u32 1.1754944e-38, %v3158
        %v3160 = vsel %vm3157, %v3159, %v3155
        %v3161 = vmul.f32 %v3136, %v3160
        %v3162 = vmin.f32 %v3161, 1.0
        %v3163 = vmax.f32 %v3162, -1.0
        %v3164 = vmul.f32 %v539, %v539
        %v3165 = vmin.f32 16.0, %v3164
        %v3166 = vmul.f32 %v3165, 2.1237322e-06
        %v3167 = vadd.f32 %v3166, 0.00028619796
        %v3168 = vmul.f32 %v3165, %v3167
        %v3169 = vadd.f32 %v3168, 0.0036580483
        %v3170 = vmul.f32 %v3165, %v3169
        %v3171 = vadd.f32 %v3170, 0.05243302
        %v3172 = vmul.f32 %v3165, %v3171
        %v3173 = vadd.f32 %v3172, 0.18741608
        %v3174 = vmul.f32 %v3165, %v3173
        %v3175 = vadd.f32 %v3174, 1.1283791
        %v3176 = vmul.f32 %v539, %v3175
        %v3177 = vmul.f32 %v3165, 3.8918573e-05
        %v3178 = vadd.f32 %v3177, 0.001143296
        %v3179 = vmul.f32 %v3165, %v3178
        %v3180 = vadd.f32 %v3179, 0.014752088
        %v3181 = vmul.f32 %v3165, %v3180
        %v3182 = vadd.f32 %v3181, 0.112945676
        %v3183 = vmul.f32 %v3165, %v3182
        %v3184 = vadd.f32 %v3183, 0.4994258
        %v3185 = vmul.f32 %v3165, %v3184
        %v3186 = vadd.f32 %v3185, 1.0
        %v3187 = vrcp.pop %v3186
        %v3188 = vmul.f32 %v3186, %v3187
        %v3189 = vsub.f32 1.0, %v3188
        %v3190 = vmul.f32 %v3187, %v3189
        %v3191 = vadd.f32 %v3187, %v3190
        %vm3192 = vweird.f32 %v3186
        %vm3193 = vweird.f32 %v3187
        %vm3194 = vmor %vm3192, %vm3193
        %v3195 = vsel %vm3194, %v3187, %v3191
        %v3196 = vand.u32 2147483647, %v3186
        %vm3197 = vcmp.eq.f32.partialorder %v3196, 8.507059e+37
        %v3198 = vand.u32 %v3186, 2147483648
        %v3199 = vor.u32 1.1754944e-38, %v3198
        %v3200 = vsel %vm3197, %v3199, %v3195
        %v3201 = vmul.f32 %v3176, %v3200
        %v3202 = vmin.f32 %v3201, 1.0
        %v3203 = vmax.f32 %v3202, -1.0
        %v3204 = vmul.f32 %v540, %v540
        %v3205 = vmin.f32 16.0, %v3204
        %v3206 = vmul.f32 %v3205, 2.1237322e-06
        %v3207 = vadd.f32 %v3206, 0.00028619796
        %v3208 = vmul.f32 %v3205, %v3207
        %v3209 = vadd.f32 %v3208, 0.0036580483
        %v3210 = vmul.f32 %v3205, %v3209
        %v3211 = vadd.f32 %v3210, 0.05243302
        %v3212 = vmul.f32 %v3205, %v3211
        %v3213 = vadd.f32 %v3212, 0.18741608
        %v3214 = vmul.f32 %v3205, %v3213
        %v3215 = vadd.f32 %v3214, 1.1283791
        %v3216 = vmul.f32 %v540, %v3215
        %v3217 = vmul.f32 %v3205, 3.8918573e-05
        %v3218 = vadd.f32 %v3217, 0.001143296
        %v3219 = vmul.f32 %v3205, %v3218
        %v3220 = vadd.f32 %v3219, 0.014752088
        %v3221 = vmul.f32 %v3205, %v3220
        %v3222 = vadd.f32 %v3221, 0.112945676
        %v3223 = vmul.f32 %v3205, %v3222
        %v3224 = vadd.f32 %v3223, 0.4994258
        %v3225 = vmul.f32 %v3205, %v3224
        %v3226 = vadd.f32 %v3225, 1.0
        %v3227 = vrcp.pop %v3226
        %v3228 = vmul.f32 %v3226, %v3227
        %v3229 = vsub.f32 1.0, %v3228
        %v3230 = vmul.f32 %v3227, %v3229
        %v3231 = vadd.f32 %v3227, %v3230
        %vm3232 = vweird.f32 %v3226
        %vm3233 = vweird.f32 %v3227
        %vm3234 = vmor %vm3232, %vm3233
        %v3235 = vsel %vm3234, %v3227, %v3231
        %v3236 = vand.u32 2147483647, %v3226
        %vm3237 = vcmp.eq.f32.partialorder %v3236, 8.507059e+37
        %v3238 = vand.u32 %v3226, 2147483648
        %v3239 = vor.u32 1.1754944e-38, %v3238
        %v3240 = vsel %vm3237, %v3239, %v3235
        %v3241 = vmul.f32 %v3216, %v3240
        %v3242 = vmin.f32 %v3241, 1.0
        %v3243 = vmax.f32 %v3242, -1.0
        %v3244 = vmul.f32 %v541, %v541
        %v3245 = vmin.f32 16.0, %v3244
        %v3246 = vmul.f32 %v3245, 2.1237322e-06
        %v3247 = vadd.f32 %v3246, 0.00028619796
        %v3248 = vmul.f32 %v3245, %v3247
        %v3249 = vadd.f32 %v3248, 0.0036580483
        %v3250 = vmul.f32 %v3245, %v3249
        %v3251 = vadd.f32 %v3250, 0.05243302
        %v3252 = vmul.f32 %v3245, %v3251
        %v3253 = vadd.f32 %v3252, 0.18741608
        %v3254 = vmul.f32 %v3245, %v3253
        %v3255 = vadd.f32 %v3254, 1.1283791
        %v3256 = vmul.f32 %v541, %v3255
        %v3257 = vmul.f32 %v3245, 3.8918573e-05
        %v3258 = vadd.f32 %v3257, 0.001143296
        %v3259 = vmul.f32 %v3245, %v3258
        %v3260 = vadd.f32 %v3259, 0.014752088
        %v3261 = vmul.f32 %v3245, %v3260
        %v3262 = vadd.f32 %v3261, 0.112945676
        %v3263 = vmul.f32 %v3245, %v3262
        %v3264 = vadd.f32 %v3263, 0.4994258
        %v3265 = vmul.f32 %v3245, %v3264
        %v3266 = vadd.f32 %v3265, 1.0
        %v3267 = vrcp.pop %v3266
        %v3268 = vmul.f32 %v3266, %v3267
        %v3269 = vsub.f32 1.0, %v3268
        %v3270 = vmul.f32 %v3267, %v3269
        %v3271 = vadd.f32 %v3267, %v3270
        %vm3272 = vweird.f32 %v3266
        %vm3273 = vweird.f32 %v3267
        %vm3274 = vmor %vm3272, %vm3273
        %v3275 = vsel %vm3274, %v3267, %v3271
        %v3276 = vand.u32 2147483647, %v3266
        %vm3277 = vcmp.eq.f32.partialorder %v3276, 8.507059e+37
        %v3278 = vand.u32 %v3266, 2147483648
        %v3279 = vor.u32 1.1754944e-38, %v3278
        %v3280 = vsel %vm3277, %v3279, %v3275
        %v3281 = vmul.f32 %v3256, %v3280
        %v3282 = vmin.f32 %v3281, 1.0
        %v3283 = vmax.f32 %v3282, -1.0
        %v3284 = vmul.f32 %v542, %v542
        %v3285 = vmin.f32 16.0, %v3284
        %v3286 = vmul.f32 %v3285, 2.1237322e-06
        %v3287 = vadd.f32 %v3286, 0.00028619796
        %v3288 = vmul.f32 %v3285, %v3287
        %v3289 = vadd.f32 %v3288, 0.0036580483
        %v3290 = vmul.f32 %v3285, %v3289
        %v3291 = vadd.f32 %v3290, 0.05243302
        %v3292 = vmul.f32 %v3285, %v3291
        %v3293 = vadd.f32 %v3292, 0.18741608
        %v3294 = vmul.f32 %v3285, %v3293
        %v3295 = vadd.f32 %v3294, 1.1283791
        %v3296 = vmul.f32 %v542, %v3295
        %v3297 = vmul.f32 %v3285, 3.8918573e-05
        %v3298 = vadd.f32 %v3297, 0.001143296
        %v3299 = vmul.f32 %v3285, %v3298
        %v3300 = vadd.f32 %v3299, 0.014752088
        %v3301 = vmul.f32 %v3285, %v3300
        %v3302 = vadd.f32 %v3301, 0.112945676
        %v3303 = vmul.f32 %v3285, %v3302
        %v3304 = vadd.f32 %v3303, 0.4994258
        %v3305 = vmul.f32 %v3285, %v3304
        %v3306 = vadd.f32 %v3305, 1.0
        %v3307 = vrcp.pop %v3306
        %v3308 = vmul.f32 %v3306, %v3307
        %v3309 = vsub.f32 1.0, %v3308
        %v3310 = vmul.f32 %v3307, %v3309
        %v3311 = vadd.f32 %v3307, %v3310
        %vm3312 = vweird.f32 %v3306
        %vm3313 = vweird.f32 %v3307
        %vm3314 = vmor %vm3312, %vm3313
        %v3315 = vsel %vm3314, %v3307, %v3311
        %v3316 = vand.u32 2147483647, %v3306
        %vm3317 = vcmp.eq.f32.partialorder %v3316, 8.507059e+37
        %v3318 = vand.u32 %v3306, 2147483648
        %v3319 = vor.u32 1.1754944e-38, %v3318
        %v3320 = vsel %vm3317, %v3319, %v3315
        %v3321 = vmul.f32 %v3296, %v3320
        %v3322 = vmin.f32 %v3321, 1.0
        %v3323 = vmax.f32 %v3322, -1.0
        %v3324 = vmul.f32 %v543, %v543
        %v3325 = vmin.f32 16.0, %v3324
        %v3326 = vmul.f32 %v3325, 2.1237322e-06
        %v3327 = vadd.f32 %v3326, 0.00028619796
        %v3328 = vmul.f32 %v3325, %v3327
        %v3329 = vadd.f32 %v3328, 0.0036580483
        %v3330 = vmul.f32 %v3325, %v3329
        %v3331 = vadd.f32 %v3330, 0.05243302
        %v3332 = vmul.f32 %v3325, %v3331
        %v3333 = vadd.f32 %v3332, 0.18741608
        %v3334 = vmul.f32 %v3325, %v3333
        %v3335 = vadd.f32 %v3334, 1.1283791
        %v3336 = vmul.f32 %v543, %v3335
        %v3337 = vmul.f32 %v3325, 3.8918573e-05
        %v3338 = vadd.f32 %v3337, 0.001143296
        %v3339 = vmul.f32 %v3325, %v3338
        %v3340 = vadd.f32 %v3339, 0.014752088
        %v3341 = vmul.f32 %v3325, %v3340
        %v3342 = vadd.f32 %v3341, 0.112945676
        %v3343 = vmul.f32 %v3325, %v3342
        %v3344 = vadd.f32 %v3343, 0.4994258
        %v3345 = vmul.f32 %v3325, %v3344
        %v3346 = vadd.f32 %v3345, 1.0
        %v3347 = vrcp.pop %v3346
        %v3348 = vmul.f32 %v3346, %v3347
        %v3349 = vsub.f32 1.0, %v3348
        %v3350 = vmul.f32 %v3347, %v3349
        %v3351 = vadd.f32 %v3347, %v3350
        %vm3352 = vweird.f32 %v3346
        %vm3353 = vweird.f32 %v3347
        %vm3354 = vmor %vm3352, %vm3353
        %v3355 = vsel %vm3354, %v3347, %v3351
        %v3356 = vand.u32 2147483647, %v3346
        %vm3357 = vcmp.eq.f32.partialorder %v3356, 8.507059e+37
        %v3358 = vand.u32 %v3346, 2147483648
        %v3359 = vor.u32 1.1754944e-38, %v3358
        %v3360 = vsel %vm3357, %v3359, %v3355
        %v3361 = vmul.f32 %v3336, %v3360
        %v3362 = vmin.f32 %v3361, 1.0
        %v3363 = vmax.f32 %v3362, -1.0
        %v3364 = vmul.f32 %v544, %v544
        %v3365 = vmin.f32 16.0, %v3364
        %v3366 = vmul.f32 %v3365, 2.1237322e-06
        %v3367 = vadd.f32 %v3366, 0.00028619796
        %v3368 = vmul.f32 %v3365, %v3367
        %v3369 = vadd.f32 %v3368, 0.0036580483
        %v3370 = vmul.f32 %v3365, %v3369
        %v3371 = vadd.f32 %v3370, 0.05243302
        %v3372 = vmul.f32 %v3365, %v3371
        %v3373 = vadd.f32 %v3372, 0.18741608
        %v3374 = vmul.f32 %v3365, %v3373
        %v3375 = vadd.f32 %v3374, 1.1283791
        %v3376 = vmul.f32 %v544, %v3375
        %v3377 = vmul.f32 %v3365, 3.8918573e-05
        %v3378 = vadd.f32 %v3377, 0.001143296
        %v3379 = vmul.f32 %v3365, %v3378
        %v3380 = vadd.f32 %v3379, 0.014752088
        %v3381 = vmul.f32 %v3365, %v3380
        %v3382 = vadd.f32 %v3381, 0.112945676
        %v3383 = vmul.f32 %v3365, %v3382
        %v3384 = vadd.f32 %v3383, 0.4994258
        %v3385 = vmul.f32 %v3365, %v3384
        %v3386 = vadd.f32 %v3385, 1.0
        %v3387 = vrcp.pop %v3386
        %v3388 = vmul.f32 %v3386, %v3387
        %v3389 = vsub.f32 1.0, %v3388
        %v3390 = vmul.f32 %v3387, %v3389
        %v3391 = vadd.f32 %v3387, %v3390
        %vm3392 = vweird.f32 %v3386
        %vm3393 = vweird.f32 %v3387
        %vm3394 = vmor %vm3392, %vm3393
        %v3395 = vsel %vm3394, %v3387, %v3391
        %v3396 = vand.u32 2147483647, %v3386
        %vm3397 = vcmp.eq.f32.partialorder %v3396, 8.507059e+37
        %v3398 = vand.u32 %v3386, 2147483648
        %v3399 = vor.u32 1.1754944e-38, %v3398
        %v3400 = vsel %vm3397, %v3399, %v3395
        %v3401 = vmul.f32 %v3376, %v3400
        %v3402 = vmin.f32 %v3401, 1.0
        %v3403 = vmax.f32 %v3402, -1.0
        %v3404 = vmul.f32 %v545, %v545
        %v3405 = vmin.f32 16.0, %v3404
        %v3406 = vmul.f32 %v3405, 2.1237322e-06
        %v3407 = vadd.f32 %v3406, 0.00028619796
        %v3408 = vmul.f32 %v3405, %v3407
        %v3409 = vadd.f32 %v3408, 0.0036580483
        %v3410 = vmul.f32 %v3405, %v3409
        %v3411 = vadd.f32 %v3410, 0.05243302
        %v3412 = vmul.f32 %v3405, %v3411
        %v3413 = vadd.f32 %v3412, 0.18741608
        %v3414 = vmul.f32 %v3405, %v3413
        %v3415 = vadd.f32 %v3414, 1.1283791
        %v3416 = vmul.f32 %v545, %v3415
        %v3417 = vmul.f32 %v3405, 3.8918573e-05
        %v3418 = vadd.f32 %v3417, 0.001143296
        %v3419 = vmul.f32 %v3405, %v3418
        %v3420 = vadd.f32 %v3419, 0.014752088
        %v3421 = vmul.f32 %v3405, %v3420
        %v3422 = vadd.f32 %v3421, 0.112945676
        %v3423 = vmul.f32 %v3405, %v3422
        %v3424 = vadd.f32 %v3423, 0.4994258
        %v3425 = vmul.f32 %v3405, %v3424
        %v3426 = vadd.f32 %v3425, 1.0
        %v3427 = vrcp.pop %v3426
        %v3428 = vmul.f32 %v3426, %v3427
        %v3429 = vsub.f32 1.0, %v3428
        %v3430 = vmul.f32 %v3427, %v3429
        %v3431 = vadd.f32 %v3427, %v3430
        %vm3432 = vweird.f32 %v3426
        %vm3433 = vweird.f32 %v3427
        %vm3434 = vmor %vm3432, %vm3433
        %v3435 = vsel %vm3434, %v3427, %v3431
        %v3436 = vand.u32 2147483647, %v3426
        %vm3437 = vcmp.eq.f32.partialorder %v3436, 8.507059e+37
        %v3438 = vand.u32 %v3426, 2147483648
        %v3439 = vor.u32 1.1754944e-38, %v3438
        %v3440 = vsel %vm3437, %v3439, %v3435
        %v3441 = vmul.f32 %v3416, %v3440
        %v3442 = vmin.f32 %v3441, 1.0
        %v3443 = vmax.f32 %v3442, -1.0
        %v3444 = vmul.f32 %v546, %v546
        %v3445 = vmin.f32 16.0, %v3444
        %v3446 = vmul.f32 %v3445, 2.1237322e-06
        %v3447 = vadd.f32 %v3446, 0.00028619796
        %v3448 = vmul.f32 %v3445, %v3447
        %v3449 = vadd.f32 %v3448, 0.0036580483
        %v3450 = vmul.f32 %v3445, %v3449
        %v3451 = vadd.f32 %v3450, 0.05243302
        %v3452 = vmul.f32 %v3445, %v3451
        %v3453 = vadd.f32 %v3452, 0.18741608
        %v3454 = vmul.f32 %v3445, %v3453
        %v3455 = vadd.f32 %v3454, 1.1283791
        %v3456 = vmul.f32 %v546, %v3455
        %v3457 = vmul.f32 %v3445, 3.8918573e-05
        %v3458 = vadd.f32 %v3457, 0.001143296
        %v3459 = vmul.f32 %v3445, %v3458
        %v3460 = vadd.f32 %v3459, 0.014752088
        %v3461 = vmul.f32 %v3445, %v3460
        %v3462 = vadd.f32 %v3461, 0.112945676
        %v3463 = vmul.f32 %v3445, %v3462
        %v3464 = vadd.f32 %v3463, 0.4994258
        %v3465 = vmul.f32 %v3445, %v3464
        %v3466 = vadd.f32 %v3465, 1.0
        %v3467 = vrcp.pop %v3466
        %v3468 = vmul.f32 %v3466, %v3467
        %v3469 = vsub.f32 1.0, %v3468
        %v3470 = vmul.f32 %v3467, %v3469
        %v3471 = vadd.f32 %v3467, %v3470
        %vm3472 = vweird.f32 %v3466
        %vm3473 = vweird.f32 %v3467
        %vm3474 = vmor %vm3472, %vm3473
        %v3475 = vsel %vm3474, %v3467, %v3471
        %v3476 = vand.u32 2147483647, %v3466
        %vm3477 = vcmp.eq.f32.partialorder %v3476, 8.507059e+37
        %v3478 = vand.u32 %v3466, 2147483648
        %v3479 = vor.u32 1.1754944e-38, %v3478
        %v3480 = vsel %vm3477, %v3479, %v3475
        %v3481 = vmul.f32 %v3456, %v3480
        %v3482 = vmin.f32 %v3481, 1.0
        %v3483 = vmax.f32 %v3482, -1.0
        %v3484 = vmul.f32 %v547, %v547
        %v3485 = vmin.f32 16.0, %v3484
        %v3486 = vmul.f32 %v3485, 2.1237322e-06
        %v3487 = vadd.f32 %v3486, 0.00028619796
        %v3488 = vmul.f32 %v3485, %v3487
        %v3489 = vadd.f32 %v3488, 0.0036580483
        %v3490 = vmul.f32 %v3485, %v3489
        %v3491 = vadd.f32 %v3490, 0.05243302
        %v3492 = vmul.f32 %v3485, %v3491
        %v3493 = vadd.f32 %v3492, 0.18741608
        %v3494 = vmul.f32 %v3485, %v3493
        %v3495 = vadd.f32 %v3494, 1.1283791
        %v3496 = vmul.f32 %v547, %v3495
        %v3497 = vmul.f32 %v3485, 3.8918573e-05
        %v3498 = vadd.f32 %v3497, 0.001143296
        %v3499 = vmul.f32 %v3485, %v3498
        %v3500 = vadd.f32 %v3499, 0.014752088
        %v3501 = vmul.f32 %v3485, %v3500
        %v3502 = vadd.f32 %v3501, 0.112945676
        %v3503 = vmul.f32 %v3485, %v3502
        %v3504 = vadd.f32 %v3503, 0.4994258
        %v3505 = vmul.f32 %v3485, %v3504
        %v3506 = vadd.f32 %v3505, 1.0
        %v3507 = vrcp.pop %v3506
        %v3508 = vmul.f32 %v3506, %v3507
        %v3509 = vsub.f32 1.0, %v3508
        %v3510 = vmul.f32 %v3507, %v3509
        %v3511 = vadd.f32 %v3507, %v3510
        %vm3512 = vweird.f32 %v3506
        %vm3513 = vweird.f32 %v3507
        %vm3514 = vmor %vm3512, %vm3513
        %v3515 = vsel %vm3514, %v3507, %v3511
        %v3516 = vand.u32 2147483647, %v3506
        %vm3517 = vcmp.eq.f32.partialorder %v3516, 8.507059e+37
        %v3518 = vand.u32 %v3506, 2147483648
        %v3519 = vor.u32 1.1754944e-38, %v3518
        %v3520 = vsel %vm3517, %v3519, %v3515
        %v3521 = vmul.f32 %v3496, %v3520
        %v3522 = vmin.f32 %v3521, 1.0
        %v3523 = vmax.f32 %v3522, -1.0
        %v3524 = vmul.f32 %v548, %v548
        %v3525 = vmin.f32 16.0, %v3524
        %v3526 = vmul.f32 %v3525, 2.1237322e-06
        %v3527 = vadd.f32 %v3526, 0.00028619796
        %v3528 = vmul.f32 %v3525, %v3527
        %v3529 = vadd.f32 %v3528, 0.0036580483
        %v3530 = vmul.f32 %v3525, %v3529
        %v3531 = vadd.f32 %v3530, 0.05243302
        %v3532 = vmul.f32 %v3525, %v3531
        %v3533 = vadd.f32 %v3532, 0.18741608
        %v3534 = vmul.f32 %v3525, %v3533
        %v3535 = vadd.f32 %v3534, 1.1283791
        %v3536 = vmul.f32 %v548, %v3535
        %v3537 = vmul.f32 %v3525, 3.8918573e-05
        %v3538 = vadd.f32 %v3537, 0.001143296
        %v3539 = vmul.f32 %v3525, %v3538
        %v3540 = vadd.f32 %v3539, 0.014752088
        %v3541 = vmul.f32 %v3525, %v3540
        %v3542 = vadd.f32 %v3541, 0.112945676
        %v3543 = vmul.f32 %v3525, %v3542
        %v3544 = vadd.f32 %v3543, 0.4994258
        %v3545 = vmul.f32 %v3525, %v3544
        %v3546 = vadd.f32 %v3545, 1.0
        %v3547 = vrcp.pop %v3546
        %v3548 = vmul.f32 %v3546, %v3547
        %v3549 = vsub.f32 1.0, %v3548
        %v3550 = vmul.f32 %v3547, %v3549
        %v3551 = vadd.f32 %v3547, %v3550
        %vm3552 = vweird.f32 %v3546
        %vm3553 = vweird.f32 %v3547
        %vm3554 = vmor %vm3552, %vm3553
        %v3555 = vsel %vm3554, %v3547, %v3551
        %v3556 = vand.u32 2147483647, %v3546
        %vm3557 = vcmp.eq.f32.partialorder %v3556, 8.507059e+37
        %v3558 = vand.u32 %v3546, 2147483648
        %v3559 = vor.u32 1.1754944e-38, %v3558
        %v3560 = vsel %vm3557, %v3559, %v3555
        %v3561 = vmul.f32 %v3536, %v3560
        %v3562 = vmin.f32 %v3561, 1.0
        %v3563 = vmax.f32 %v3562, -1.0
        %v3564 = vmul.f32 %v549, %v549
        %v3565 = vmin.f32 16.0, %v3564
        %v3566 = vmul.f32 %v3565, 2.1237322e-06
        %v3567 = vadd.f32 %v3566, 0.00028619796
        %v3568 = vmul.f32 %v3565, %v3567
        %v3569 = vadd.f32 %v3568, 0.0036580483
        %v3570 = vmul.f32 %v3565, %v3569
        %v3571 = vadd.f32 %v3570, 0.05243302
        %v3572 = vmul.f32 %v3565, %v3571
        %v3573 = vadd.f32 %v3572, 0.18741608
        %v3574 = vmul.f32 %v3565, %v3573
        %v3575 = vadd.f32 %v3574, 1.1283791
        %v3576 = vmul.f32 %v549, %v3575
        %v3577 = vmul.f32 %v3565, 3.8918573e-05
        %v3578 = vadd.f32 %v3577, 0.001143296
        %v3579 = vmul.f32 %v3565, %v3578
        %v3580 = vadd.f32 %v3579, 0.014752088
        %v3581 = vmul.f32 %v3565, %v3580
        %v3582 = vadd.f32 %v3581, 0.112945676
        %v3583 = vmul.f32 %v3565, %v3582
        %v3584 = vadd.f32 %v3583, 0.4994258
        %v3585 = vmul.f32 %v3565, %v3584
        %v3586 = vadd.f32 %v3585, 1.0
        %v3587 = vrcp.pop %v3586
        %v3588 = vmul.f32 %v3586, %v3587
        %v3589 = vsub.f32 1.0, %v3588
        %v3590 = vmul.f32 %v3587, %v3589
        %v3591 = vadd.f32 %v3587, %v3590
        %vm3592 = vweird.f32 %v3586
        %vm3593 = vweird.f32 %v3587
        %vm3594 = vmor %vm3592, %vm3593
        %v3595 = vsel %vm3594, %v3587, %v3591
        %v3596 = vand.u32 2147483647, %v3586
        %vm3597 = vcmp.eq.f32.partialorder %v3596, 8.507059e+37
        %v3598 = vand.u32 %v3586, 2147483648
        %v3599 = vor.u32 1.1754944e-38, %v3598
        %v3600 = vsel %vm3597, %v3599, %v3595
        %v3601 = vmul.f32 %v3576, %v3600
        %v3602 = vmin.f32 %v3601, 1.0
        %v3603 = vmax.f32 %v3602, -1.0
        %v3604 = vmul.f32 %v550, %v550
        %v3605 = vmin.f32 16.0, %v3604
        %v3606 = vmul.f32 %v3605, 2.1237322e-06
        %v3607 = vadd.f32 %v3606, 0.00028619796
        %v3608 = vmul.f32 %v3605, %v3607
        %v3609 = vadd.f32 %v3608, 0.0036580483
        %v3610 = vmul.f32 %v3605, %v3609
        %v3611 = vadd.f32 %v3610, 0.05243302
        %v3612 = vmul.f32 %v3605, %v3611
        %v3613 = vadd.f32 %v3612, 0.18741608
        %v3614 = vmul.f32 %v3605, %v3613
        %v3615 = vadd.f32 %v3614, 1.1283791
        %v3616 = vmul.f32 %v550, %v3615
        %v3617 = vmul.f32 %v3605, 3.8918573e-05
        %v3618 = vadd.f32 %v3617, 0.001143296
        %v3619 = vmul.f32 %v3605, %v3618
        %v3620 = vadd.f32 %v3619, 0.014752088
        %v3621 = vmul.f32 %v3605, %v3620
        %v3622 = vadd.f32 %v3621, 0.112945676
        %v3623 = vmul.f32 %v3605, %v3622
        %v3624 = vadd.f32 %v3623, 0.4994258
        %v3625 = vmul.f32 %v3605, %v3624
        %v3626 = vadd.f32 %v3625, 1.0
        %v3627 = vrcp.pop %v3626
        %v3628 = vmul.f32 %v3626, %v3627
        %v3629 = vsub.f32 1.0, %v3628
        %v3630 = vmul.f32 %v3627, %v3629
        %v3631 = vadd.f32 %v3627, %v3630
        %vm3632 = vweird.f32 %v3626
        %vm3633 = vweird.f32 %v3627
        %vm3634 = vmor %vm3632, %vm3633
        %v3635 = vsel %vm3634, %v3627, %v3631
        %v3636 = vand.u32 2147483647, %v3626
        %vm3637 = vcmp.eq.f32.partialorder %v3636, 8.507059e+37
        %v3638 = vand.u32 %v3626, 2147483648
        %v3639 = vor.u32 1.1754944e-38, %v3638
        %v3640 = vsel %vm3637, %v3639, %v3635
        %v3641 = vmul.f32 %v3616, %v3640
        %v3642 = vmin.f32 %v3641, 1.0
        %v3643 = vmax.f32 %v3642, -1.0
        %v3644 = vmul.f32 %v551, %v551
        %v3645 = vmin.f32 16.0, %v3644
        %v3646 = vmul.f32 %v3645, 2.1237322e-06
        %v3647 = vadd.f32 %v3646, 0.00028619796
        %v3648 = vmul.f32 %v3645, %v3647
        %v3649 = vadd.f32 %v3648, 0.0036580483
        %v3650 = vmul.f32 %v3645, %v3649
        %v3651 = vadd.f32 %v3650, 0.05243302
        %v3652 = vmul.f32 %v3645, %v3651
        %v3653 = vadd.f32 %v3652, 0.18741608
        %v3654 = vmul.f32 %v3645, %v3653
        %v3655 = vadd.f32 %v3654, 1.1283791
        %v3656 = vmul.f32 %v551, %v3655
        %v3657 = vmul.f32 %v3645, 3.8918573e-05
        %v3658 = vadd.f32 %v3657, 0.001143296
        %v3659 = vmul.f32 %v3645, %v3658
        %v3660 = vadd.f32 %v3659, 0.014752088
        %v3661 = vmul.f32 %v3645, %v3660
        %v3662 = vadd.f32 %v3661, 0.112945676
        %v3663 = vmul.f32 %v3645, %v3662
        %v3664 = vadd.f32 %v3663, 0.4994258
        %v3665 = vmul.f32 %v3645, %v3664
        %v3666 = vadd.f32 %v3665, 1.0
        %v3667 = vrcp.pop %v3666
        %v3668 = vmul.f32 %v3666, %v3667
        %v3669 = vsub.f32 1.0, %v3668
        %v3670 = vmul.f32 %v3667, %v3669
        %v3671 = vadd.f32 %v3667, %v3670
        %vm3672 = vweird.f32 %v3666
        %vm3673 = vweird.f32 %v3667
        %vm3674 = vmor %vm3672, %vm3673
        %v3675 = vsel %vm3674, %v3667, %v3671
        %v3676 = vand.u32 2147483647, %v3666
        %vm3677 = vcmp.eq.f32.partialorder %v3676, 8.507059e+37
        %v3678 = vand.u32 %v3666, 2147483648
        %v3679 = vor.u32 1.1754944e-38, %v3678
        %v3680 = vsel %vm3677, %v3679, %v3675
        %v3681 = vmul.f32 %v3656, %v3680
        %v3682 = vmin.f32 %v3681, 1.0
        %v3683 = vmax.f32 %v3682, -1.0
        %v3684 = vmul.f32 %v552, %v552
        %v3685 = vmin.f32 16.0, %v3684
        %v3686 = vmul.f32 %v3685, 2.1237322e-06
        %v3687 = vadd.f32 %v3686, 0.00028619796
        %v3688 = vmul.f32 %v3685, %v3687
        %v3689 = vadd.f32 %v3688, 0.0036580483
        %v3690 = vmul.f32 %v3685, %v3689
        %v3691 = vadd.f32 %v3690, 0.05243302
        %v3692 = vmul.f32 %v3685, %v3691
        %v3693 = vadd.f32 %v3692, 0.18741608
        %v3694 = vmul.f32 %v3685, %v3693
        %v3695 = vadd.f32 %v3694, 1.1283791
        %v3696 = vmul.f32 %v552, %v3695
        %v3697 = vmul.f32 %v3685, 3.8918573e-05
        %v3698 = vadd.f32 %v3697, 0.001143296
        %v3699 = vmul.f32 %v3685, %v3698
        %v3700 = vadd.f32 %v3699, 0.014752088
        %v3701 = vmul.f32 %v3685, %v3700
        %v3702 = vadd.f32 %v3701, 0.112945676
        %v3703 = vmul.f32 %v3685, %v3702
        %v3704 = vadd.f32 %v3703, 0.4994258
        %v3705 = vmul.f32 %v3685, %v3704
        %v3706 = vadd.f32 %v3705, 1.0
        %v3707 = vrcp.pop %v3706
        %v3708 = vmul.f32 %v3706, %v3707
        %v3709 = vsub.f32 1.0, %v3708
        %v3710 = vmul.f32 %v3707, %v3709
        %v3711 = vadd.f32 %v3707, %v3710
        %vm3712 = vweird.f32 %v3706
        %vm3713 = vweird.f32 %v3707
        %vm3714 = vmor %vm3712, %vm3713
        %v3715 = vsel %vm3714, %v3707, %v3711
        %v3716 = vand.u32 2147483647, %v3706
        %vm3717 = vcmp.eq.f32.partialorder %v3716, 8.507059e+37
        %v3718 = vand.u32 %v3706, 2147483648
        %v3719 = vor.u32 1.1754944e-38, %v3718
        %v3720 = vsel %vm3717, %v3719, %v3715
        %v3721 = vmul.f32 %v3696, %v3720
        %v3722 = vmin.f32 %v3721, 1.0
        %v3723 = vmax.f32 %v3722, -1.0
        %v3724 = vmul.f32 %v553, %v553
        %v3725 = vmin.f32 16.0, %v3724
        %v3726 = vmul.f32 %v3725, 2.1237322e-06
        %v3727 = vadd.f32 %v3726, 0.00028619796
        %v3728 = vmul.f32 %v3725, %v3727
        %v3729 = vadd.f32 %v3728, 0.0036580483
        %v3730 = vmul.f32 %v3725, %v3729
        %v3731 = vadd.f32 %v3730, 0.05243302
        %v3732 = vmul.f32 %v3725, %v3731
        %v3733 = vadd.f32 %v3732, 0.18741608
        %v3734 = vmul.f32 %v3725, %v3733
        %v3735 = vadd.f32 %v3734, 1.1283791
        %v3736 = vmul.f32 %v553, %v3735
        %v3737 = vmul.f32 %v3725, 3.8918573e-05
        %v3738 = vadd.f32 %v3737, 0.001143296
        %v3739 = vmul.f32 %v3725, %v3738
        %v3740 = vadd.f32 %v3739, 0.014752088
        %v3741 = vmul.f32 %v3725, %v3740
        %v3742 = vadd.f32 %v3741, 0.112945676
        %v3743 = vmul.f32 %v3725, %v3742
        %v3744 = vadd.f32 %v3743, 0.4994258
        %v3745 = vmul.f32 %v3725, %v3744
        %v3746 = vadd.f32 %v3745, 1.0
        %v3747 = vrcp.pop %v3746
        %v3748 = vmul.f32 %v3746, %v3747
        %v3749 = vsub.f32 1.0, %v3748
        %v3750 = vmul.f32 %v3747, %v3749
        %v3751 = vadd.f32 %v3747, %v3750
        %vm3752 = vweird.f32 %v3746
        %vm3753 = vweird.f32 %v3747
        %vm3754 = vmor %vm3752, %vm3753
        %v3755 = vsel %vm3754, %v3747, %v3751
        %v3756 = vand.u32 2147483647, %v3746
        %vm3757 = vcmp.eq.f32.partialorder %v3756, 8.507059e+37
        %v3758 = vand.u32 %v3746, 2147483648
        %v3759 = vor.u32 1.1754944e-38, %v3758
        %v3760 = vsel %vm3757, %v3759, %v3755
        %v3761 = vmul.f32 %v3736, %v3760
        %v3762 = vmin.f32 %v3761, 1.0
        %v3763 = vmax.f32 %v3762, -1.0
        %v3764 = vmul.f32 %v554, %v554
        %v3765 = vmin.f32 16.0, %v3764
        %v3766 = vmul.f32 %v3765, 2.1237322e-06
        %v3767 = vadd.f32 %v3766, 0.00028619796
        %v3768 = vmul.f32 %v3765, %v3767
        %v3769 = vadd.f32 %v3768, 0.0036580483
        %v3770 = vmul.f32 %v3765, %v3769
        %v3771 = vadd.f32 %v3770, 0.05243302
        %v3772 = vmul.f32 %v3765, %v3771
        %v3773 = vadd.f32 %v3772, 0.18741608
        %v3774 = vmul.f32 %v3765, %v3773
        %v3775 = vadd.f32 %v3774, 1.1283791
        %v3776 = vmul.f32 %v554, %v3775
        %v3777 = vmul.f32 %v3765, 3.8918573e-05
        %v3778 = vadd.f32 %v3777, 0.001143296
        %v3779 = vmul.f32 %v3765, %v3778
        %v3780 = vadd.f32 %v3779, 0.014752088
        %v3781 = vmul.f32 %v3765, %v3780
        %v3782 = vadd.f32 %v3781, 0.112945676
        %v3783 = vmul.f32 %v3765, %v3782
        %v3784 = vadd.f32 %v3783, 0.4994258
        %v3785 = vmul.f32 %v3765, %v3784
        %v3786 = vadd.f32 %v3785, 1.0
        %v3787 = vrcp.pop %v3786
        %v3788 = vmul.f32 %v3786, %v3787
        %v3789 = vsub.f32 1.0, %v3788
        %v3790 = vmul.f32 %v3787, %v3789
        %v3791 = vadd.f32 %v3787, %v3790
        %vm3792 = vweird.f32 %v3786
        %vm3793 = vweird.f32 %v3787
        %vm3794 = vmor %vm3792, %vm3793
        %v3795 = vsel %vm3794, %v3787, %v3791
        %v3796 = vand.u32 2147483647, %v3786
        %vm3797 = vcmp.eq.f32.partialorder %v3796, 8.507059e+37
        %v3798 = vand.u32 %v3786, 2147483648
        %v3799 = vor.u32 1.1754944e-38, %v3798
        %v3800 = vsel %vm3797, %v3799, %v3795
        %v3801 = vmul.f32 %v3776, %v3800
        %v3802 = vmin.f32 %v3801, 1.0
        %v3803 = vmax.f32 %v3802, -1.0
        %v3804 = vmul.f32 %v555, %v555
        %v3805 = vmin.f32 16.0, %v3804
        %v3806 = vmul.f32 %v3805, 2.1237322e-06
        %v3807 = vadd.f32 %v3806, 0.00028619796
        %v3808 = vmul.f32 %v3805, %v3807
        %v3809 = vadd.f32 %v3808, 0.0036580483
        %v3810 = vmul.f32 %v3805, %v3809
        %v3811 = vadd.f32 %v3810, 0.05243302
        %v3812 = vmul.f32 %v3805, %v3811
        %v3813 = vadd.f32 %v3812, 0.18741608
        %v3814 = vmul.f32 %v3805, %v3813
        %v3815 = vadd.f32 %v3814, 1.1283791
        %v3816 = vmul.f32 %v555, %v3815
        %v3817 = vmul.f32 %v3805, 3.8918573e-05
        %v3818 = vadd.f32 %v3817, 0.001143296
        %v3819 = vmul.f32 %v3805, %v3818
        %v3820 = vadd.f32 %v3819, 0.014752088
        %v3821 = vmul.f32 %v3805, %v3820
        %v3822 = vadd.f32 %v3821, 0.112945676
        %v3823 = vmul.f32 %v3805, %v3822
        %v3824 = vadd.f32 %v3823, 0.4994258
        %v3825 = vmul.f32 %v3805, %v3824
        %v3826 = vadd.f32 %v3825, 1.0
        %v3827 = vrcp.pop %v3826
        %v3828 = vmul.f32 %v3826, %v3827
        %v3829 = vsub.f32 1.0, %v3828
        %v3830 = vmul.f32 %v3827, %v3829
        %v3831 = vadd.f32 %v3827, %v3830
        %vm3832 = vweird.f32 %v3826
        %vm3833 = vweird.f32 %v3827
        %vm3834 = vmor %vm3832, %vm3833
        %v3835 = vsel %vm3834, %v3827, %v3831
        %v3836 = vand.u32 2147483647, %v3826
        %vm3837 = vcmp.eq.f32.partialorder %v3836, 8.507059e+37
        %v3838 = vand.u32 %v3826, 2147483648
        %v3839 = vor.u32 1.1754944e-38, %v3838
        %v3840 = vsel %vm3837, %v3839, %v3835
        %v3841 = vmul.f32 %v3816, %v3840
        %v3842 = vmin.f32 %v3841, 1.0
        %v3843 = vmax.f32 %v3842, -1.0
        %v3844 = vmul.f32 %v556, %v556
        %v3845 = vmin.f32 16.0, %v3844
        %v3846 = vmul.f32 %v3845, 2.1237322e-06
        %v3847 = vadd.f32 %v3846, 0.00028619796
        %v3848 = vmul.f32 %v3845, %v3847
        %v3849 = vadd.f32 %v3848, 0.0036580483
        %v3850 = vmul.f32 %v3845, %v3849
        %v3851 = vadd.f32 %v3850, 0.05243302
        %v3852 = vmul.f32 %v3845, %v3851
        %v3853 = vadd.f32 %v3852, 0.18741608
        %v3854 = vmul.f32 %v3845, %v3853
        %v3855 = vadd.f32 %v3854, 1.1283791
        %v3856 = vmul.f32 %v556, %v3855
        %v3857 = vmul.f32 %v3845, 3.8918573e-05
        %v3858 = vadd.f32 %v3857, 0.001143296
        %v3859 = vmul.f32 %v3845, %v3858
        %v3860 = vadd.f32 %v3859, 0.014752088
        %v3861 = vmul.f32 %v3845, %v3860
        %v3862 = vadd.f32 %v3861, 0.112945676
        %v3863 = vmul.f32 %v3845, %v3862
        %v3864 = vadd.f32 %v3863, 0.4994258
        %v3865 = vmul.f32 %v3845, %v3864
        %v3866 = vadd.f32 %v3865, 1.0
        %v3867 = vrcp.pop %v3866
        %v3868 = vmul.f32 %v3866, %v3867
        %v3869 = vsub.f32 1.0, %v3868
        %v3870 = vmul.f32 %v3867, %v3869
        %v3871 = vadd.f32 %v3867, %v3870
        %vm3872 = vweird.f32 %v3866
        %vm3873 = vweird.f32 %v3867
        %vm3874 = vmor %vm3872, %vm3873
        %v3875 = vsel %vm3874, %v3867, %v3871
        %v3876 = vand.u32 2147483647, %v3866
        %vm3877 = vcmp.eq.f32.partialorder %v3876, 8.507059e+37
        %v3878 = vand.u32 %v3866, 2147483648
        %v3879 = vor.u32 1.1754944e-38, %v3878
        %v3880 = vsel %vm3877, %v3879, %v3875
        %v3881 = vmul.f32 %v3856, %v3880
        %v3882 = vmin.f32 %v3881, 1.0
        %v3883 = vmax.f32 %v3882, -1.0
        %v3884 = vmul.f32 %v557, %v557
        %v3885 = vmin.f32 16.0, %v3884
        %v3886 = vmul.f32 %v3885, 2.1237322e-06
        %v3887 = vadd.f32 %v3886, 0.00028619796
        %v3888 = vmul.f32 %v3885, %v3887
        %v3889 = vadd.f32 %v3888, 0.0036580483
        %v3890 = vmul.f32 %v3885, %v3889
        %v3891 = vadd.f32 %v3890, 0.05243302
        %v3892 = vmul.f32 %v3885, %v3891
        %v3893 = vadd.f32 %v3892, 0.18741608
        %v3894 = vmul.f32 %v3885, %v3893
        %v3895 = vadd.f32 %v3894, 1.1283791
        %v3896 = vmul.f32 %v557, %v3895
        %v3897 = vmul.f32 %v3885, 3.8918573e-05
        %v3898 = vadd.f32 %v3897, 0.001143296
        %v3899 = vmul.f32 %v3885, %v3898
        %v3900 = vadd.f32 %v3899, 0.014752088
        %v3901 = vmul.f32 %v3885, %v3900
        %v3902 = vadd.f32 %v3901, 0.112945676
        %v3903 = vmul.f32 %v3885, %v3902
        %v3904 = vadd.f32 %v3903, 0.4994258
        %v3905 = vmul.f32 %v3885, %v3904
        %v3906 = vadd.f32 %v3905, 1.0
        %v3907 = vrcp.pop %v3906
        %v3908 = vmul.f32 %v3906, %v3907
        %v3909 = vsub.f32 1.0, %v3908
        %v3910 = vmul.f32 %v3907, %v3909
        %v3911 = vadd.f32 %v3907, %v3910
        %vm3912 = vweird.f32 %v3906
        %vm3913 = vweird.f32 %v3907
        %vm3914 = vmor %vm3912, %vm3913
        %v3915 = vsel %vm3914, %v3907, %v3911
        %v3916 = vand.u32 2147483647, %v3906
        %vm3917 = vcmp.eq.f32.partialorder %v3916, 8.507059e+37
        %v3918 = vand.u32 %v3906, 2147483648
        %v3919 = vor.u32 1.1754944e-38, %v3918
        %v3920 = vsel %vm3917, %v3919, %v3915
        %v3921 = vmul.f32 %v3896, %v3920
        %v3922 = vmin.f32 %v3921, 1.0
        %v3923 = vmax.f32 %v3922, -1.0
        %v3924 = vmul.f32 %v558, %v558
        %v3925 = vmin.f32 16.0, %v3924
        %v3926 = vmul.f32 %v3925, 2.1237322e-06
        %v3927 = vadd.f32 %v3926, 0.00028619796
        %v3928 = vmul.f32 %v3925, %v3927
        %v3929 = vadd.f32 %v3928, 0.0036580483
        %v3930 = vmul.f32 %v3925, %v3929
        %v3931 = vadd.f32 %v3930, 0.05243302
        %v3932 = vmul.f32 %v3925, %v3931
        %v3933 = vadd.f32 %v3932, 0.18741608
        %v3934 = vmul.f32 %v3925, %v3933
        %v3935 = vadd.f32 %v3934, 1.1283791
        %v3936 = vmul.f32 %v558, %v3935
        %v3937 = vmul.f32 %v3925, 3.8918573e-05
        %v3938 = vadd.f32 %v3937, 0.001143296
        %v3939 = vmul.f32 %v3925, %v3938
        %v3940 = vadd.f32 %v3939, 0.014752088
        %v3941 = vmul.f32 %v3925, %v3940
        %v3942 = vadd.f32 %v3941, 0.112945676
        %v3943 = vmul.f32 %v3925, %v3942
        %v3944 = vadd.f32 %v3943, 0.4994258
        %v3945 = vmul.f32 %v3925, %v3944
        %v3946 = vadd.f32 %v3945, 1.0
        %v3947 = vrcp.pop %v3946
        %v3948 = vmul.f32 %v3946, %v3947
        %v3949 = vsub.f32 1.0, %v3948
        %v3950 = vmul.f32 %v3947, %v3949
        %v3951 = vadd.f32 %v3947, %v3950
        %vm3952 = vweird.f32 %v3946
        %vm3953 = vweird.f32 %v3947
        %vm3954 = vmor %vm3952, %vm3953
        %v3955 = vsel %vm3954, %v3947, %v3951
        %v3956 = vand.u32 2147483647, %v3946
        %vm3957 = vcmp.eq.f32.partialorder %v3956, 8.507059e+37
        %v3958 = vand.u32 %v3946, 2147483648
        %v3959 = vor.u32 1.1754944e-38, %v3958
        %v3960 = vsel %vm3957, %v3959, %v3955
        %v3961 = vmul.f32 %v3936, %v3960
        %v3962 = vmin.f32 %v3961, 1.0
        %v3963 = vmax.f32 %v3962, -1.0
        %v3964 = vmul.f32 %v559, %v559
        %v3965 = vmin.f32 16.0, %v3964
        %v3966 = vmul.f32 %v3965, 2.1237322e-06
        %v3967 = vadd.f32 %v3966, 0.00028619796
        %v3968 = vmul.f32 %v3965, %v3967
        %v3969 = vadd.f32 %v3968, 0.0036580483
        %v3970 = vmul.f32 %v3965, %v3969
        %v3971 = vadd.f32 %v3970, 0.05243302
        %v3972 = vmul.f32 %v3965, %v3971
        %v3973 = vadd.f32 %v3972, 0.18741608
        %v3974 = vmul.f32 %v3965, %v3973
        %v3975 = vadd.f32 %v3974, 1.1283791
        %v3976 = vmul.f32 %v559, %v3975
        %v3977 = vmul.f32 %v3965, 3.8918573e-05
        %v3978 = vadd.f32 %v3977, 0.001143296
        %v3979 = vmul.f32 %v3965, %v3978
        %v3980 = vadd.f32 %v3979, 0.014752088
        %v3981 = vmul.f32 %v3965, %v3980
        %v3982 = vadd.f32 %v3981, 0.112945676
        %v3983 = vmul.f32 %v3965, %v3982
        %v3984 = vadd.f32 %v3983, 0.4994258
        %v3985 = vmul.f32 %v3965, %v3984
        %v3986 = vadd.f32 %v3985, 1.0
        %v3987 = vrcp.pop %v3986
        %v3988 = vmul.f32 %v3986, %v3987
        %v3989 = vsub.f32 1.0, %v3988
        %v3990 = vmul.f32 %v3987, %v3989
        %v3991 = vadd.f32 %v3987, %v3990
        %vm3992 = vweird.f32 %v3986
        %vm3993 = vweird.f32 %v3987
        %vm3994 = vmor %vm3992, %vm3993
        %v3995 = vsel %vm3994, %v3987, %v3991
        %v3996 = vand.u32 2147483647, %v3986
        %vm3997 = vcmp.eq.f32.partialorder %v3996, 8.507059e+37
        %v3998 = vand.u32 %v3986, 2147483648
        %v3999 = vor.u32 1.1754944e-38, %v3998
        %v4000 = vsel %vm3997, %v3999, %v3995
        %v4001 = vmul.f32 %v3976, %v4000
        %v4002 = vmin.f32 %v4001, 1.0
        %v4003 = vmax.f32 %v4002, -1.0
        %v4004 = vmul.f32 %v560, %v560
        %v4005 = vmin.f32 16.0, %v4004
        %v4006 = vmul.f32 %v4005, 2.1237322e-06
        %v4007 = vadd.f32 %v4006, 0.00028619796
        %v4008 = vmul.f32 %v4005, %v4007
        %v4009 = vadd.f32 %v4008, 0.0036580483
        %v4010 = vmul.f32 %v4005, %v4009
        %v4011 = vadd.f32 %v4010, 0.05243302
        %v4012 = vmul.f32 %v4005, %v4011
        %v4013 = vadd.f32 %v4012, 0.18741608
        %v4014 = vmul.f32 %v4005, %v4013
        %v4015 = vadd.f32 %v4014, 1.1283791
        %v4016 = vmul.f32 %v560, %v4015
        %v4017 = vmul.f32 %v4005, 3.8918573e-05
        %v4018 = vadd.f32 %v4017, 0.001143296
        %v4019 = vmul.f32 %v4005, %v4018
        %v4020 = vadd.f32 %v4019, 0.014752088
        %v4021 = vmul.f32 %v4005, %v4020
        %v4022 = vadd.f32 %v4021, 0.112945676
        %v4023 = vmul.f32 %v4005, %v4022
        %v4024 = vadd.f32 %v4023, 0.4994258
        %v4025 = vmul.f32 %v4005, %v4024
        %v4026 = vadd.f32 %v4025, 1.0
        %v4027 = vrcp.pop %v4026
        %v4028 = vmul.f32 %v4026, %v4027
        %v4029 = vsub.f32 1.0, %v4028
        %v4030 = vmul.f32 %v4027, %v4029
        %v4031 = vadd.f32 %v4027, %v4030
        %vm4032 = vweird.f32 %v4026
        %vm4033 = vweird.f32 %v4027
        %vm4034 = vmor %vm4032, %vm4033
        %v4035 = vsel %vm4034, %v4027, %v4031
        %v4036 = vand.u32 2147483647, %v4026
        %vm4037 = vcmp.eq.f32.partialorder %v4036, 8.507059e+37
        %v4038 = vand.u32 %v4026, 2147483648
        %v4039 = vor.u32 1.1754944e-38, %v4038
        %v4040 = vsel %vm4037, %v4039, %v4035
        %v4041 = vmul.f32 %v4016, %v4040
        %v4042 = vmin.f32 %v4041, 1.0
        %v4043 = vmax.f32 %v4042, -1.0
        %v4044 = vmul.f32 %v561, %v561
        %v4045 = vmin.f32 16.0, %v4044
        %v4046 = vmul.f32 %v4045, 2.1237322e-06
        %v4047 = vadd.f32 %v4046, 0.00028619796
        %v4048 = vmul.f32 %v4045, %v4047
        %v4049 = vadd.f32 %v4048, 0.0036580483
        %v4050 = vmul.f32 %v4045, %v4049
        %v4051 = vadd.f32 %v4050, 0.05243302
        %v4052 = vmul.f32 %v4045, %v4051
        %v4053 = vadd.f32 %v4052, 0.18741608
        %v4054 = vmul.f32 %v4045, %v4053
        %v4055 = vadd.f32 %v4054, 1.1283791
        %v4056 = vmul.f32 %v561, %v4055
        %v4057 = vmul.f32 %v4045, 3.8918573e-05
        %v4058 = vadd.f32 %v4057, 0.001143296
        %v4059 = vmul.f32 %v4045, %v4058
        %v4060 = vadd.f32 %v4059, 0.014752088
        %v4061 = vmul.f32 %v4045, %v4060
        %v4062 = vadd.f32 %v4061, 0.112945676
        %v4063 = vmul.f32 %v4045, %v4062
        %v4064 = vadd.f32 %v4063, 0.4994258
        %v4065 = vmul.f32 %v4045, %v4064
        %v4066 = vadd.f32 %v4065, 1.0
        %v4067 = vrcp.pop %v4066
        %v4068 = vmul.f32 %v4066, %v4067
        %v4069 = vsub.f32 1.0, %v4068
        %v4070 = vmul.f32 %v4067, %v4069
        %v4071 = vadd.f32 %v4067, %v4070
        %vm4072 = vweird.f32 %v4066
        %vm4073 = vweird.f32 %v4067
        %vm4074 = vmor %vm4072, %vm4073
        %v4075 = vsel %vm4074, %v4067, %v4071
        %v4076 = vand.u32 2147483647, %v4066
        %vm4077 = vcmp.eq.f32.partialorder %v4076, 8.507059e+37
        %v4078 = vand.u32 %v4066, 2147483648
        %v4079 = vor.u32 1.1754944e-38, %v4078
        %v4080 = vsel %vm4077, %v4079, %v4075
        %v4081 = vmul.f32 %v4056, %v4080
        %v4082 = vmin.f32 %v4081, 1.0
        %v4083 = vmax.f32 %v4082, -1.0
        %v4084 = vmul.f32 %v562, %v562
        %v4085 = vmin.f32 16.0, %v4084
        %v4086 = vmul.f32 %v4085, 2.1237322e-06
        %v4087 = vadd.f32 %v4086, 0.00028619796
        %v4088 = vmul.f32 %v4085, %v4087
        %v4089 = vadd.f32 %v4088, 0.0036580483
        %v4090 = vmul.f32 %v4085, %v4089
        %v4091 = vadd.f32 %v4090, 0.05243302
        %v4092 = vmul.f32 %v4085, %v4091
        %v4093 = vadd.f32 %v4092, 0.18741608
        %v4094 = vmul.f32 %v4085, %v4093
        %v4095 = vadd.f32 %v4094, 1.1283791
        %v4096 = vmul.f32 %v562, %v4095
        %v4097 = vmul.f32 %v4085, 3.8918573e-05
        %v4098 = vadd.f32 %v4097, 0.001143296
        %v4099 = vmul.f32 %v4085, %v4098
        %v4100 = vadd.f32 %v4099, 0.014752088
        %v4101 = vmul.f32 %v4085, %v4100
        %v4102 = vadd.f32 %v4101, 0.112945676
        %v4103 = vmul.f32 %v4085, %v4102
        %v4104 = vadd.f32 %v4103, 0.4994258
        %v4105 = vmul.f32 %v4085, %v4104
        %v4106 = vadd.f32 %v4105, 1.0
        %v4107 = vrcp.pop %v4106
        %v4108 = vmul.f32 %v4106, %v4107
        %v4109 = vsub.f32 1.0, %v4108
        %v4110 = vmul.f32 %v4107, %v4109
        %v4111 = vadd.f32 %v4107, %v4110
        %vm4112 = vweird.f32 %v4106
        %vm4113 = vweird.f32 %v4107
        %vm4114 = vmor %vm4112, %vm4113
        %v4115 = vsel %vm4114, %v4107, %v4111
        %v4116 = vand.u32 2147483647, %v4106
        %vm4117 = vcmp.eq.f32.partialorder %v4116, 8.507059e+37
        %v4118 = vand.u32 %v4106, 2147483648
        %v4119 = vor.u32 1.1754944e-38, %v4118
        %v4120 = vsel %vm4117, %v4119, %v4115
        %v4121 = vmul.f32 %v4096, %v4120
        %v4122 = vmin.f32 %v4121, 1.0
        %v4123 = vmax.f32 %v4122, -1.0
        %v4124 = vmul.f32 %v563, %v563
        %v4125 = vmin.f32 16.0, %v4124
        %v4126 = vmul.f32 %v4125, 2.1237322e-06
        %v4127 = vadd.f32 %v4126, 0.00028619796
        %v4128 = vmul.f32 %v4125, %v4127
        %v4129 = vadd.f32 %v4128, 0.0036580483
        %v4130 = vmul.f32 %v4125, %v4129
        %v4131 = vadd.f32 %v4130, 0.05243302
        %v4132 = vmul.f32 %v4125, %v4131
        %v4133 = vadd.f32 %v4132, 0.18741608
        %v4134 = vmul.f32 %v4125, %v4133
        %v4135 = vadd.f32 %v4134, 1.1283791
        %v4136 = vmul.f32 %v563, %v4135
        %v4137 = vmul.f32 %v4125, 3.8918573e-05
        %v4138 = vadd.f32 %v4137, 0.001143296
        %v4139 = vmul.f32 %v4125, %v4138
        %v4140 = vadd.f32 %v4139, 0.014752088
        %v4141 = vmul.f32 %v4125, %v4140
        %v4142 = vadd.f32 %v4141, 0.112945676
        %v4143 = vmul.f32 %v4125, %v4142
        %v4144 = vadd.f32 %v4143, 0.4994258
        %v4145 = vmul.f32 %v4125, %v4144
        %v4146 = vadd.f32 %v4145, 1.0
        %v4147 = vrcp.pop %v4146
        %v4148 = vmul.f32 %v4146, %v4147
        %v4149 = vsub.f32 1.0, %v4148
        %v4150 = vmul.f32 %v4147, %v4149
        %v4151 = vadd.f32 %v4147, %v4150
        %vm4152 = vweird.f32 %v4146
        %vm4153 = vweird.f32 %v4147
        %vm4154 = vmor %vm4152, %vm4153
        %v4155 = vsel %vm4154, %v4147, %v4151
        %v4156 = vand.u32 2147483647, %v4146
        %vm4157 = vcmp.eq.f32.partialorder %v4156, 8.507059e+37
        %v4158 = vand.u32 %v4146, 2147483648
        %v4159 = vor.u32 1.1754944e-38, %v4158
        %v4160 = vsel %vm4157, %v4159, %v4155
        %v4161 = vmul.f32 %v4136, %v4160
        %v4162 = vmin.f32 %v4161, 1.0
        %v4163 = vmax.f32 %v4162, -1.0
        %v4164 = vmul.f32 %v564, %v564
        %v4165 = vmin.f32 16.0, %v4164
        %v4166 = vmul.f32 %v4165, 2.1237322e-06
        %v4167 = vadd.f32 %v4166, 0.00028619796
        %v4168 = vmul.f32 %v4165, %v4167
        %v4169 = vadd.f32 %v4168, 0.0036580483
        %v4170 = vmul.f32 %v4165, %v4169
        %v4171 = vadd.f32 %v4170, 0.05243302
        %v4172 = vmul.f32 %v4165, %v4171
        %v4173 = vadd.f32 %v4172, 0.18741608
        %v4174 = vmul.f32 %v4165, %v4173
        %v4175 = vadd.f32 %v4174, 1.1283791
        %v4176 = vmul.f32 %v564, %v4175
        %v4177 = vmul.f32 %v4165, 3.8918573e-05
        %v4178 = vadd.f32 %v4177, 0.001143296
        %v4179 = vmul.f32 %v4165, %v4178
        %v4180 = vadd.f32 %v4179, 0.014752088
        %v4181 = vmul.f32 %v4165, %v4180
        %v4182 = vadd.f32 %v4181, 0.112945676
        %v4183 = vmul.f32 %v4165, %v4182
        %v4184 = vadd.f32 %v4183, 0.4994258
        %v4185 = vmul.f32 %v4165, %v4184
        %v4186 = vadd.f32 %v4185, 1.0
        %v4187 = vrcp.pop %v4186
        %v4188 = vmul.f32 %v4186, %v4187
        %v4189 = vsub.f32 1.0, %v4188
        %v4190 = vmul.f32 %v4187, %v4189
        %v4191 = vadd.f32 %v4187, %v4190
        %vm4192 = vweird.f32 %v4186
        %vm4193 = vweird.f32 %v4187
        %vm4194 = vmor %vm4192, %vm4193
        %v4195 = vsel %vm4194, %v4187, %v4191
        %v4196 = vand.u32 2147483647, %v4186
        %vm4197 = vcmp.eq.f32.partialorder %v4196, 8.507059e+37
        %v4198 = vand.u32 %v4186, 2147483648
        %v4199 = vor.u32 1.1754944e-38, %v4198
        %v4200 = vsel %vm4197, %v4199, %v4195
        %v4201 = vmul.f32 %v4176, %v4200
        %v4202 = vmin.f32 %v4201, 1.0
        %v4203 = vmax.f32 %v4202, -1.0
        %v4204 = vmul.f32 %v565, %v565
        %v4205 = vmin.f32 16.0, %v4204
        %v4206 = vmul.f32 %v4205, 2.1237322e-06
        %v4207 = vadd.f32 %v4206, 0.00028619796
        %v4208 = vmul.f32 %v4205, %v4207
        %v4209 = vadd.f32 %v4208, 0.0036580483
        %v4210 = vmul.f32 %v4205, %v4209
        %v4211 = vadd.f32 %v4210, 0.05243302
        %v4212 = vmul.f32 %v4205, %v4211
        %v4213 = vadd.f32 %v4212, 0.18741608
        %v4214 = vmul.f32 %v4205, %v4213
        %v4215 = vadd.f32 %v4214, 1.1283791
        %v4216 = vmul.f32 %v565, %v4215
        %v4217 = vmul.f32 %v4205, 3.8918573e-05
        %v4218 = vadd.f32 %v4217, 0.001143296
        %v4219 = vmul.f32 %v4205, %v4218
        %v4220 = vadd.f32 %v4219, 0.014752088
        %v4221 = vmul.f32 %v4205, %v4220
        %v4222 = vadd.f32 %v4221, 0.112945676
        %v4223 = vmul.f32 %v4205, %v4222
        %v4224 = vadd.f32 %v4223, 0.4994258
        %v4225 = vmul.f32 %v4205, %v4224
        %v4226 = vadd.f32 %v4225, 1.0
        %v4227 = vrcp.pop %v4226
        %v4228 = vmul.f32 %v4226, %v4227
        %v4229 = vsub.f32 1.0, %v4228
        %v4230 = vmul.f32 %v4227, %v4229
        %v4231 = vadd.f32 %v4227, %v4230
        %vm4232 = vweird.f32 %v4226
        %vm4233 = vweird.f32 %v4227
        %vm4234 = vmor %vm4232, %vm4233
        %v4235 = vsel %vm4234, %v4227, %v4231
        %v4236 = vand.u32 2147483647, %v4226
        %vm4237 = vcmp.eq.f32.partialorder %v4236, 8.507059e+37
        %v4238 = vand.u32 %v4226, 2147483648
        %v4239 = vor.u32 1.1754944e-38, %v4238
        %v4240 = vsel %vm4237, %v4239, %v4235
        %v4241 = vmul.f32 %v4216, %v4240
        %v4242 = vmin.f32 %v4241, 1.0
        %v4243 = vmax.f32 %v4242, -1.0
        %v4244 = vmul.f32 %v566, %v566
        %v4245 = vmin.f32 16.0, %v4244
        %v4246 = vmul.f32 %v4245, 2.1237322e-06
        %v4247 = vadd.f32 %v4246, 0.00028619796
        %v4248 = vmul.f32 %v4245, %v4247
        %v4249 = vadd.f32 %v4248, 0.0036580483
        %v4250 = vmul.f32 %v4245, %v4249
        %v4251 = vadd.f32 %v4250, 0.05243302
        %v4252 = vmul.f32 %v4245, %v4251
        %v4253 = vadd.f32 %v4252, 0.18741608
        %v4254 = vmul.f32 %v4245, %v4253
        %v4255 = vadd.f32 %v4254, 1.1283791
        %v4256 = vmul.f32 %v566, %v4255
        %v4257 = vmul.f32 %v4245, 3.8918573e-05
        %v4258 = vadd.f32 %v4257, 0.001143296
        %v4259 = vmul.f32 %v4245, %v4258
        %v4260 = vadd.f32 %v4259, 0.014752088
        %v4261 = vmul.f32 %v4245, %v4260
        %v4262 = vadd.f32 %v4261, 0.112945676
        %v4263 = vmul.f32 %v4245, %v4262
        %v4264 = vadd.f32 %v4263, 0.4994258
        %v4265 = vmul.f32 %v4245, %v4264
        %v4266 = vadd.f32 %v4265, 1.0
        %v4267 = vrcp.pop %v4266
        %v4268 = vmul.f32 %v4266, %v4267
        %v4269 = vsub.f32 1.0, %v4268
        %v4270 = vmul.f32 %v4267, %v4269
        %v4271 = vadd.f32 %v4267, %v4270
        %vm4272 = vweird.f32 %v4266
        %vm4273 = vweird.f32 %v4267
        %vm4274 = vmor %vm4272, %vm4273
        %v4275 = vsel %vm4274, %v4267, %v4271
        %v4276 = vand.u32 2147483647, %v4266
        %vm4277 = vcmp.eq.f32.partialorder %v4276, 8.507059e+37
        %v4278 = vand.u32 %v4266, 2147483648
        %v4279 = vor.u32 1.1754944e-38, %v4278
        %v4280 = vsel %vm4277, %v4279, %v4275
        %v4281 = vmul.f32 %v4256, %v4280
        %v4282 = vmin.f32 %v4281, 1.0
        %v4283 = vmax.f32 %v4282, -1.0
        %v4284 = vmul.f32 %v567, %v567
        %v4285 = vmin.f32 16.0, %v4284
        %v4286 = vmul.f32 %v4285, 2.1237322e-06
        %v4287 = vadd.f32 %v4286, 0.00028619796
        %v4288 = vmul.f32 %v4285, %v4287
        %v4289 = vadd.f32 %v4288, 0.0036580483
        %v4290 = vmul.f32 %v4285, %v4289
        %v4291 = vadd.f32 %v4290, 0.05243302
        %v4292 = vmul.f32 %v4285, %v4291
        %v4293 = vadd.f32 %v4292, 0.18741608
        %v4294 = vmul.f32 %v4285, %v4293
        %v4295 = vadd.f32 %v4294, 1.1283791
        %v4296 = vmul.f32 %v567, %v4295
        %v4297 = vmul.f32 %v4285, 3.8918573e-05
        %v4298 = vadd.f32 %v4297, 0.001143296
        %v4299 = vmul.f32 %v4285, %v4298
        %v4300 = vadd.f32 %v4299, 0.014752088
        %v4301 = vmul.f32 %v4285, %v4300
        %v4302 = vadd.f32 %v4301, 0.112945676
        %v4303 = vmul.f32 %v4285, %v4302
        %v4304 = vadd.f32 %v4303, 0.4994258
        %v4305 = vmul.f32 %v4285, %v4304
        %v4306 = vadd.f32 %v4305, 1.0
        %v4307 = vrcp.pop %v4306
        %v4308 = vmul.f32 %v4306, %v4307
        %v4309 = vsub.f32 1.0, %v4308
        %v4310 = vmul.f32 %v4307, %v4309
        %v4311 = vadd.f32 %v4307, %v4310
        %vm4312 = vweird.f32 %v4306
        %vm4313 = vweird.f32 %v4307
        %vm4314 = vmor %vm4312, %vm4313
        %v4315 = vsel %vm4314, %v4307, %v4311
        %v4316 = vand.u32 2147483647, %v4306
        %vm4317 = vcmp.eq.f32.partialorder %v4316, 8.507059e+37
        %v4318 = vand.u32 %v4306, 2147483648
        %v4319 = vor.u32 1.1754944e-38, %v4318
        %v4320 = vsel %vm4317, %v4319, %v4315
        %v4321 = vmul.f32 %v4296, %v4320
        %v4322 = vmin.f32 %v4321, 1.0
        %v4323 = vmax.f32 %v4322, -1.0
        %v4324 = vmul.f32 %v568, %v568
        %v4325 = vmin.f32 16.0, %v4324
        %v4326 = vmul.f32 %v4325, 2.1237322e-06
        %v4327 = vadd.f32 %v4326, 0.00028619796
        %v4328 = vmul.f32 %v4325, %v4327
        %v4329 = vadd.f32 %v4328, 0.0036580483
        %v4330 = vmul.f32 %v4325, %v4329
        %v4331 = vadd.f32 %v4330, 0.05243302
        %v4332 = vmul.f32 %v4325, %v4331
        %v4333 = vadd.f32 %v4332, 0.18741608
        %v4334 = vmul.f32 %v4325, %v4333
        %v4335 = vadd.f32 %v4334, 1.1283791
        %v4336 = vmul.f32 %v568, %v4335
        %v4337 = vmul.f32 %v4325, 3.8918573e-05
        %v4338 = vadd.f32 %v4337, 0.001143296
        %v4339 = vmul.f32 %v4325, %v4338
        %v4340 = vadd.f32 %v4339, 0.014752088
        %v4341 = vmul.f32 %v4325, %v4340
        %v4342 = vadd.f32 %v4341, 0.112945676
        %v4343 = vmul.f32 %v4325, %v4342
        %v4344 = vadd.f32 %v4343, 0.4994258
        %v4345 = vmul.f32 %v4325, %v4344
        %v4346 = vadd.f32 %v4345, 1.0
        %v4347 = vrcp.pop %v4346
        %v4348 = vmul.f32 %v4346, %v4347
        %v4349 = vsub.f32 1.0, %v4348
        %v4350 = vmul.f32 %v4347, %v4349
        %v4351 = vadd.f32 %v4347, %v4350
        %vm4352 = vweird.f32 %v4346
        %vm4353 = vweird.f32 %v4347
        %vm4354 = vmor %vm4352, %vm4353
        %v4355 = vsel %vm4354, %v4347, %v4351
        %v4356 = vand.u32 2147483647, %v4346
        %vm4357 = vcmp.eq.f32.partialorder %v4356, 8.507059e+37
        %v4358 = vand.u32 %v4346, 2147483648
        %v4359 = vor.u32 1.1754944e-38, %v4358
        %v4360 = vsel %vm4357, %v4359, %v4355
        %v4361 = vmul.f32 %v4336, %v4360
        %v4362 = vmin.f32 %v4361, 1.0
        %v4363 = vmax.f32 %v4362, -1.0
        %v4364 = vmul.f32 %v569, %v569
        %v4365 = vmin.f32 16.0, %v4364
        %v4366 = vmul.f32 %v4365, 2.1237322e-06
        %v4367 = vadd.f32 %v4366, 0.00028619796
        %v4368 = vmul.f32 %v4365, %v4367
        %v4369 = vadd.f32 %v4368, 0.0036580483
        %v4370 = vmul.f32 %v4365, %v4369
        %v4371 = vadd.f32 %v4370, 0.05243302
        %v4372 = vmul.f32 %v4365, %v4371
        %v4373 = vadd.f32 %v4372, 0.18741608
        %v4374 = vmul.f32 %v4365, %v4373
        %v4375 = vadd.f32 %v4374, 1.1283791
        %v4376 = vmul.f32 %v569, %v4375
        %v4377 = vmul.f32 %v4365, 3.8918573e-05
        %v4378 = vadd.f32 %v4377, 0.001143296
        %v4379 = vmul.f32 %v4365, %v4378
        %v4380 = vadd.f32 %v4379, 0.014752088
        %v4381 = vmul.f32 %v4365, %v4380
        %v4382 = vadd.f32 %v4381, 0.112945676
        %v4383 = vmul.f32 %v4365, %v4382
        %v4384 = vadd.f32 %v4383, 0.4994258
        %v4385 = vmul.f32 %v4365, %v4384
        %v4386 = vadd.f32 %v4385, 1.0
        %v4387 = vrcp.pop %v4386
        %v4388 = vmul.f32 %v4386, %v4387
        %v4389 = vsub.f32 1.0, %v4388
        %v4390 = vmul.f32 %v4387, %v4389
        %v4391 = vadd.f32 %v4387, %v4390
        %vm4392 = vweird.f32 %v4386
        %vm4393 = vweird.f32 %v4387
        %vm4394 = vmor %vm4392, %vm4393
        %v4395 = vsel %vm4394, %v4387, %v4391
        %v4396 = vand.u32 2147483647, %v4386
        %vm4397 = vcmp.eq.f32.partialorder %v4396, 8.507059e+37
        %v4398 = vand.u32 %v4386, 2147483648
        %v4399 = vor.u32 1.1754944e-38, %v4398
        %v4400 = vsel %vm4397, %v4399, %v4395
        %v4401 = vmul.f32 %v4376, %v4400
        %v4402 = vmin.f32 %v4401, 1.0
        %v4403 = vmax.f32 %v4402, -1.0
        %v4404 = vmul.f32 %v570, %v570
        %v4405 = vmin.f32 16.0, %v4404
        %v4406 = vmul.f32 %v4405, 2.1237322e-06
        %v4407 = vadd.f32 %v4406, 0.00028619796
        %v4408 = vmul.f32 %v4405, %v4407
        %v4409 = vadd.f32 %v4408, 0.0036580483
        %v4410 = vmul.f32 %v4405, %v4409
        %v4411 = vadd.f32 %v4410, 0.05243302
        %v4412 = vmul.f32 %v4405, %v4411
        %v4413 = vadd.f32 %v4412, 0.18741608
        %v4414 = vmul.f32 %v4405, %v4413
        %v4415 = vadd.f32 %v4414, 1.1283791
        %v4416 = vmul.f32 %v570, %v4415
        %v4417 = vmul.f32 %v4405, 3.8918573e-05
        %v4418 = vadd.f32 %v4417, 0.001143296
        %v4419 = vmul.f32 %v4405, %v4418
        %v4420 = vadd.f32 %v4419, 0.014752088
        %v4421 = vmul.f32 %v4405, %v4420
        %v4422 = vadd.f32 %v4421, 0.112945676
        %v4423 = vmul.f32 %v4405, %v4422
        %v4424 = vadd.f32 %v4423, 0.4994258
        %v4425 = vmul.f32 %v4405, %v4424
        %v4426 = vadd.f32 %v4425, 1.0
        %v4427 = vrcp.pop %v4426
        %v4428 = vmul.f32 %v4426, %v4427
        %v4429 = vsub.f32 1.0, %v4428
        %v4430 = vmul.f32 %v4427, %v4429
        %v4431 = vadd.f32 %v4427, %v4430
        %vm4432 = vweird.f32 %v4426
        %vm4433 = vweird.f32 %v4427
        %vm4434 = vmor %vm4432, %vm4433
        %v4435 = vsel %vm4434, %v4427, %v4431
        %v4436 = vand.u32 2147483647, %v4426
        %vm4437 = vcmp.eq.f32.partialorder %v4436, 8.507059e+37
        %v4438 = vand.u32 %v4426, 2147483648
        %v4439 = vor.u32 1.1754944e-38, %v4438
        %v4440 = vsel %vm4437, %v4439, %v4435
        %v4441 = vmul.f32 %v4416, %v4440
        %v4442 = vmin.f32 %v4441, 1.0
        %v4443 = vmax.f32 %v4442, -1.0
        %v4444 = vmul.f32 %v571, %v571
        %v4445 = vmin.f32 16.0, %v4444
        %v4446 = vmul.f32 %v4445, 2.1237322e-06
        %v4447 = vadd.f32 %v4446, 0.00028619796
        %v4448 = vmul.f32 %v4445, %v4447
        %v4449 = vadd.f32 %v4448, 0.0036580483
        %v4450 = vmul.f32 %v4445, %v4449
        %v4451 = vadd.f32 %v4450, 0.05243302
        %v4452 = vmul.f32 %v4445, %v4451
        %v4453 = vadd.f32 %v4452, 0.18741608
        %v4454 = vmul.f32 %v4445, %v4453
        %v4455 = vadd.f32 %v4454, 1.1283791
        %v4456 = vmul.f32 %v571, %v4455
        %v4457 = vmul.f32 %v4445, 3.8918573e-05
        %v4458 = vadd.f32 %v4457, 0.001143296
        %v4459 = vmul.f32 %v4445, %v4458
        %v4460 = vadd.f32 %v4459, 0.014752088
        %v4461 = vmul.f32 %v4445, %v4460
        %v4462 = vadd.f32 %v4461, 0.112945676
        %v4463 = vmul.f32 %v4445, %v4462
        %v4464 = vadd.f32 %v4463, 0.4994258
        %v4465 = vmul.f32 %v4445, %v4464
        %v4466 = vadd.f32 %v4465, 1.0
        %v4467 = vrcp.pop %v4466
        %v4468 = vmul.f32 %v4466, %v4467
        %v4469 = vsub.f32 1.0, %v4468
        %v4470 = vmul.f32 %v4467, %v4469
        %v4471 = vadd.f32 %v4467, %v4470
        %vm4472 = vweird.f32 %v4466
        %vm4473 = vweird.f32 %v4467
        %vm4474 = vmor %vm4472, %vm4473
        %v4475 = vsel %vm4474, %v4467, %v4471
        %v4476 = vand.u32 2147483647, %v4466
        %vm4477 = vcmp.eq.f32.partialorder %v4476, 8.507059e+37
        %v4478 = vand.u32 %v4466, 2147483648
        %v4479 = vor.u32 1.1754944e-38, %v4478
        %v4480 = vsel %vm4477, %v4479, %v4475
        %v4481 = vmul.f32 %v4456, %v4480
        %v4482 = vmin.f32 %v4481, 1.0
        %v4483 = vmax.f32 %v4482, -1.0
        %v4484 = vmul.f32 %v572, %v572
        %v4485 = vmin.f32 16.0, %v4484
        %v4486 = vmul.f32 %v4485, 2.1237322e-06
        %v4487 = vadd.f32 %v4486, 0.00028619796
        %v4488 = vmul.f32 %v4485, %v4487
        %v4489 = vadd.f32 %v4488, 0.0036580483
        %v4490 = vmul.f32 %v4485, %v4489
        %v4491 = vadd.f32 %v4490, 0.05243302
        %v4492 = vmul.f32 %v4485, %v4491
        %v4493 = vadd.f32 %v4492, 0.18741608
        %v4494 = vmul.f32 %v4485, %v4493
        %v4495 = vadd.f32 %v4494, 1.1283791
        %v4496 = vmul.f32 %v572, %v4495
        %v4497 = vmul.f32 %v4485, 3.8918573e-05
        %v4498 = vadd.f32 %v4497, 0.001143296
        %v4499 = vmul.f32 %v4485, %v4498
        %v4500 = vadd.f32 %v4499, 0.014752088
        %v4501 = vmul.f32 %v4485, %v4500
        %v4502 = vadd.f32 %v4501, 0.112945676
        %v4503 = vmul.f32 %v4485, %v4502
        %v4504 = vadd.f32 %v4503, 0.4994258
        %v4505 = vmul.f32 %v4485, %v4504
        %v4506 = vadd.f32 %v4505, 1.0
        %v4507 = vrcp.pop %v4506
        %v4508 = vmul.f32 %v4506, %v4507
        %v4509 = vsub.f32 1.0, %v4508
        %v4510 = vmul.f32 %v4507, %v4509
        %v4511 = vadd.f32 %v4507, %v4510
        %vm4512 = vweird.f32 %v4506
        %vm4513 = vweird.f32 %v4507
        %vm4514 = vmor %vm4512, %vm4513
        %v4515 = vsel %vm4514, %v4507, %v4511
        %v4516 = vand.u32 2147483647, %v4506
        %vm4517 = vcmp.eq.f32.partialorder %v4516, 8.507059e+37
        %v4518 = vand.u32 %v4506, 2147483648
        %v4519 = vor.u32 1.1754944e-38, %v4518
        %v4520 = vsel %vm4517, %v4519, %v4515
        %v4521 = vmul.f32 %v4496, %v4520
        %v4522 = vmin.f32 %v4521, 1.0
        %v4523 = vmax.f32 %v4522, -1.0
        %v4524 = vmul.f32 %v573, %v573
        %v4525 = vmin.f32 16.0, %v4524
        %v4526 = vmul.f32 %v4525, 2.1237322e-06
        %v4527 = vadd.f32 %v4526, 0.00028619796
        %v4528 = vmul.f32 %v4525, %v4527
        %v4529 = vadd.f32 %v4528, 0.0036580483
        %v4530 = vmul.f32 %v4525, %v4529
        %v4531 = vadd.f32 %v4530, 0.05243302
        %v4532 = vmul.f32 %v4525, %v4531
        %v4533 = vadd.f32 %v4532, 0.18741608
        %v4534 = vmul.f32 %v4525, %v4533
        %v4535 = vadd.f32 %v4534, 1.1283791
        %v4536 = vmul.f32 %v573, %v4535
        %v4537 = vmul.f32 %v4525, 3.8918573e-05
        %v4538 = vadd.f32 %v4537, 0.001143296
        %v4539 = vmul.f32 %v4525, %v4538
        %v4540 = vadd.f32 %v4539, 0.014752088
        %v4541 = vmul.f32 %v4525, %v4540
        %v4542 = vadd.f32 %v4541, 0.112945676
        %v4543 = vmul.f32 %v4525, %v4542
        %v4544 = vadd.f32 %v4543, 0.4994258
        %v4545 = vmul.f32 %v4525, %v4544
        %v4546 = vadd.f32 %v4545, 1.0
        %v4547 = vrcp.pop %v4546
        %v4548 = vmul.f32 %v4546, %v4547
        %v4549 = vsub.f32 1.0, %v4548
        %v4550 = vmul.f32 %v4547, %v4549
        %v4551 = vadd.f32 %v4547, %v4550
        %vm4552 = vweird.f32 %v4546
        %vm4553 = vweird.f32 %v4547
        %vm4554 = vmor %vm4552, %vm4553
        %v4555 = vsel %vm4554, %v4547, %v4551
        %v4556 = vand.u32 2147483647, %v4546
        %vm4557 = vcmp.eq.f32.partialorder %v4556, 8.507059e+37
        %v4558 = vand.u32 %v4546, 2147483648
        %v4559 = vor.u32 1.1754944e-38, %v4558
        %v4560 = vsel %vm4557, %v4559, %v4555
        %v4561 = vmul.f32 %v4536, %v4560
        %v4562 = vmin.f32 %v4561, 1.0
        %v4563 = vmax.f32 %v4562, -1.0
        %v4564 = vmul.f32 %v574, %v574
        %v4565 = vmin.f32 16.0, %v4564
        %v4566 = vmul.f32 %v4565, 2.1237322e-06
        %v4567 = vadd.f32 %v4566, 0.00028619796
        %v4568 = vmul.f32 %v4565, %v4567
        %v4569 = vadd.f32 %v4568, 0.0036580483
        %v4570 = vmul.f32 %v4565, %v4569
        %v4571 = vadd.f32 %v4570, 0.05243302
        %v4572 = vmul.f32 %v4565, %v4571
        %v4573 = vadd.f32 %v4572, 0.18741608
        %v4574 = vmul.f32 %v4565, %v4573
        %v4575 = vadd.f32 %v4574, 1.1283791
        %v4576 = vmul.f32 %v574, %v4575
        %v4577 = vmul.f32 %v4565, 3.8918573e-05
        %v4578 = vadd.f32 %v4577, 0.001143296
        %v4579 = vmul.f32 %v4565, %v4578
        %v4580 = vadd.f32 %v4579, 0.014752088
        %v4581 = vmul.f32 %v4565, %v4580
        %v4582 = vadd.f32 %v4581, 0.112945676
        %v4583 = vmul.f32 %v4565, %v4582
        %v4584 = vadd.f32 %v4583, 0.4994258
        %v4585 = vmul.f32 %v4565, %v4584
        %v4586 = vadd.f32 %v4585, 1.0
        %v4587 = vrcp.pop %v4586
        %v4588 = vmul.f32 %v4586, %v4587
        %v4589 = vsub.f32 1.0, %v4588
        %v4590 = vmul.f32 %v4587, %v4589
        %v4591 = vadd.f32 %v4587, %v4590
        %vm4592 = vweird.f32 %v4586
        %vm4593 = vweird.f32 %v4587
        %vm4594 = vmor %vm4592, %vm4593
        %v4595 = vsel %vm4594, %v4587, %v4591
        %v4596 = vand.u32 2147483647, %v4586
        %vm4597 = vcmp.eq.f32.partialorder %v4596, 8.507059e+37
        %v4598 = vand.u32 %v4586, 2147483648
        %v4599 = vor.u32 1.1754944e-38, %v4598
        %v4600 = vsel %vm4597, %v4599, %v4595
        %v4601 = vmul.f32 %v4576, %v4600
        %v4602 = vmin.f32 %v4601, 1.0
        %v4603 = vmax.f32 %v4602, -1.0
        %v4604 = vmul.f32 %v575, %v575
        %v4605 = vmin.f32 16.0, %v4604
        %v4606 = vmul.f32 %v4605, 2.1237322e-06
        %v4607 = vadd.f32 %v4606, 0.00028619796
        %v4608 = vmul.f32 %v4605, %v4607
        %v4609 = vadd.f32 %v4608, 0.0036580483
        %v4610 = vmul.f32 %v4605, %v4609
        %v4611 = vadd.f32 %v4610, 0.05243302
        %v4612 = vmul.f32 %v4605, %v4611
        %v4613 = vadd.f32 %v4612, 0.18741608
        %v4614 = vmul.f32 %v4605, %v4613
        %v4615 = vadd.f32 %v4614, 1.1283791
        %v4616 = vmul.f32 %v575, %v4615
        %v4617 = vmul.f32 %v4605, 3.8918573e-05
        %v4618 = vadd.f32 %v4617, 0.001143296
        %v4619 = vmul.f32 %v4605, %v4618
        %v4620 = vadd.f32 %v4619, 0.014752088
        %v4621 = vmul.f32 %v4605, %v4620
        %v4622 = vadd.f32 %v4621, 0.112945676
        %v4623 = vmul.f32 %v4605, %v4622
        %v4624 = vadd.f32 %v4623, 0.4994258
        %v4625 = vmul.f32 %v4605, %v4624
        %v4626 = vadd.f32 %v4625, 1.0
        %v4627 = vrcp.pop %v4626
        %v4628 = vmul.f32 %v4626, %v4627
        %v4629 = vsub.f32 1.0, %v4628
        %v4630 = vmul.f32 %v4627, %v4629
        %v4631 = vadd.f32 %v4627, %v4630
        %vm4632 = vweird.f32 %v4626
        %vm4633 = vweird.f32 %v4627
        %vm4634 = vmor %vm4632, %vm4633
        %v4635 = vsel %vm4634, %v4627, %v4631
        %v4636 = vand.u32 2147483647, %v4626
        %vm4637 = vcmp.eq.f32.partialorder %v4636, 8.507059e+37
        %v4638 = vand.u32 %v4626, 2147483648
        %v4639 = vor.u32 1.1754944e-38, %v4638
        %v4640 = vsel %vm4637, %v4639, %v4635
        %v4641 = vmul.f32 %v4616, %v4640
        %v4642 = vmin.f32 %v4641, 1.0
        %v4643 = vmax.f32 %v4642, -1.0
        %v4644 = vmul.f32 %v576, %v576
        %v4645 = vmin.f32 16.0, %v4644
        %v4646 = vmul.f32 %v4645, 2.1237322e-06
        %v4647 = vadd.f32 %v4646, 0.00028619796
        %v4648 = vmul.f32 %v4645, %v4647
        %v4649 = vadd.f32 %v4648, 0.0036580483
        %v4650 = vmul.f32 %v4645, %v4649
        %v4651 = vadd.f32 %v4650, 0.05243302
        %v4652 = vmul.f32 %v4645, %v4651
        %v4653 = vadd.f32 %v4652, 0.18741608
        %v4654 = vmul.f32 %v4645, %v4653
        %v4655 = vadd.f32 %v4654, 1.1283791
        %v4656 = vmul.f32 %v576, %v4655
        %v4657 = vmul.f32 %v4645, 3.8918573e-05
        %v4658 = vadd.f32 %v4657, 0.001143296
        %v4659 = vmul.f32 %v4645, %v4658
        %v4660 = vadd.f32 %v4659, 0.014752088
        %v4661 = vmul.f32 %v4645, %v4660
        %v4662 = vadd.f32 %v4661, 0.112945676
        %v4663 = vmul.f32 %v4645, %v4662
        %v4664 = vadd.f32 %v4663, 0.4994258
        %v4665 = vmul.f32 %v4645, %v4664
        %v4666 = vadd.f32 %v4665, 1.0
        %v4667 = vrcp.pop %v4666
        %v4668 = vmul.f32 %v4666, %v4667
        %v4669 = vsub.f32 1.0, %v4668
        %v4670 = vmul.f32 %v4667, %v4669
        %v4671 = vadd.f32 %v4667, %v4670
        %vm4672 = vweird.f32 %v4666
        %vm4673 = vweird.f32 %v4667
        %vm4674 = vmor %vm4672, %vm4673
        %v4675 = vsel %vm4674, %v4667, %v4671
        %v4676 = vand.u32 2147483647, %v4666
        %vm4677 = vcmp.eq.f32.partialorder %v4676, 8.507059e+37
        %v4678 = vand.u32 %v4666, 2147483648
        %v4679 = vor.u32 1.1754944e-38, %v4678
        %v4680 = vsel %vm4677, %v4679, %v4675
        %v4681 = vmul.f32 %v4656, %v4680
        %v4682 = vmin.f32 %v4681, 1.0
        %v4683 = vmax.f32 %v4682, -1.0
        %v4684 = vmul.f32 %v577, %v577
        %v4685 = vmin.f32 16.0, %v4684
        %v4686 = vmul.f32 %v4685, 2.1237322e-06
        %v4687 = vadd.f32 %v4686, 0.00028619796
        %v4688 = vmul.f32 %v4685, %v4687
        %v4689 = vadd.f32 %v4688, 0.0036580483
        %v4690 = vmul.f32 %v4685, %v4689
        %v4691 = vadd.f32 %v4690, 0.05243302
        %v4692 = vmul.f32 %v4685, %v4691
        %v4693 = vadd.f32 %v4692, 0.18741608
        %v4694 = vmul.f32 %v4685, %v4693
        %v4695 = vadd.f32 %v4694, 1.1283791
        %v4696 = vmul.f32 %v577, %v4695
        %v4697 = vmul.f32 %v4685, 3.8918573e-05
        %v4698 = vadd.f32 %v4697, 0.001143296
        %v4699 = vmul.f32 %v4685, %v4698
        %v4700 = vadd.f32 %v4699, 0.014752088
        %v4701 = vmul.f32 %v4685, %v4700
        %v4702 = vadd.f32 %v4701, 0.112945676
        %v4703 = vmul.f32 %v4685, %v4702
        %v4704 = vadd.f32 %v4703, 0.4994258
        %v4705 = vmul.f32 %v4685, %v4704
        %v4706 = vadd.f32 %v4705, 1.0
        %v4707 = vrcp.pop %v4706
        %v4708 = vmul.f32 %v4706, %v4707
        %v4709 = vsub.f32 1.0, %v4708
        %v4710 = vmul.f32 %v4707, %v4709
        %v4711 = vadd.f32 %v4707, %v4710
        %vm4712 = vweird.f32 %v4706
        %vm4713 = vweird.f32 %v4707
        %vm4714 = vmor %vm4712, %vm4713
        %v4715 = vsel %vm4714, %v4707, %v4711
        %v4716 = vand.u32 2147483647, %v4706
        %vm4717 = vcmp.eq.f32.partialorder %v4716, 8.507059e+37
        %v4718 = vand.u32 %v4706, 2147483648
        %v4719 = vor.u32 1.1754944e-38, %v4718
        %v4720 = vsel %vm4717, %v4719, %v4715
        %v4721 = vmul.f32 %v4696, %v4720
        %v4722 = vmin.f32 %v4721, 1.0
        %v4723 = vmax.f32 %v4722, -1.0
        %v4724 = vmul.f32 %v578, %v578
        %v4725 = vmin.f32 16.0, %v4724
        %v4726 = vmul.f32 %v4725, 2.1237322e-06
        %v4727 = vadd.f32 %v4726, 0.00028619796
        %v4728 = vmul.f32 %v4725, %v4727
        %v4729 = vadd.f32 %v4728, 0.0036580483
        %v4730 = vmul.f32 %v4725, %v4729
        %v4731 = vadd.f32 %v4730, 0.05243302
        %v4732 = vmul.f32 %v4725, %v4731
        %v4733 = vadd.f32 %v4732, 0.18741608
        %v4734 = vmul.f32 %v4725, %v4733
        %v4735 = vadd.f32 %v4734, 1.1283791
        %v4736 = vmul.f32 %v578, %v4735
        %v4737 = vmul.f32 %v4725, 3.8918573e-05
        %v4738 = vadd.f32 %v4737, 0.001143296
        %v4739 = vmul.f32 %v4725, %v4738
        %v4740 = vadd.f32 %v4739, 0.014752088
        %v4741 = vmul.f32 %v4725, %v4740
        %v4742 = vadd.f32 %v4741, 0.112945676
        %v4743 = vmul.f32 %v4725, %v4742
        %v4744 = vadd.f32 %v4743, 0.4994258
        %v4745 = vmul.f32 %v4725, %v4744
        %v4746 = vadd.f32 %v4745, 1.0
        %v4747 = vrcp.pop %v4746
        %v4748 = vmul.f32 %v4746, %v4747
        %v4749 = vsub.f32 1.0, %v4748
        %v4750 = vmul.f32 %v4747, %v4749
        %v4751 = vadd.f32 %v4747, %v4750
        %vm4752 = vweird.f32 %v4746
        %vm4753 = vweird.f32 %v4747
        %vm4754 = vmor %vm4752, %vm4753
        %v4755 = vsel %vm4754, %v4747, %v4751
        %v4756 = vand.u32 2147483647, %v4746
        %vm4757 = vcmp.eq.f32.partialorder %v4756, 8.507059e+37
        %v4758 = vand.u32 %v4746, 2147483648
        %v4759 = vor.u32 1.1754944e-38, %v4758
        %v4760 = vsel %vm4757, %v4759, %v4755
        %v4761 = vmul.f32 %v4736, %v4760
        %v4762 = vmin.f32 %v4761, 1.0
        %v4763 = vmax.f32 %v4762, -1.0
        %v4764 = vmul.f32 %v579, %v579
        %v4765 = vmin.f32 16.0, %v4764
        %v4766 = vmul.f32 %v4765, 2.1237322e-06
        %v4767 = vadd.f32 %v4766, 0.00028619796
        %v4768 = vmul.f32 %v4765, %v4767
        %v4769 = vadd.f32 %v4768, 0.0036580483
        %v4770 = vmul.f32 %v4765, %v4769
        %v4771 = vadd.f32 %v4770, 0.05243302
        %v4772 = vmul.f32 %v4765, %v4771
        %v4773 = vadd.f32 %v4772, 0.18741608
        %v4774 = vmul.f32 %v4765, %v4773
        %v4775 = vadd.f32 %v4774, 1.1283791
        %v4776 = vmul.f32 %v579, %v4775
        %v4777 = vmul.f32 %v4765, 3.8918573e-05
        %v4778 = vadd.f32 %v4777, 0.001143296
        %v4779 = vmul.f32 %v4765, %v4778
        %v4780 = vadd.f32 %v4779, 0.014752088
        %v4781 = vmul.f32 %v4765, %v4780
        %v4782 = vadd.f32 %v4781, 0.112945676
        %v4783 = vmul.f32 %v4765, %v4782
        %v4784 = vadd.f32 %v4783, 0.4994258
        %v4785 = vmul.f32 %v4765, %v4784
        %v4786 = vadd.f32 %v4785, 1.0
        %v4787 = vrcp.pop %v4786
        %v4788 = vmul.f32 %v4786, %v4787
        %v4789 = vsub.f32 1.0, %v4788
        %v4790 = vmul.f32 %v4787, %v4789
        %v4791 = vadd.f32 %v4787, %v4790
        %vm4792 = vweird.f32 %v4786
        %vm4793 = vweird.f32 %v4787
        %vm4794 = vmor %vm4792, %vm4793
        %v4795 = vsel %vm4794, %v4787, %v4791
        %v4796 = vand.u32 2147483647, %v4786
        %vm4797 = vcmp.eq.f32.partialorder %v4796, 8.507059e+37
        %v4798 = vand.u32 %v4786, 2147483648
        %v4799 = vor.u32 1.1754944e-38, %v4798
        %v4800 = vsel %vm4797, %v4799, %v4795
        %v4801 = vmul.f32 %v4776, %v4800
        %v4802 = vmin.f32 %v4801, 1.0
        %v4803 = vmax.f32 %v4802, -1.0
        %v4804 = vmul.f32 %v580, %v580
        %v4805 = vmin.f32 16.0, %v4804
        %v4806 = vmul.f32 %v4805, 2.1237322e-06
        %v4807 = vadd.f32 %v4806, 0.00028619796
        %v4808 = vmul.f32 %v4805, %v4807
        %v4809 = vadd.f32 %v4808, 0.0036580483
        %v4810 = vmul.f32 %v4805, %v4809
        %v4811 = vadd.f32 %v4810, 0.05243302
        %v4812 = vmul.f32 %v4805, %v4811
        %v4813 = vadd.f32 %v4812, 0.18741608
        %v4814 = vmul.f32 %v4805, %v4813
        %v4815 = vadd.f32 %v4814, 1.1283791
        %v4816 = vmul.f32 %v580, %v4815
        %v4817 = vmul.f32 %v4805, 3.8918573e-05
        %v4818 = vadd.f32 %v4817, 0.001143296
        %v4819 = vmul.f32 %v4805, %v4818
        %v4820 = vadd.f32 %v4819, 0.014752088
        %v4821 = vmul.f32 %v4805, %v4820
        %v4822 = vadd.f32 %v4821, 0.112945676
        %v4823 = vmul.f32 %v4805, %v4822
        %v4824 = vadd.f32 %v4823, 0.4994258
        %v4825 = vmul.f32 %v4805, %v4824
        %v4826 = vadd.f32 %v4825, 1.0
        %v4827 = vrcp.pop %v4826
        %v4828 = vmul.f32 %v4826, %v4827
        %v4829 = vsub.f32 1.0, %v4828
        %v4830 = vmul.f32 %v4827, %v4829
        %v4831 = vadd.f32 %v4827, %v4830
        %vm4832 = vweird.f32 %v4826
        %vm4833 = vweird.f32 %v4827
        %vm4834 = vmor %vm4832, %vm4833
        %v4835 = vsel %vm4834, %v4827, %v4831
        %v4836 = vand.u32 2147483647, %v4826
        %vm4837 = vcmp.eq.f32.partialorder %v4836, 8.507059e+37
        %v4838 = vand.u32 %v4826, 2147483648
        %v4839 = vor.u32 1.1754944e-38, %v4838
        %v4840 = vsel %vm4837, %v4839, %v4835
        %v4841 = vmul.f32 %v4816, %v4840
        %v4842 = vmin.f32 %v4841, 1.0
        %v4843 = vmax.f32 %v4842, -1.0
        %v4844 = vmul.f32 %v581, %v581
        %v4845 = vmin.f32 16.0, %v4844
        %v4846 = vmul.f32 %v4845, 2.1237322e-06
        %v4847 = vadd.f32 %v4846, 0.00028619796
        %v4848 = vmul.f32 %v4845, %v4847
        %v4849 = vadd.f32 %v4848, 0.0036580483
        %v4850 = vmul.f32 %v4845, %v4849
        %v4851 = vadd.f32 %v4850, 0.05243302
        %v4852 = vmul.f32 %v4845, %v4851
        %v4853 = vadd.f32 %v4852, 0.18741608
        %v4854 = vmul.f32 %v4845, %v4853
        %v4855 = vadd.f32 %v4854, 1.1283791
        %v4856 = vmul.f32 %v581, %v4855
        %v4857 = vmul.f32 %v4845, 3.8918573e-05
        %v4858 = vadd.f32 %v4857, 0.001143296
        %v4859 = vmul.f32 %v4845, %v4858
        %v4860 = vadd.f32 %v4859, 0.014752088
        %v4861 = vmul.f32 %v4845, %v4860
        %v4862 = vadd.f32 %v4861, 0.112945676
        %v4863 = vmul.f32 %v4845, %v4862
        %v4864 = vadd.f32 %v4863, 0.4994258
        %v4865 = vmul.f32 %v4845, %v4864
        %v4866 = vadd.f32 %v4865, 1.0
        %v4867 = vrcp.pop %v4866
        %v4868 = vmul.f32 %v4866, %v4867
        %v4869 = vsub.f32 1.0, %v4868
        %v4870 = vmul.f32 %v4867, %v4869
        %v4871 = vadd.f32 %v4867, %v4870
        %vm4872 = vweird.f32 %v4866
        %vm4873 = vweird.f32 %v4867
        %vm4874 = vmor %vm4872, %vm4873
        %v4875 = vsel %vm4874, %v4867, %v4871
        %v4876 = vand.u32 2147483647, %v4866
        %vm4877 = vcmp.eq.f32.partialorder %v4876, 8.507059e+37
        %v4878 = vand.u32 %v4866, 2147483648
        %v4879 = vor.u32 1.1754944e-38, %v4878
        %v4880 = vsel %vm4877, %v4879, %v4875
        %v4881 = vmul.f32 %v4856, %v4880
        %v4882 = vmin.f32 %v4881, 1.0
        %v4883 = vmax.f32 %v4882, -1.0
        %v4884 = vmul.f32 %v582, %v582
        %v4885 = vmin.f32 16.0, %v4884
        %v4886 = vmul.f32 %v4885, 2.1237322e-06
        %v4887 = vadd.f32 %v4886, 0.00028619796
        %v4888 = vmul.f32 %v4885, %v4887
        %v4889 = vadd.f32 %v4888, 0.0036580483
        %v4890 = vmul.f32 %v4885, %v4889
        %v4891 = vadd.f32 %v4890, 0.05243302
        %v4892 = vmul.f32 %v4885, %v4891
        %v4893 = vadd.f32 %v4892, 0.18741608
        %v4894 = vmul.f32 %v4885, %v4893
        %v4895 = vadd.f32 %v4894, 1.1283791
        %v4896 = vmul.f32 %v582, %v4895
        %v4897 = vmul.f32 %v4885, 3.8918573e-05
        %v4898 = vadd.f32 %v4897, 0.001143296
        %v4899 = vmul.f32 %v4885, %v4898
        %v4900 = vadd.f32 %v4899, 0.014752088
        %v4901 = vmul.f32 %v4885, %v4900
        %v4902 = vadd.f32 %v4901, 0.112945676
        %v4903 = vmul.f32 %v4885, %v4902
        %v4904 = vadd.f32 %v4903, 0.4994258
        %v4905 = vmul.f32 %v4885, %v4904
        %v4906 = vadd.f32 %v4905, 1.0
        %v4907 = vrcp.pop %v4906
        %v4908 = vmul.f32 %v4906, %v4907
        %v4909 = vsub.f32 1.0, %v4908
        %v4910 = vmul.f32 %v4907, %v4909
        %v4911 = vadd.f32 %v4907, %v4910
        %vm4912 = vweird.f32 %v4906
        %vm4913 = vweird.f32 %v4907
        %vm4914 = vmor %vm4912, %vm4913
        %v4915 = vsel %vm4914, %v4907, %v4911
        %v4916 = vand.u32 2147483647, %v4906
        %vm4917 = vcmp.eq.f32.partialorder %v4916, 8.507059e+37
        %v4918 = vand.u32 %v4906, 2147483648
        %v4919 = vor.u32 1.1754944e-38, %v4918
        %v4920 = vsel %vm4917, %v4919, %v4915
        %v4921 = vmul.f32 %v4896, %v4920
        %v4922 = vmin.f32 %v4921, 1.0
        %v4923 = vmax.f32 %v4922, -1.0
        %v4924 = vmul.f32 %v583, %v583
        %v4925 = vmin.f32 16.0, %v4924
        %v4926 = vmul.f32 %v4925, 2.1237322e-06
        %v4927 = vadd.f32 %v4926, 0.00028619796
        %v4928 = vmul.f32 %v4925, %v4927
        %v4929 = vadd.f32 %v4928, 0.0036580483
        %v4930 = vmul.f32 %v4925, %v4929
        %v4931 = vadd.f32 %v4930, 0.05243302
        %v4932 = vmul.f32 %v4925, %v4931
        %v4933 = vadd.f32 %v4932, 0.18741608
        %v4934 = vmul.f32 %v4925, %v4933
        %v4935 = vadd.f32 %v4934, 1.1283791
        %v4936 = vmul.f32 %v583, %v4935
        %v4937 = vmul.f32 %v4925, 3.8918573e-05
        %v4938 = vadd.f32 %v4937, 0.001143296
        %v4939 = vmul.f32 %v4925, %v4938
        %v4940 = vadd.f32 %v4939, 0.014752088
        %v4941 = vmul.f32 %v4925, %v4940
        %v4942 = vadd.f32 %v4941, 0.112945676
        %v4943 = vmul.f32 %v4925, %v4942
        %v4944 = vadd.f32 %v4943, 0.4994258
        %v4945 = vmul.f32 %v4925, %v4944
        %v4946 = vadd.f32 %v4945, 1.0
        %v4947 = vrcp.pop %v4946
        %v4948 = vmul.f32 %v4946, %v4947
        %v4949 = vsub.f32 1.0, %v4948
        %v4950 = vmul.f32 %v4947, %v4949
        %v4951 = vadd.f32 %v4947, %v4950
        %vm4952 = vweird.f32 %v4946
        %vm4953 = vweird.f32 %v4947
        %vm4954 = vmor %vm4952, %vm4953
        %v4955 = vsel %vm4954, %v4947, %v4951
        %v4956 = vand.u32 2147483647, %v4946
        %vm4957 = vcmp.eq.f32.partialorder %v4956, 8.507059e+37
        %v4958 = vand.u32 %v4946, 2147483648
        %v4959 = vor.u32 1.1754944e-38, %v4958
        %v4960 = vsel %vm4957, %v4959, %v4955
        %v4961 = vmul.f32 %v4936, %v4960
        %v4962 = vmin.f32 %v4961, 1.0
        %v4963 = vmax.f32 %v4962, -1.0
        %v4964 = vmul.f32 %v584, %v584
        %v4965 = vmin.f32 16.0, %v4964
        %v4966 = vmul.f32 %v4965, 2.1237322e-06
        %v4967 = vadd.f32 %v4966, 0.00028619796
        %v4968 = vmul.f32 %v4965, %v4967
        %v4969 = vadd.f32 %v4968, 0.0036580483
        %v4970 = vmul.f32 %v4965, %v4969
        %v4971 = vadd.f32 %v4970, 0.05243302
        %v4972 = vmul.f32 %v4965, %v4971
        %v4973 = vadd.f32 %v4972, 0.18741608
        %v4974 = vmul.f32 %v4965, %v4973
        %v4975 = vadd.f32 %v4974, 1.1283791
        %v4976 = vmul.f32 %v584, %v4975
        %v4977 = vmul.f32 %v4965, 3.8918573e-05
        %v4978 = vadd.f32 %v4977, 0.001143296
        %v4979 = vmul.f32 %v4965, %v4978
        %v4980 = vadd.f32 %v4979, 0.014752088
        %v4981 = vmul.f32 %v4965, %v4980
        %v4982 = vadd.f32 %v4981, 0.112945676
        %v4983 = vmul.f32 %v4965, %v4982
        %v4984 = vadd.f32 %v4983, 0.4994258
        %v4985 = vmul.f32 %v4965, %v4984
        %v4986 = vadd.f32 %v4985, 1.0
        %v4987 = vrcp.pop %v4986
        %v4988 = vmul.f32 %v4986, %v4987
        %v4989 = vsub.f32 1.0, %v4988
        %v4990 = vmul.f32 %v4987, %v4989
        %v4991 = vadd.f32 %v4987, %v4990
        %vm4992 = vweird.f32 %v4986
        %vm4993 = vweird.f32 %v4987
        %vm4994 = vmor %vm4992, %vm4993
        %v4995 = vsel %vm4994, %v4987, %v4991
        %v4996 = vand.u32 2147483647, %v4986
        %vm4997 = vcmp.eq.f32.partialorder %v4996, 8.507059e+37
        %v4998 = vand.u32 %v4986, 2147483648
        %v4999 = vor.u32 1.1754944e-38, %v4998
        %v5000 = vsel %vm4997, %v4999, %v4995
        %v5001 = vmul.f32 %v4976, %v5000
        %v5002 = vmin.f32 %v5001, 1.0
        %v5003 = vmax.f32 %v5002, -1.0
        %v5004 = vmul.f32 %v585, %v585
        %v5005 = vmin.f32 16.0, %v5004
        %v5006 = vmul.f32 %v5005, 2.1237322e-06
        %v5007 = vadd.f32 %v5006, 0.00028619796
        %v5008 = vmul.f32 %v5005, %v5007
        %v5009 = vadd.f32 %v5008, 0.0036580483
        %v5010 = vmul.f32 %v5005, %v5009
        %v5011 = vadd.f32 %v5010, 0.05243302
        %v5012 = vmul.f32 %v5005, %v5011
        %v5013 = vadd.f32 %v5012, 0.18741608
        %v5014 = vmul.f32 %v5005, %v5013
        %v5015 = vadd.f32 %v5014, 1.1283791
        %v5016 = vmul.f32 %v585, %v5015
        %v5017 = vmul.f32 %v5005, 3.8918573e-05
        %v5018 = vadd.f32 %v5017, 0.001143296
        %v5019 = vmul.f32 %v5005, %v5018
        %v5020 = vadd.f32 %v5019, 0.014752088
        %v5021 = vmul.f32 %v5005, %v5020
        %v5022 = vadd.f32 %v5021, 0.112945676
        %v5023 = vmul.f32 %v5005, %v5022
        %v5024 = vadd.f32 %v5023, 0.4994258
        %v5025 = vmul.f32 %v5005, %v5024
        %v5026 = vadd.f32 %v5025, 1.0
        %v5027 = vrcp.pop %v5026
        %v5028 = vmul.f32 %v5026, %v5027
        %v5029 = vsub.f32 1.0, %v5028
        %v5030 = vmul.f32 %v5027, %v5029
        %v5031 = vadd.f32 %v5027, %v5030
        %vm5032 = vweird.f32 %v5026
        %vm5033 = vweird.f32 %v5027
        %vm5034 = vmor %vm5032, %vm5033
        %v5035 = vsel %vm5034, %v5027, %v5031
        %v5036 = vand.u32 2147483647, %v5026
        %vm5037 = vcmp.eq.f32.partialorder %v5036, 8.507059e+37
        %v5038 = vand.u32 %v5026, 2147483648
        %v5039 = vor.u32 1.1754944e-38, %v5038
        %v5040 = vsel %vm5037, %v5039, %v5035
        %v5041 = vmul.f32 %v5016, %v5040
        %v5042 = vmin.f32 %v5041, 1.0
        %v5043 = vmax.f32 %v5042, -1.0
        %v5044 = vmul.f32 %v586, %v586
        %v5045 = vmin.f32 16.0, %v5044
        %v5046 = vmul.f32 %v5045, 2.1237322e-06
        %v5047 = vadd.f32 %v5046, 0.00028619796
        %v5048 = vmul.f32 %v5045, %v5047
        %v5049 = vadd.f32 %v5048, 0.0036580483
        %v5050 = vmul.f32 %v5045, %v5049
        %v5051 = vadd.f32 %v5050, 0.05243302
        %v5052 = vmul.f32 %v5045, %v5051
        %v5053 = vadd.f32 %v5052, 0.18741608
        %v5054 = vmul.f32 %v5045, %v5053
        %v5055 = vadd.f32 %v5054, 1.1283791
        %v5056 = vmul.f32 %v586, %v5055
        %v5057 = vmul.f32 %v5045, 3.8918573e-05
        %v5058 = vadd.f32 %v5057, 0.001143296
        %v5059 = vmul.f32 %v5045, %v5058
        %v5060 = vadd.f32 %v5059, 0.014752088
        %v5061 = vmul.f32 %v5045, %v5060
        %v5062 = vadd.f32 %v5061, 0.112945676
        %v5063 = vmul.f32 %v5045, %v5062
        %v5064 = vadd.f32 %v5063, 0.4994258
        %v5065 = vmul.f32 %v5045, %v5064
        %v5066 = vadd.f32 %v5065, 1.0
        %v5067 = vrcp.pop %v5066
        %v5068 = vmul.f32 %v5066, %v5067
        %v5069 = vsub.f32 1.0, %v5068
        %v5070 = vmul.f32 %v5067, %v5069
        %v5071 = vadd.f32 %v5067, %v5070
        %vm5072 = vweird.f32 %v5066
        %vm5073 = vweird.f32 %v5067
        %vm5074 = vmor %vm5072, %vm5073
        %v5075 = vsel %vm5074, %v5067, %v5071
        %v5076 = vand.u32 2147483647, %v5066
        %vm5077 = vcmp.eq.f32.partialorder %v5076, 8.507059e+37
        %v5078 = vand.u32 %v5066, 2147483648
        %v5079 = vor.u32 1.1754944e-38, %v5078
        %v5080 = vsel %vm5077, %v5079, %v5075
        %v5081 = vmul.f32 %v5056, %v5080
        %v5082 = vmin.f32 %v5081, 1.0
        %v5083 = vmax.f32 %v5082, -1.0
        %v5084 = vmul.f32 %v587, %v587
        %v5085 = vmin.f32 16.0, %v5084
        %v5086 = vmul.f32 %v5085, 2.1237322e-06
        %v5087 = vadd.f32 %v5086, 0.00028619796
        %v5088 = vmul.f32 %v5085, %v5087
        %v5089 = vadd.f32 %v5088, 0.0036580483
        %v5090 = vmul.f32 %v5085, %v5089
        %v5091 = vadd.f32 %v5090, 0.05243302
        %v5092 = vmul.f32 %v5085, %v5091
        %v5093 = vadd.f32 %v5092, 0.18741608
        %v5094 = vmul.f32 %v5085, %v5093
        %v5095 = vadd.f32 %v5094, 1.1283791
        %v5096 = vmul.f32 %v587, %v5095
        %v5097 = vmul.f32 %v5085, 3.8918573e-05
        %v5098 = vadd.f32 %v5097, 0.001143296
        %v5099 = vmul.f32 %v5085, %v5098
        %v5100 = vadd.f32 %v5099, 0.014752088
        %v5101 = vmul.f32 %v5085, %v5100
        %v5102 = vadd.f32 %v5101, 0.112945676
        %v5103 = vmul.f32 %v5085, %v5102
        %v5104 = vadd.f32 %v5103, 0.4994258
        %v5105 = vmul.f32 %v5085, %v5104
        %v5106 = vadd.f32 %v5105, 1.0
        %v5107 = vrcp.pop %v5106
        %v5108 = vmul.f32 %v5106, %v5107
        %v5109 = vsub.f32 1.0, %v5108
        %v5110 = vmul.f32 %v5107, %v5109
        %v5111 = vadd.f32 %v5107, %v5110
        %vm5112 = vweird.f32 %v5106
        %vm5113 = vweird.f32 %v5107
        %vm5114 = vmor %vm5112, %vm5113
        %v5115 = vsel %vm5114, %v5107, %v5111
        %v5116 = vand.u32 2147483647, %v5106
        %vm5117 = vcmp.eq.f32.partialorder %v5116, 8.507059e+37
        %v5118 = vand.u32 %v5106, 2147483648
        %v5119 = vor.u32 1.1754944e-38, %v5118
        %v5120 = vsel %vm5117, %v5119, %v5115
        %v5121 = vmul.f32 %v5096, %v5120
        %v5122 = vmin.f32 %v5121, 1.0
        %v5123 = vmax.f32 %v5122, -1.0
        %v5124 = vmul.f32 %v588, %v588
        %v5125 = vmin.f32 16.0, %v5124
        %v5126 = vmul.f32 %v5125, 2.1237322e-06
        %v5127 = vadd.f32 %v5126, 0.00028619796
        %v5128 = vmul.f32 %v5125, %v5127
        %v5129 = vadd.f32 %v5128, 0.0036580483
        %v5130 = vmul.f32 %v5125, %v5129
        %v5131 = vadd.f32 %v5130, 0.05243302
        %v5132 = vmul.f32 %v5125, %v5131
        %v5133 = vadd.f32 %v5132, 0.18741608
        %v5134 = vmul.f32 %v5125, %v5133
        %v5135 = vadd.f32 %v5134, 1.1283791
        %v5136 = vmul.f32 %v588, %v5135
        %v5137 = vmul.f32 %v5125, 3.8918573e-05
        %v5138 = vadd.f32 %v5137, 0.001143296
        %v5139 = vmul.f32 %v5125, %v5138
        %v5140 = vadd.f32 %v5139, 0.014752088
        %v5141 = vmul.f32 %v5125, %v5140
        %v5142 = vadd.f32 %v5141, 0.112945676
        %v5143 = vmul.f32 %v5125, %v5142
        %v5144 = vadd.f32 %v5143, 0.4994258
        %v5145 = vmul.f32 %v5125, %v5144
        %v5146 = vadd.f32 %v5145, 1.0
        %v5147 = vrcp.pop %v5146
        %v5148 = vmul.f32 %v5146, %v5147
        %v5149 = vsub.f32 1.0, %v5148
        %v5150 = vmul.f32 %v5147, %v5149
        %v5151 = vadd.f32 %v5147, %v5150
        %vm5152 = vweird.f32 %v5146
        %vm5153 = vweird.f32 %v5147
        %vm5154 = vmor %vm5152, %vm5153
        %v5155 = vsel %vm5154, %v5147, %v5151
        %v5156 = vand.u32 2147483647, %v5146
        %vm5157 = vcmp.eq.f32.partialorder %v5156, 8.507059e+37
        %v5158 = vand.u32 %v5146, 2147483648
        %v5159 = vor.u32 1.1754944e-38, %v5158
        %v5160 = vsel %vm5157, %v5159, %v5155
        %v5161 = vmul.f32 %v5136, %v5160
        %v5162 = vmin.f32 %v5161, 1.0
        %v5163 = vmax.f32 %v5162, -1.0
        %v5164 = vmul.f32 %v589, %v589
        %v5165 = vmin.f32 16.0, %v5164
        %v5166 = vmul.f32 %v5165, 2.1237322e-06
        %v5167 = vadd.f32 %v5166, 0.00028619796
        %v5168 = vmul.f32 %v5165, %v5167
        %v5169 = vadd.f32 %v5168, 0.0036580483
        %v5170 = vmul.f32 %v5165, %v5169
        %v5171 = vadd.f32 %v5170, 0.05243302
        %v5172 = vmul.f32 %v5165, %v5171
        %v5173 = vadd.f32 %v5172, 0.18741608
        %v5174 = vmul.f32 %v5165, %v5173
        %v5175 = vadd.f32 %v5174, 1.1283791
        %v5176 = vmul.f32 %v589, %v5175
        %v5177 = vmul.f32 %v5165, 3.8918573e-05
        %v5178 = vadd.f32 %v5177, 0.001143296
        %v5179 = vmul.f32 %v5165, %v5178
        %v5180 = vadd.f32 %v5179, 0.014752088
        %v5181 = vmul.f32 %v5165, %v5180
        %v5182 = vadd.f32 %v5181, 0.112945676
        %v5183 = vmul.f32 %v5165, %v5182
        %v5184 = vadd.f32 %v5183, 0.4994258
        %v5185 = vmul.f32 %v5165, %v5184
        %v5186 = vadd.f32 %v5185, 1.0
        %v5187 = vrcp.pop %v5186
        %v5188 = vmul.f32 %v5186, %v5187
        %v5189 = vsub.f32 1.0, %v5188
        %v5190 = vmul.f32 %v5187, %v5189
        %v5191 = vadd.f32 %v5187, %v5190
        %vm5192 = vweird.f32 %v5186
        %vm5193 = vweird.f32 %v5187
        %vm5194 = vmor %vm5192, %vm5193
        %v5195 = vsel %vm5194, %v5187, %v5191
        %v5196 = vand.u32 2147483647, %v5186
        %vm5197 = vcmp.eq.f32.partialorder %v5196, 8.507059e+37
        %v5198 = vand.u32 %v5186, 2147483648
        %v5199 = vor.u32 1.1754944e-38, %v5198
        %v5200 = vsel %vm5197, %v5199, %v5195
        %v5201 = vmul.f32 %v5176, %v5200
        %v5202 = vmin.f32 %v5201, 1.0
        %v5203 = vmax.f32 %v5202, -1.0
        %v5204 = vmul.f32 %v590, %v590
        %v5205 = vmin.f32 16.0, %v5204
        %v5206 = vmul.f32 %v5205, 2.1237322e-06
        %v5207 = vadd.f32 %v5206, 0.00028619796
        %v5208 = vmul.f32 %v5205, %v5207
        %v5209 = vadd.f32 %v5208, 0.0036580483
        %v5210 = vmul.f32 %v5205, %v5209
        %v5211 = vadd.f32 %v5210, 0.05243302
        %v5212 = vmul.f32 %v5205, %v5211
        %v5213 = vadd.f32 %v5212, 0.18741608
        %v5214 = vmul.f32 %v5205, %v5213
        %v5215 = vadd.f32 %v5214, 1.1283791
        %v5216 = vmul.f32 %v590, %v5215
        %v5217 = vmul.f32 %v5205, 3.8918573e-05
        %v5218 = vadd.f32 %v5217, 0.001143296
        %v5219 = vmul.f32 %v5205, %v5218
        %v5220 = vadd.f32 %v5219, 0.014752088
        %v5221 = vmul.f32 %v5205, %v5220
        %v5222 = vadd.f32 %v5221, 0.112945676
        %v5223 = vmul.f32 %v5205, %v5222
        %v5224 = vadd.f32 %v5223, 0.4994258
        %v5225 = vmul.f32 %v5205, %v5224
        %v5226 = vadd.f32 %v5225, 1.0
        %v5227 = vrcp.pop %v5226
        %v5228 = vmul.f32 %v5226, %v5227
        %v5229 = vsub.f32 1.0, %v5228
        %v5230 = vmul.f32 %v5227, %v5229
        %v5231 = vadd.f32 %v5227, %v5230
        %vm5232 = vweird.f32 %v5226
        %vm5233 = vweird.f32 %v5227
        %vm5234 = vmor %vm5232, %vm5233
        %v5235 = vsel %vm5234, %v5227, %v5231
        %v5236 = vand.u32 2147483647, %v5226
        %vm5237 = vcmp.eq.f32.partialorder %v5236, 8.507059e+37
        %v5238 = vand.u32 %v5226, 2147483648
        %v5239 = vor.u32 1.1754944e-38, %v5238
        %v5240 = vsel %vm5237, %v5239, %v5235
        %v5241 = vmul.f32 %v5216, %v5240
        %v5242 = vmin.f32 %v5241, 1.0
        %v5243 = vmax.f32 %v5242, -1.0
        %v5244 = vmul.f32 %v591, %v591
        %v5245 = vmin.f32 16.0, %v5244
        %v5246 = vmul.f32 %v5245, 2.1237322e-06
        %v5247 = vadd.f32 %v5246, 0.00028619796
        %v5248 = vmul.f32 %v5245, %v5247
        %v5249 = vadd.f32 %v5248, 0.0036580483
        %v5250 = vmul.f32 %v5245, %v5249
        %v5251 = vadd.f32 %v5250, 0.05243302
        %v5252 = vmul.f32 %v5245, %v5251
        %v5253 = vadd.f32 %v5252, 0.18741608
        %v5254 = vmul.f32 %v5245, %v5253
        %v5255 = vadd.f32 %v5254, 1.1283791
        %v5256 = vmul.f32 %v591, %v5255
        %v5257 = vmul.f32 %v5245, 3.8918573e-05
        %v5258 = vadd.f32 %v5257, 0.001143296
        %v5259 = vmul.f32 %v5245, %v5258
        %v5260 = vadd.f32 %v5259, 0.014752088
        %v5261 = vmul.f32 %v5245, %v5260
        %v5262 = vadd.f32 %v5261, 0.112945676
        %v5263 = vmul.f32 %v5245, %v5262
        %v5264 = vadd.f32 %v5263, 0.4994258
        %v5265 = vmul.f32 %v5245, %v5264
        %v5266 = vadd.f32 %v5265, 1.0
        %v5267 = vrcp.pop %v5266
        %v5268 = vmul.f32 %v5266, %v5267
        %v5269 = vsub.f32 1.0, %v5268
        %v5270 = vmul.f32 %v5267, %v5269
        %v5271 = vadd.f32 %v5267, %v5270
        %vm5272 = vweird.f32 %v5266
        %vm5273 = vweird.f32 %v5267
        %vm5274 = vmor %vm5272, %vm5273
        %v5275 = vsel %vm5274, %v5267, %v5271
        %v5276 = vand.u32 2147483647, %v5266
        %vm5277 = vcmp.eq.f32.partialorder %v5276, 8.507059e+37
        %v5278 = vand.u32 %v5266, 2147483648
        %v5279 = vor.u32 1.1754944e-38, %v5278
        %v5280 = vsel %vm5277, %v5279, %v5275
        %v5281 = vmul.f32 %v5256, %v5280
        %v5282 = vmin.f32 %v5281, 1.0
        %v5283 = vmax.f32 %v5282, -1.0
        %v5284 = vmul.f32 %v592, %v592
        %v5285 = vmin.f32 16.0, %v5284
        %v5286 = vmul.f32 %v5285, 2.1237322e-06
        %v5287 = vadd.f32 %v5286, 0.00028619796
        %v5288 = vmul.f32 %v5285, %v5287
        %v5289 = vadd.f32 %v5288, 0.0036580483
        %v5290 = vmul.f32 %v5285, %v5289
        %v5291 = vadd.f32 %v5290, 0.05243302
        %v5292 = vmul.f32 %v5285, %v5291
        %v5293 = vadd.f32 %v5292, 0.18741608
        %v5294 = vmul.f32 %v5285, %v5293
        %v5295 = vadd.f32 %v5294, 1.1283791
        %v5296 = vmul.f32 %v592, %v5295
        %v5297 = vmul.f32 %v5285, 3.8918573e-05
        %v5298 = vadd.f32 %v5297, 0.001143296
        %v5299 = vmul.f32 %v5285, %v5298
        %v5300 = vadd.f32 %v5299, 0.014752088
        %v5301 = vmul.f32 %v5285, %v5300
        %v5302 = vadd.f32 %v5301, 0.112945676
        %v5303 = vmul.f32 %v5285, %v5302
        %v5304 = vadd.f32 %v5303, 0.4994258
        %v5305 = vmul.f32 %v5285, %v5304
        %v5306 = vadd.f32 %v5305, 1.0
        %v5307 = vrcp.pop %v5306
        %v5308 = vmul.f32 %v5306, %v5307
        %v5309 = vsub.f32 1.0, %v5308
        %v5310 = vmul.f32 %v5307, %v5309
        %v5311 = vadd.f32 %v5307, %v5310
        %vm5312 = vweird.f32 %v5306
        %vm5313 = vweird.f32 %v5307
        %vm5314 = vmor %vm5312, %vm5313
        %v5315 = vsel %vm5314, %v5307, %v5311
        %v5316 = vand.u32 2147483647, %v5306
        %vm5317 = vcmp.eq.f32.partialorder %v5316, 8.507059e+37
        %v5318 = vand.u32 %v5306, 2147483648
        %v5319 = vor.u32 1.1754944e-38, %v5318
        %v5320 = vsel %vm5317, %v5319, %v5315
        %v5321 = vmul.f32 %v5296, %v5320
        %v5322 = vmin.f32 %v5321, 1.0
        %v5323 = vmax.f32 %v5322, -1.0
        %v5324 = vmul.f32 %v593, %v593
        %v5325 = vmin.f32 16.0, %v5324
        %v5326 = vmul.f32 %v5325, 2.1237322e-06
        %v5327 = vadd.f32 %v5326, 0.00028619796
        %v5328 = vmul.f32 %v5325, %v5327
        %v5329 = vadd.f32 %v5328, 0.0036580483
        %v5330 = vmul.f32 %v5325, %v5329
        %v5331 = vadd.f32 %v5330, 0.05243302
        %v5332 = vmul.f32 %v5325, %v5331
        %v5333 = vadd.f32 %v5332, 0.18741608
        %v5334 = vmul.f32 %v5325, %v5333
        %v5335 = vadd.f32 %v5334, 1.1283791
        %v5336 = vmul.f32 %v593, %v5335
        %v5337 = vmul.f32 %v5325, 3.8918573e-05
        %v5338 = vadd.f32 %v5337, 0.001143296
        %v5339 = vmul.f32 %v5325, %v5338
        %v5340 = vadd.f32 %v5339, 0.014752088
        %v5341 = vmul.f32 %v5325, %v5340
        %v5342 = vadd.f32 %v5341, 0.112945676
        %v5343 = vmul.f32 %v5325, %v5342
        %v5344 = vadd.f32 %v5343, 0.4994258
        %v5345 = vmul.f32 %v5325, %v5344
        %v5346 = vadd.f32 %v5345, 1.0
        %v5347 = vrcp.pop %v5346
        %v5348 = vmul.f32 %v5346, %v5347
        %v5349 = vsub.f32 1.0, %v5348
        %v5350 = vmul.f32 %v5347, %v5349
        %v5351 = vadd.f32 %v5347, %v5350
        %vm5352 = vweird.f32 %v5346
        %vm5353 = vweird.f32 %v5347
        %vm5354 = vmor %vm5352, %vm5353
        %v5355 = vsel %vm5354, %v5347, %v5351
        %v5356 = vand.u32 2147483647, %v5346
        %vm5357 = vcmp.eq.f32.partialorder %v5356, 8.507059e+37
        %v5358 = vand.u32 %v5346, 2147483648
        %v5359 = vor.u32 1.1754944e-38, %v5358
        %v5360 = vsel %vm5357, %v5359, %v5355
        %v5361 = vmul.f32 %v5336, %v5360
        %v5362 = vmin.f32 %v5361, 1.0
        %v5363 = vmax.f32 %v5362, -1.0
        %v5364 = vmul.f32 %v594, %v594
        %v5365 = vmin.f32 16.0, %v5364
        %v5366 = vmul.f32 %v5365, 2.1237322e-06
        %v5367 = vadd.f32 %v5366, 0.00028619796
        %v5368 = vmul.f32 %v5365, %v5367
        %v5369 = vadd.f32 %v5368, 0.0036580483
        %v5370 = vmul.f32 %v5365, %v5369
        %v5371 = vadd.f32 %v5370, 0.05243302
        %v5372 = vmul.f32 %v5365, %v5371
        %v5373 = vadd.f32 %v5372, 0.18741608
        %v5374 = vmul.f32 %v5365, %v5373
        %v5375 = vadd.f32 %v5374, 1.1283791
        %v5376 = vmul.f32 %v594, %v5375
        %v5377 = vmul.f32 %v5365, 3.8918573e-05
        %v5378 = vadd.f32 %v5377, 0.001143296
        %v5379 = vmul.f32 %v5365, %v5378
        %v5380 = vadd.f32 %v5379, 0.014752088
        %v5381 = vmul.f32 %v5365, %v5380
        %v5382 = vadd.f32 %v5381, 0.112945676
        %v5383 = vmul.f32 %v5365, %v5382
        %v5384 = vadd.f32 %v5383, 0.4994258
        %v5385 = vmul.f32 %v5365, %v5384
        %v5386 = vadd.f32 %v5385, 1.0
        %v5387 = vrcp.pop %v5386
        %v5388 = vmul.f32 %v5386, %v5387
        %v5389 = vsub.f32 1.0, %v5388
        %v5390 = vmul.f32 %v5387, %v5389
        %v5391 = vadd.f32 %v5387, %v5390
        %vm5392 = vweird.f32 %v5386
        %vm5393 = vweird.f32 %v5387
        %vm5394 = vmor %vm5392, %vm5393
        %v5395 = vsel %vm5394, %v5387, %v5391
        %v5396 = vand.u32 2147483647, %v5386
        %vm5397 = vcmp.eq.f32.partialorder %v5396, 8.507059e+37
        %v5398 = vand.u32 %v5386, 2147483648
        %v5399 = vor.u32 1.1754944e-38, %v5398
        %v5400 = vsel %vm5397, %v5399, %v5395
        %v5401 = vmul.f32 %v5376, %v5400
        %v5402 = vmin.f32 %v5401, 1.0
        %v5403 = vmax.f32 %v5402, -1.0
        %v5404 = vmul.f32 %v595, %v595
        %v5405 = vmin.f32 16.0, %v5404
        %v5406 = vmul.f32 %v5405, 2.1237322e-06
        %v5407 = vadd.f32 %v5406, 0.00028619796
        %v5408 = vmul.f32 %v5405, %v5407
        %v5409 = vadd.f32 %v5408, 0.0036580483
        %v5410 = vmul.f32 %v5405, %v5409
        %v5411 = vadd.f32 %v5410, 0.05243302
        %v5412 = vmul.f32 %v5405, %v5411
        %v5413 = vadd.f32 %v5412, 0.18741608
        %v5414 = vmul.f32 %v5405, %v5413
        %v5415 = vadd.f32 %v5414, 1.1283791
        %v5416 = vmul.f32 %v595, %v5415
        %v5417 = vmul.f32 %v5405, 3.8918573e-05
        %v5418 = vadd.f32 %v5417, 0.001143296
        %v5419 = vmul.f32 %v5405, %v5418
        %v5420 = vadd.f32 %v5419, 0.014752088
        %v5421 = vmul.f32 %v5405, %v5420
        %v5422 = vadd.f32 %v5421, 0.112945676
        %v5423 = vmul.f32 %v5405, %v5422
        %v5424 = vadd.f32 %v5423, 0.4994258
        %v5425 = vmul.f32 %v5405, %v5424
        %v5426 = vadd.f32 %v5425, 1.0
        %v5427 = vrcp.pop %v5426
        %v5428 = vmul.f32 %v5426, %v5427
        %v5429 = vsub.f32 1.0, %v5428
        %v5430 = vmul.f32 %v5427, %v5429
        %v5431 = vadd.f32 %v5427, %v5430
        %vm5432 = vweird.f32 %v5426
        %vm5433 = vweird.f32 %v5427
        %vm5434 = vmor %vm5432, %vm5433
        %v5435 = vsel %vm5434, %v5427, %v5431
        %v5436 = vand.u32 2147483647, %v5426
        %vm5437 = vcmp.eq.f32.partialorder %v5436, 8.507059e+37
        %v5438 = vand.u32 %v5426, 2147483648
        %v5439 = vor.u32 1.1754944e-38, %v5438
        %v5440 = vsel %vm5437, %v5439, %v5435
        %v5441 = vmul.f32 %v5416, %v5440
        %v5442 = vmin.f32 %v5441, 1.0
        %v5443 = vmax.f32 %v5442, -1.0
        %v5444 = vmul.f32 %v596, %v596
        %v5445 = vmin.f32 16.0, %v5444
        %v5446 = vmul.f32 %v5445, 2.1237322e-06
        %v5447 = vadd.f32 %v5446, 0.00028619796
        %v5448 = vmul.f32 %v5445, %v5447
        %v5449 = vadd.f32 %v5448, 0.0036580483
        %v5450 = vmul.f32 %v5445, %v5449
        %v5451 = vadd.f32 %v5450, 0.05243302
        %v5452 = vmul.f32 %v5445, %v5451
        %v5453 = vadd.f32 %v5452, 0.18741608
        %v5454 = vmul.f32 %v5445, %v5453
        %v5455 = vadd.f32 %v5454, 1.1283791
        %v5456 = vmul.f32 %v596, %v5455
        %v5457 = vmul.f32 %v5445, 3.8918573e-05
        %v5458 = vadd.f32 %v5457, 0.001143296
        %v5459 = vmul.f32 %v5445, %v5458
        %v5460 = vadd.f32 %v5459, 0.014752088
        %v5461 = vmul.f32 %v5445, %v5460
        %v5462 = vadd.f32 %v5461, 0.112945676
        %v5463 = vmul.f32 %v5445, %v5462
        %v5464 = vadd.f32 %v5463, 0.4994258
        %v5465 = vmul.f32 %v5445, %v5464
        %v5466 = vadd.f32 %v5465, 1.0
        %v5467 = vrcp.pop %v5466
        %v5468 = vmul.f32 %v5466, %v5467
        %v5469 = vsub.f32 1.0, %v5468
        %v5470 = vmul.f32 %v5467, %v5469
        %v5471 = vadd.f32 %v5467, %v5470
        %vm5472 = vweird.f32 %v5466
        %vm5473 = vweird.f32 %v5467
        %vm5474 = vmor %vm5472, %vm5473
        %v5475 = vsel %vm5474, %v5467, %v5471
        %v5476 = vand.u32 2147483647, %v5466
        %vm5477 = vcmp.eq.f32.partialorder %v5476, 8.507059e+37
        %v5478 = vand.u32 %v5466, 2147483648
        %v5479 = vor.u32 1.1754944e-38, %v5478
        %v5480 = vsel %vm5477, %v5479, %v5475
        %v5481 = vmul.f32 %v5456, %v5480
        %v5482 = vmin.f32 %v5481, 1.0
        %v5483 = vmax.f32 %v5482, -1.0
        %v5484 = vmul.f32 %v597, %v597
        %v5485 = vmin.f32 16.0, %v5484
        %v5486 = vmul.f32 %v5485, 2.1237322e-06
        %v5487 = vadd.f32 %v5486, 0.00028619796
        %v5488 = vmul.f32 %v5485, %v5487
        %v5489 = vadd.f32 %v5488, 0.0036580483
        %v5490 = vmul.f32 %v5485, %v5489
        %v5491 = vadd.f32 %v5490, 0.05243302
        %v5492 = vmul.f32 %v5485, %v5491
        %v5493 = vadd.f32 %v5492, 0.18741608
        %v5494 = vmul.f32 %v5485, %v5493
        %v5495 = vadd.f32 %v5494, 1.1283791
        %v5496 = vmul.f32 %v597, %v5495
        %v5497 = vmul.f32 %v5485, 3.8918573e-05
        %v5498 = vadd.f32 %v5497, 0.001143296
        %v5499 = vmul.f32 %v5485, %v5498
        %v5500 = vadd.f32 %v5499, 0.014752088
        %v5501 = vmul.f32 %v5485, %v5500
        %v5502 = vadd.f32 %v5501, 0.112945676
        %v5503 = vmul.f32 %v5485, %v5502
        %v5504 = vadd.f32 %v5503, 0.4994258
        %v5505 = vmul.f32 %v5485, %v5504
        %v5506 = vadd.f32 %v5505, 1.0
        %v5507 = vrcp.pop %v5506
        %v5508 = vmul.f32 %v5506, %v5507
        %v5509 = vsub.f32 1.0, %v5508
        %v5510 = vmul.f32 %v5507, %v5509
        %v5511 = vadd.f32 %v5507, %v5510
        %vm5512 = vweird.f32 %v5506
        %vm5513 = vweird.f32 %v5507
        %vm5514 = vmor %vm5512, %vm5513
        %v5515 = vsel %vm5514, %v5507, %v5511
        %v5516 = vand.u32 2147483647, %v5506
        %vm5517 = vcmp.eq.f32.partialorder %v5516, 8.507059e+37
        %v5518 = vand.u32 %v5506, 2147483648
        %v5519 = vor.u32 1.1754944e-38, %v5518
        %v5520 = vsel %vm5517, %v5519, %v5515
        %v5521 = vmul.f32 %v5496, %v5520
        %v5522 = vmin.f32 %v5521, 1.0
        %v5523 = vmax.f32 %v5522, -1.0
        %v5524 = vmul.f32 %v598, %v598
        %v5525 = vmin.f32 16.0, %v5524
        %v5526 = vmul.f32 %v5525, 2.1237322e-06
        %v5527 = vadd.f32 %v5526, 0.00028619796
        %v5528 = vmul.f32 %v5525, %v5527
        %v5529 = vadd.f32 %v5528, 0.0036580483
        %v5530 = vmul.f32 %v5525, %v5529
        %v5531 = vadd.f32 %v5530, 0.05243302
        %v5532 = vmul.f32 %v5525, %v5531
        %v5533 = vadd.f32 %v5532, 0.18741608
        %v5534 = vmul.f32 %v5525, %v5533
        %v5535 = vadd.f32 %v5534, 1.1283791
        %v5536 = vmul.f32 %v598, %v5535
        %v5537 = vmul.f32 %v5525, 3.8918573e-05
        %v5538 = vadd.f32 %v5537, 0.001143296
        %v5539 = vmul.f32 %v5525, %v5538
        %v5540 = vadd.f32 %v5539, 0.014752088
        %v5541 = vmul.f32 %v5525, %v5540
        %v5542 = vadd.f32 %v5541, 0.112945676
        %v5543 = vmul.f32 %v5525, %v5542
        %v5544 = vadd.f32 %v5543, 0.4994258
        %v5545 = vmul.f32 %v5525, %v5544
        %v5546 = vadd.f32 %v5545, 1.0
        %v5547 = vrcp.pop %v5546
        %v5548 = vmul.f32 %v5546, %v5547
        %v5549 = vsub.f32 1.0, %v5548
        %v5550 = vmul.f32 %v5547, %v5549
        %v5551 = vadd.f32 %v5547, %v5550
        %vm5552 = vweird.f32 %v5546
        %vm5553 = vweird.f32 %v5547
        %vm5554 = vmor %vm5552, %vm5553
        %v5555 = vsel %vm5554, %v5547, %v5551
        %v5556 = vand.u32 2147483647, %v5546
        %vm5557 = vcmp.eq.f32.partialorder %v5556, 8.507059e+37
        %v5558 = vand.u32 %v5546, 2147483648
        %v5559 = vor.u32 1.1754944e-38, %v5558
        %v5560 = vsel %vm5557, %v5559, %v5555
        %v5561 = vmul.f32 %v5536, %v5560
        %v5562 = vmin.f32 %v5561, 1.0
        %v5563 = vmax.f32 %v5562, -1.0
        %v5564 = vmul.f32 %v599, %v599
        %v5565 = vmin.f32 16.0, %v5564
        %v5566 = vmul.f32 %v5565, 2.1237322e-06
        %v5567 = vadd.f32 %v5566, 0.00028619796
        %v5568 = vmul.f32 %v5565, %v5567
        %v5569 = vadd.f32 %v5568, 0.0036580483
        %v5570 = vmul.f32 %v5565, %v5569
        %v5571 = vadd.f32 %v5570, 0.05243302
        %v5572 = vmul.f32 %v5565, %v5571
        %v5573 = vadd.f32 %v5572, 0.18741608
        %v5574 = vmul.f32 %v5565, %v5573
        %v5575 = vadd.f32 %v5574, 1.1283791
        %v5576 = vmul.f32 %v599, %v5575
        %v5577 = vmul.f32 %v5565, 3.8918573e-05
        %v5578 = vadd.f32 %v5577, 0.001143296
        %v5579 = vmul.f32 %v5565, %v5578
        %v5580 = vadd.f32 %v5579, 0.014752088
        %v5581 = vmul.f32 %v5565, %v5580
        %v5582 = vadd.f32 %v5581, 0.112945676
        %v5583 = vmul.f32 %v5565, %v5582
        %v5584 = vadd.f32 %v5583, 0.4994258
        %v5585 = vmul.f32 %v5565, %v5584
        %v5586 = vadd.f32 %v5585, 1.0
        %v5587 = vrcp.pop %v5586
        %v5588 = vmul.f32 %v5586, %v5587
        %v5589 = vsub.f32 1.0, %v5588
        %v5590 = vmul.f32 %v5587, %v5589
        %v5591 = vadd.f32 %v5587, %v5590
        %vm5592 = vweird.f32 %v5586
        %vm5593 = vweird.f32 %v5587
        %vm5594 = vmor %vm5592, %vm5593
        %v5595 = vsel %vm5594, %v5587, %v5591
        %v5596 = vand.u32 2147483647, %v5586
        %vm5597 = vcmp.eq.f32.partialorder %v5596, 8.507059e+37
        %v5598 = vand.u32 %v5586, 2147483648
        %v5599 = vor.u32 1.1754944e-38, %v5598
        %v5600 = vsel %vm5597, %v5599, %v5595
        %v5601 = vmul.f32 %v5576, %v5600
        %v5602 = vmin.f32 %v5601, 1.0
        %v5603 = vmax.f32 %v5602, -1.0
        %v5604 = vmul.f32 %v600, %v600
        %v5605 = vmin.f32 16.0, %v5604
        %v5606 = vmul.f32 %v5605, 2.1237322e-06
        %v5607 = vadd.f32 %v5606, 0.00028619796
        %v5608 = vmul.f32 %v5605, %v5607
        %v5609 = vadd.f32 %v5608, 0.0036580483
        %v5610 = vmul.f32 %v5605, %v5609
        %v5611 = vadd.f32 %v5610, 0.05243302
        %v5612 = vmul.f32 %v5605, %v5611
        %v5613 = vadd.f32 %v5612, 0.18741608
        %v5614 = vmul.f32 %v5605, %v5613
        %v5615 = vadd.f32 %v5614, 1.1283791
        %v5616 = vmul.f32 %v600, %v5615
        %v5617 = vmul.f32 %v5605, 3.8918573e-05
        %v5618 = vadd.f32 %v5617, 0.001143296
        %v5619 = vmul.f32 %v5605, %v5618
        %v5620 = vadd.f32 %v5619, 0.014752088
        %v5621 = vmul.f32 %v5605, %v5620
        %v5622 = vadd.f32 %v5621, 0.112945676
        %v5623 = vmul.f32 %v5605, %v5622
        %v5624 = vadd.f32 %v5623, 0.4994258
        %v5625 = vmul.f32 %v5605, %v5624
        %v5626 = vadd.f32 %v5625, 1.0
        %v5627 = vrcp.pop %v5626
        %v5628 = vmul.f32 %v5626, %v5627
        %v5629 = vsub.f32 1.0, %v5628
        %v5630 = vmul.f32 %v5627, %v5629
        %v5631 = vadd.f32 %v5627, %v5630
        %vm5632 = vweird.f32 %v5626
        %vm5633 = vweird.f32 %v5627
        %vm5634 = vmor %vm5632, %vm5633
        %v5635 = vsel %vm5634, %v5627, %v5631
        %v5636 = vand.u32 2147483647, %v5626
        %vm5637 = vcmp.eq.f32.partialorder %v5636, 8.507059e+37
        %v5638 = vand.u32 %v5626, 2147483648
        %v5639 = vor.u32 1.1754944e-38, %v5638
        %v5640 = vsel %vm5637, %v5639, %v5635
        %v5641 = vmul.f32 %v5616, %v5640
        %v5642 = vmin.f32 %v5641, 1.0
        %v5643 = vmax.f32 %v5642, -1.0
        %v5644 = vmul.f32 %v601, %v601
        %v5645 = vmin.f32 16.0, %v5644
        %v5646 = vmul.f32 %v5645, 2.1237322e-06
        %v5647 = vadd.f32 %v5646, 0.00028619796
        %v5648 = vmul.f32 %v5645, %v5647
        %v5649 = vadd.f32 %v5648, 0.0036580483
        %v5650 = vmul.f32 %v5645, %v5649
        %v5651 = vadd.f32 %v5650, 0.05243302
        %v5652 = vmul.f32 %v5645, %v5651
        %v5653 = vadd.f32 %v5652, 0.18741608
        %v5654 = vmul.f32 %v5645, %v5653
        %v5655 = vadd.f32 %v5654, 1.1283791
        %v5656 = vmul.f32 %v601, %v5655
        %v5657 = vmul.f32 %v5645, 3.8918573e-05
        %v5658 = vadd.f32 %v5657, 0.001143296
        %v5659 = vmul.f32 %v5645, %v5658
        %v5660 = vadd.f32 %v5659, 0.014752088
        %v5661 = vmul.f32 %v5645, %v5660
        %v5662 = vadd.f32 %v5661, 0.112945676
        %v5663 = vmul.f32 %v5645, %v5662
        %v5664 = vadd.f32 %v5663, 0.4994258
        %v5665 = vmul.f32 %v5645, %v5664
        %v5666 = vadd.f32 %v5665, 1.0
        %v5667 = vrcp.pop %v5666
        %v5668 = vmul.f32 %v5666, %v5667
        %v5669 = vsub.f32 1.0, %v5668
        %v5670 = vmul.f32 %v5667, %v5669
        %v5671 = vadd.f32 %v5667, %v5670
        %vm5672 = vweird.f32 %v5666
        %vm5673 = vweird.f32 %v5667
        %vm5674 = vmor %vm5672, %vm5673
        %v5675 = vsel %vm5674, %v5667, %v5671
        %v5676 = vand.u32 2147483647, %v5666
        %vm5677 = vcmp.eq.f32.partialorder %v5676, 8.507059e+37
        %v5678 = vand.u32 %v5666, 2147483648
        %v5679 = vor.u32 1.1754944e-38, %v5678
        %v5680 = vsel %vm5677, %v5679, %v5675
        %v5681 = vmul.f32 %v5656, %v5680
        %v5682 = vmin.f32 %v5681, 1.0
        %v5683 = vmax.f32 %v5682, -1.0
        %v5684 = vmul.f32 %v602, %v602
        %v5685 = vmin.f32 16.0, %v5684
        %v5686 = vmul.f32 %v5685, 2.1237322e-06
        %v5687 = vadd.f32 %v5686, 0.00028619796
        %v5688 = vmul.f32 %v5685, %v5687
        %v5689 = vadd.f32 %v5688, 0.0036580483
        %v5690 = vmul.f32 %v5685, %v5689
        %v5691 = vadd.f32 %v5690, 0.05243302
        %v5692 = vmul.f32 %v5685, %v5691
        %v5693 = vadd.f32 %v5692, 0.18741608
        %v5694 = vmul.f32 %v5685, %v5693
        %v5695 = vadd.f32 %v5694, 1.1283791
        %v5696 = vmul.f32 %v602, %v5695
        %v5697 = vmul.f32 %v5685, 3.8918573e-05
        %v5698 = vadd.f32 %v5697, 0.001143296
        %v5699 = vmul.f32 %v5685, %v5698
        %v5700 = vadd.f32 %v5699, 0.014752088
        %v5701 = vmul.f32 %v5685, %v5700
        %v5702 = vadd.f32 %v5701, 0.112945676
        %v5703 = vmul.f32 %v5685, %v5702
        %v5704 = vadd.f32 %v5703, 0.4994258
        %v5705 = vmul.f32 %v5685, %v5704
        %v5706 = vadd.f32 %v5705, 1.0
        %v5707 = vrcp.pop %v5706
        %v5708 = vmul.f32 %v5706, %v5707
        %v5709 = vsub.f32 1.0, %v5708
        %v5710 = vmul.f32 %v5707, %v5709
        %v5711 = vadd.f32 %v5707, %v5710
        %vm5712 = vweird.f32 %v5706
        %vm5713 = vweird.f32 %v5707
        %vm5714 = vmor %vm5712, %vm5713
        %v5715 = vsel %vm5714, %v5707, %v5711
        %v5716 = vand.u32 2147483647, %v5706
        %vm5717 = vcmp.eq.f32.partialorder %v5716, 8.507059e+37
        %v5718 = vand.u32 %v5706, 2147483648
        %v5719 = vor.u32 1.1754944e-38, %v5718
        %v5720 = vsel %vm5717, %v5719, %v5715
        %v5721 = vmul.f32 %v5696, %v5720
        %v5722 = vmin.f32 %v5721, 1.0
        %v5723 = vmax.f32 %v5722, -1.0
        %v5724 = vmul.f32 %v603, %v603
        %v5725 = vmin.f32 16.0, %v5724
        %v5726 = vmul.f32 %v5725, 2.1237322e-06
        %v5727 = vadd.f32 %v5726, 0.00028619796
        %v5728 = vmul.f32 %v5725, %v5727
        %v5729 = vadd.f32 %v5728, 0.0036580483
        %v5730 = vmul.f32 %v5725, %v5729
        %v5731 = vadd.f32 %v5730, 0.05243302
        %v5732 = vmul.f32 %v5725, %v5731
        %v5733 = vadd.f32 %v5732, 0.18741608
        %v5734 = vmul.f32 %v5725, %v5733
        %v5735 = vadd.f32 %v5734, 1.1283791
        %v5736 = vmul.f32 %v603, %v5735
        %v5737 = vmul.f32 %v5725, 3.8918573e-05
        %v5738 = vadd.f32 %v5737, 0.001143296
        %v5739 = vmul.f32 %v5725, %v5738
        %v5740 = vadd.f32 %v5739, 0.014752088
        %v5741 = vmul.f32 %v5725, %v5740
        %v5742 = vadd.f32 %v5741, 0.112945676
        %v5743 = vmul.f32 %v5725, %v5742
        %v5744 = vadd.f32 %v5743, 0.4994258
        %v5745 = vmul.f32 %v5725, %v5744
        %v5746 = vadd.f32 %v5745, 1.0
        %v5747 = vrcp.pop %v5746
        %v5748 = vmul.f32 %v5746, %v5747
        %v5749 = vsub.f32 1.0, %v5748
        %v5750 = vmul.f32 %v5747, %v5749
        %v5751 = vadd.f32 %v5747, %v5750
        %vm5752 = vweird.f32 %v5746
        %vm5753 = vweird.f32 %v5747
        %vm5754 = vmor %vm5752, %vm5753
        %v5755 = vsel %vm5754, %v5747, %v5751
        %v5756 = vand.u32 2147483647, %v5746
        %vm5757 = vcmp.eq.f32.partialorder %v5756, 8.507059e+37
        %v5758 = vand.u32 %v5746, 2147483648
        %v5759 = vor.u32 1.1754944e-38, %v5758
        %v5760 = vsel %vm5757, %v5759, %v5755
        %v5761 = vmul.f32 %v5736, %v5760
        %v5762 = vmin.f32 %v5761, 1.0
        %v5763 = vmax.f32 %v5762, -1.0
        %v5764 = vmul.f32 %v604, %v604
        %v5765 = vmin.f32 16.0, %v5764
        %v5766 = vmul.f32 %v5765, 2.1237322e-06
        %v5767 = vadd.f32 %v5766, 0.00028619796
        %v5768 = vmul.f32 %v5765, %v5767
        %v5769 = vadd.f32 %v5768, 0.0036580483
        %v5770 = vmul.f32 %v5765, %v5769
        %v5771 = vadd.f32 %v5770, 0.05243302
        %v5772 = vmul.f32 %v5765, %v5771
        %v5773 = vadd.f32 %v5772, 0.18741608
        %v5774 = vmul.f32 %v5765, %v5773
        %v5775 = vadd.f32 %v5774, 1.1283791
        %v5776 = vmul.f32 %v604, %v5775
        %v5777 = vmul.f32 %v5765, 3.8918573e-05
        %v5778 = vadd.f32 %v5777, 0.001143296
        %v5779 = vmul.f32 %v5765, %v5778
        %v5780 = vadd.f32 %v5779, 0.014752088
        %v5781 = vmul.f32 %v5765, %v5780
        %v5782 = vadd.f32 %v5781, 0.112945676
        %v5783 = vmul.f32 %v5765, %v5782
        %v5784 = vadd.f32 %v5783, 0.4994258
        %v5785 = vmul.f32 %v5765, %v5784
        %v5786 = vadd.f32 %v5785, 1.0
        %v5787 = vrcp.pop %v5786
        %v5788 = vmul.f32 %v5786, %v5787
        %v5789 = vsub.f32 1.0, %v5788
        %v5790 = vmul.f32 %v5787, %v5789
        %v5791 = vadd.f32 %v5787, %v5790
        %vm5792 = vweird.f32 %v5786
        %vm5793 = vweird.f32 %v5787
        %vm5794 = vmor %vm5792, %vm5793
        %v5795 = vsel %vm5794, %v5787, %v5791
        %v5796 = vand.u32 2147483647, %v5786
        %vm5797 = vcmp.eq.f32.partialorder %v5796, 8.507059e+37
        %v5798 = vand.u32 %v5786, 2147483648
        %v5799 = vor.u32 1.1754944e-38, %v5798
        %v5800 = vsel %vm5797, %v5799, %v5795
        %v5801 = vmul.f32 %v5776, %v5800
        %v5802 = vmin.f32 %v5801, 1.0
        %v5803 = vmax.f32 %v5802, -1.0
        %v5804 = vmul.f32 %v605, %v605
        %v5805 = vmin.f32 16.0, %v5804
        %v5806 = vmul.f32 %v5805, 2.1237322e-06
        %v5807 = vadd.f32 %v5806, 0.00028619796
        %v5808 = vmul.f32 %v5805, %v5807
        %v5809 = vadd.f32 %v5808, 0.0036580483
        %v5810 = vmul.f32 %v5805, %v5809
        %v5811 = vadd.f32 %v5810, 0.05243302
        %v5812 = vmul.f32 %v5805, %v5811
        %v5813 = vadd.f32 %v5812, 0.18741608
        %v5814 = vmul.f32 %v5805, %v5813
        %v5815 = vadd.f32 %v5814, 1.1283791
        %v5816 = vmul.f32 %v605, %v5815
        %v5817 = vmul.f32 %v5805, 3.8918573e-05
        %v5818 = vadd.f32 %v5817, 0.001143296
        %v5819 = vmul.f32 %v5805, %v5818
        %v5820 = vadd.f32 %v5819, 0.014752088
        %v5821 = vmul.f32 %v5805, %v5820
        %v5822 = vadd.f32 %v5821, 0.112945676
        %v5823 = vmul.f32 %v5805, %v5822
        %v5824 = vadd.f32 %v5823, 0.4994258
        %v5825 = vmul.f32 %v5805, %v5824
        %v5826 = vadd.f32 %v5825, 1.0
        %v5827 = vrcp.pop %v5826
        %v5828 = vmul.f32 %v5826, %v5827
        %v5829 = vsub.f32 1.0, %v5828
        %v5830 = vmul.f32 %v5827, %v5829
        %v5831 = vadd.f32 %v5827, %v5830
        %vm5832 = vweird.f32 %v5826
        %vm5833 = vweird.f32 %v5827
        %vm5834 = vmor %vm5832, %vm5833
        %v5835 = vsel %vm5834, %v5827, %v5831
        %v5836 = vand.u32 2147483647, %v5826
        %vm5837 = vcmp.eq.f32.partialorder %v5836, 8.507059e+37
        %v5838 = vand.u32 %v5826, 2147483648
        %v5839 = vor.u32 1.1754944e-38, %v5838
        %v5840 = vsel %vm5837, %v5839, %v5835
        %v5841 = vmul.f32 %v5816, %v5840
        %v5842 = vmin.f32 %v5841, 1.0
        %v5843 = vmax.f32 %v5842, -1.0
        %v5844 = vmul.f32 %v606, %v606
        %v5845 = vmin.f32 16.0, %v5844
        %v5846 = vmul.f32 %v5845, 2.1237322e-06
        %v5847 = vadd.f32 %v5846, 0.00028619796
        %v5848 = vmul.f32 %v5845, %v5847
        %v5849 = vadd.f32 %v5848, 0.0036580483
        %v5850 = vmul.f32 %v5845, %v5849
        %v5851 = vadd.f32 %v5850, 0.05243302
        %v5852 = vmul.f32 %v5845, %v5851
        %v5853 = vadd.f32 %v5852, 0.18741608
        %v5854 = vmul.f32 %v5845, %v5853
        %v5855 = vadd.f32 %v5854, 1.1283791
        %v5856 = vmul.f32 %v606, %v5855
        %v5857 = vmul.f32 %v5845, 3.8918573e-05
        %v5858 = vadd.f32 %v5857, 0.001143296
        %v5859 = vmul.f32 %v5845, %v5858
        %v5860 = vadd.f32 %v5859, 0.014752088
        %v5861 = vmul.f32 %v5845, %v5860
        %v5862 = vadd.f32 %v5861, 0.112945676
        %v5863 = vmul.f32 %v5845, %v5862
        %v5864 = vadd.f32 %v5863, 0.4994258
        %v5865 = vmul.f32 %v5845, %v5864
        %v5866 = vadd.f32 %v5865, 1.0
        %v5867 = vrcp.pop %v5866
        %v5868 = vmul.f32 %v5866, %v5867
        %v5869 = vsub.f32 1.0, %v5868
        %v5870 = vmul.f32 %v5867, %v5869
        %v5871 = vadd.f32 %v5867, %v5870
        %vm5872 = vweird.f32 %v5866
        %vm5873 = vweird.f32 %v5867
        %vm5874 = vmor %vm5872, %vm5873
        %v5875 = vsel %vm5874, %v5867, %v5871
        %v5876 = vand.u32 2147483647, %v5866
        %vm5877 = vcmp.eq.f32.partialorder %v5876, 8.507059e+37
        %v5878 = vand.u32 %v5866, 2147483648
        %v5879 = vor.u32 1.1754944e-38, %v5878
        %v5880 = vsel %vm5877, %v5879, %v5875
        %v5881 = vmul.f32 %v5856, %v5880
        %v5882 = vmin.f32 %v5881, 1.0
        %v5883 = vmax.f32 %v5882, -1.0
        %v5884 = vmul.f32 %v607, %v607
        %v5885 = vmin.f32 16.0, %v5884
        %v5886 = vmul.f32 %v5885, 2.1237322e-06
        %v5887 = vadd.f32 %v5886, 0.00028619796
        %v5888 = vmul.f32 %v5885, %v5887
        %v5889 = vadd.f32 %v5888, 0.0036580483
        %v5890 = vmul.f32 %v5885, %v5889
        %v5891 = vadd.f32 %v5890, 0.05243302
        %v5892 = vmul.f32 %v5885, %v5891
        %v5893 = vadd.f32 %v5892, 0.18741608
        %v5894 = vmul.f32 %v5885, %v5893
        %v5895 = vadd.f32 %v5894, 1.1283791
        %v5896 = vmul.f32 %v607, %v5895
        %v5897 = vmul.f32 %v5885, 3.8918573e-05
        %v5898 = vadd.f32 %v5897, 0.001143296
        %v5899 = vmul.f32 %v5885, %v5898
        %v5900 = vadd.f32 %v5899, 0.014752088
        %v5901 = vmul.f32 %v5885, %v5900
        %v5902 = vadd.f32 %v5901, 0.112945676
        %v5903 = vmul.f32 %v5885, %v5902
        %v5904 = vadd.f32 %v5903, 0.4994258
        %v5905 = vmul.f32 %v5885, %v5904
        %v5906 = vadd.f32 %v5905, 1.0
        %v5907 = vrcp.pop %v5906
        %v5908 = vmul.f32 %v5906, %v5907
        %v5909 = vsub.f32 1.0, %v5908
        %v5910 = vmul.f32 %v5907, %v5909
        %v5911 = vadd.f32 %v5907, %v5910
        %vm5912 = vweird.f32 %v5906
        %vm5913 = vweird.f32 %v5907
        %vm5914 = vmor %vm5912, %vm5913
        %v5915 = vsel %vm5914, %v5907, %v5911
        %v5916 = vand.u32 2147483647, %v5906
        %vm5917 = vcmp.eq.f32.partialorder %v5916, 8.507059e+37
        %v5918 = vand.u32 %v5906, 2147483648
        %v5919 = vor.u32 1.1754944e-38, %v5918
        %v5920 = vsel %vm5917, %v5919, %v5915
        %v5921 = vmul.f32 %v5896, %v5920
        %v5922 = vmin.f32 %v5921, 1.0
        %v5923 = vmax.f32 %v5922, -1.0
        %v5924 = vmul.f32 %v608, %v608
        %v5925 = vmin.f32 16.0, %v5924
        %v5926 = vmul.f32 %v5925, 2.1237322e-06
        %v5927 = vadd.f32 %v5926, 0.00028619796
        %v5928 = vmul.f32 %v5925, %v5927
        %v5929 = vadd.f32 %v5928, 0.0036580483
        %v5930 = vmul.f32 %v5925, %v5929
        %v5931 = vadd.f32 %v5930, 0.05243302
        %v5932 = vmul.f32 %v5925, %v5931
        %v5933 = vadd.f32 %v5932, 0.18741608
        %v5934 = vmul.f32 %v5925, %v5933
        %v5935 = vadd.f32 %v5934, 1.1283791
        %v5936 = vmul.f32 %v608, %v5935
        %v5937 = vmul.f32 %v5925, 3.8918573e-05
        %v5938 = vadd.f32 %v5937, 0.001143296
        %v5939 = vmul.f32 %v5925, %v5938
        %v5940 = vadd.f32 %v5939, 0.014752088
        %v5941 = vmul.f32 %v5925, %v5940
        %v5942 = vadd.f32 %v5941, 0.112945676
        %v5943 = vmul.f32 %v5925, %v5942
        %v5944 = vadd.f32 %v5943, 0.4994258
        %v5945 = vmul.f32 %v5925, %v5944
        %v5946 = vadd.f32 %v5945, 1.0
        %v5947 = vrcp.pop %v5946
        %v5948 = vmul.f32 %v5946, %v5947
        %v5949 = vsub.f32 1.0, %v5948
        %v5950 = vmul.f32 %v5947, %v5949
        %v5951 = vadd.f32 %v5947, %v5950
        %vm5952 = vweird.f32 %v5946
        %vm5953 = vweird.f32 %v5947
        %vm5954 = vmor %vm5952, %vm5953
        %v5955 = vsel %vm5954, %v5947, %v5951
        %v5956 = vand.u32 2147483647, %v5946
        %vm5957 = vcmp.eq.f32.partialorder %v5956, 8.507059e+37
        %v5958 = vand.u32 %v5946, 2147483648
        %v5959 = vor.u32 1.1754944e-38, %v5958
        %v5960 = vsel %vm5957, %v5959, %v5955
        %v5961 = vmul.f32 %v5936, %v5960
        %v5962 = vmin.f32 %v5961, 1.0
        %v5963 = vmax.f32 %v5962, -1.0
        %v5964 = vmul.f32 %v609, %v609
        %v5965 = vmin.f32 16.0, %v5964
        %v5966 = vmul.f32 %v5965, 2.1237322e-06
        %v5967 = vadd.f32 %v5966, 0.00028619796
        %v5968 = vmul.f32 %v5965, %v5967
        %v5969 = vadd.f32 %v5968, 0.0036580483
        %v5970 = vmul.f32 %v5965, %v5969
        %v5971 = vadd.f32 %v5970, 0.05243302
        %v5972 = vmul.f32 %v5965, %v5971
        %v5973 = vadd.f32 %v5972, 0.18741608
        %v5974 = vmul.f32 %v5965, %v5973
        %v5975 = vadd.f32 %v5974, 1.1283791
        %v5976 = vmul.f32 %v609, %v5975
        %v5977 = vmul.f32 %v5965, 3.8918573e-05
        %v5978 = vadd.f32 %v5977, 0.001143296
        %v5979 = vmul.f32 %v5965, %v5978
        %v5980 = vadd.f32 %v5979, 0.014752088
        %v5981 = vmul.f32 %v5965, %v5980
        %v5982 = vadd.f32 %v5981, 0.112945676
        %v5983 = vmul.f32 %v5965, %v5982
        %v5984 = vadd.f32 %v5983, 0.4994258
        %v5985 = vmul.f32 %v5965, %v5984
        %v5986 = vadd.f32 %v5985, 1.0
        %v5987 = vrcp.pop %v5986
        %v5988 = vmul.f32 %v5986, %v5987
        %v5989 = vsub.f32 1.0, %v5988
        %v5990 = vmul.f32 %v5987, %v5989
        %v5991 = vadd.f32 %v5987, %v5990
        %vm5992 = vweird.f32 %v5986
        %vm5993 = vweird.f32 %v5987
        %vm5994 = vmor %vm5992, %vm5993
        %v5995 = vsel %vm5994, %v5987, %v5991
        %v5996 = vand.u32 2147483647, %v5986
        %vm5997 = vcmp.eq.f32.partialorder %v5996, 8.507059e+37
        %v5998 = vand.u32 %v5986, 2147483648
        %v5999 = vor.u32 1.1754944e-38, %v5998
        %v6000 = vsel %vm5997, %v5999, %v5995
        %v6001 = vmul.f32 %v5976, %v6000
        %v6002 = vmin.f32 %v6001, 1.0
        %v6003 = vmax.f32 %v6002, -1.0
        %v6004 = vmul.f32 %v610, %v610
        %v6005 = vmin.f32 16.0, %v6004
        %v6006 = vmul.f32 %v6005, 2.1237322e-06
        %v6007 = vadd.f32 %v6006, 0.00028619796
        %v6008 = vmul.f32 %v6005, %v6007
        %v6009 = vadd.f32 %v6008, 0.0036580483
        %v6010 = vmul.f32 %v6005, %v6009
        %v6011 = vadd.f32 %v6010, 0.05243302
        %v6012 = vmul.f32 %v6005, %v6011
        %v6013 = vadd.f32 %v6012, 0.18741608
        %v6014 = vmul.f32 %v6005, %v6013
        %v6015 = vadd.f32 %v6014, 1.1283791
        %v6016 = vmul.f32 %v610, %v6015
        %v6017 = vmul.f32 %v6005, 3.8918573e-05
        %v6018 = vadd.f32 %v6017, 0.001143296
        %v6019 = vmul.f32 %v6005, %v6018
        %v6020 = vadd.f32 %v6019, 0.014752088
        %v6021 = vmul.f32 %v6005, %v6020
        %v6022 = vadd.f32 %v6021, 0.112945676
        %v6023 = vmul.f32 %v6005, %v6022
        %v6024 = vadd.f32 %v6023, 0.4994258
        %v6025 = vmul.f32 %v6005, %v6024
        %v6026 = vadd.f32 %v6025, 1.0
        %v6027 = vrcp.pop %v6026
        %v6028 = vmul.f32 %v6026, %v6027
        %v6029 = vsub.f32 1.0, %v6028
        %v6030 = vmul.f32 %v6027, %v6029
        %v6031 = vadd.f32 %v6027, %v6030
        %vm6032 = vweird.f32 %v6026
        %vm6033 = vweird.f32 %v6027
        %vm6034 = vmor %vm6032, %vm6033
        %v6035 = vsel %vm6034, %v6027, %v6031
        %v6036 = vand.u32 2147483647, %v6026
        %vm6037 = vcmp.eq.f32.partialorder %v6036, 8.507059e+37
        %v6038 = vand.u32 %v6026, 2147483648
        %v6039 = vor.u32 1.1754944e-38, %v6038
        %v6040 = vsel %vm6037, %v6039, %v6035
        %v6041 = vmul.f32 %v6016, %v6040
        %v6042 = vmin.f32 %v6041, 1.0
        %v6043 = vmax.f32 %v6042, -1.0
        %v6044 = vmul.f32 %v611, %v611
        %v6045 = vmin.f32 16.0, %v6044
        %v6046 = vmul.f32 %v6045, 2.1237322e-06
        %v6047 = vadd.f32 %v6046, 0.00028619796
        %v6048 = vmul.f32 %v6045, %v6047
        %v6049 = vadd.f32 %v6048, 0.0036580483
        %v6050 = vmul.f32 %v6045, %v6049
        %v6051 = vadd.f32 %v6050, 0.05243302
        %v6052 = vmul.f32 %v6045, %v6051
        %v6053 = vadd.f32 %v6052, 0.18741608
        %v6054 = vmul.f32 %v6045, %v6053
        %v6055 = vadd.f32 %v6054, 1.1283791
        %v6056 = vmul.f32 %v611, %v6055
        %v6057 = vmul.f32 %v6045, 3.8918573e-05
        %v6058 = vadd.f32 %v6057, 0.001143296
        %v6059 = vmul.f32 %v6045, %v6058
        %v6060 = vadd.f32 %v6059, 0.014752088
        %v6061 = vmul.f32 %v6045, %v6060
        %v6062 = vadd.f32 %v6061, 0.112945676
        %v6063 = vmul.f32 %v6045, %v6062
        %v6064 = vadd.f32 %v6063, 0.4994258
        %v6065 = vmul.f32 %v6045, %v6064
        %v6066 = vadd.f32 %v6065, 1.0
        %v6067 = vrcp.pop %v6066
        %v6068 = vmul.f32 %v6066, %v6067
        %v6069 = vsub.f32 1.0, %v6068
        %v6070 = vmul.f32 %v6067, %v6069
        %v6071 = vadd.f32 %v6067, %v6070
        %vm6072 = vweird.f32 %v6066
        %vm6073 = vweird.f32 %v6067
        %vm6074 = vmor %vm6072, %vm6073
        %v6075 = vsel %vm6074, %v6067, %v6071
        %v6076 = vand.u32 2147483647, %v6066
        %vm6077 = vcmp.eq.f32.partialorder %v6076, 8.507059e+37
        %v6078 = vand.u32 %v6066, 2147483648
        %v6079 = vor.u32 1.1754944e-38, %v6078
        %v6080 = vsel %vm6077, %v6079, %v6075
        %v6081 = vmul.f32 %v6056, %v6080
        %v6082 = vmin.f32 %v6081, 1.0
        %v6083 = vmax.f32 %v6082, -1.0
        %v6084 = vmul.f32 %v612, %v612
        %v6085 = vmin.f32 16.0, %v6084
        %v6086 = vmul.f32 %v6085, 2.1237322e-06
        %v6087 = vadd.f32 %v6086, 0.00028619796
        %v6088 = vmul.f32 %v6085, %v6087
        %v6089 = vadd.f32 %v6088, 0.0036580483
        %v6090 = vmul.f32 %v6085, %v6089
        %v6091 = vadd.f32 %v6090, 0.05243302
        %v6092 = vmul.f32 %v6085, %v6091
        %v6093 = vadd.f32 %v6092, 0.18741608
        %v6094 = vmul.f32 %v6085, %v6093
        %v6095 = vadd.f32 %v6094, 1.1283791
        %v6096 = vmul.f32 %v612, %v6095
        %v6097 = vmul.f32 %v6085, 3.8918573e-05
        %v6098 = vadd.f32 %v6097, 0.001143296
        %v6099 = vmul.f32 %v6085, %v6098
        %v6100 = vadd.f32 %v6099, 0.014752088
        %v6101 = vmul.f32 %v6085, %v6100
        %v6102 = vadd.f32 %v6101, 0.112945676
        %v6103 = vmul.f32 %v6085, %v6102
        %v6104 = vadd.f32 %v6103, 0.4994258
        %v6105 = vmul.f32 %v6085, %v6104
        %v6106 = vadd.f32 %v6105, 1.0
        %v6107 = vrcp.pop %v6106
        %v6108 = vmul.f32 %v6106, %v6107
        %v6109 = vsub.f32 1.0, %v6108
        %v6110 = vmul.f32 %v6107, %v6109
        %v6111 = vadd.f32 %v6107, %v6110
        %vm6112 = vweird.f32 %v6106
        %vm6113 = vweird.f32 %v6107
        %vm6114 = vmor %vm6112, %vm6113
        %v6115 = vsel %vm6114, %v6107, %v6111
        %v6116 = vand.u32 2147483647, %v6106
        %vm6117 = vcmp.eq.f32.partialorder %v6116, 8.507059e+37
        %v6118 = vand.u32 %v6106, 2147483648
        %v6119 = vor.u32 1.1754944e-38, %v6118
        %v6120 = vsel %vm6117, %v6119, %v6115
        %v6121 = vmul.f32 %v6096, %v6120
        %v6122 = vmin.f32 %v6121, 1.0
        %v6123 = vmax.f32 %v6122, -1.0
        %v6124 = vmul.f32 %v613, %v613
        %v6125 = vmin.f32 16.0, %v6124
        %v6126 = vmul.f32 %v6125, 2.1237322e-06
        %v6127 = vadd.f32 %v6126, 0.00028619796
        %v6128 = vmul.f32 %v6125, %v6127
        %v6129 = vadd.f32 %v6128, 0.0036580483
        %v6130 = vmul.f32 %v6125, %v6129
        %v6131 = vadd.f32 %v6130, 0.05243302
        %v6132 = vmul.f32 %v6125, %v6131
        %v6133 = vadd.f32 %v6132, 0.18741608
        %v6134 = vmul.f32 %v6125, %v6133
        %v6135 = vadd.f32 %v6134, 1.1283791
        %v6136 = vmul.f32 %v613, %v6135
        %v6137 = vmul.f32 %v6125, 3.8918573e-05
        %v6138 = vadd.f32 %v6137, 0.001143296
        %v6139 = vmul.f32 %v6125, %v6138
        %v6140 = vadd.f32 %v6139, 0.014752088
        %v6141 = vmul.f32 %v6125, %v6140
        %v6142 = vadd.f32 %v6141, 0.112945676
        %v6143 = vmul.f32 %v6125, %v6142
        %v6144 = vadd.f32 %v6143, 0.4994258
        %v6145 = vmul.f32 %v6125, %v6144
        %v6146 = vadd.f32 %v6145, 1.0
        %v6147 = vrcp.pop %v6146
        %v6148 = vmul.f32 %v6146, %v6147
        %v6149 = vsub.f32 1.0, %v6148
        %v6150 = vmul.f32 %v6147, %v6149
        %v6151 = vadd.f32 %v6147, %v6150
        %vm6152 = vweird.f32 %v6146
        %vm6153 = vweird.f32 %v6147
        %vm6154 = vmor %vm6152, %vm6153
        %v6155 = vsel %vm6154, %v6147, %v6151
        %v6156 = vand.u32 2147483647, %v6146
        %vm6157 = vcmp.eq.f32.partialorder %v6156, 8.507059e+37
        %v6158 = vand.u32 %v6146, 2147483648
        %v6159 = vor.u32 1.1754944e-38, %v6158
        %v6160 = vsel %vm6157, %v6159, %v6155
        %v6161 = vmul.f32 %v6136, %v6160
        %v6162 = vmin.f32 %v6161, 1.0
        %v6163 = vmax.f32 %v6162, -1.0
        %v6164 = vmul.f32 %v614, %v614
        %v6165 = vmin.f32 16.0, %v6164
        %v6166 = vmul.f32 %v6165, 2.1237322e-06
        %v6167 = vadd.f32 %v6166, 0.00028619796
        %v6168 = vmul.f32 %v6165, %v6167
        %v6169 = vadd.f32 %v6168, 0.0036580483
        %v6170 = vmul.f32 %v6165, %v6169
        %v6171 = vadd.f32 %v6170, 0.05243302
        %v6172 = vmul.f32 %v6165, %v6171
        %v6173 = vadd.f32 %v6172, 0.18741608
        %v6174 = vmul.f32 %v6165, %v6173
        %v6175 = vadd.f32 %v6174, 1.1283791
        %v6176 = vmul.f32 %v614, %v6175
        %v6177 = vmul.f32 %v6165, 3.8918573e-05
        %v6178 = vadd.f32 %v6177, 0.001143296
        %v6179 = vmul.f32 %v6165, %v6178
        %v6180 = vadd.f32 %v6179, 0.014752088
        %v6181 = vmul.f32 %v6165, %v6180
        %v6182 = vadd.f32 %v6181, 0.112945676
        %v6183 = vmul.f32 %v6165, %v6182
        %v6184 = vadd.f32 %v6183, 0.4994258
        %v6185 = vmul.f32 %v6165, %v6184
        %v6186 = vadd.f32 %v6185, 1.0
        %v6187 = vrcp.pop %v6186
        %v6188 = vmul.f32 %v6186, %v6187
        %v6189 = vsub.f32 1.0, %v6188
        %v6190 = vmul.f32 %v6187, %v6189
        %v6191 = vadd.f32 %v6187, %v6190
        %vm6192 = vweird.f32 %v6186
        %vm6193 = vweird.f32 %v6187
        %vm6194 = vmor %vm6192, %vm6193
        %v6195 = vsel %vm6194, %v6187, %v6191
        %v6196 = vand.u32 2147483647, %v6186
        %vm6197 = vcmp.eq.f32.partialorder %v6196, 8.507059e+37
        %v6198 = vand.u32 %v6186, 2147483648
        %v6199 = vor.u32 1.1754944e-38, %v6198
        %v6200 = vsel %vm6197, %v6199, %v6195
        %v6201 = vmul.f32 %v6176, %v6200
        %v6202 = vmin.f32 %v6201, 1.0
        %v6203 = vmax.f32 %v6202, -1.0
        %v6204 = vmul.f32 %v615, %v615
        %v6205 = vmin.f32 16.0, %v6204
        %v6206 = vmul.f32 %v6205, 2.1237322e-06
        %v6207 = vadd.f32 %v6206, 0.00028619796
        %v6208 = vmul.f32 %v6205, %v6207
        %v6209 = vadd.f32 %v6208, 0.0036580483
        %v6210 = vmul.f32 %v6205, %v6209
        %v6211 = vadd.f32 %v6210, 0.05243302
        %v6212 = vmul.f32 %v6205, %v6211
        %v6213 = vadd.f32 %v6212, 0.18741608
        %v6214 = vmul.f32 %v6205, %v6213
        %v6215 = vadd.f32 %v6214, 1.1283791
        %v6216 = vmul.f32 %v615, %v6215
        %v6217 = vmul.f32 %v6205, 3.8918573e-05
        %v6218 = vadd.f32 %v6217, 0.001143296
        %v6219 = vmul.f32 %v6205, %v6218
        %v6220 = vadd.f32 %v6219, 0.014752088
        %v6221 = vmul.f32 %v6205, %v6220
        %v6222 = vadd.f32 %v6221, 0.112945676
        %v6223 = vmul.f32 %v6205, %v6222
        %v6224 = vadd.f32 %v6223, 0.4994258
        %v6225 = vmul.f32 %v6205, %v6224
        %v6226 = vadd.f32 %v6225, 1.0
        %v6227 = vrcp.pop %v6226
        %v6228 = vmul.f32 %v6226, %v6227
        %v6229 = vsub.f32 1.0, %v6228
        %v6230 = vmul.f32 %v6227, %v6229
        %v6231 = vadd.f32 %v6227, %v6230
        %vm6232 = vweird.f32 %v6226
        %vm6233 = vweird.f32 %v6227
        %vm6234 = vmor %vm6232, %vm6233
        %v6235 = vsel %vm6234, %v6227, %v6231
        %v6236 = vand.u32 2147483647, %v6226
        %vm6237 = vcmp.eq.f32.partialorder %v6236, 8.507059e+37
        %v6238 = vand.u32 %v6226, 2147483648
        %v6239 = vor.u32 1.1754944e-38, %v6238
        %v6240 = vsel %vm6237, %v6239, %v6235
        %v6241 = vmul.f32 %v6216, %v6240
        %v6242 = vmin.f32 %v6241, 1.0
        %v6243 = vmax.f32 %v6242, -1.0
        %v6244 = vmul.f32 %v616, %v616
        %v6245 = vmin.f32 16.0, %v6244
        %v6246 = vmul.f32 %v6245, 2.1237322e-06
        %v6247 = vadd.f32 %v6246, 0.00028619796
        %v6248 = vmul.f32 %v6245, %v6247
        %v6249 = vadd.f32 %v6248, 0.0036580483
        %v6250 = vmul.f32 %v6245, %v6249
        %v6251 = vadd.f32 %v6250, 0.05243302
        %v6252 = vmul.f32 %v6245, %v6251
        %v6253 = vadd.f32 %v6252, 0.18741608
        %v6254 = vmul.f32 %v6245, %v6253
        %v6255 = vadd.f32 %v6254, 1.1283791
        %v6256 = vmul.f32 %v616, %v6255
        %v6257 = vmul.f32 %v6245, 3.8918573e-05
        %v6258 = vadd.f32 %v6257, 0.001143296
        %v6259 = vmul.f32 %v6245, %v6258
        %v6260 = vadd.f32 %v6259, 0.014752088
        %v6261 = vmul.f32 %v6245, %v6260
        %v6262 = vadd.f32 %v6261, 0.112945676
        %v6263 = vmul.f32 %v6245, %v6262
        %v6264 = vadd.f32 %v6263, 0.4994258
        %v6265 = vmul.f32 %v6245, %v6264
        %v6266 = vadd.f32 %v6265, 1.0
        %v6267 = vrcp.pop %v6266
        %v6268 = vmul.f32 %v6266, %v6267
        %v6269 = vsub.f32 1.0, %v6268
        %v6270 = vmul.f32 %v6267, %v6269
        %v6271 = vadd.f32 %v6267, %v6270
        %vm6272 = vweird.f32 %v6266
        %vm6273 = vweird.f32 %v6267
        %vm6274 = vmor %vm6272, %vm6273
        %v6275 = vsel %vm6274, %v6267, %v6271
        %v6276 = vand.u32 2147483647, %v6266
        %vm6277 = vcmp.eq.f32.partialorder %v6276, 8.507059e+37
        %v6278 = vand.u32 %v6266, 2147483648
        %v6279 = vor.u32 1.1754944e-38, %v6278
        %v6280 = vsel %vm6277, %v6279, %v6275
        %v6281 = vmul.f32 %v6256, %v6280
        %v6282 = vmin.f32 %v6281, 1.0
        %v6283 = vmax.f32 %v6282, -1.0
        %v6284 = vmul.f32 %v617, %v617
        %v6285 = vmin.f32 16.0, %v6284
        %v6286 = vmul.f32 %v6285, 2.1237322e-06
        %v6287 = vadd.f32 %v6286, 0.00028619796
        %v6288 = vmul.f32 %v6285, %v6287
        %v6289 = vadd.f32 %v6288, 0.0036580483
        %v6290 = vmul.f32 %v6285, %v6289
        %v6291 = vadd.f32 %v6290, 0.05243302
        %v6292 = vmul.f32 %v6285, %v6291
        %v6293 = vadd.f32 %v6292, 0.18741608
        %v6294 = vmul.f32 %v6285, %v6293
        %v6295 = vadd.f32 %v6294, 1.1283791
        %v6296 = vmul.f32 %v617, %v6295
        %v6297 = vmul.f32 %v6285, 3.8918573e-05
        %v6298 = vadd.f32 %v6297, 0.001143296
        %v6299 = vmul.f32 %v6285, %v6298
        %v6300 = vadd.f32 %v6299, 0.014752088
        %v6301 = vmul.f32 %v6285, %v6300
        %v6302 = vadd.f32 %v6301, 0.112945676
        %v6303 = vmul.f32 %v6285, %v6302
        %v6304 = vadd.f32 %v6303, 0.4994258
        %v6305 = vmul.f32 %v6285, %v6304
        %v6306 = vadd.f32 %v6305, 1.0
        %v6307 = vrcp.pop %v6306
        %v6308 = vmul.f32 %v6306, %v6307
        %v6309 = vsub.f32 1.0, %v6308
        %v6310 = vmul.f32 %v6307, %v6309
        %v6311 = vadd.f32 %v6307, %v6310
        %vm6312 = vweird.f32 %v6306
        %vm6313 = vweird.f32 %v6307
        %vm6314 = vmor %vm6312, %vm6313
        %v6315 = vsel %vm6314, %v6307, %v6311
        %v6316 = vand.u32 2147483647, %v6306
        %vm6317 = vcmp.eq.f32.partialorder %v6316, 8.507059e+37
        %v6318 = vand.u32 %v6306, 2147483648
        %v6319 = vor.u32 1.1754944e-38, %v6318
        %v6320 = vsel %vm6317, %v6319, %v6315
        %v6321 = vmul.f32 %v6296, %v6320
        %v6322 = vmin.f32 %v6321, 1.0
        %v6323 = vmax.f32 %v6322, -1.0
        %v6324 = vmul.f32 %v618, %v618
        %v6325 = vmin.f32 16.0, %v6324
        %v6326 = vmul.f32 %v6325, 2.1237322e-06
        %v6327 = vadd.f32 %v6326, 0.00028619796
        %v6328 = vmul.f32 %v6325, %v6327
        %v6329 = vadd.f32 %v6328, 0.0036580483
        %v6330 = vmul.f32 %v6325, %v6329
        %v6331 = vadd.f32 %v6330, 0.05243302
        %v6332 = vmul.f32 %v6325, %v6331
        %v6333 = vadd.f32 %v6332, 0.18741608
        %v6334 = vmul.f32 %v6325, %v6333
        %v6335 = vadd.f32 %v6334, 1.1283791
        %v6336 = vmul.f32 %v618, %v6335
        %v6337 = vmul.f32 %v6325, 3.8918573e-05
        %v6338 = vadd.f32 %v6337, 0.001143296
        %v6339 = vmul.f32 %v6325, %v6338
        %v6340 = vadd.f32 %v6339, 0.014752088
        %v6341 = vmul.f32 %v6325, %v6340
        %v6342 = vadd.f32 %v6341, 0.112945676
        %v6343 = vmul.f32 %v6325, %v6342
        %v6344 = vadd.f32 %v6343, 0.4994258
        %v6345 = vmul.f32 %v6325, %v6344
        %v6346 = vadd.f32 %v6345, 1.0
        %v6347 = vrcp.pop %v6346
        %v6348 = vmul.f32 %v6346, %v6347
        %v6349 = vsub.f32 1.0, %v6348
        %v6350 = vmul.f32 %v6347, %v6349
        %v6351 = vadd.f32 %v6347, %v6350
        %vm6352 = vweird.f32 %v6346
        %vm6353 = vweird.f32 %v6347
        %vm6354 = vmor %vm6352, %vm6353
        %v6355 = vsel %vm6354, %v6347, %v6351
        %v6356 = vand.u32 2147483647, %v6346
        %vm6357 = vcmp.eq.f32.partialorder %v6356, 8.507059e+37
        %v6358 = vand.u32 %v6346, 2147483648
        %v6359 = vor.u32 1.1754944e-38, %v6358
        %v6360 = vsel %vm6357, %v6359, %v6355
        %v6361 = vmul.f32 %v6336, %v6360
        %v6362 = vmin.f32 %v6361, 1.0
        %v6363 = vmax.f32 %v6362, -1.0
        %v6364 = vmul.f32 %v619, %v619
        %v6365 = vmin.f32 16.0, %v6364
        %v6366 = vmul.f32 %v6365, 2.1237322e-06
        %v6367 = vadd.f32 %v6366, 0.00028619796
        %v6368 = vmul.f32 %v6365, %v6367
        %v6369 = vadd.f32 %v6368, 0.0036580483
        %v6370 = vmul.f32 %v6365, %v6369
        %v6371 = vadd.f32 %v6370, 0.05243302
        %v6372 = vmul.f32 %v6365, %v6371
        %v6373 = vadd.f32 %v6372, 0.18741608
        %v6374 = vmul.f32 %v6365, %v6373
        %v6375 = vadd.f32 %v6374, 1.1283791
        %v6376 = vmul.f32 %v619, %v6375
        %v6377 = vmul.f32 %v6365, 3.8918573e-05
        %v6378 = vadd.f32 %v6377, 0.001143296
        %v6379 = vmul.f32 %v6365, %v6378
        %v6380 = vadd.f32 %v6379, 0.014752088
        %v6381 = vmul.f32 %v6365, %v6380
        %v6382 = vadd.f32 %v6381, 0.112945676
        %v6383 = vmul.f32 %v6365, %v6382
        %v6384 = vadd.f32 %v6383, 0.4994258
        %v6385 = vmul.f32 %v6365, %v6384
        %v6386 = vadd.f32 %v6385, 1.0
        %v6387 = vrcp.pop %v6386
        %v6388 = vmul.f32 %v6386, %v6387
        %v6389 = vsub.f32 1.0, %v6388
        %v6390 = vmul.f32 %v6387, %v6389
        %v6391 = vadd.f32 %v6387, %v6390
        %vm6392 = vweird.f32 %v6386
        %vm6393 = vweird.f32 %v6387
        %vm6394 = vmor %vm6392, %vm6393
        %v6395 = vsel %vm6394, %v6387, %v6391
        %v6396 = vand.u32 2147483647, %v6386
        %vm6397 = vcmp.eq.f32.partialorder %v6396, 8.507059e+37
        %v6398 = vand.u32 %v6386, 2147483648
        %v6399 = vor.u32 1.1754944e-38, %v6398
        %v6400 = vsel %vm6397, %v6399, %v6395
        %v6401 = vmul.f32 %v6376, %v6400
        %v6402 = vmin.f32 %v6401, 1.0
        %v6403 = vmax.f32 %v6402, -1.0
        %v6404 = vmul.f32 %v620, %v620
        %v6405 = vmin.f32 16.0, %v6404
        %v6406 = vmul.f32 %v6405, 2.1237322e-06
        %v6407 = vadd.f32 %v6406, 0.00028619796
        %v6408 = vmul.f32 %v6405, %v6407
        %v6409 = vadd.f32 %v6408, 0.0036580483
        %v6410 = vmul.f32 %v6405, %v6409
        %v6411 = vadd.f32 %v6410, 0.05243302
        %v6412 = vmul.f32 %v6405, %v6411
        %v6413 = vadd.f32 %v6412, 0.18741608
        %v6414 = vmul.f32 %v6405, %v6413
        %v6415 = vadd.f32 %v6414, 1.1283791
        %v6416 = vmul.f32 %v620, %v6415
        %v6417 = vmul.f32 %v6405, 3.8918573e-05
        %v6418 = vadd.f32 %v6417, 0.001143296
        %v6419 = vmul.f32 %v6405, %v6418
        %v6420 = vadd.f32 %v6419, 0.014752088
        %v6421 = vmul.f32 %v6405, %v6420
        %v6422 = vadd.f32 %v6421, 0.112945676
        %v6423 = vmul.f32 %v6405, %v6422
        %v6424 = vadd.f32 %v6423, 0.4994258
        %v6425 = vmul.f32 %v6405, %v6424
        %v6426 = vadd.f32 %v6425, 1.0
        %v6427 = vrcp.pop %v6426
        %v6428 = vmul.f32 %v6426, %v6427
        %v6429 = vsub.f32 1.0, %v6428
        %v6430 = vmul.f32 %v6427, %v6429
        %v6431 = vadd.f32 %v6427, %v6430
        %vm6432 = vweird.f32 %v6426
        %vm6433 = vweird.f32 %v6427
        %vm6434 = vmor %vm6432, %vm6433
        %v6435 = vsel %vm6434, %v6427, %v6431
        %v6436 = vand.u32 2147483647, %v6426
        %vm6437 = vcmp.eq.f32.partialorder %v6436, 8.507059e+37
        %v6438 = vand.u32 %v6426, 2147483648
        %v6439 = vor.u32 1.1754944e-38, %v6438
        %v6440 = vsel %vm6437, %v6439, %v6435
        %v6441 = vmul.f32 %v6416, %v6440
        %v6442 = vmin.f32 %v6441, 1.0
        %v6443 = vmax.f32 %v6442, -1.0
        %v6444 = vmul.f32 %v621, %v621
        %v6445 = vmin.f32 16.0, %v6444
        %v6446 = vmul.f32 %v6445, 2.1237322e-06
        %v6447 = vadd.f32 %v6446, 0.00028619796
        %v6448 = vmul.f32 %v6445, %v6447
        %v6449 = vadd.f32 %v6448, 0.0036580483
        %v6450 = vmul.f32 %v6445, %v6449
        %v6451 = vadd.f32 %v6450, 0.05243302
        %v6452 = vmul.f32 %v6445, %v6451
        %v6453 = vadd.f32 %v6452, 0.18741608
        %v6454 = vmul.f32 %v6445, %v6453
        %v6455 = vadd.f32 %v6454, 1.1283791
        %v6456 = vmul.f32 %v621, %v6455
        %v6457 = vmul.f32 %v6445, 3.8918573e-05
        %v6458 = vadd.f32 %v6457, 0.001143296
        %v6459 = vmul.f32 %v6445, %v6458
        %v6460 = vadd.f32 %v6459, 0.014752088
        %v6461 = vmul.f32 %v6445, %v6460
        %v6462 = vadd.f32 %v6461, 0.112945676
        %v6463 = vmul.f32 %v6445, %v6462
        %v6464 = vadd.f32 %v6463, 0.4994258
        %v6465 = vmul.f32 %v6445, %v6464
        %v6466 = vadd.f32 %v6465, 1.0
        %v6467 = vrcp.pop %v6466
        %v6468 = vmul.f32 %v6466, %v6467
        %v6469 = vsub.f32 1.0, %v6468
        %v6470 = vmul.f32 %v6467, %v6469
        %v6471 = vadd.f32 %v6467, %v6470
        %vm6472 = vweird.f32 %v6466
        %vm6473 = vweird.f32 %v6467
        %vm6474 = vmor %vm6472, %vm6473
        %v6475 = vsel %vm6474, %v6467, %v6471
        %v6476 = vand.u32 2147483647, %v6466
        %vm6477 = vcmp.eq.f32.partialorder %v6476, 8.507059e+37
        %v6478 = vand.u32 %v6466, 2147483648
        %v6479 = vor.u32 1.1754944e-38, %v6478
        %v6480 = vsel %vm6477, %v6479, %v6475
        %v6481 = vmul.f32 %v6456, %v6480
        %v6482 = vmin.f32 %v6481, 1.0
        %v6483 = vmax.f32 %v6482, -1.0
        %v6484 = vmul.f32 %v622, %v622
        %v6485 = vmin.f32 16.0, %v6484
        %v6486 = vmul.f32 %v6485, 2.1237322e-06
        %v6487 = vadd.f32 %v6486, 0.00028619796
        %v6488 = vmul.f32 %v6485, %v6487
        %v6489 = vadd.f32 %v6488, 0.0036580483
        %v6490 = vmul.f32 %v6485, %v6489
        %v6491 = vadd.f32 %v6490, 0.05243302
        %v6492 = vmul.f32 %v6485, %v6491
        %v6493 = vadd.f32 %v6492, 0.18741608
        %v6494 = vmul.f32 %v6485, %v6493
        %v6495 = vadd.f32 %v6494, 1.1283791
        %v6496 = vmul.f32 %v622, %v6495
        %v6497 = vmul.f32 %v6485, 3.8918573e-05
        %v6498 = vadd.f32 %v6497, 0.001143296
        %v6499 = vmul.f32 %v6485, %v6498
        %v6500 = vadd.f32 %v6499, 0.014752088
        %v6501 = vmul.f32 %v6485, %v6500
        %v6502 = vadd.f32 %v6501, 0.112945676
        %v6503 = vmul.f32 %v6485, %v6502
        %v6504 = vadd.f32 %v6503, 0.4994258
        %v6505 = vmul.f32 %v6485, %v6504
        %v6506 = vadd.f32 %v6505, 1.0
        %v6507 = vrcp.pop %v6506
        %v6508 = vmul.f32 %v6506, %v6507
        %v6509 = vsub.f32 1.0, %v6508
        %v6510 = vmul.f32 %v6507, %v6509
        %v6511 = vadd.f32 %v6507, %v6510
        %vm6512 = vweird.f32 %v6506
        %vm6513 = vweird.f32 %v6507
        %vm6514 = vmor %vm6512, %vm6513
        %v6515 = vsel %vm6514, %v6507, %v6511
        %v6516 = vand.u32 2147483647, %v6506
        %vm6517 = vcmp.eq.f32.partialorder %v6516, 8.507059e+37
        %v6518 = vand.u32 %v6506, 2147483648
        %v6519 = vor.u32 1.1754944e-38, %v6518
        %v6520 = vsel %vm6517, %v6519, %v6515
        %v6521 = vmul.f32 %v6496, %v6520
        %v6522 = vmin.f32 %v6521, 1.0
        %v6523 = vmax.f32 %v6522, -1.0
        %v6524 = vmul.f32 %v623, %v623
        %v6525 = vmin.f32 16.0, %v6524
        %v6526 = vmul.f32 %v6525, 2.1237322e-06
        %v6527 = vadd.f32 %v6526, 0.00028619796
        %v6528 = vmul.f32 %v6525, %v6527
        %v6529 = vadd.f32 %v6528, 0.0036580483
        %v6530 = vmul.f32 %v6525, %v6529
        %v6531 = vadd.f32 %v6530, 0.05243302
        %v6532 = vmul.f32 %v6525, %v6531
        %v6533 = vadd.f32 %v6532, 0.18741608
        %v6534 = vmul.f32 %v6525, %v6533
        %v6535 = vadd.f32 %v6534, 1.1283791
        %v6536 = vmul.f32 %v623, %v6535
        %v6537 = vmul.f32 %v6525, 3.8918573e-05
        %v6538 = vadd.f32 %v6537, 0.001143296
        %v6539 = vmul.f32 %v6525, %v6538
        %v6540 = vadd.f32 %v6539, 0.014752088
        %v6541 = vmul.f32 %v6525, %v6540
        %v6542 = vadd.f32 %v6541, 0.112945676
        %v6543 = vmul.f32 %v6525, %v6542
        %v6544 = vadd.f32 %v6543, 0.4994258
        %v6545 = vmul.f32 %v6525, %v6544
        %v6546 = vadd.f32 %v6545, 1.0
        %v6547 = vrcp.pop %v6546
        %v6548 = vmul.f32 %v6546, %v6547
        %v6549 = vsub.f32 1.0, %v6548
        %v6550 = vmul.f32 %v6547, %v6549
        %v6551 = vadd.f32 %v6547, %v6550
        %vm6552 = vweird.f32 %v6546
        %vm6553 = vweird.f32 %v6547
        %vm6554 = vmor %vm6552, %vm6553
        %v6555 = vsel %vm6554, %v6547, %v6551
        %v6556 = vand.u32 2147483647, %v6546
        %vm6557 = vcmp.eq.f32.partialorder %v6556, 8.507059e+37
        %v6558 = vand.u32 %v6546, 2147483648
        %v6559 = vor.u32 1.1754944e-38, %v6558
        %v6560 = vsel %vm6557, %v6559, %v6555
        %v6561 = vmul.f32 %v6536, %v6560
        %v6562 = vmin.f32 %v6561, 1.0
        %v6563 = vmax.f32 %v6562, -1.0
        %v6564 = vmul.f32 %v624, %v624
        %v6565 = vmin.f32 16.0, %v6564
        %v6566 = vmul.f32 %v6565, 2.1237322e-06
        %v6567 = vadd.f32 %v6566, 0.00028619796
        %v6568 = vmul.f32 %v6565, %v6567
        %v6569 = vadd.f32 %v6568, 0.0036580483
        %v6570 = vmul.f32 %v6565, %v6569
        %v6571 = vadd.f32 %v6570, 0.05243302
        %v6572 = vmul.f32 %v6565, %v6571
        %v6573 = vadd.f32 %v6572, 0.18741608
        %v6574 = vmul.f32 %v6565, %v6573
        %v6575 = vadd.f32 %v6574, 1.1283791
        %v6576 = vmul.f32 %v624, %v6575
        %v6577 = vmul.f32 %v6565, 3.8918573e-05
        %v6578 = vadd.f32 %v6577, 0.001143296
        %v6579 = vmul.f32 %v6565, %v6578
        %v6580 = vadd.f32 %v6579, 0.014752088
        %v6581 = vmul.f32 %v6565, %v6580
        %v6582 = vadd.f32 %v6581, 0.112945676
        %v6583 = vmul.f32 %v6565, %v6582
        %v6584 = vadd.f32 %v6583, 0.4994258
        %v6585 = vmul.f32 %v6565, %v6584
        %v6586 = vadd.f32 %v6585, 1.0
        %v6587 = vrcp.pop %v6586
        %v6588 = vmul.f32 %v6586, %v6587
        %v6589 = vsub.f32 1.0, %v6588
        %v6590 = vmul.f32 %v6587, %v6589
        %v6591 = vadd.f32 %v6587, %v6590
        %vm6592 = vweird.f32 %v6586
        %vm6593 = vweird.f32 %v6587
        %vm6594 = vmor %vm6592, %vm6593
        %v6595 = vsel %vm6594, %v6587, %v6591
        %v6596 = vand.u32 2147483647, %v6586
        %vm6597 = vcmp.eq.f32.partialorder %v6596, 8.507059e+37
        %v6598 = vand.u32 %v6586, 2147483648
        %v6599 = vor.u32 1.1754944e-38, %v6598
        %v6600 = vsel %vm6597, %v6599, %v6595
        %v6601 = vmul.f32 %v6576, %v6600
        %v6602 = vmin.f32 %v6601, 1.0
        %v6603 = vmax.f32 %v6602, -1.0
        %v6604 = vmul.f32 %v625, %v625
        %v6605 = vmin.f32 16.0, %v6604
        %v6606 = vmul.f32 %v6605, 2.1237322e-06
        %v6607 = vadd.f32 %v6606, 0.00028619796
        %v6608 = vmul.f32 %v6605, %v6607
        %v6609 = vadd.f32 %v6608, 0.0036580483
        %v6610 = vmul.f32 %v6605, %v6609
        %v6611 = vadd.f32 %v6610, 0.05243302
        %v6612 = vmul.f32 %v6605, %v6611
        %v6613 = vadd.f32 %v6612, 0.18741608
        %v6614 = vmul.f32 %v6605, %v6613
        %v6615 = vadd.f32 %v6614, 1.1283791
        %v6616 = vmul.f32 %v625, %v6615
        %v6617 = vmul.f32 %v6605, 3.8918573e-05
        %v6618 = vadd.f32 %v6617, 0.001143296
        %v6619 = vmul.f32 %v6605, %v6618
        %v6620 = vadd.f32 %v6619, 0.014752088
        %v6621 = vmul.f32 %v6605, %v6620
        %v6622 = vadd.f32 %v6621, 0.112945676
        %v6623 = vmul.f32 %v6605, %v6622
        %v6624 = vadd.f32 %v6623, 0.4994258
        %v6625 = vmul.f32 %v6605, %v6624
        %v6626 = vadd.f32 %v6625, 1.0
        %v6627 = vrcp.pop %v6626
        %v6628 = vmul.f32 %v6626, %v6627
        %v6629 = vsub.f32 1.0, %v6628
        %v6630 = vmul.f32 %v6627, %v6629
        %v6631 = vadd.f32 %v6627, %v6630
        %vm6632 = vweird.f32 %v6626
        %vm6633 = vweird.f32 %v6627
        %vm6634 = vmor %vm6632, %vm6633
        %v6635 = vsel %vm6634, %v6627, %v6631
        %v6636 = vand.u32 2147483647, %v6626
        %vm6637 = vcmp.eq.f32.partialorder %v6636, 8.507059e+37
        %v6638 = vand.u32 %v6626, 2147483648
        %v6639 = vor.u32 1.1754944e-38, %v6638
        %v6640 = vsel %vm6637, %v6639, %v6635
        %v6641 = vmul.f32 %v6616, %v6640
        %v6642 = vmin.f32 %v6641, 1.0
        %v6643 = vmax.f32 %v6642, -1.0
        %v6644 = vmul.f32 %v626, %v626
        %v6645 = vmin.f32 16.0, %v6644
        %v6646 = vmul.f32 %v6645, 2.1237322e-06
        %v6647 = vadd.f32 %v6646, 0.00028619796
        %v6648 = vmul.f32 %v6645, %v6647
        %v6649 = vadd.f32 %v6648, 0.0036580483
        %v6650 = vmul.f32 %v6645, %v6649
        %v6651 = vadd.f32 %v6650, 0.05243302
        %v6652 = vmul.f32 %v6645, %v6651
        %v6653 = vadd.f32 %v6652, 0.18741608
        %v6654 = vmul.f32 %v6645, %v6653
        %v6655 = vadd.f32 %v6654, 1.1283791
        %v6656 = vmul.f32 %v626, %v6655
        %v6657 = vmul.f32 %v6645, 3.8918573e-05
        %v6658 = vadd.f32 %v6657, 0.001143296
        %v6659 = vmul.f32 %v6645, %v6658
        %v6660 = vadd.f32 %v6659, 0.014752088
        %v6661 = vmul.f32 %v6645, %v6660
        %v6662 = vadd.f32 %v6661, 0.112945676
        %v6663 = vmul.f32 %v6645, %v6662
        %v6664 = vadd.f32 %v6663, 0.4994258
        %v6665 = vmul.f32 %v6645, %v6664
        %v6666 = vadd.f32 %v6665, 1.0
        %v6667 = vrcp.pop %v6666
        %v6668 = vmul.f32 %v6666, %v6667
        %v6669 = vsub.f32 1.0, %v6668
        %v6670 = vmul.f32 %v6667, %v6669
        %v6671 = vadd.f32 %v6667, %v6670
        %vm6672 = vweird.f32 %v6666
        %vm6673 = vweird.f32 %v6667
        %vm6674 = vmor %vm6672, %vm6673
        %v6675 = vsel %vm6674, %v6667, %v6671
        %v6676 = vand.u32 2147483647, %v6666
        %vm6677 = vcmp.eq.f32.partialorder %v6676, 8.507059e+37
        %v6678 = vand.u32 %v6666, 2147483648
        %v6679 = vor.u32 1.1754944e-38, %v6678
        %v6680 = vsel %vm6677, %v6679, %v6675
        %v6681 = vmul.f32 %v6656, %v6680
        %v6682 = vmin.f32 %v6681, 1.0
        %v6683 = vmax.f32 %v6682, -1.0
        %v6684 = vmul.f32 %v627, %v627
        %v6685 = vmin.f32 16.0, %v6684
        %v6686 = vmul.f32 %v6685, 2.1237322e-06
        %v6687 = vadd.f32 %v6686, 0.00028619796
        %v6688 = vmul.f32 %v6685, %v6687
        %v6689 = vadd.f32 %v6688, 0.0036580483
        %v6690 = vmul.f32 %v6685, %v6689
        %v6691 = vadd.f32 %v6690, 0.05243302
        %v6692 = vmul.f32 %v6685, %v6691
        %v6693 = vadd.f32 %v6692, 0.18741608
        %v6694 = vmul.f32 %v6685, %v6693
        %v6695 = vadd.f32 %v6694, 1.1283791
        %v6696 = vmul.f32 %v627, %v6695
        %v6697 = vmul.f32 %v6685, 3.8918573e-05
        %v6698 = vadd.f32 %v6697, 0.001143296
        %v6699 = vmul.f32 %v6685, %v6698
        %v6700 = vadd.f32 %v6699, 0.014752088
        %v6701 = vmul.f32 %v6685, %v6700
        %v6702 = vadd.f32 %v6701, 0.112945676
        %v6703 = vmul.f32 %v6685, %v6702
        %v6704 = vadd.f32 %v6703, 0.4994258
        %v6705 = vmul.f32 %v6685, %v6704
        %v6706 = vadd.f32 %v6705, 1.0
        %v6707 = vrcp.pop %v6706
        %v6708 = vmul.f32 %v6706, %v6707
        %v6709 = vsub.f32 1.0, %v6708
        %v6710 = vmul.f32 %v6707, %v6709
        %v6711 = vadd.f32 %v6707, %v6710
        %vm6712 = vweird.f32 %v6706
        %vm6713 = vweird.f32 %v6707
        %vm6714 = vmor %vm6712, %vm6713
        %v6715 = vsel %vm6714, %v6707, %v6711
        %v6716 = vand.u32 2147483647, %v6706
        %vm6717 = vcmp.eq.f32.partialorder %v6716, 8.507059e+37
        %v6718 = vand.u32 %v6706, 2147483648
        %v6719 = vor.u32 1.1754944e-38, %v6718
        %v6720 = vsel %vm6717, %v6719, %v6715
        %v6721 = vmul.f32 %v6696, %v6720
        %v6722 = vmin.f32 %v6721, 1.0
        %v6723 = vmax.f32 %v6722, -1.0
        %v6724 = vmul.f32 %v628, %v628
        %v6725 = vmin.f32 16.0, %v6724
        %v6726 = vmul.f32 %v6725, 2.1237322e-06
        %v6727 = vadd.f32 %v6726, 0.00028619796
        %v6728 = vmul.f32 %v6725, %v6727
        %v6729 = vadd.f32 %v6728, 0.0036580483
        %v6730 = vmul.f32 %v6725, %v6729
        %v6731 = vadd.f32 %v6730, 0.05243302
        %v6732 = vmul.f32 %v6725, %v6731
        %v6733 = vadd.f32 %v6732, 0.18741608
        %v6734 = vmul.f32 %v6725, %v6733
        %v6735 = vadd.f32 %v6734, 1.1283791
        %v6736 = vmul.f32 %v628, %v6735
        %v6737 = vmul.f32 %v6725, 3.8918573e-05
        %v6738 = vadd.f32 %v6737, 0.001143296
        %v6739 = vmul.f32 %v6725, %v6738
        %v6740 = vadd.f32 %v6739, 0.014752088
        %v6741 = vmul.f32 %v6725, %v6740
        %v6742 = vadd.f32 %v6741, 0.112945676
        %v6743 = vmul.f32 %v6725, %v6742
        %v6744 = vadd.f32 %v6743, 0.4994258
        %v6745 = vmul.f32 %v6725, %v6744
        %v6746 = vadd.f32 %v6745, 1.0
        %v6747 = vrcp.pop %v6746
        %v6748 = vmul.f32 %v6746, %v6747
        %v6749 = vsub.f32 1.0, %v6748
        %v6750 = vmul.f32 %v6747, %v6749
        %v6751 = vadd.f32 %v6747, %v6750
        %vm6752 = vweird.f32 %v6746
        %vm6753 = vweird.f32 %v6747
        %vm6754 = vmor %vm6752, %vm6753
        %v6755 = vsel %vm6754, %v6747, %v6751
        %v6756 = vand.u32 2147483647, %v6746
        %vm6757 = vcmp.eq.f32.partialorder %v6756, 8.507059e+37
        %v6758 = vand.u32 %v6746, 2147483648
        %v6759 = vor.u32 1.1754944e-38, %v6758
        %v6760 = vsel %vm6757, %v6759, %v6755
        %v6761 = vmul.f32 %v6736, %v6760
        %v6762 = vmin.f32 %v6761, 1.0
        %v6763 = vmax.f32 %v6762, -1.0
        %v6764 = vmul.f32 %v629, %v629
        %v6765 = vmin.f32 16.0, %v6764
        %v6766 = vmul.f32 %v6765, 2.1237322e-06
        %v6767 = vadd.f32 %v6766, 0.00028619796
        %v6768 = vmul.f32 %v6765, %v6767
        %v6769 = vadd.f32 %v6768, 0.0036580483
        %v6770 = vmul.f32 %v6765, %v6769
        %v6771 = vadd.f32 %v6770, 0.05243302
        %v6772 = vmul.f32 %v6765, %v6771
        %v6773 = vadd.f32 %v6772, 0.18741608
        %v6774 = vmul.f32 %v6765, %v6773
        %v6775 = vadd.f32 %v6774, 1.1283791
        %v6776 = vmul.f32 %v629, %v6775
        %v6777 = vmul.f32 %v6765, 3.8918573e-05
        %v6778 = vadd.f32 %v6777, 0.001143296
        %v6779 = vmul.f32 %v6765, %v6778
        %v6780 = vadd.f32 %v6779, 0.014752088
        %v6781 = vmul.f32 %v6765, %v6780
        %v6782 = vadd.f32 %v6781, 0.112945676
        %v6783 = vmul.f32 %v6765, %v6782
        %v6784 = vadd.f32 %v6783, 0.4994258
        %v6785 = vmul.f32 %v6765, %v6784
        %v6786 = vadd.f32 %v6785, 1.0
        %v6787 = vrcp.pop %v6786
        %v6788 = vmul.f32 %v6786, %v6787
        %v6789 = vsub.f32 1.0, %v6788
        %v6790 = vmul.f32 %v6787, %v6789
        %v6791 = vadd.f32 %v6787, %v6790
        %vm6792 = vweird.f32 %v6786
        %vm6793 = vweird.f32 %v6787
        %vm6794 = vmor %vm6792, %vm6793
        %v6795 = vsel %vm6794, %v6787, %v6791
        %v6796 = vand.u32 2147483647, %v6786
        %vm6797 = vcmp.eq.f32.partialorder %v6796, 8.507059e+37
        %v6798 = vand.u32 %v6786, 2147483648
        %v6799 = vor.u32 1.1754944e-38, %v6798
        %v6800 = vsel %vm6797, %v6799, %v6795
        %v6801 = vmul.f32 %v6776, %v6800
        %v6802 = vmin.f32 %v6801, 1.0
        %v6803 = vmax.f32 %v6802, -1.0
        %v6804 = vmul.f32 %v630, %v630
        %v6805 = vmin.f32 16.0, %v6804
        %v6806 = vmul.f32 %v6805, 2.1237322e-06
        %v6807 = vadd.f32 %v6806, 0.00028619796
        %v6808 = vmul.f32 %v6805, %v6807
        %v6809 = vadd.f32 %v6808, 0.0036580483
        %v6810 = vmul.f32 %v6805, %v6809
        %v6811 = vadd.f32 %v6810, 0.05243302
        %v6812 = vmul.f32 %v6805, %v6811
        %v6813 = vadd.f32 %v6812, 0.18741608
        %v6814 = vmul.f32 %v6805, %v6813
        %v6815 = vadd.f32 %v6814, 1.1283791
        %v6816 = vmul.f32 %v630, %v6815
        %v6817 = vmul.f32 %v6805, 3.8918573e-05
        %v6818 = vadd.f32 %v6817, 0.001143296
        %v6819 = vmul.f32 %v6805, %v6818
        %v6820 = vadd.f32 %v6819, 0.014752088
        %v6821 = vmul.f32 %v6805, %v6820
        %v6822 = vadd.f32 %v6821, 0.112945676
        %v6823 = vmul.f32 %v6805, %v6822
        %v6824 = vadd.f32 %v6823, 0.4994258
        %v6825 = vmul.f32 %v6805, %v6824
        %v6826 = vadd.f32 %v6825, 1.0
        %v6827 = vrcp.pop %v6826
        %v6828 = vmul.f32 %v6826, %v6827
        %v6829 = vsub.f32 1.0, %v6828
        %v6830 = vmul.f32 %v6827, %v6829
        %v6831 = vadd.f32 %v6827, %v6830
        %vm6832 = vweird.f32 %v6826
        %vm6833 = vweird.f32 %v6827
        %vm6834 = vmor %vm6832, %vm6833
        %v6835 = vsel %vm6834, %v6827, %v6831
        %v6836 = vand.u32 2147483647, %v6826
        %vm6837 = vcmp.eq.f32.partialorder %v6836, 8.507059e+37
        %v6838 = vand.u32 %v6826, 2147483648
        %v6839 = vor.u32 1.1754944e-38, %v6838
        %v6840 = vsel %vm6837, %v6839, %v6835
        %v6841 = vmul.f32 %v6816, %v6840
        %v6842 = vmin.f32 %v6841, 1.0
        %v6843 = vmax.f32 %v6842, -1.0
        %v6844 = vmul.f32 %v631, %v631
        %v6845 = vmin.f32 16.0, %v6844
        %v6846 = vmul.f32 %v6845, 2.1237322e-06
        %v6847 = vadd.f32 %v6846, 0.00028619796
        %v6848 = vmul.f32 %v6845, %v6847
        %v6849 = vadd.f32 %v6848, 0.0036580483
        %v6850 = vmul.f32 %v6845, %v6849
        %v6851 = vadd.f32 %v6850, 0.05243302
        %v6852 = vmul.f32 %v6845, %v6851
        %v6853 = vadd.f32 %v6852, 0.18741608
        %v6854 = vmul.f32 %v6845, %v6853
        %v6855 = vadd.f32 %v6854, 1.1283791
        %v6856 = vmul.f32 %v631, %v6855
        %v6857 = vmul.f32 %v6845, 3.8918573e-05
        %v6858 = vadd.f32 %v6857, 0.001143296
        %v6859 = vmul.f32 %v6845, %v6858
        %v6860 = vadd.f32 %v6859, 0.014752088
        %v6861 = vmul.f32 %v6845, %v6860
        %v6862 = vadd.f32 %v6861, 0.112945676
        %v6863 = vmul.f32 %v6845, %v6862
        %v6864 = vadd.f32 %v6863, 0.4994258
        %v6865 = vmul.f32 %v6845, %v6864
        %v6866 = vadd.f32 %v6865, 1.0
        %v6867 = vrcp.pop %v6866
        %v6868 = vmul.f32 %v6866, %v6867
        %v6869 = vsub.f32 1.0, %v6868
        %v6870 = vmul.f32 %v6867, %v6869
        %v6871 = vadd.f32 %v6867, %v6870
        %vm6872 = vweird.f32 %v6866
        %vm6873 = vweird.f32 %v6867
        %vm6874 = vmor %vm6872, %vm6873
        %v6875 = vsel %vm6874, %v6867, %v6871
        %v6876 = vand.u32 2147483647, %v6866
        %vm6877 = vcmp.eq.f32.partialorder %v6876, 8.507059e+37
        %v6878 = vand.u32 %v6866, 2147483648
        %v6879 = vor.u32 1.1754944e-38, %v6878
        %v6880 = vsel %vm6877, %v6879, %v6875
        %v6881 = vmul.f32 %v6856, %v6880
        %v6882 = vmin.f32 %v6881, 1.0
        %v6883 = vmax.f32 %v6882, -1.0
        %v6884 = vmul.f32 %v632, %v632
        %v6885 = vmin.f32 16.0, %v6884
        %v6886 = vmul.f32 %v6885, 2.1237322e-06
        %v6887 = vadd.f32 %v6886, 0.00028619796
        %v6888 = vmul.f32 %v6885, %v6887
        %v6889 = vadd.f32 %v6888, 0.0036580483
        %v6890 = vmul.f32 %v6885, %v6889
        %v6891 = vadd.f32 %v6890, 0.05243302
        %v6892 = vmul.f32 %v6885, %v6891
        %v6893 = vadd.f32 %v6892, 0.18741608
        %v6894 = vmul.f32 %v6885, %v6893
        %v6895 = vadd.f32 %v6894, 1.1283791
        %v6896 = vmul.f32 %v632, %v6895
        %v6897 = vmul.f32 %v6885, 3.8918573e-05
        %v6898 = vadd.f32 %v6897, 0.001143296
        %v6899 = vmul.f32 %v6885, %v6898
        %v6900 = vadd.f32 %v6899, 0.014752088
        %v6901 = vmul.f32 %v6885, %v6900
        %v6902 = vadd.f32 %v6901, 0.112945676
        %v6903 = vmul.f32 %v6885, %v6902
        %v6904 = vadd.f32 %v6903, 0.4994258
        %v6905 = vmul.f32 %v6885, %v6904
        %v6906 = vadd.f32 %v6905, 1.0
        %v6907 = vrcp.pop %v6906
        %v6908 = vmul.f32 %v6906, %v6907
        %v6909 = vsub.f32 1.0, %v6908
        %v6910 = vmul.f32 %v6907, %v6909
        %v6911 = vadd.f32 %v6907, %v6910
        %vm6912 = vweird.f32 %v6906
        %vm6913 = vweird.f32 %v6907
        %vm6914 = vmor %vm6912, %vm6913
        %v6915 = vsel %vm6914, %v6907, %v6911
        %v6916 = vand.u32 2147483647, %v6906
        %vm6917 = vcmp.eq.f32.partialorder %v6916, 8.507059e+37
        %v6918 = vand.u32 %v6906, 2147483648
        %v6919 = vor.u32 1.1754944e-38, %v6918
        %v6920 = vsel %vm6917, %v6919, %v6915
        %v6921 = vmul.f32 %v6896, %v6920
        %v6922 = vmin.f32 %v6921, 1.0
        %v6923 = vmax.f32 %v6922, -1.0
        %v6924 = vmul.f32 %v633, %v633
        %v6925 = vmin.f32 16.0, %v6924
        %v6926 = vmul.f32 %v6925, 2.1237322e-06
        %v6927 = vadd.f32 %v6926, 0.00028619796
        %v6928 = vmul.f32 %v6925, %v6927
        %v6929 = vadd.f32 %v6928, 0.0036580483
        %v6930 = vmul.f32 %v6925, %v6929
        %v6931 = vadd.f32 %v6930, 0.05243302
        %v6932 = vmul.f32 %v6925, %v6931
        %v6933 = vadd.f32 %v6932, 0.18741608
        %v6934 = vmul.f32 %v6925, %v6933
        %v6935 = vadd.f32 %v6934, 1.1283791
        %v6936 = vmul.f32 %v633, %v6935
        %v6937 = vmul.f32 %v6925, 3.8918573e-05
        %v6938 = vadd.f32 %v6937, 0.001143296
        %v6939 = vmul.f32 %v6925, %v6938
        %v6940 = vadd.f32 %v6939, 0.014752088
        %v6941 = vmul.f32 %v6925, %v6940
        %v6942 = vadd.f32 %v6941, 0.112945676
        %v6943 = vmul.f32 %v6925, %v6942
        %v6944 = vadd.f32 %v6943, 0.4994258
        %v6945 = vmul.f32 %v6925, %v6944
        %v6946 = vadd.f32 %v6945, 1.0
        %v6947 = vrcp.pop %v6946
        %v6948 = vmul.f32 %v6946, %v6947
        %v6949 = vsub.f32 1.0, %v6948
        %v6950 = vmul.f32 %v6947, %v6949
        %v6951 = vadd.f32 %v6947, %v6950
        %vm6952 = vweird.f32 %v6946
        %vm6953 = vweird.f32 %v6947
        %vm6954 = vmor %vm6952, %vm6953
        %v6955 = vsel %vm6954, %v6947, %v6951
        %v6956 = vand.u32 2147483647, %v6946
        %vm6957 = vcmp.eq.f32.partialorder %v6956, 8.507059e+37
        %v6958 = vand.u32 %v6946, 2147483648
        %v6959 = vor.u32 1.1754944e-38, %v6958
        %v6960 = vsel %vm6957, %v6959, %v6955
        %v6961 = vmul.f32 %v6936, %v6960
        %v6962 = vmin.f32 %v6961, 1.0
        %v6963 = vmax.f32 %v6962, -1.0
        %v6964 = vmul.f32 %v634, %v634
        %v6965 = vmin.f32 16.0, %v6964
        %v6966 = vmul.f32 %v6965, 2.1237322e-06
        %v6967 = vadd.f32 %v6966, 0.00028619796
        %v6968 = vmul.f32 %v6965, %v6967
        %v6969 = vadd.f32 %v6968, 0.0036580483
        %v6970 = vmul.f32 %v6965, %v6969
        %v6971 = vadd.f32 %v6970, 0.05243302
        %v6972 = vmul.f32 %v6965, %v6971
        %v6973 = vadd.f32 %v6972, 0.18741608
        %v6974 = vmul.f32 %v6965, %v6973
        %v6975 = vadd.f32 %v6974, 1.1283791
        %v6976 = vmul.f32 %v634, %v6975
        %v6977 = vmul.f32 %v6965, 3.8918573e-05
        %v6978 = vadd.f32 %v6977, 0.001143296
        %v6979 = vmul.f32 %v6965, %v6978
        %v6980 = vadd.f32 %v6979, 0.014752088
        %v6981 = vmul.f32 %v6965, %v6980
        %v6982 = vadd.f32 %v6981, 0.112945676
        %v6983 = vmul.f32 %v6965, %v6982
        %v6984 = vadd.f32 %v6983, 0.4994258
        %v6985 = vmul.f32 %v6965, %v6984
        %v6986 = vadd.f32 %v6985, 1.0
        %v6987 = vrcp.pop %v6986
        %v6988 = vmul.f32 %v6986, %v6987
        %v6989 = vsub.f32 1.0, %v6988
        %v6990 = vmul.f32 %v6987, %v6989
        %v6991 = vadd.f32 %v6987, %v6990
        %vm6992 = vweird.f32 %v6986
        %vm6993 = vweird.f32 %v6987
        %vm6994 = vmor %vm6992, %vm6993
        %v6995 = vsel %vm6994, %v6987, %v6991
        %v6996 = vand.u32 2147483647, %v6986
        %vm6997 = vcmp.eq.f32.partialorder %v6996, 8.507059e+37
        %v6998 = vand.u32 %v6986, 2147483648
        %v6999 = vor.u32 1.1754944e-38, %v6998
        %v7000 = vsel %vm6997, %v6999, %v6995
        %v7001 = vmul.f32 %v6976, %v7000
        %v7002 = vmin.f32 %v7001, 1.0
        %v7003 = vmax.f32 %v7002, -1.0
        %v7004 = vmul.f32 %v635, %v635
        %v7005 = vmin.f32 16.0, %v7004
        %v7006 = vmul.f32 %v7005, 2.1237322e-06
        %v7007 = vadd.f32 %v7006, 0.00028619796
        %v7008 = vmul.f32 %v7005, %v7007
        %v7009 = vadd.f32 %v7008, 0.0036580483
        %v7010 = vmul.f32 %v7005, %v7009
        %v7011 = vadd.f32 %v7010, 0.05243302
        %v7012 = vmul.f32 %v7005, %v7011
        %v7013 = vadd.f32 %v7012, 0.18741608
        %v7014 = vmul.f32 %v7005, %v7013
        %v7015 = vadd.f32 %v7014, 1.1283791
        %v7016 = vmul.f32 %v635, %v7015
        %v7017 = vmul.f32 %v7005, 3.8918573e-05
        %v7018 = vadd.f32 %v7017, 0.001143296
        %v7019 = vmul.f32 %v7005, %v7018
        %v7020 = vadd.f32 %v7019, 0.014752088
        %v7021 = vmul.f32 %v7005, %v7020
        %v7022 = vadd.f32 %v7021, 0.112945676
        %v7023 = vmul.f32 %v7005, %v7022
        %v7024 = vadd.f32 %v7023, 0.4994258
        %v7025 = vmul.f32 %v7005, %v7024
        %v7026 = vadd.f32 %v7025, 1.0
        %v7027 = vrcp.pop %v7026
        %v7028 = vmul.f32 %v7026, %v7027
        %v7029 = vsub.f32 1.0, %v7028
        %v7030 = vmul.f32 %v7027, %v7029
        %v7031 = vadd.f32 %v7027, %v7030
        %vm7032 = vweird.f32 %v7026
        %vm7033 = vweird.f32 %v7027
        %vm7034 = vmor %vm7032, %vm7033
        %v7035 = vsel %vm7034, %v7027, %v7031
        %v7036 = vand.u32 2147483647, %v7026
        %vm7037 = vcmp.eq.f32.partialorder %v7036, 8.507059e+37
        %v7038 = vand.u32 %v7026, 2147483648
        %v7039 = vor.u32 1.1754944e-38, %v7038
        %v7040 = vsel %vm7037, %v7039, %v7035
        %v7041 = vmul.f32 %v7016, %v7040
        %v7042 = vmin.f32 %v7041, 1.0
        %v7043 = vmax.f32 %v7042, -1.0
        %v7044 = vmul.f32 %v636, %v636
        %v7045 = vmin.f32 16.0, %v7044
        %v7046 = vmul.f32 %v7045, 2.1237322e-06
        %v7047 = vadd.f32 %v7046, 0.00028619796
        %v7048 = vmul.f32 %v7045, %v7047
        %v7049 = vadd.f32 %v7048, 0.0036580483
        %v7050 = vmul.f32 %v7045, %v7049
        %v7051 = vadd.f32 %v7050, 0.05243302
        %v7052 = vmul.f32 %v7045, %v7051
        %v7053 = vadd.f32 %v7052, 0.18741608
        %v7054 = vmul.f32 %v7045, %v7053
        %v7055 = vadd.f32 %v7054, 1.1283791
        %v7056 = vmul.f32 %v636, %v7055
        %v7057 = vmul.f32 %v7045, 3.8918573e-05
        %v7058 = vadd.f32 %v7057, 0.001143296
        %v7059 = vmul.f32 %v7045, %v7058
        %v7060 = vadd.f32 %v7059, 0.014752088
        %v7061 = vmul.f32 %v7045, %v7060
        %v7062 = vadd.f32 %v7061, 0.112945676
        %v7063 = vmul.f32 %v7045, %v7062
        %v7064 = vadd.f32 %v7063, 0.4994258
        %v7065 = vmul.f32 %v7045, %v7064
        %v7066 = vadd.f32 %v7065, 1.0
        %v7067 = vrcp.pop %v7066
        %v7068 = vmul.f32 %v7066, %v7067
        %v7069 = vsub.f32 1.0, %v7068
        %v7070 = vmul.f32 %v7067, %v7069
        %v7071 = vadd.f32 %v7067, %v7070
        %vm7072 = vweird.f32 %v7066
        %vm7073 = vweird.f32 %v7067
        %vm7074 = vmor %vm7072, %vm7073
        %v7075 = vsel %vm7074, %v7067, %v7071
        %v7076 = vand.u32 2147483647, %v7066
        %vm7077 = vcmp.eq.f32.partialorder %v7076, 8.507059e+37
        %v7078 = vand.u32 %v7066, 2147483648
        %v7079 = vor.u32 1.1754944e-38, %v7078
        %v7080 = vsel %vm7077, %v7079, %v7075
        %v7081 = vmul.f32 %v7056, %v7080
        %v7082 = vmin.f32 %v7081, 1.0
        %v7083 = vmax.f32 %v7082, -1.0
        %v7084 = vmul.f32 %v637, %v637
        %v7085 = vmin.f32 16.0, %v7084
        %v7086 = vmul.f32 %v7085, 2.1237322e-06
        %v7087 = vadd.f32 %v7086, 0.00028619796
        %v7088 = vmul.f32 %v7085, %v7087
        %v7089 = vadd.f32 %v7088, 0.0036580483
        %v7090 = vmul.f32 %v7085, %v7089
        %v7091 = vadd.f32 %v7090, 0.05243302
        %v7092 = vmul.f32 %v7085, %v7091
        %v7093 = vadd.f32 %v7092, 0.18741608
        %v7094 = vmul.f32 %v7085, %v7093
        %v7095 = vadd.f32 %v7094, 1.1283791
        %v7096 = vmul.f32 %v637, %v7095
        %v7097 = vmul.f32 %v7085, 3.8918573e-05
        %v7098 = vadd.f32 %v7097, 0.001143296
        %v7099 = vmul.f32 %v7085, %v7098
        %v7100 = vadd.f32 %v7099, 0.014752088
        %v7101 = vmul.f32 %v7085, %v7100
        %v7102 = vadd.f32 %v7101, 0.112945676
        %v7103 = vmul.f32 %v7085, %v7102
        %v7104 = vadd.f32 %v7103, 0.4994258
        %v7105 = vmul.f32 %v7085, %v7104
        %v7106 = vadd.f32 %v7105, 1.0
        %v7107 = vrcp.pop %v7106
        %v7108 = vmul.f32 %v7106, %v7107
        %v7109 = vsub.f32 1.0, %v7108
        %v7110 = vmul.f32 %v7107, %v7109
        %v7111 = vadd.f32 %v7107, %v7110
        %vm7112 = vweird.f32 %v7106
        %vm7113 = vweird.f32 %v7107
        %vm7114 = vmor %vm7112, %vm7113
        %v7115 = vsel %vm7114, %v7107, %v7111
        %v7116 = vand.u32 2147483647, %v7106
        %vm7117 = vcmp.eq.f32.partialorder %v7116, 8.507059e+37
        %v7118 = vand.u32 %v7106, 2147483648
        %v7119 = vor.u32 1.1754944e-38, %v7118
        %v7120 = vsel %vm7117, %v7119, %v7115
        %v7121 = vmul.f32 %v7096, %v7120
        %v7122 = vmin.f32 %v7121, 1.0
        %v7123 = vmax.f32 %v7122, -1.0
        %v7124 = vmul.f32 %v638, %v638
        %v7125 = vmin.f32 16.0, %v7124
        %v7126 = vmul.f32 %v7125, 2.1237322e-06
        %v7127 = vadd.f32 %v7126, 0.00028619796
        %v7128 = vmul.f32 %v7125, %v7127
        %v7129 = vadd.f32 %v7128, 0.0036580483
        %v7130 = vmul.f32 %v7125, %v7129
        %v7131 = vadd.f32 %v7130, 0.05243302
        %v7132 = vmul.f32 %v7125, %v7131
        %v7133 = vadd.f32 %v7132, 0.18741608
        %v7134 = vmul.f32 %v7125, %v7133
        %v7135 = vadd.f32 %v7134, 1.1283791
        %v7136 = vmul.f32 %v638, %v7135
        %v7137 = vmul.f32 %v7125, 3.8918573e-05
        %v7138 = vadd.f32 %v7137, 0.001143296
        %v7139 = vmul.f32 %v7125, %v7138
        %v7140 = vadd.f32 %v7139, 0.014752088
        %v7141 = vmul.f32 %v7125, %v7140
        %v7142 = vadd.f32 %v7141, 0.112945676
        %v7143 = vmul.f32 %v7125, %v7142
        %v7144 = vadd.f32 %v7143, 0.4994258
        %v7145 = vmul.f32 %v7125, %v7144
        %v7146 = vadd.f32 %v7145, 1.0
        %v7147 = vrcp.pop %v7146
        %v7148 = vmul.f32 %v7146, %v7147
        %v7149 = vsub.f32 1.0, %v7148
        %v7150 = vmul.f32 %v7147, %v7149
        %v7151 = vadd.f32 %v7147, %v7150
        %vm7152 = vweird.f32 %v7146
        %vm7153 = vweird.f32 %v7147
        %vm7154 = vmor %vm7152, %vm7153
        %v7155 = vsel %vm7154, %v7147, %v7151
        %v7156 = vand.u32 2147483647, %v7146
        %vm7157 = vcmp.eq.f32.partialorder %v7156, 8.507059e+37
        %v7158 = vand.u32 %v7146, 2147483648
        %v7159 = vor.u32 1.1754944e-38, %v7158
        %v7160 = vsel %vm7157, %v7159, %v7155
        %v7161 = vmul.f32 %v7136, %v7160
        %v7162 = vmin.f32 %v7161, 1.0
        %v7163 = vmax.f32 %v7162, -1.0
        %v7164 = vmul.f32 %v639, %v639
        %v7165 = vmin.f32 16.0, %v7164
        %v7166 = vmul.f32 %v7165, 2.1237322e-06
        %v7167 = vadd.f32 %v7166, 0.00028619796
        %v7168 = vmul.f32 %v7165, %v7167
        %v7169 = vadd.f32 %v7168, 0.0036580483
        %v7170 = vmul.f32 %v7165, %v7169
        %v7171 = vadd.f32 %v7170, 0.05243302
        %v7172 = vmul.f32 %v7165, %v7171
        %v7173 = vadd.f32 %v7172, 0.18741608
        %v7174 = vmul.f32 %v7165, %v7173
        %v7175 = vadd.f32 %v7174, 1.1283791
        %v7176 = vmul.f32 %v639, %v7175
        %v7177 = vmul.f32 %v7165, 3.8918573e-05
        %v7178 = vadd.f32 %v7177, 0.001143296
        %v7179 = vmul.f32 %v7165, %v7178
        %v7180 = vadd.f32 %v7179, 0.014752088
        %v7181 = vmul.f32 %v7165, %v7180
        %v7182 = vadd.f32 %v7181, 0.112945676
        %v7183 = vmul.f32 %v7165, %v7182
        %v7184 = vadd.f32 %v7183, 0.4994258
        %v7185 = vmul.f32 %v7165, %v7184
        %v7186 = vadd.f32 %v7185, 1.0
        %v7187 = vrcp.pop %v7186
        %v7188 = vmul.f32 %v7186, %v7187
        %v7189 = vsub.f32 1.0, %v7188
        %v7190 = vmul.f32 %v7187, %v7189
        %v7191 = vadd.f32 %v7187, %v7190
        %vm7192 = vweird.f32 %v7186
        %vm7193 = vweird.f32 %v7187
        %vm7194 = vmor %vm7192, %vm7193
        %v7195 = vsel %vm7194, %v7187, %v7191
        %v7196 = vand.u32 2147483647, %v7186
        %vm7197 = vcmp.eq.f32.partialorder %v7196, 8.507059e+37
        %v7198 = vand.u32 %v7186, 2147483648
        %v7199 = vor.u32 1.1754944e-38, %v7198
        %v7200 = vsel %vm7197, %v7199, %v7195
        %v7201 = vmul.f32 %v7176, %v7200
        %v7202 = vmin.f32 %v7201, 1.0
        %v7203 = vmax.f32 %v7202, -1.0
        %v7204 = vmul.f32 %v640, %v640
        %v7205 = vmin.f32 16.0, %v7204
        %v7206 = vmul.f32 %v7205, 2.1237322e-06
        %v7207 = vadd.f32 %v7206, 0.00028619796
        %v7208 = vmul.f32 %v7205, %v7207
        %v7209 = vadd.f32 %v7208, 0.0036580483
        %v7210 = vmul.f32 %v7205, %v7209
        %v7211 = vadd.f32 %v7210, 0.05243302
        %v7212 = vmul.f32 %v7205, %v7211
        %v7213 = vadd.f32 %v7212, 0.18741608
        %v7214 = vmul.f32 %v7205, %v7213
        %v7215 = vadd.f32 %v7214, 1.1283791
        %v7216 = vmul.f32 %v640, %v7215
        %v7217 = vmul.f32 %v7205, 3.8918573e-05
        %v7218 = vadd.f32 %v7217, 0.001143296
        %v7219 = vmul.f32 %v7205, %v7218
        %v7220 = vadd.f32 %v7219, 0.014752088
        %v7221 = vmul.f32 %v7205, %v7220
        %v7222 = vadd.f32 %v7221, 0.112945676
        %v7223 = vmul.f32 %v7205, %v7222
        %v7224 = vadd.f32 %v7223, 0.4994258
        %v7225 = vmul.f32 %v7205, %v7224
        %v7226 = vadd.f32 %v7225, 1.0
        %v7227 = vrcp.pop %v7226
        %v7228 = vmul.f32 %v7226, %v7227
        %v7229 = vsub.f32 1.0, %v7228
        %v7230 = vmul.f32 %v7227, %v7229
        %v7231 = vadd.f32 %v7227, %v7230
        %vm7232 = vweird.f32 %v7226
        %vm7233 = vweird.f32 %v7227
        %vm7234 = vmor %vm7232, %vm7233
        %v7235 = vsel %vm7234, %v7227, %v7231
        %v7236 = vand.u32 2147483647, %v7226
        %vm7237 = vcmp.eq.f32.partialorder %v7236, 8.507059e+37
        %v7238 = vand.u32 %v7226, 2147483648
        %v7239 = vor.u32 1.1754944e-38, %v7238
        %v7240 = vsel %vm7237, %v7239, %v7235
        %v7241 = vmul.f32 %v7216, %v7240
        %v7242 = vmin.f32 %v7241, 1.0
        %v7243 = vmax.f32 %v7242, -1.0
        %v7244 = vmul.f32 %v641, %v641
        %v7245 = vmin.f32 16.0, %v7244
        %v7246 = vmul.f32 %v7245, 2.1237322e-06
        %v7247 = vadd.f32 %v7246, 0.00028619796
        %v7248 = vmul.f32 %v7245, %v7247
        %v7249 = vadd.f32 %v7248, 0.0036580483
        %v7250 = vmul.f32 %v7245, %v7249
        %v7251 = vadd.f32 %v7250, 0.05243302
        %v7252 = vmul.f32 %v7245, %v7251
        %v7253 = vadd.f32 %v7252, 0.18741608
        %v7254 = vmul.f32 %v7245, %v7253
        %v7255 = vadd.f32 %v7254, 1.1283791
        %v7256 = vmul.f32 %v641, %v7255
        %v7257 = vmul.f32 %v7245, 3.8918573e-05
        %v7258 = vadd.f32 %v7257, 0.001143296
        %v7259 = vmul.f32 %v7245, %v7258
        %v7260 = vadd.f32 %v7259, 0.014752088
        %v7261 = vmul.f32 %v7245, %v7260
        %v7262 = vadd.f32 %v7261, 0.112945676
        %v7263 = vmul.f32 %v7245, %v7262
        %v7264 = vadd.f32 %v7263, 0.4994258
        %v7265 = vmul.f32 %v7245, %v7264
        %v7266 = vadd.f32 %v7265, 1.0
        %v7267 = vrcp.pop %v7266
        %v7268 = vmul.f32 %v7266, %v7267
        %v7269 = vsub.f32 1.0, %v7268
        %v7270 = vmul.f32 %v7267, %v7269
        %v7271 = vadd.f32 %v7267, %v7270
        %vm7272 = vweird.f32 %v7266
        %vm7273 = vweird.f32 %v7267
        %vm7274 = vmor %vm7272, %vm7273
        %v7275 = vsel %vm7274, %v7267, %v7271
        %v7276 = vand.u32 2147483647, %v7266
        %vm7277 = vcmp.eq.f32.partialorder %v7276, 8.507059e+37
        %v7278 = vand.u32 %v7266, 2147483648
        %v7279 = vor.u32 1.1754944e-38, %v7278
        %v7280 = vsel %vm7277, %v7279, %v7275
        %v7281 = vmul.f32 %v7256, %v7280
        %v7282 = vmin.f32 %v7281, 1.0
        %v7283 = vmax.f32 %v7282, -1.0
        %v7284 = vmul.f32 %v642, %v642
        %v7285 = vmin.f32 16.0, %v7284
        %v7286 = vmul.f32 %v7285, 2.1237322e-06
        %v7287 = vadd.f32 %v7286, 0.00028619796
        %v7288 = vmul.f32 %v7285, %v7287
        %v7289 = vadd.f32 %v7288, 0.0036580483
        %v7290 = vmul.f32 %v7285, %v7289
        %v7291 = vadd.f32 %v7290, 0.05243302
        %v7292 = vmul.f32 %v7285, %v7291
        %v7293 = vadd.f32 %v7292, 0.18741608
        %v7294 = vmul.f32 %v7285, %v7293
        %v7295 = vadd.f32 %v7294, 1.1283791
        %v7296 = vmul.f32 %v642, %v7295
        %v7297 = vmul.f32 %v7285, 3.8918573e-05
        %v7298 = vadd.f32 %v7297, 0.001143296
        %v7299 = vmul.f32 %v7285, %v7298
        %v7300 = vadd.f32 %v7299, 0.014752088
        %v7301 = vmul.f32 %v7285, %v7300
        %v7302 = vadd.f32 %v7301, 0.112945676
        %v7303 = vmul.f32 %v7285, %v7302
        %v7304 = vadd.f32 %v7303, 0.4994258
        %v7305 = vmul.f32 %v7285, %v7304
        %v7306 = vadd.f32 %v7305, 1.0
        %v7307 = vrcp.pop %v7306
        %v7308 = vmul.f32 %v7306, %v7307
        %v7309 = vsub.f32 1.0, %v7308
        %v7310 = vmul.f32 %v7307, %v7309
        %v7311 = vadd.f32 %v7307, %v7310
        %vm7312 = vweird.f32 %v7306
        %vm7313 = vweird.f32 %v7307
        %vm7314 = vmor %vm7312, %vm7313
        %v7315 = vsel %vm7314, %v7307, %v7311
        %v7316 = vand.u32 2147483647, %v7306
        %vm7317 = vcmp.eq.f32.partialorder %v7316, 8.507059e+37
        %v7318 = vand.u32 %v7306, 2147483648
        %v7319 = vor.u32 1.1754944e-38, %v7318
        %v7320 = vsel %vm7317, %v7319, %v7315
        %v7321 = vmul.f32 %v7296, %v7320
        %v7322 = vmin.f32 %v7321, 1.0
        %v7323 = vmax.f32 %v7322, -1.0
        %v7324 = vmul.f32 %v643, %v643
        %v7325 = vmin.f32 16.0, %v7324
        %v7326 = vmul.f32 %v7325, 2.1237322e-06
        %v7327 = vadd.f32 %v7326, 0.00028619796
        %v7328 = vmul.f32 %v7325, %v7327
        %v7329 = vadd.f32 %v7328, 0.0036580483
        %v7330 = vmul.f32 %v7325, %v7329
        %v7331 = vadd.f32 %v7330, 0.05243302
        %v7332 = vmul.f32 %v7325, %v7331
        %v7333 = vadd.f32 %v7332, 0.18741608
        %v7334 = vmul.f32 %v7325, %v7333
        %v7335 = vadd.f32 %v7334, 1.1283791
        %v7336 = vmul.f32 %v643, %v7335
        %v7337 = vmul.f32 %v7325, 3.8918573e-05
        %v7338 = vadd.f32 %v7337, 0.001143296
        %v7339 = vmul.f32 %v7325, %v7338
        %v7340 = vadd.f32 %v7339, 0.014752088
        %v7341 = vmul.f32 %v7325, %v7340
        %v7342 = vadd.f32 %v7341, 0.112945676
        %v7343 = vmul.f32 %v7325, %v7342
        %v7344 = vadd.f32 %v7343, 0.4994258
        %v7345 = vmul.f32 %v7325, %v7344
        %v7346 = vadd.f32 %v7345, 1.0
        %v7347 = vrcp.pop %v7346
        %v7348 = vmul.f32 %v7346, %v7347
        %v7349 = vsub.f32 1.0, %v7348
        %v7350 = vmul.f32 %v7347, %v7349
        %v7351 = vadd.f32 %v7347, %v7350
        %vm7352 = vweird.f32 %v7346
        %vm7353 = vweird.f32 %v7347
        %vm7354 = vmor %vm7352, %vm7353
        %v7355 = vsel %vm7354, %v7347, %v7351
        %v7356 = vand.u32 2147483647, %v7346
        %vm7357 = vcmp.eq.f32.partialorder %v7356, 8.507059e+37
        %v7358 = vand.u32 %v7346, 2147483648
        %v7359 = vor.u32 1.1754944e-38, %v7358
        %v7360 = vsel %vm7357, %v7359, %v7355
        %v7361 = vmul.f32 %v7336, %v7360
        %v7362 = vmin.f32 %v7361, 1.0
        %v7363 = vmax.f32 %v7362, -1.0
        %v7364 = vadd.f32 %v683, 1.0
        %v7365 = vadd.f32 %v723, 1.0
        %v7366 = vadd.f32 %v763, 1.0
        %v7367 = vadd.f32 %v803, 1.0
        %v7368 = vadd.f32 %v843, 1.0
        %v7369 = vadd.f32 %v883, 1.0
        %v7370 = vadd.f32 %v923, 1.0
        %v7371 = vadd.f32 %v963, 1.0
        %v7372 = vadd.f32 %v1003, 1.0
        %v7373 = vadd.f32 %v1043, 1.0
        %v7374 = vadd.f32 %v1083, 1.0
        %v7375 = vadd.f32 %v1123, 1.0
        %v7376 = vadd.f32 %v1163, 1.0
        %v7377 = vadd.f32 %v1203, 1.0
        %v7378 = vadd.f32 %v1243, 1.0
        %v7379 = vadd.f32 %v1283, 1.0
        %v7380 = vadd.f32 %v1323, 1.0
        %v7381 = vadd.f32 %v1363, 1.0
        %v7382 = vadd.f32 %v1403, 1.0
        %v7383 = vadd.f32 %v1443, 1.0
        %v7384 = vadd.f32 %v1483, 1.0
        %v7385 = vadd.f32 %v1523, 1.0
        %v7386 = vadd.f32 %v1563, 1.0
        %v7387 = vadd.f32 %v1603, 1.0
        %v7388 = vadd.f32 %v1643, 1.0
        %v7389 = vadd.f32 %v1683, 1.0
        %v7390 = vadd.f32 %v1723, 1.0
        %v7391 = vadd.f32 %v1763, 1.0
        %v7392 = vadd.f32 %v1803, 1.0
        %v7393 = vadd.f32 %v1843, 1.0
        %v7394 = vadd.f32 %v1883, 1.0
        %v7395 = vadd.f32 %v1923, 1.0
        %v7396 = vadd.f32 %v1963, 1.0
        %v7397 = vadd.f32 %v2003, 1.0
        %v7398 = vadd.f32 %v2043, 1.0
        %v7399 = vadd.f32 %v2083, 1.0
        %v7400 = vadd.f32 %v2123, 1.0
        %v7401 = vadd.f32 %v2163, 1.0
        %v7402 = vadd.f32 %v2203, 1.0
        %v7403 = vadd.f32 %v2243, 1.0
        %v7404 = vadd.f32 %v2283, 1.0
        %v7405 = vadd.f32 %v2323, 1.0
        %v7406 = vadd.f32 %v2363, 1.0
        %v7407 = vadd.f32 %v2403, 1.0
        %v7408 = vadd.f32 %v2443, 1.0
        %v7409 = vadd.f32 %v2483, 1.0
        %v7410 = vadd.f32 %v2523, 1.0
        %v7411 = vadd.f32 %v2563, 1.0
        %v7412 = vadd.f32 %v2603, 1.0
        %v7413 = vadd.f32 %v2643, 1.0
        %v7414 = vadd.f32 %v2683, 1.0
        %v7415 = vadd.f32 %v2723, 1.0
        %v7416 = vadd.f32 %v2763, 1.0
        %v7417 = vadd.f32 %v2803, 1.0
        %v7418 = vadd.f32 %v2843, 1.0
        %v7419 = vadd.f32 %v2883, 1.0
        %v7420 = vadd.f32 %v2923, 1.0
        %v7421 = vadd.f32 %v2963, 1.0
        %v7422 = vadd.f32 %v3003, 1.0
        %v7423 = vadd.f32 %v3043, 1.0
        %v7424 = vadd.f32 %v3083, 1.0
        %v7425 = vadd.f32 %v3123, 1.0
        %v7426 = vadd.f32 %v3163, 1.0
        %v7427 = vadd.f32 %v3203, 1.0
        %v7428 = vadd.f32 %v3243, 1.0
        %v7429 = vadd.f32 %v3283, 1.0
        %v7430 = vadd.f32 %v3323, 1.0
        %v7431 = vadd.f32 %v3363, 1.0
        %v7432 = vadd.f32 %v3403, 1.0
        %v7433 = vadd.f32 %v3443, 1.0
        %v7434 = vadd.f32 %v3483, 1.0
        %v7435 = vadd.f32 %v3523, 1.0
        %v7436 = vadd.f32 %v3563, 1.0
        %v7437 = vadd.f32 %v3603, 1.0
        %v7438 = vadd.f32 %v3643, 1.0
        %v7439 = vadd.f32 %v3683, 1.0
        %v7440 = vadd.f32 %v3723, 1.0
        %v7441 = vadd.f32 %v3763, 1.0
        %v7442 = vadd.f32 %v3803, 1.0
        %v7443 = vadd.f32 %v3843, 1.0
        %v7444 = vadd.f32 %v3883, 1.0
        %v7445 = vadd.f32 %v3923, 1.0
        %v7446 = vadd.f32 %v3963, 1.0
        %v7447 = vadd.f32 %v4003, 1.0
        %v7448 = vadd.f32 %v4043, 1.0
        %v7449 = vadd.f32 %v4083, 1.0
        %v7450 = vadd.f32 %v4123, 1.0
        %v7451 = vadd.f32 %v4163, 1.0
        %v7452 = vadd.f32 %v4203, 1.0
        %v7453 = vadd.f32 %v4243, 1.0
        %v7454 = vadd.f32 %v4283, 1.0
        %v7455 = vadd.f32 %v4323, 1.0
        %v7456 = vadd.f32 %v4363, 1.0
        %v7457 = vadd.f32 %v4403, 1.0
        %v7458 = vadd.f32 %v4443, 1.0
        %v7459 = vadd.f32 %v4483, 1.0
        %v7460 = vadd.f32 %v4523, 1.0
        %v7461 = vadd.f32 %v4563, 1.0
        %v7462 = vadd.f32 %v4603, 1.0
        %v7463 = vadd.f32 %v4643, 1.0
        %v7464 = vadd.f32 %v4683, 1.0
        %v7465 = vadd.f32 %v4723, 1.0
        %v7466 = vadd.f32 %v4763, 1.0
        %v7467 = vadd.f32 %v4803, 1.0
        %v7468 = vadd.f32 %v4843, 1.0
        %v7469 = vadd.f32 %v4883, 1.0
        %v7470 = vadd.f32 %v4923, 1.0
        %v7471 = vadd.f32 %v4963, 1.0
        %v7472 = vadd.f32 %v5003, 1.0
        %v7473 = vadd.f32 %v5043, 1.0
        %v7474 = vadd.f32 %v5083, 1.0
        %v7475 = vadd.f32 %v5123, 1.0
        %v7476 = vadd.f32 %v5163, 1.0
        %v7477 = vadd.f32 %v5203, 1.0
        %v7478 = vadd.f32 %v5243, 1.0
        %v7479 = vadd.f32 %v5283, 1.0
        %v7480 = vadd.f32 %v5323, 1.0
        %v7481 = vadd.f32 %v5363, 1.0
        %v7482 = vadd.f32 %v5403, 1.0
        %v7483 = vadd.f32 %v5443, 1.0
        %v7484 = vadd.f32 %v5483, 1.0
        %v7485 = vadd.f32 %v5523, 1.0
        %v7486 = vadd.f32 %v5563, 1.0
        %v7487 = vadd.f32 %v5603, 1.0
        %v7488 = vadd.f32 %v5643, 1.0
        %v7489 = vadd.f32 %v5683, 1.0
        %v7490 = vadd.f32 %v5723, 1.0
        %v7491 = vadd.f32 %v5763, 1.0
        %v7492 = vadd.f32 %v5803, 1.0
        %v7493 = vadd.f32 %v5843, 1.0
        %v7494 = vadd.f32 %v5883, 1.0
        %v7495 = vadd.f32 %v5923, 1.0
        %v7496 = vadd.f32 %v5963, 1.0
        %v7497 = vadd.f32 %v6003, 1.0
        %v7498 = vadd.f32 %v6043, 1.0
        %v7499 = vadd.f32 %v6083, 1.0
        %v7500 = vadd.f32 %v6123, 1.0
        %v7501 = vadd.f32 %v6163, 1.0
        %v7502 = vadd.f32 %v6203, 1.0
        %v7503 = vadd.f32 %v6243, 1.0
        %v7504 = vadd.f32 %v6283, 1.0
        %v7505 = vadd.f32 %v6323, 1.0
        %v7506 = vadd.f32 %v6363, 1.0
        %v7507 = vadd.f32 %v6403, 1.0
        %v7508 = vadd.f32 %v6443, 1.0
        %v7509 = vadd.f32 %v6483, 1.0
        %v7510 = vadd.f32 %v6523, 1.0
        %v7511 = vadd.f32 %v6563, 1.0
        %v7512 = vadd.f32 %v6603, 1.0
        %v7513 = vadd.f32 %v6643, 1.0
        %v7514 = vadd.f32 %v6683, 1.0
        %v7515 = vadd.f32 %v6723, 1.0
        %v7516 = vadd.f32 %v6763, 1.0
        %v7517 = vadd.f32 %v6803, 1.0
        %v7518 = vadd.f32 %v6843, 1.0
        %v7519 = vadd.f32 %v6883, 1.0
        %v7520 = vadd.f32 %v6923, 1.0
        %v7521 = vadd.f32 %v6963, 1.0
        %v7522 = vadd.f32 %v7003, 1.0
        %v7523 = vadd.f32 %v7043, 1.0
        %v7524 = vadd.f32 %v7083, 1.0
        %v7525 = vadd.f32 %v7123, 1.0
        %v7526 = vadd.f32 %v7163, 1.0
        %v7527 = vadd.f32 %v7203, 1.0
        %v7528 = vadd.f32 %v7243, 1.0
        %v7529 = vadd.f32 %v7283, 1.0
        %v7530 = vadd.f32 %v7323, 1.0
        %v7531 = vadd.f32 %v7363, 1.0
        %v7532 = vmul.f32 %v308, %v7364
        %v7533 = vmul.f32 %v309, %v7365
        %v7534 = vmul.f32 %v310, %v7366
        %v7535 = vmul.f32 %v311, %v7367
        %v7536 = vmul.f32 %v312, %v7368
        %v7537 = vmul.f32 %v313, %v7369
        %v7538 = vmul.f32 %v314, %v7370
        %v7539 = vmul.f32 %v315, %v7371
        %v7540 = vmul.f32 %v316, %v7372
        %v7541 = vmul.f32 %v317, %v7373
        %v7542 = vmul.f32 %v318, %v7374
        %v7543 = vmul.f32 %v319, %v7375
        %v7544 = vmul.f32 %v320, %v7376
        %v7545 = vmul.f32 %v321, %v7377
        %v7546 = vmul.f32 %v322, %v7378
        %v7547 = vmul.f32 %v323, %v7379
        %v7548 = vmul.f32 %v324, %v7380
        %v7549 = vmul.f32 %v325, %v7381
        %v7550 = vmul.f32 %v326, %v7382
        %v7551 = vmul.f32 %v327, %v7383
        %v7552 = vmul.f32 %v328, %v7384
        %v7553 = vmul.f32 %v329, %v7385
        %v7554 = vmul.f32 %v330, %v7386
        %v7555 = vmul.f32 %v331, %v7387
        %v7556 = vmul.f32 %v332, %v7388
        %v7557 = vmul.f32 %v333, %v7389
        %v7558 = vmul.f32 %v334, %v7390
        %v7559 = vmul.f32 %v335, %v7391
        %v7560 = vmul.f32 %v336, %v7392
        %v7561 = vmul.f32 %v337, %v7393
        %v7562 = vmul.f32 %v338, %v7394
        %v7563 = vmul.f32 %v339, %v7395
        %v7564 = vmul.f32 %v340, %v7396
        %v7565 = vmul.f32 %v341, %v7397
        %v7566 = vmul.f32 %v342, %v7398
        %v7567 = vmul.f32 %v343, %v7399
        %v7568 = vmul.f32 %v344, %v7400
        %v7569 = vmul.f32 %v345, %v7401
        %v7570 = vmul.f32 %v346, %v7402
        %v7571 = vmul.f32 %v347, %v7403
        %v7572 = vmul.f32 %v348, %v7404
        %v7573 = vmul.f32 %v349, %v7405
        %v7574 = vmul.f32 %v350, %v7406
        %v7575 = vmul.f32 %v351, %v7407
        %v7576 = vmul.f32 %v352, %v7408
        %v7577 = vmul.f32 %v353, %v7409
        %v7578 = vmul.f32 %v354, %v7410
        %v7579 = vmul.f32 %v355, %v7411
        %v7580 = vmul.f32 %v356, %v7412
        %v7581 = vmul.f32 %v357, %v7413
        %v7582 = vmul.f32 %v358, %v7414
        %v7583 = vmul.f32 %v359, %v7415
        %v7584 = vmul.f32 %v360, %v7416
        %v7585 = vmul.f32 %v361, %v7417
        %v7586 = vmul.f32 %v362, %v7418
        %v7587 = vmul.f32 %v363, %v7419
        %v7588 = vmul.f32 %v364, %v7420
        %v7589 = vmul.f32 %v365, %v7421
        %v7590 = vmul.f32 %v366, %v7422
        %v7591 = vmul.f32 %v367, %v7423
        %v7592 = vmul.f32 %v368, %v7424
        %v7593 = vmul.f32 %v369, %v7425
        %v7594 = vmul.f32 %v370, %v7426
        %v7595 = vmul.f32 %v371, %v7427
        %v7596 = vmul.f32 %v372, %v7428
        %v7597 = vmul.f32 %v373, %v7429
        %v7598 = vmul.f32 %v374, %v7430
        %v7599 = vmul.f32 %v375, %v7431
        %v7600 = vmul.f32 %v376, %v7432
        %v7601 = vmul.f32 %v377, %v7433
        %v7602 = vmul.f32 %v378, %v7434
        %v7603 = vmul.f32 %v379, %v7435
        %v7604 = vmul.f32 %v380, %v7436
        %v7605 = vmul.f32 %v381, %v7437
        %v7606 = vmul.f32 %v382, %v7438
        %v7607 = vmul.f32 %v383, %v7439
        %v7608 = vmul.f32 %v384, %v7440
        %v7609 = vmul.f32 %v385, %v7441
        %v7610 = vmul.f32 %v386, %v7442
        %v7611 = vmul.f32 %v387, %v7443
        %v7612 = vmul.f32 %v388, %v7444
        %v7613 = vmul.f32 %v389, %v7445
        %v7614 = vmul.f32 %v390, %v7446
        %v7615 = vmul.f32 %v391, %v7447
        %v7616 = vmul.f32 %v392, %v7448
        %v7617 = vmul.f32 %v393, %v7449
        %v7618 = vmul.f32 %v394, %v7450
        %v7619 = vmul.f32 %v395, %v7451
        %v7620 = vmul.f32 %v396, %v7452
        %v7621 = vmul.f32 %v397, %v7453
        %v7622 = vmul.f32 %v398, %v7454
        %v7623 = vmul.f32 %v399, %v7455
        %v7624 = vmul.f32 %v400, %v7456
        %v7625 = vmul.f32 %v401, %v7457
        %v7626 = vmul.f32 %v402, %v7458
        %v7627 = vmul.f32 %v403, %v7459
        %v7628 = vmul.f32 %v404, %v7460
        %v7629 = vmul.f32 %v405, %v7461
        %v7630 = vmul.f32 %v406, %v7462
        %v7631 = vmul.f32 %v407, %v7463
        %v7632 = vmul.f32 %v408, %v7464
        %v7633 = vmul.f32 %v409, %v7465
        %v7634 = vmul.f32 %v410, %v7466
        %v7635 = vmul.f32 %v411, %v7467
        %v7636 = vmul.f32 %v412, %v7468
        %v7637 = vmul.f32 %v413, %v7469
        %v7638 = vmul.f32 %v414, %v7470
        %v7639 = vmul.f32 %v415, %v7471
        %v7640 = vmul.f32 %v416, %v7472
        %v7641 = vmul.f32 %v417, %v7473
        %v7642 = vmul.f32 %v418, %v7474
        %v7643 = vmul.f32 %v419, %v7475
        %v7644 = vmul.f32 %v420, %v7476
        %v7645 = vmul.f32 %v421, %v7477
        %v7646 = vmul.f32 %v422, %v7478
        %v7647 = vmul.f32 %v423, %v7479
        %v7648 = vmul.f32 %v424, %v7480
        %v7649 = vmul.f32 %v425, %v7481
        %v7650 = vmul.f32 %v426, %v7482
        %v7651 = vmul.f32 %v427, %v7483
        %v7652 = vmul.f32 %v428, %v7484
        %v7653 = vmul.f32 %v429, %v7485
        %v7654 = vmul.f32 %v430, %v7486
        %v7655 = vmul.f32 %v431, %v7487
        %v7656 = vmul.f32 %v432, %v7488
        %v7657 = vmul.f32 %v433, %v7489
        %v7658 = vmul.f32 %v434, %v7490
        %v7659 = vmul.f32 %v435, %v7491
        %v7660 = vmul.f32 %v436, %v7492
        %v7661 = vmul.f32 %v437, %v7493
        %v7662 = vmul.f32 %v438, %v7494
        %v7663 = vmul.f32 %v439, %v7495
        %v7664 = vmul.f32 %v440, %v7496
        %v7665 = vmul.f32 %v441, %v7497
        %v7666 = vmul.f32 %v442, %v7498
        %v7667 = vmul.f32 %v443, %v7499
        %v7668 = vmul.f32 %v444, %v7500
        %v7669 = vmul.f32 %v445, %v7501
        %v7670 = vmul.f32 %v446, %v7502
        %v7671 = vmul.f32 %v447, %v7503
        %v7672 = vmul.f32 %v448, %v7504
        %v7673 = vmul.f32 %v449, %v7505
        %v7674 = vmul.f32 %v450, %v7506
        %v7675 = vmul.f32 %v451, %v7507
        %v7676 = vmul.f32 %v452, %v7508
        %v7677 = vmul.f32 %v453, %v7509
        %v7678 = vmul.f32 %v454, %v7510
        %v7679 = vmul.f32 %v455, %v7511
        %v7680 = vmul.f32 %v456, %v7512
        %v7681 = vmul.f32 %v457, %v7513
        %v7682 = vmul.f32 %v458, %v7514
        %v7683 = vmul.f32 %v459, %v7515
        %v7684 = vmul.f32 %v460, %v7516
        %v7685 = vmul.f32 %v461, %v7517
        %v7686 = vmul.f32 %v462, %v7518
        %v7687 = vmul.f32 %v463, %v7519
        %v7688 = vmul.f32 %v464, %v7520
        %v7689 = vmul.f32 %v465, %v7521
        %v7690 = vmul.f32 %v466, %v7522
        %v7691 = vmul.f32 %v467, %v7523
        %v7692 = vmul.f32 %v468, %v7524
        %v7693 = vmul.f32 %v469, %v7525
        %v7694 = vmul.f32 %v470, %v7526
        %v7695 = vmul.f32 %v471, %v7527
        %v7696 = vmul.f32 %v472, %v7528
        %v7697 = vmul.f32 %v473, %v7529
        %v7698 = vmul.f32 %v474, %v7530
        %v7699 = vmul.f32 %v475, %v7531
        %7700 = vst [vmem:[%s137] sm:$0xff] %v7532
        %7701 = vst [vmem:[%s137 + $0x8] sm:$0xff] %v7533
        %7702 = vst [vmem:[%s137 + $0x10] sm:$0xff] %v7534
        %7703 = vst [vmem:[%s137 + $0x18] sm:$0xff] %v7535
        %7704 = vst [vmem:[%s137 + $0x20] sm:$0xff] %v7536
        %7705 = vst [vmem:[%s137 + $0x28] sm:$0xff] %v7537
        %7706 = vst [vmem:[%s137 + $0x30] sm:$0xff] %v7538
        %7707 = vst [vmem:[%s137 + $0x38] sm:$0xff] %v7539
        %7708 = vst [vmem:[%s137 + $0x40] sm:$0xff] %v7540
        %7709 = vst [vmem:[%s137 + $0x48] sm:$0xff] %v7541
        %7710 = vst [vmem:[%s137 + $0x50] sm:$0xff] %v7542
        %7711 = vst [vmem:[%s137 + $0x58] sm:$0xff] %v7543
        %7712 = vst [vmem:[%s137 + $0x60] sm:$0xff] %v7544
        %7713 = vst [vmem:[%s137 + $0x68] sm:$0xff] %v7545
        %7714 = vst [vmem:[%s137 + $0x70] sm:$0xff] %v7546
        %7715 = vst [vmem:[%s137 + $0x78] sm:$0xff] %v7547
        %7716 = vst [vmem:[%s137 + $0x80] sm:$0xff] %v7548
        %7717 = vst [vmem:[%s137 + $0x88] sm:$0xff] %v7549
        %7718 = vst [vmem:[%s137 + $0x90] sm:$0xff] %v7550
        %7719 = vst [vmem:[%s137 + $0x98] sm:$0xff] %v7551
        %7720 = vst [vmem:[%s137 + $0xa0] sm:$0xff] %v7552
        %7721 = vst [vmem:[%s137 + $0xa8] sm:$0xff] %v7553
        %7722 = vst [vmem:[%s137 + $0xb0] sm:$0xff] %v7554
        %7723 = vst [vmem:[%s137 + $0xb8] sm:$0xff] %v7555
        %7724 = vst [vmem:[%s137 + $0xc0] sm:$0xff] %v7556
        %7725 = vst [vmem:[%s137 + $0xc8] sm:$0xff] %v7557
        %7726 = vst [vmem:[%s137 + $0xd0] sm:$0xff] %v7558
        %7727 = vst [vmem:[%s137 + $0xd8] sm:$0xff] %v7559
        %7728 = vst [vmem:[%s137 + $0xe0] sm:$0xff] %v7560
        %7729 = vst [vmem:[%s137 + $0xe8] sm:$0xff] %v7561
        %7730 = vst [vmem:[%s137 + $0xf0] sm:$0xff] %v7562
        %7731 = vst [vmem:[%s137 + $0xf8] sm:$0xff] %v7563
        %7732 = vst [vmem:[%s137 + $0x100] sm:$0xff] %v7564
        %7733 = vst [vmem:[%s137 + $0x108] sm:$0xff] %v7565
        %7734 = vst [vmem:[%s137 + $0x110] sm:$0xff] %v7566
        %7735 = vst [vmem:[%s137 + $0x118] sm:$0xff] %v7567
        %7736 = vst [vmem:[%s137 + $0x120] sm:$0xff] %v7568
        %7737 = vst [vmem:[%s137 + $0x128] sm:$0xff] %v7569
        %7738 = vst [vmem:[%s137 + $0x130] sm:$0xff] %v7570
        %7739 = vst [vmem:[%s137 + $0x138] sm:$0xff] %v7571
        %7740 = vst [vmem:[%s137 + $0x140] sm:$0xff] %v7572
        %7741 = vst [vmem:[%s137 + $0x148] sm:$0xff] %v7573
        %7742 = vst [vmem:[%s137 + $0x150] sm:$0xff] %v7574
        %7743 = vst [vmem:[%s137 + $0x158] sm:$0xff] %v7575
        %7744 = vst [vmem:[%s137 + $0x160] sm:$0xff] %v7576
        %7745 = vst [vmem:[%s137 + $0x168] sm:$0xff] %v7577
        %7746 = vst [vmem:[%s137 + $0x170] sm:$0xff] %v7578
        %7747 = vst [vmem:[%s137 + $0x178] sm:$0xff] %v7579
        %7748 = vst [vmem:[%s137 + $0x180] sm:$0xff] %v7580
        %7749 = vst [vmem:[%s137 + $0x188] sm:$0xff] %v7581
        %7750 = vst [vmem:[%s137 + $0x190] sm:$0xff] %v7582
        %7751 = vst [vmem:[%s137 + $0x198] sm:$0xff] %v7583
        %7752 = vst [vmem:[%s137 + $0x1a0] sm:$0xff] %v7584
        %7753 = vst [vmem:[%s137 + $0x1a8] sm:$0xff] %v7585
        %7754 = vst [vmem:[%s137 + $0x1b0] sm:$0xff] %v7586
        %7755 = vst [vmem:[%s137 + $0x1b8] sm:$0xff] %v7587
        %7756 = vst [vmem:[%s137 + $0x1c0] sm:$0xff] %v7588
        %7757 = vst [vmem:[%s137 + $0x1c8] sm:$0xff] %v7589
        %7758 = vst [vmem:[%s137 + $0x1d0] sm:$0xff] %v7590
        %7759 = vst [vmem:[%s137 + $0x1d8] sm:$0xff] %v7591
        %7760 = vst [vmem:[%s137 + $0x1e0] sm:$0xff] %v7592
        %7761 = vst [vmem:[%s137 + $0x1e8] sm:$0xff] %v7593
        %7762 = vst [vmem:[%s137 + $0x1f0] sm:$0xff] %v7594
        %7763 = vst [vmem:[%s137 + $0x1f8] sm:$0xff] %v7595
        %7764 = vst [vmem:[%s137 + $0x200] sm:$0xff] %v7596
        %7765 = vst [vmem:[%s137 + $0x208] sm:$0xff] %v7597
        %7766 = vst [vmem:[%s137 + $0x210] sm:$0xff] %v7598
        %7767 = vst [vmem:[%s137 + $0x218] sm:$0xff] %v7599
        %7768 = vst [vmem:[%s137 + $0x220] sm:$0xff] %v7600
        %7769 = vst [vmem:[%s137 + $0x228] sm:$0xff] %v7601
        %7770 = vst [vmem:[%s137 + $0x230] sm:$0xff] %v7602
        %7771 = vst [vmem:[%s137 + $0x238] sm:$0xff] %v7603
        %7772 = vst [vmem:[%s137 + $0x240] sm:$0xff] %v7604
        %7773 = vst [vmem:[%s137 + $0x248] sm:$0xff] %v7605
        %7774 = vst [vmem:[%s137 + $0x250] sm:$0xff] %v7606
        %7775 = vst [vmem:[%s137 + $0x258] sm:$0xff] %v7607
        %7776 = vst [vmem:[%s137 + $0x260] sm:$0xff] %v7608
        %7777 = vst [vmem:[%s137 + $0x268] sm:$0xff] %v7609
        %7778 = vst [vmem:[%s137 + $0x270] sm:$0xff] %v7610
        %7779 = vst [vmem:[%s137 + $0x278] sm:$0xff] %v7611
        %7780 = vst [vmem:[%s137 + $0x280] sm:$0xff] %v7612
        %7781 = vst [vmem:[%s137 + $0x288] sm:$0xff] %v7613
        %7782 = vst [vmem:[%s137 + $0x290] sm:$0xff] %v7614
        %7783 = vst [vmem:[%s137 + $0x298] sm:$0xff] %v7615
        %7784 = vst [vmem:[%s137 + $0x2a0] sm:$0xff] %v7616
        %7785 = vst [vmem:[%s137 + $0x2a8] sm:$0xff] %v7617
        %7786 = vst [vmem:[%s137 + $0x2b0] sm:$0xff] %v7618
        %7787 = vst [vmem:[%s137 + $0x2b8] sm:$0xff] %v7619
        %7788 = vst [vmem:[%s137 + $0x2c0] sm:$0xff] %v7620
        %7789 = vst [vmem:[%s137 + $0x2c8] sm:$0xff] %v7621
        %7790 = vst [vmem:[%s137 + $0x2d0] sm:$0xff] %v7622
        %7791 = vst [vmem:[%s137 + $0x2d8] sm:$0xff] %v7623
        %7792 = vst [vmem:[%s137 + $0x2e0] sm:$0xff] %v7624
        %7793 = vst [vmem:[%s137 + $0x2e8] sm:$0xff] %v7625
        %7794 = vst [vmem:[%s137 + $0x2f0] sm:$0xff] %v7626
        %7795 = vst [vmem:[%s137 + $0x2f8] sm:$0xff] %v7627
        %7796 = vst [vmem:[%s137 + $0x300] sm:$0xff] %v7628
        %7797 = vst [vmem:[%s137 + $0x308] sm:$0xff] %v7629
        %7798 = vst [vmem:[%s137 + $0x310] sm:$0xff] %v7630
        %7799 = vst [vmem:[%s137 + $0x318] sm:$0xff] %v7631
        %7800 = vst [vmem:[%s137 + $0x320] sm:$0xff] %v7632
        %7801 = vst [vmem:[%s137 + $0x328] sm:$0xff] %v7633
        %7802 = vst [vmem:[%s137 + $0x330] sm:$0xff] %v7634
        %7803 = vst [vmem:[%s137 + $0x338] sm:$0xff] %v7635
        %7804 = vst [vmem:[%s137 + $0x340] sm:$0xff] %v7636
        %7805 = vst [vmem:[%s137 + $0x348] sm:$0xff] %v7637
        %7806 = vst [vmem:[%s137 + $0x350] sm:$0xff] %v7638
        %7807 = vst [vmem:[%s137 + $0x358] sm:$0xff] %v7639
        %7808 = vst [vmem:[%s137 + $0x360] sm:$0xff] %v7640
        %7809 = vst [vmem:[%s137 + $0x368] sm:$0xff] %v7641
        %7810 = vst [vmem:[%s137 + $0x370] sm:$0xff] %v7642
        %7811 = vst [vmem:[%s137 + $0x378] sm:$0xff] %v7643
        %7812 = vst [vmem:[%s137 + $0x380] sm:$0xff] %v7644
        %7813 = vst [vmem:[%s137 + $0x388] sm:$0xff] %v7645
        %7814 = vst [vmem:[%s137 + $0x390] sm:$0xff] %v7646
        %7815 = vst [vmem:[%s137 + $0x398] sm:$0xff] %v7647
        %7816 = vst [vmem:[%s137 + $0x3a0] sm:$0xff] %v7648
        %7817 = vst [vmem:[%s137 + $0x3a8] sm:$0xff] %v7649
        %7818 = vst [vmem:[%s137 + $0x3b0] sm:$0xff] %v7650
        %7819 = vst [vmem:[%s137 + $0x3b8] sm:$0xff] %v7651
        %7820 = vst [vmem:[%s137 + $0x3c0] sm:$0xff] %v7652
        %7821 = vst [vmem:[%s137 + $0x3c8] sm:$0xff] %v7653
        %7822 = vst [vmem:[%s137 + $0x3d0] sm:$0xff] %v7654
        %7823 = vst [vmem:[%s137 + $0x3d8] sm:$0xff] %v7655
        %7824 = vst [vmem:[%s137 + $0x3e0] sm:$0xff] %v7656
        %7825 = vst [vmem:[%s137 + $0x3e8] sm:$0xff] %v7657
        %7826 = vst [vmem:[%s137 + $0x3f0] sm:$0xff] %v7658
        %7827 = vst [vmem:[%s137 + $0x3f8] sm:$0xff] %v7659
        %7828 = vst [vmem:[%s137 + $0x400] sm:$0xff] %v7660
        %7829 = vst [vmem:[%s137 + $0x408] sm:$0xff] %v7661
        %7830 = vst [vmem:[%s137 + $0x410] sm:$0xff] %v7662
        %7831 = vst [vmem:[%s137 + $0x418] sm:$0xff] %v7663
        %7832 = vst [vmem:[%s137 + $0x420] sm:$0xff] %v7664
        %7833 = vst [vmem:[%s137 + $0x428] sm:$0xff] %v7665
        %7834 = vst [vmem:[%s137 + $0x430] sm:$0xff] %v7666
        %7835 = vst [vmem:[%s137 + $0x438] sm:$0xff] %v7667
        %7836 = vst [vmem:[%s137 + $0x440] sm:$0xff] %v7668
        %7837 = vst [vmem:[%s137 + $0x448] sm:$0xff] %v7669
        %7838 = vst [vmem:[%s137 + $0x450] sm:$0xff] %v7670
        %7839 = vst [vmem:[%s137 + $0x458] sm:$0xff] %v7671
        %7840 = vst [vmem:[%s137 + $0x460] sm:$0xff] %v7672
        %7841 = vst [vmem:[%s137 + $0x468] sm:$0xff] %v7673
        %7842 = vst [vmem:[%s137 + $0x470] sm:$0xff] %v7674
        %7843 = vst [vmem:[%s137 + $0x478] sm:$0xff] %v7675
        %7844 = vst [vmem:[%s137 + $0x480] sm:$0xff] %v7676
        %7845 = vst [vmem:[%s137 + $0x488] sm:$0xff] %v7677
        %7846 = vst [vmem:[%s137 + $0x490] sm:$0xff] %v7678
        %7847 = vst [vmem:[%s137 + $0x498] sm:$0xff] %v7679
        %7848 = vst [vmem:[%s137 + $0x4a0] sm:$0xff] %v7680
        %7849 = vst [vmem:[%s137 + $0x4a8] sm:$0xff] %v7681
        %7850 = vst [vmem:[%s137 + $0x4b0] sm:$0xff] %v7682
        %7851 = vst [vmem:[%s137 + $0x4b8] sm:$0xff] %v7683
        %7852 = vst [vmem:[%s137 + $0x4c0] sm:$0xff] %v7684
        %7853 = vst [vmem:[%s137 + $0x4c8] sm:$0xff] %v7685
        %7854 = vst [vmem:[%s137 + $0x4d0] sm:$0xff] %v7686
        %7855 = vst [vmem:[%s137 + $0x4d8] sm:$0xff] %v7687
        %7856 = vst [vmem:[%s137 + $0x4e0] sm:$0xff] %v7688
        %7857 = vst [vmem:[%s137 + $0x4e8] sm:$0xff] %v7689
        %7858 = vst [vmem:[%s137 + $0x4f0] sm:$0xff] %v7690
        %7859 = vst [vmem:[%s137 + $0x4f8] sm:$0xff] %v7691
        %7860 = vst [vmem:[%s137 + $0x500] sm:$0xff] %v7692
        %7861 = vst [vmem:[%s137 + $0x508] sm:$0xff] %v7693
        %7862 = vst [vmem:[%s137 + $0x510] sm:$0xff] %v7694
        %7863 = vst [vmem:[%s137 + $0x518] sm:$0xff] %v7695
        %7864 = vst [vmem:[%s137 + $0x520] sm:$0xff] %v7696
        %7865 = vst [vmem:[%s137 + $0x528] sm:$0xff] %v7697
        %7866 = vst [vmem:[%s137 + $0x530] sm:$0xff] %v7698
        %7867 = vst [vmem:[%s137 + $0x538] sm:$0xff] %v7699
        %s7868 = sand.u32 %s52, 1
        %s7869 = scalar_lea.sflag [#allocation4], %s7868
        %s7870 = sand.u32 %s52, 1
        %s7871 = smul.addr %s7870, 1344
        %s7872 = scalar_lea.vmem [#allocation5], %s7871
        // Predicated region
        $region29: #{tpu_custom_call.1} parent=23 // pred_check
          %p7873 = pneg %p62
        $region30: #{tpu_custom_call.1} parent=23 // pred_check_branch
          %7875 = sbr.rel (%p7873) target = $region32
        $region31: #{tpu_custom_call.1} parent=23 // pred_region
          %s7876 = smul.u32 14, %s18
          %7878 = vsyncadd %s7869, 0
          %s7879 = smul.addr %s7876, 12
          %s7880 = smul.addr %s7879, 8
          %s7881 = scalar_lea.hbm %s1, %s7880
          %s7882 = sshll.u32 %s7872, 4
          %s7883 = int_to_ptr.vmem [resolvable:$true] %s7882
          %s7884 = sshll.u32 %s7881, 4
          %s7885 = int_to_ptr.hbm [resolvable:$true] %s7884
          %7890 = dma.vmem_to_hbm [thread:$0]  %s7883, 21504, %s7885, %s7869, 1536, 1536, 96
        $region32: #{tpu_custom_call.1} parent=23 // pred_fallthru
          _
      $region24: #{tpu_custom_call.1} parent=5 // pred_fallthru
        _
      %p7891 = scmp.le.s32.totalorder 2, %s13
      // Predicated region
      $region33: #{tpu_custom_call.1} parent=5 // pred_check
        %p7892 = pneg %p7891
      $region34: #{tpu_custom_call.1} parent=5 // pred_check_branch
        %7894 = sbr.rel (%p7892) target = $region36
      $region35: #{tpu_custom_call.1} parent=5 // pred_region
        %s7895 = ssub.s32 %s13, 2
        // Predicated region
        $region37: #{tpu_custom_call.1} parent=35 // pred_check
          %p7896 = pneg %p68
        $region38: #{tpu_custom_call.1} parent=35 // pred_check_branch
          %7898 = sbr.rel (%p7896) target = $region40
        $region39: #{tpu_custom_call.1} parent=35 // pred_region
          %s7899 = sand.u32 %s53, 1
          %s7900 = scalar_lea.sflag [#allocation4], %s7899
          %s7901 = sand.u32 %s53, 1
          %s7902 = smul.addr %s7901, 1344
          %s7903 = scalar_lea.vmem [#allocation5], %s7902
          %7905 = dma.done %s7900, 21504
        $region40: #{tpu_custom_call.1} parent=35 // pred_fallthru
          _
      $region36: #{tpu_custom_call.1} parent=5 // pred_fallthru
        _
    $region6: #{tpu_custom_call.1} parent=1 // loop_footer
      %s17 = sadd.s32 1, %s13
    $region7: #{tpu_custom_call.1} parent=1 // loop_footer_branch
      %12 = sbr.rel target = $region3
    $region8: #{tpu_custom_call.1} parent=1 // loop_exit
      _
    %7906 = vsyncpa [#allocation3], 1
    %s7907 = scalar_lea.sflag [#allocation3], 1
    %7908 = vsyncpa %s7907, 1
    %7909 = vsyncpa [#allocation4], 1
    %s7910 = scalar_lea.sflag [#allocation4], 1
    %7911 = vsyncpa %s7910, 1

</llo_original>
